<compile_context>
chip_gen: v7x
topology: tpu7x:2x2x1
jax: 0.10.0
libtpu: 0.0.40
codegen_flags: <defaults>
</compile_context>

<pallas_src>
import math

import numpy as np
import jax
import jax.numpy as jnp
from jax.experimental import pallas as pl
from jax.experimental.pallas import tpu as pltpu

_TWO_PI = 2.0 * math.pi
_HALF_PI = 0.5 * math.pi


def _poly_sin(z):
    # Range-reduced polynomial sine (pure VPU: floor / where / mul / add).
    k = jnp.floor(z / _TWO_PI + 0.5)
    r = z - _TWO_PI * k                                   # r in [-pi, pi]
    r = jnp.where(r > _HALF_PI, math.pi - r, r)
    r = jnp.where(r < -_HALF_PI, -math.pi - r, r)         # r in [-pi/2, pi/2]
    r2 = r * r
    return r * (1.0 + r2 * (-1.0 / 6.0 + r2 * (1.0 / 120.0 +
                 r2 * (-1.0 / 5040.0 + r2 * (1.0 / 362880.0)))))


def _kaiser_sinc_lowpass(num_taps=13, cutoff=0.25, beta=8.0):
    c = num_taps // 2
    n = np.arange(num_taps) - c
    h = 2.0 * cutoff * np.sinc(2.0 * cutoff * n) * np.kaiser(num_taps, beta)
    return (h / h.sum()).astype(np.float64)


def _polyphase_taps(f):
    # Decompose 2x up -> FIR(2f) -> (snake) -> FIR(f) -> 2x down into polyphase taps so the
    # whole anti-aliased activation runs at the original rate T (no 2T intermediates).
    F = len(f)
    c = F // 2
    up_even, up_odd, dn_even, dn_odd = [], [], [], []
    for j in range(F):
        if (j - c) % 2 == 0:
            m = (j - c) // 2
            up_even.append((m, 2.0 * float(f[j])))                 # u[2t]   = 2*sum f[c+2m]   x[t+m]
            dn_even.append((m, float(f[j])))                       # d[2t]  += sum   f[c+2m]   s_even[t+m]
        else:
            up_odd.append(((j - c + 1) // 2, 2.0 * float(f[j])))   # u[2t+1] = 2*sum f[c+2m-1] x[t+m]
            dn_odd.append(((j - c - 1) // 2, float(f[j])))         # d[2t]  += sum   f[c+2m+1] s_odd[t+m]
    return up_even, up_odd, dn_even, dn_odd


def _make_amp_block_kernel(C, T, K, dilations, taps, off, n_layers):
    taps_ue, taps_uo, taps_de, taps_do = taps

    def kernel(x_ref, w_ref, p_ref, o_ref, pad_ref):
        # Zero only the halo tiles (interior fills below never touch them), so every shifted
        # read sees zero edge padding without re-zeroing the whole buffer.  `off` is a
        # multiple of 128 and T % 128 == 0, so these stores and every `fill` below are
        # lane-aligned, unmasked vector stores (no vst.msk partial stores).
        pad_ref[:, :off] = jnp.zeros((C, off), jnp.float32)
        pad_ref[:, off + T:] = jnp.zeros((C, off), jnp.float32)

        def fill(val):                       # interior-only, lane-aligned store
            pad_ref[:, off:off + T] = val

        def win(s):                          # zero-padded shifted view: x[:, t+s]
            return pad_ref[:, off + s:off + s + T]

        def fir(tap_list):                   # FIR over current pad_ref contents
            m0, c0 = tap_list[0]
            acc = c0 * win(m0)
            for m, coef in tap_list[1:]:
                acc = acc + coef * win(m)
            return acc

        def snake(z, alpha, inv_beta):       # SnakeBeta: z + sin^2(alpha*z) / beta
            s = _poly_sin(alpha * z)
            return z + (s * s) * inv_beta

        def anti_alias_act(val, alpha, inv_beta):
            # 2x anti-aliased upsample -> SnakeBeta -> 2x anti-aliased downsample (polyphase).
            fill(val)
            u_even = fir(taps_ue)
            u_odd = fir(taps_uo)
            s_even = snake(u_even, alpha, inv_beta)
            s_odd = snake(u_odd, alpha, inv_beta)
            fill(s_even)
            acc = fir(taps_de)
            fill(s_odd)
            return acc + fir(taps_do)

        def conv1d(val, w_stk, bias, dil):
            # 'same' dilated Conv1d as ONE MXU contraction:
            #   y = W_stack (C, K*C) @ [stacked shifted slices] (K*C, T) + bias
            p = dil * (K - 1) // 2
            fill(val)
            xs = jnp.concatenate([win(k * dil - p) for k in range(K)], axis=0)
            return jnp.dot(w_stk, xs, preferred_element_type=jnp.float32) + bias

        x = x_ref[...]                                            # (C, T)
        for l in range(n_layers):
            dil = dilations[l]
            w1 = w_ref[2 * l]                                     # (C, K*C)
            w2 = w_ref[2 * l + 1]
            b1 = p_ref[6 * l + 0]                                 # (C, 1)
            b2 = p_ref[6 * l + 1]
            # Hoist per-channel SnakeBeta params: one exp / reciprocal per activation,
            # turning the C*T divides into broadcast multiplies.
            alpha1 = jnp.exp(p_ref[6 * l + 2])
            inv_b1 = pl.reciprocal(jnp.exp(p_ref[6 * l + 3]) + 1e-9, approx=False)
            alpha2 = jnp.exp(p_ref[6 * l + 4])
            inv_b2 = pl.reciprocal(jnp.exp(p_ref[6 * l + 5]) + 1e-9, approx=False)

            y = anti_alias_act(x, alpha1, inv_b1)
            y = conv1d(y, w1, b1, dil)
            y = anti_alias_act(y, alpha2, inv_b2)
            y = conv1d(y, w2, b2, 1)
            x = x + y                                             # residual

        o_ref[...] = x

    return kernel


def amp_block(x, layer_params, kernel_size, dilations, filt):
    """Fused AMPBlock forward: all layers in a single pallas_call (grid over batch)."""
    B, C, T = x.shape
    K = kernel_size
    L = len(layer_params)
    assert K % 2 == 1, "odd kernel_size required for exact 'same' padding"
    assert T % 128 == 0, "time dim must be lane-dense (multiple of 128)"
    assert len(dilations) == L

    taps = _polyphase_taps(filt)
    maxshift = max(abs(m) for tl in taps for m, _ in tl)
    halo_needed = max([maxshift, K // 2] + [d * (K - 1) // 2 for d in dilations])
    OFF = 128                      # lane-aligned halo: one full lane tile per side
    assert halo_needed <= OFF, f"receptive-field halo {halo_needed} exceeds {OFF}"

    # Pack weights as (2L, C, K*C) with W[co, k*C + ci] = w_torch[co, ci, k] (one MXU
    # contraction per conv), and all per-channel vectors into a single (6L, C, 1) input.
    w_stk, p_stk = [], []
    for p in layer_params:
        for w in (p["w1"], p["w2"]):
            w_stk.append(jnp.transpose(w, (0, 2, 1)).reshape(C, K * C))
        for v in (p["b1"], p["b2"], p["la1"], p["lb1"], p["la2"], p["lb2"]):
            p_stk.append(v.reshape(C, 1))
    w_fused = jnp.stack(w_stk, axis=0).astype(jnp.float32)        # (2L, C, K*C)
    p_fused = jnp.stack(p_stk, axis=0).astype(jnp.float32)        # (6L, C, 1)

    kernel = _make_amp_block_kernel(C, T, K, tuple(dilations), taps, OFF, L)

    # Advisory cost hint for the XLA scheduler around this custom call.
    conv_flops = 2 * (2 * C * C * K * T)                           # both convs, per layer
    act_flops = 2 * (52 + 44) * C * T                              # 4 FIRs + 2 snakes, per layer
    cost = pl.CostEstimate(
        flops=int(B * L * (conv_flops + act_flops)),
        transcendentals=int(B * L * 8 * C),
        bytes_accessed=int(4 * (2 * B * C * T + 2 * L * C * K * C + 6 * L * C)),
    )

    grid_spec = pltpu.PrefetchScalarGridSpec(
        num_scalar_prefetch=0,
        grid=(B,),
        in_specs=[
            pl.BlockSpec((None, C, T), lambda b: (b, 0, 0)),          # activations
            pl.BlockSpec((2 * L, C, K * C), lambda b: (0, 0, 0)),     # weights (grid-invariant)
            pl.BlockSpec((6 * L, C, 1), lambda b: (0, 0, 0)),         # packed per-channel vectors
        ],
        out_specs=pl.BlockSpec((None, C, T), lambda b: (b, 0, 0)),
        scratch_shapes=[
            # Single shared zero-halo buffer reused for every FIR / conv shifted read.
            pltpu.VMEM((C, T + 2 * OFF), jnp.float32),
        ],
    )

    return pl.pallas_call(
        kernel,
        out_shape=jax.ShapeDtypeStruct((B, C, T), jnp.float32),
        grid_spec=grid_spec,
        compiler_params=pltpu.CompilerParams(dimension_semantics=("parallel",)),
        cost_estimate=cost,
    )(x, w_fused, p_fused)


# ---------------------------------------------------------------------------
# Parameter init (weight-normed Conv1d, torch layout) and a pure-JAX reference
# ---------------------------------------------------------------------------

def _init_wn_conv(key, C, K):
    # weight_norm(nn.Conv1d): w = g * v / ||v||, norm per output channel (dim=0).
    kv, kg, kb = jax.random.split(key, 3)
    v = 0.3 * jax.random.normal(kv, (C, C, K), jnp.float32)       # (out, in, k), torch layout
    g = 1.0 + 0.05 * jax.random.normal(kg, (C,), jnp.float32)
    norm = jnp.sqrt(jnp.sum(v * v, axis=(1, 2), keepdims=True)) + 1e-12
    w = g[:, None, None] * v / norm
    b = 0.05 * jax.random.normal(kb, (C,), jnp.float32)
    return w, b


def init_amp_layer_params(key, C, K):
    k1, k2, k3, k4 = jax.random.split(key, 4)
    w1, b1 = _init_wn_conv(k1, C, K)
    w2, b2 = _init_wn_conv(k2, C, K)
    la1, lb1 = jnp.split(0.1 * jax.random.normal(k3, (2 * C,), jnp.float32), 2)
    la2, lb2 = jnp.split(0.1 * jax.random.normal(k4, (2 * C,), jnp.float32), 2)
    return dict(w1=w1, b1=b1, w2=w2, b2=b2, la1=la1, lb1=lb1, la2=la2, lb2=lb2)


def _ref_anti_alias_act(x, la, lb, filt):
    # Direct-form reference: zero-stuff 2x -> FIR(2f) -> SnakeBeta -> FIR(f) -> decimate 2x.
    B, C, T = x.shape
    f = jnp.asarray(filt, jnp.float32)
    F = f.shape[0]
    c = F // 2
    z = jnp.zeros((B, C, 2 * T), jnp.float32).at[:, :, ::2].set(x)
    zp = jnp.pad(z, ((0, 0), (0, 0), (c, c)))
    u = sum(2.0 * f[j] * zp[:, :, j:j + 2 * T] for j in range(F))
    alpha = jnp.exp(la)[None, :, None]
    beta = jnp.exp(lb)[None, :, None]
    s = u + jnp.sin(alpha * u) ** 2 / (beta + 1e-9)
    sp = jnp.pad(s, ((0, 0), (0, 0), (c, c)))
    d = sum(f[j] * sp[:, :, j:j + 2 * T] for j in range(F))
    return d[:, :, ::2]


def _ref_conv1d(x, w, b, dil):
    B, C, T = x.shape
    K = w.shape[-1]
    p = dil * (K - 1) // 2
    xp = jnp.pad(x, ((0, 0), (0, 0), (p, p)))
    y = sum(jnp.einsum("oi,bit->bot", w[:, :, k], xp[:, :, k * dil:k * dil + T])
            for k in range(K))
    return y + b[None, :, None]


def amp_block_reference(x, layer_params, kernel_size, dilations, filt):
    for p, d in zip(layer_params, dilations):
        y = _ref_anti_alias_act(x, p["la1"], p["lb1"], filt)
        y = _ref_conv1d(y, p["w1"], p["b1"], d)
        y = _ref_anti_alias_act(y, p["la2"], p["lb2"], filt)
        y = _ref_conv1d(y, p["w2"], p["b2"], 1)
        x = x + y
    return x


if __name__ == "__main__":
    B, C, T = 2, 8, 256         # lane-dense time (T % 128 == 0); channels map to sublanes
    K = 3                       # kernel_size (odd -> exact 'same' padding as reference)
    dilations = (1, 3, 5)
    filt = _kaiser_sinc_lowpass()

    key = jax.random.PRNGKey(0)
    kx, *kls = jax.random.split(key, 1 + len(dilations))
    x = jax.random.normal(kx, (B, C, T), jnp.float32)
    layer_params = [init_amp_layer_params(k, C, K) for k in kls]

    y = amp_block(x, layer_params, K, dilations, filt)
    y = jax.block_until_ready(y)
    assert y.shape == (B, C, T)
    assert bool(jnp.all(jnp.isfinite(y)))

    # Validate the fused kernel against a direct (non-polyphase, jnp.sin) reference.
    y_ref = amp_block_reference(x, layer_params, K, dilations, filt)
    max_err = float(jnp.max(jnp.abs(y - y_ref)))
    scale = max(1.0, float(jnp.max(jnp.abs(y_ref))))
    assert max_err < 1e-2 * scale, f"kernel/reference mismatch: max abs err = {max_err}"

    print("KERNEL_OK")
</pallas_src>

<mosaic_0001>
module attributes {stable_mosaic.version = 11 : i64} {
  func.func @kernel(%arg0: i32, %arg1: memref<1x8x256xf32, #tpu.memory_space<vmem>>, %arg2: memref<6x8x24xf32, #tpu.memory_space<vmem>>, %arg3: memref<18x8x1xf32, #tpu.memory_space<vmem>>, %arg4: memref<1x8x256xf32, #tpu.memory_space<vmem>>, %arg5: memref<8x512xf32, #tpu.memory_space<vmem>>) attributes {dimension_semantics = [#tpu.dimension_semantics<parallel>], iteration_bounds = array<i64: 2>, scalar_prefetch = 0 : i64, scratch_operands = 1 : i64, tpu.core_type = #tpu.core_type<tc>, window_params = [{transform_indices = @transform_0, window_bounds = array<i64: 1, 8, 256>}, {pipeline_mode = #tpu.pipeline_mode<synchronous>, transform_indices = @transform_1, window_bounds = array<i64: 6, 8, 24>}, {pipeline_mode = #tpu.pipeline_mode<synchronous>, transform_indices = @transform_2, window_bounds = array<i64: 18, 8, 1>}, {transform_indices = @transform_3, window_bounds = array<i64: 1, 8, 256>}]} {
    %cst = arith.constant 0.000000e+00 : f32
    %0 = vector.broadcast %cst : f32 to vector<8x128xf32>
    %c0 = arith.constant 0 : index
    %c0_0 = arith.constant 0 : index
    %1 = vector.load %arg5[%c0, %c0_0] : memref<8x512xf32, #tpu.memory_space<vmem>>, vector<8x128xf32>
    tpu.vector_store %arg5[%c0, %c0_0], %0 {strides = array<i32>} : memref<8x512xf32, #tpu.memory_space<vmem>>, vector<8x128xf32>,
    %cst_1 = arith.constant 0.000000e+00 : f32
    %2 = vector.broadcast %cst_1 : f32 to vector<8x128xf32>
    %c0_2 = arith.constant 0 : index
    %c384 = arith.constant 384 : index
    %3 = vector.load %arg5[%c0_2, %c384] : memref<8x512xf32, #tpu.memory_space<vmem>>, vector<8x128xf32>
    tpu.vector_store %arg5[%c0_2, %c384], %2 {strides = array<i32>} : memref<8x512xf32, #tpu.memory_space<vmem>>, vector<8x128xf32>,
    %c0_3 = arith.constant 0 : index
    %c0_4 = arith.constant 0 : index
    %c0_5 = arith.constant 0 : index
    %4 = vector.load %arg1[%c0_3, %c0_4, %c0_5] : memref<1x8x256xf32, #tpu.memory_space<vmem>>, vector<1x8x256xf32>
    %5 = vector.shape_cast %4 : vector<1x8x256xf32> to vector<8x256xf32>
    %c0_6 = arith.constant 0 : index
    %c0_7 = arith.constant 0 : index
    %c0_8 = arith.constant 0 : index
    %6 = vector.load %arg2[%c0_6, %c0_7, %c0_8] : memref<6x8x24xf32, #tpu.memory_space<vmem>>, vector<1x8x24xf32>
    %7 = vector.shape_cast %6 : vector<1x8x24xf32> to vector<8x24xf32>
    %c1 = arith.constant 1 : index
    %c0_9 = arith.constant 0 : index
    %c0_10 = arith.constant 0 : index
    %8 = vector.load %arg2[%c1, %c0_9, %c0_10] : memref<6x8x24xf32, #tpu.memory_space<vmem>>, vector<1x8x24xf32>
    %9 = vector.shape_cast %8 : vector<1x8x24xf32> to vector<8x24xf32>
    %c0_11 = arith.constant 0 : index
    %c0_12 = arith.constant 0 : index
    %c0_13 = arith.constant 0 : index
    %10 = vector.load %arg3[%c0_11, %c0_12, %c0_13] : memref<18x8x1xf32, #tpu.memory_space<vmem>>, vector<1x8x1xf32>
    %11 = vector.shape_cast %10 : vector<1x8x1xf32> to vector<8x1xf32>
    %c1_14 = arith.constant 1 : index
    %c0_15 = arith.constant 0 : index
    %c0_16 = arith.constant 0 : index
    %12 = vector.load %arg3[%c1_14, %c0_15, %c0_16] : memref<18x8x1xf32, #tpu.memory_space<vmem>>, vector<1x8x1xf32>
    %13 = vector.shape_cast %12 : vector<1x8x1xf32> to vector<8x1xf32>
    %c2 = arith.constant 2 : index
    %c0_17 = arith.constant 0 : index
    %c0_18 = arith.constant 0 : index
    %14 = vector.load %arg3[%c2, %c0_17, %c0_18] : memref<18x8x1xf32, #tpu.memory_space<vmem>>, vector<1x8x1xf32>
    %15 = vector.shape_cast %14 : vector<1x8x1xf32> to vector<8x1xf32>
    %16 = math.exp %15 : vector<8x1xf32>
    %c3 = arith.constant 3 : index
    %c0_19 = arith.constant 0 : index
    %c0_20 = arith.constant 0 : index
    %17 = vector.load %arg3[%c3, %c0_19, %c0_20] : memref<18x8x1xf32, #tpu.memory_space<vmem>>, vector<1x8x1xf32>
    %18 = vector.shape_cast %17 : vector<1x8x1xf32> to vector<8x1xf32>
    %19 = math.exp %18 : vector<8x1xf32>
    %cst_21 = arith.constant 9.99999971E-10 : f32
    %20 = vector.broadcast %cst_21 : f32 to vector<8x1xf32>
    %21 = arith.addf %19, %20 : vector<8x1xf32>
    %22 = tpu.reciprocal %21 : vector<8x1xf32> -> vector<8x1xf32>
    %c4 = arith.constant 4 : index
    %c0_22 = arith.constant 0 : index
    %c0_23 = arith.constant 0 : index
    %23 = vector.load %arg3[%c4, %c0_22, %c0_23] : memref<18x8x1xf32, #tpu.memory_space<vmem>>, vector<1x8x1xf32>
    %24 = vector.shape_cast %23 : vector<1x8x1xf32> to vector<8x1xf32>
    %25 = math.exp %24 : vector<8x1xf32>
    %c5 = arith.constant 5 : index
    %c0_24 = arith.constant 0 : index
    %c0_25 = arith.constant 0 : index
    %26 = vector.load %arg3[%c5, %c0_24, %c0_25] : memref<18x8x1xf32, #tpu.memory_space<vmem>>, vector<1x8x1xf32>
    %27 = vector.shape_cast %26 : vector<1x8x1xf32> to vector<8x1xf32>
    %28 = math.exp %27 : vector<8x1xf32>
    %cst_26 = arith.constant 9.99999971E-10 : f32
    %29 = vector.broadcast %cst_26 : f32 to vector<8x1xf32>
    %30 = arith.addf %28, %29 : vector<8x1xf32>
    %31 = tpu.reciprocal %30 : vector<8x1xf32> -> vector<8x1xf32>
    %c0_27 = arith.constant 0 : index
    %c128 = arith.constant 128 : index
    %32 = vector.load %arg5[%c0_27, %c128] : memref<8x512xf32, #tpu.memory_space<vmem>>, vector<8x256xf32>
    tpu.vector_store %arg5[%c0_27, %c128], %5 {strides = array<i32>} : memref<8x512xf32, #tpu.memory_space<vmem>>, vector<8x256xf32>,
    %c0_28 = arith.constant 0 : index
    %c125 = arith.constant 125 : index
    %33 = vector.load %arg5[%c0_28, %c125] : memref<8x512xf32, #tpu.memory_space<vmem>>, vector<8x256xf32>
    %cst_29 = arith.constant 9.11752463E-20 : f32
    %34 = vector.broadcast %cst_29 : f32 to vector<8x256xf32>
    %35 = arith.mulf %34, %33 : vector<8x256xf32>
    %c0_30 = arith.constant 0 : index
    %c126 = arith.constant 126 : index
    %36 = vector.load %arg5[%c0_30, %c126] : memref<8x512xf32, #tpu.memory_space<vmem>>, vector<8x256xf32>
    %cst_31 = arith.constant -5.9258731E-18 : f32
    %37 = vector.broadcast %cst_31 : f32 to vector<8x256xf32>
    %38 = arith.mulf %37, %36 : vector<8x256xf32>
    %39 = arith.addf %35, %38 : vector<8x256xf32>
    %c0_32 = arith.constant 0 : index
    %c127 = arith.constant 127 : index
    %40 = vector.load %arg5[%c0_32, %c127] : memref<8x512xf32, #tpu.memory_space<vmem>>, vector<8x256xf32>
    %cst_33 = arith.constant 2.54357492E-17 : f32
    %41 = vector.broadcast %cst_33 : f32 to vector<8x256xf32>
    %42 = arith.mulf %41, %40 : vector<8x256xf32>
    %43 = arith.addf %39, %42 : vector<8x256xf32>
    %c0_34 = arith.constant 0 : index
    %c128_35 = arith.constant 128 : index
    %44 = vector.load %arg5[%c0_34, %c128_35] : memref<8x512xf32, #tpu.memory_space<vmem>>, vector<8x256xf32>
    %cst_36 = arith.constant 1.0000397 : f32
    %45 = vector.broadcast %cst_36 : f32 to vector<8x256xf32>
    %46 = arith.mulf %45, %44 : vector<8x256xf32>
    %47 = arith.addf %43, %46 : vector<8x256xf32>
    %c0_37 = arith.constant 0 : index
    %c129 = arith.constant 129 : index
    %48 = vector.load %arg5[%c0_37, %c129] : memref<8x512xf32, #tpu.memory_space<vmem>>, vector<8x256xf32>
    %cst_38 = arith.constant 2.54357492E-17 : f32
    %49 = vector.broadcast %cst_38 : f32 to vector<8x256xf32>
    %50 = arith.mulf %49, %48 : vector<8x256xf32>
    %51 = arith.addf %47, %50 : vector<8x256xf32>
    %c0_39 = arith.constant 0 : index
    %c130 = arith.constant 130 : index
    %52 = vector.load %arg5[%c0_39, %c130] : memref<8x512xf32, #tpu.memory_space<vmem>>, vector<8x256xf32>
    %cst_40 = arith.constant -5.9258731E-18 : f32
    %53 = vector.broadcast %cst_40 : f32 to vector<8x256xf32>
    %54 = arith.mulf %53, %52 : vector<8x256xf32>
    %55 = arith.addf %51, %54 : vector<8x256xf32>
    %c0_41 = arith.constant 0 : index
    %c131 = arith.constant 131 : index
    %56 = vector.load %arg5[%c0_41, %c131] : memref<8x512xf32, #tpu.memory_space<vmem>>, vector<8x256xf32>
    %cst_42 = arith.constant 9.11752463E-20 : f32
    %57 = vector.broadcast %cst_42 : f32 to vector<8x256xf32>
    %58 = arith.mulf %57, %56 : vector<8x256xf32>
    %59 = arith.addf %55, %58 : vector<8x256xf32>
    %c0_43 = arith.constant 0 : index
    %c126_44 = arith.constant 126 : index
    %60 = vector.load %arg5[%c0_43, %c126_44] : memref<8x512xf32, #tpu.memory_space<vmem>>, vector<8x256xf32>
    %cst_45 = arith.constant 0.00486158906 : f32
    %61 = vector.broadcast %cst_45 : f32 to vector<8x256xf32>
    %62 = arith.mulf %61, %60 : vector<8x256xf32>
    %c0_46 = arith.constant 0 : index
    %c127_47 = arith.constant 127 : index
    %63 = vector.load %arg5[%c0_46, %c127_47] : memref<8x512xf32, #tpu.memory_space<vmem>>, vector<8x256xf32>
    %cst_48 = arith.constant -0.078301549 : f32
    %64 = vector.broadcast %cst_48 : f32 to vector<8x256xf32>
    %65 = arith.mulf %64, %63 : vector<8x256xf32>
    %66 = arith.addf %62, %65 : vector<8x256xf32>
    %c0_49 = arith.constant 0 : index
    %c128_50 = arith.constant 128 : index
    %67 = vector.load %arg5[%c0_49, %c128_50] : memref<8x512xf32, #tpu.memory_space<vmem>>, vector<8x256xf32>
    %cst_51 = arith.constant 0.573420107 : f32
    %68 = vector.broadcast %cst_51 : f32 to vector<8x256xf32>
    %69 = arith.mulf %68, %67 : vector<8x256xf32>
    %70 = arith.addf %66, %69 : vector<8x256xf32>
    %c0_52 = arith.constant 0 : index
    %c129_53 = arith.constant 129 : index
    %71 = vector.load %arg5[%c0_52, %c129_53] : memref<8x512xf32, #tpu.memory_space<vmem>>, vector<8x256xf32>
    %cst_54 = arith.constant 0.573420107 : f32
    %72 = vector.broadcast %cst_54 : f32 to vector<8x256xf32>
    %73 = arith.mulf %72, %71 : vector<8x256xf32>
    %74 = arith.addf %70, %73 : vector<8x256xf32>
    %c0_55 = arith.constant 0 : index
    %c130_56 = arith.constant 130 : index
    %75 = vector.load %arg5[%c0_55, %c130_56] : memref<8x512xf32, #tpu.memory_space<vmem>>, vector<8x256xf32>
    %cst_57 = arith.constant -0.078301549 : f32
    %76 = vector.broadcast %cst_57 : f32 to vector<8x256xf32>
    %77 = arith.mulf %76, %75 : vector<8x256xf32>
    %78 = arith.addf %74, %77 : vector<8x256xf32>
    %c0_58 = arith.constant 0 : index
    %c131_59 = arith.constant 131 : index
    %79 = vector.load %arg5[%c0_58, %c131_59] : memref<8x512xf32, #tpu.memory_space<vmem>>, vector<8x256xf32>
    %cst_60 = arith.constant 0.00486158906 : f32
    %80 = vector.broadcast %cst_60 : f32 to vector<8x256xf32>
    %81 = arith.mulf %80, %79 : vector<8x256xf32>
    %82 = arith.addf %78, %81 : vector<8x256xf32>
    %83 = vector.broadcast %16 : vector<8x1xf32> to vector<8x256xf32>
    %84 = arith.mulf %83, %59 : vector<8x256xf32>
    %cst_61 = arith.constant 6.28318548 : f32
    %85 = vector.broadcast %cst_61 : f32 to vector<8x256xf32>
    %86 = arith.divf %84, %85 : vector<8x256xf32>
    %cst_62 = arith.constant 5.000000e-01 : f32
    %87 = vector.broadcast %cst_62 : f32 to vector<8x256xf32>
    %88 = arith.addf %86, %87 : vector<8x256xf32>
    %89 = math.floor %88 : vector<8x256xf32>
    %cst_63 = arith.constant 6.28318548 : f32
    %90 = vector.broadcast %cst_63 : f32 to vector<8x256xf32>
    %91 = arith.mulf %90, %89 : vector<8x256xf32>
    %92 = arith.subf %84, %91 : vector<8x256xf32>
    %cst_64 = arith.constant 1.57079637 : f32
    %93 = vector.broadcast %cst_64 : f32 to vector<8x256xf32>
    %94 = arith.cmpf ogt, %92, %93 : vector<8x256xf32>
    %cst_65 = arith.constant 3.14159274 : f32
    %95 = vector.broadcast %cst_65 : f32 to vector<8x256xf32>
    %96 = arith.subf %95, %92 : vector<8x256xf32>
    %97 = arith.select %94, %96, %92 : vector<8x256xi1>, vector<8x256xf32>
    %cst_66 = arith.constant -1.57079637 : f32
    %98 = vector.broadcast %cst_66 : f32 to vector<8x256xf32>
    %99 = arith.cmpf olt, %97, %98 : vector<8x256xf32>
    %cst_67 = arith.constant -3.14159274 : f32
    %100 = vector.broadcast %cst_67 : f32 to vector<8x256xf32>
    %101 = arith.subf %100, %97 : vector<8x256xf32>
    %102 = arith.select %99, %101, %97 : vector<8x256xi1>, vector<8x256xf32>
    %103 = arith.mulf %102, %102 : vector<8x256xf32>
    %cst_68 = arith.constant 2.75573188E-6 : f32
    %104 = vector.broadcast %cst_68 : f32 to vector<8x256xf32>
    %105 = arith.mulf %103, %104 : vector<8x256xf32>
    %cst_69 = arith.constant -1.98412701E-4 : f32
    %106 = vector.broadcast %cst_69 : f32 to vector<8x256xf32>
    %107 = arith.addf %106, %105 : vector<8x256xf32>
    %108 = arith.mulf %103, %107 : vector<8x256xf32>
    %cst_70 = arith.constant 0.00833333377 : f32
    %109 = vector.broadcast %cst_70 : f32 to vector<8x256xf32>
    %110 = arith.addf %109, %108 : vector<8x256xf32>
    %111 = arith.mulf %103, %110 : vector<8x256xf32>
    %cst_71 = arith.constant -0.166666672 : f32
    %112 = vector.broadcast %cst_71 : f32 to vector<8x256xf32>
    %113 = arith.addf %112, %111 : vector<8x256xf32>
    %114 = arith.mulf %103, %113 : vector<8x256xf32>
    %cst_72 = arith.constant 1.000000e+00 : f32
    %115 = vector.broadcast %cst_72 : f32 to vector<8x256xf32>
    %116 = arith.addf %115, %114 : vector<8x256xf32>
    %117 = arith.mulf %102, %116 : vector<8x256xf32>
    %118 = arith.mulf %117, %117 : vector<8x256xf32>
    %119 = vector.broadcast %22 : vector<8x1xf32> to vector<8x256xf32>
    %120 = arith.mulf %118, %119 : vector<8x256xf32>
    %121 = arith.addf %59, %120 : vector<8x256xf32>
    %122 = vector.broadcast %16 : vector<8x1xf32> to vector<8x256xf32>
    %123 = arith.mulf %122, %82 : vector<8x256xf32>
    %cst_73 = arith.constant 6.28318548 : f32
    %124 = vector.broadcast %cst_73 : f32 to vector<8x256xf32>
    %125 = arith.divf %123, %124 : vector<8x256xf32>
    %cst_74 = arith.constant 5.000000e-01 : f32
    %126 = vector.broadcast %cst_74 : f32 to vector<8x256xf32>
    %127 = arith.addf %125, %126 : vector<8x256xf32>
    %128 = math.floor %127 : vector<8x256xf32>
    %cst_75 = arith.constant 6.28318548 : f32
    %129 = vector.broadcast %cst_75 : f32 to vector<8x256xf32>
    %130 = arith.mulf %129, %128 : vector<8x256xf32>
    %131 = arith.subf %123, %130 : vector<8x256xf32>
    %cst_76 = arith.constant 1.57079637 : f32
    %132 = vector.broadcast %cst_76 : f32 to vector<8x256xf32>
    %133 = arith.cmpf ogt, %131, %132 : vector<8x256xf32>
    %cst_77 = arith.constant 3.14159274 : f32
    %134 = vector.broadcast %cst_77 : f32 to vector<8x256xf32>
    %135 = arith.subf %134, %131 : vector<8x256xf32>
    %136 = arith.select %133, %135, %131 : vector<8x256xi1>, vector<8x256xf32>
    %cst_78 = arith.constant -1.57079637 : f32
    %137 = vector.broadcast %cst_78 : f32 to vector<8x256xf32>
    %138 = arith.cmpf olt, %136, %137 : vector<8x256xf32>
    %cst_79 = arith.constant -3.14159274 : f32
    %139 = vector.broadcast %cst_79 : f32 to vector<8x256xf32>
    %140 = arith.subf %139, %136 : vector<8x256xf32>
    %141 = arith.select %138, %140, %136 : vector<8x256xi1>, vector<8x256xf32>
    %142 = arith.mulf %141, %141 : vector<8x256xf32>
    %cst_80 = arith.constant 2.75573188E-6 : f32
    %143 = vector.broadcast %cst_80 : f32 to vector<8x256xf32>
    %144 = arith.mulf %142, %143 : vector<8x256xf32>
    %cst_81 = arith.constant -1.98412701E-4 : f32
    %145 = vector.broadcast %cst_81 : f32 to vector<8x256xf32>
    %146 = arith.addf %145, %144 : vector<8x256xf32>
    %147 = arith.mulf %142, %146 : vector<8x256xf32>
    %cst_82 = arith.constant 0.00833333377 : f32
    %148 = vector.broadcast %cst_82 : f32 to vector<8x256xf32>
    %149 = arith.addf %148, %147 : vector<8x256xf32>
    %150 = arith.mulf %142, %149 : vector<8x256xf32>
    %cst_83 = arith.constant -0.166666672 : f32
    %151 = vector.broadcast %cst_83 : f32 to vector<8x256xf32>
    %152 = arith.addf %151, %150 : vector<8x256xf32>
    %153 = arith.mulf %142, %152 : vector<8x256xf32>
    %cst_84 = arith.constant 1.000000e+00 : f32
    %154 = vector.broadcast %cst_84 : f32 to vector<8x256xf32>
    %155 = arith.addf %154, %153 : vector<8x256xf32>
    %156 = arith.mulf %141, %155 : vector<8x256xf32>
    %157 = arith.mulf %156, %156 : vector<8x256xf32>
    %158 = vector.broadcast %22 : vector<8x1xf32> to vector<8x256xf32>
    %159 = arith.mulf %157, %158 : vector<8x256xf32>
    %160 = arith.addf %82, %159 : vector<8x256xf32>
    %c0_85 = arith.constant 0 : index
    %c128_86 = arith.constant 128 : index
    %161 = vector.load %arg5[%c0_85, %c128_86] : memref<8x512xf32, #tpu.memory_space<vmem>>, vector<8x256xf32>
    tpu.vector_store %arg5[%c0_85, %c128_86], %121 {strides = array<i32>} : memref<8x512xf32, #tpu.memory_space<vmem>>, vector<8x256xf32>,
    %c0_87 = arith.constant 0 : index
    %c125_88 = arith.constant 125 : index
    %162 = vector.load %arg5[%c0_87, %c125_88] : memref<8x512xf32, #tpu.memory_space<vmem>>, vector<8x256xf32>
    %cst_89 = arith.constant 4.55876232E-20 : f32
    %163 = vector.broadcast %cst_89 : f32 to vector<8x256xf32>
    %164 = arith.mulf %163, %162 : vector<8x256xf32>
    %c0_90 = arith.constant 0 : index
    %c126_91 = arith.constant 126 : index
    %165 = vector.load %arg5[%c0_90, %c126_91] : memref<8x512xf32, #tpu.memory_space<vmem>>, vector<8x256xf32>
    %cst_92 = arith.constant -2.96293655E-18 : f32
    %166 = vector.broadcast %cst_92 : f32 to vector<8x256xf32>
    %167 = arith.mulf %166, %165 : vector<8x256xf32>
    %168 = arith.addf %164, %167 : vector<8x256xf32>
    %c0_93 = arith.constant 0 : index
    %c127_94 = arith.constant 127 : index
    %169 = vector.load %arg5[%c0_93, %c127_94] : memref<8x512xf32, #tpu.memory_space<vmem>>, vector<8x256xf32>
    %cst_95 = arith.constant 1.27178746E-17 : f32
    %170 = vector.broadcast %cst_95 : f32 to vector<8x256xf32>
    %171 = arith.mulf %170, %169 : vector<8x256xf32>
    %172 = arith.addf %168, %171 : vector<8x256xf32>
    %c0_96 = arith.constant 0 : index
    %c128_97 = arith.constant 128 : index
    %173 = vector.load %arg5[%c0_96, %c128_97] : memref<8x512xf32, #tpu.memory_space<vmem>>, vector<8x256xf32>
    %cst_98 = arith.constant 0.500019848 : f32
    %174 = vector.broadcast %cst_98 : f32 to vector<8x256xf32>
    %175 = arith.mulf %174, %173 : vector<8x256xf32>
    %176 = arith.addf %172, %175 : vector<8x256xf32>
    %c0_99 = arith.constant 0 : index
    %c129_100 = arith.constant 129 : index
    %177 = vector.load %arg5[%c0_99, %c129_100] : memref<8x512xf32, #tpu.memory_space<vmem>>, vector<8x256xf32>
    %cst_101 = arith.constant 1.27178746E-17 : f32
    %178 = vector.broadcast %cst_101 : f32 to vector<8x256xf32>
    %179 = arith.mulf %178, %177 : vector<8x256xf32>
    %180 = arith.addf %176, %179 : vector<8x256xf32>
    %c0_102 = arith.constant 0 : index
    %c130_103 = arith.constant 130 : index
    %181 = vector.load %arg5[%c0_102, %c130_103] : memref<8x512xf32, #tpu.memory_space<vmem>>, vector<8x256xf32>
    %cst_104 = arith.constant -2.96293655E-18 : f32
    %182 = vector.broadcast %cst_104 : f32 to vector<8x256xf32>
    %183 = arith.mulf %182, %181 : vector<8x256xf32>
    %184 = arith.addf %180, %183 : vector<8x256xf32>
    %c0_105 = arith.constant 0 : index
    %c131_106 = arith.constant 131 : index
    %185 = vector.load %arg5[%c0_105, %c131_106] : memref<8x512xf32, #tpu.memory_space<vmem>>, vector<8x256xf32>
    %cst_107 = arith.constant 4.55876232E-20 : f32
    %186 = vector.broadcast %cst_107 : f32 to vector<8x256xf32>
    %187 = arith.mulf %186, %185 : vector<8x256xf32>
    %188 = arith.addf %184, %187 : vector<8x256xf32>
    %c0_108 = arith.constant 0 : index
    %c128_109 = arith.constant 128 : index
    %189 = vector.load %arg5[%c0_108, %c128_109] : memref<8x512xf32, #tpu.memory_space<vmem>>, vector<8x256xf32>
    tpu.vector_store %arg5[%c0_108, %c128_109], %160 {strides = array<i32>} : memref<8x512xf32, #tpu.memory_space<vmem>>, vector<8x256xf32>,
    %c0_110 = arith.constant 0 : index
    %c125_111 = arith.constant 125 : index
    %190 = vector.load %arg5[%c0_110, %c125_111] : memref<8x512xf32, #tpu.memory_space<vmem>>, vector<8x256xf32>
    %cst_112 = arith.constant 0.00243079453 : f32
    %191 = vector.broadcast %cst_112 : f32 to vector<8x256xf32>
    %192 = arith.mulf %191, %190 : vector<8x256xf32>
    %c0_113 = arith.constant 0 : index
    %c126_114 = arith.constant 126 : index
    %193 = vector.load %arg5[%c0_113, %c126_114] : memref<8x512xf32, #tpu.memory_space<vmem>>, vector<8x256xf32>
    %cst_115 = arith.constant -0.0391507745 : f32
    %194 = vector.broadcast %cst_115 : f32 to vector<8x256xf32>
    %195 = arith.mulf %194, %193 : vector<8x256xf32>
    %196 = arith.addf %192, %195 : vector<8x256xf32>
    %c0_116 = arith.constant 0 : index
    %c127_117 = arith.constant 127 : index
    %197 = vector.load %arg5[%c0_116, %c127_117] : memref<8x512xf32, #tpu.memory_space<vmem>>, vector<8x256xf32>
    %cst_118 = arith.constant 0.286710054 : f32
    %198 = vector.broadcast %cst_118 : f32 to vector<8x256xf32>
    %199 = arith.mulf %198, %197 : vector<8x256xf32>
    %200 = arith.addf %196, %199 : vector<8x256xf32>
    %c0_119 = arith.constant 0 : index
    %c128_120 = arith.constant 128 : index
    %201 = vector.load %arg5[%c0_119, %c128_120] : memref<8x512xf32, #tpu.memory_space<vmem>>, vector<8x256xf32>
    %cst_121 = arith.constant 0.286710054 : f32
    %202 = vector.broadcast %cst_121 : f32 to vector<8x256xf32>
    %203 = arith.mulf %202, %201 : vector<8x256xf32>
    %204 = arith.addf %200, %203 : vector<8x256xf32>
    %c0_122 = arith.constant 0 : index
    %c129_123 = arith.constant 129 : index
    %205 = vector.load %arg5[%c0_122, %c129_123] : memref<8x512xf32, #tpu.memory_space<vmem>>, vector<8x256xf32>
    %cst_124 = arith.constant -0.0391507745 : f32
    %206 = vector.broadcast %cst_124 : f32 to vector<8x256xf32>
    %207 = arith.mulf %206, %205 : vector<8x256xf32>
    %208 = arith.addf %204, %207 : vector<8x256xf32>
    %c0_125 = arith.constant 0 : index
    %c130_126 = arith.constant 130 : index
    %209 = vector.load %arg5[%c0_125, %c130_126] : memref<8x512xf32, #tpu.memory_space<vmem>>, vector<8x256xf32>
    %cst_127 = arith.constant 0.00243079453 : f32
    %210 = vector.broadcast %cst_127 : f32 to vector<8x256xf32>
    %211 = arith.mulf %210, %209 : vector<8x256xf32>
    %212 = arith.addf %208, %211 : vector<8x256xf32>
    %213 = arith.addf %188, %212 : vector<8x256xf32>
    %c0_128 = arith.constant 0 : index
    %c128_129 = arith.constant 128 : index
    %214 = vector.load %arg5[%c0_128, %c128_129] : memref<8x512xf32, #tpu.memory_space<vmem>>, vector<8x256xf32>
    tpu.vector_store %arg5[%c0_128, %c128_129], %213 {strides = array<i32>} : memref<8x512xf32, #tpu.memory_space<vmem>>, vector<8x256xf32>,
    %c0_130 = arith.constant 0 : index
    %c127_131 = arith.constant 127 : index
    %215 = vector.load %arg5[%c0_130, %c127_131] : memref<8x512xf32, #tpu.memory_space<vmem>>, vector<8x256xf32>
    %c0_132 = arith.constant 0 : index
    %c128_133 = arith.constant 128 : index
    %216 = vector.load %arg5[%c0_132, %c128_133] : memref<8x512xf32, #tpu.memory_space<vmem>>, vector<8x256xf32>
    %c0_134 = arith.constant 0 : index
    %c129_135 = arith.constant 129 : index
    %217 = vector.load %arg5[%c0_134, %c129_135] : memref<8x512xf32, #tpu.memory_space<vmem>>, vector<8x256xf32>
    %218 = tpu.concatenate %215, %216, %217 in 0 : vector<8x256xf32>, vector<8x256xf32>, vector<8x256xf32> -> vector<24x256xf32>
    %cst_136 = arith.constant dense<0.000000e+00> : vector<8x256xf32>
    %219 = tpu.matmul %7, %218, %cst_136 {dimension_numbers = #tpu.dot_dimension_numbers<[1], [0], [0], [1], [0, 0, 1, 1], [], []>} : vector<8x24xf32>, vector<24x256xf32>, vector<8x256xf32> -> vector<8x256xf32>
    %220 = vector.broadcast %11 : vector<8x1xf32> to vector<8x256xf32>
    %221 = arith.addf %219, %220 : vector<8x256xf32>
    %c0_137 = arith.constant 0 : index
    %c128_138 = arith.constant 128 : index
    %222 = vector.load %arg5[%c0_137, %c128_138] : memref<8x512xf32, #tpu.memory_space<vmem>>, vector<8x256xf32>
    tpu.vector_store %arg5[%c0_137, %c128_138], %221 {strides = array<i32>} : memref<8x512xf32, #tpu.memory_space<vmem>>, vector<8x256xf32>,
    %c0_139 = arith.constant 0 : index
    %c125_140 = arith.constant 125 : index
    %223 = vector.load %arg5[%c0_139, %c125_140] : memref<8x512xf32, #tpu.memory_space<vmem>>, vector<8x256xf32>
    %cst_141 = arith.constant 9.11752463E-20 : f32
    %224 = vector.broadcast %cst_141 : f32 to vector<8x256xf32>
    %225 = arith.mulf %224, %223 : vector<8x256xf32>
    %c0_142 = arith.constant 0 : index
    %c126_143 = arith.constant 126 : index
    %226 = vector.load %arg5[%c0_142, %c126_143] : memref<8x512xf32, #tpu.memory_space<vmem>>, vector<8x256xf32>
    %cst_144 = arith.constant -5.9258731E-18 : f32
    %227 = vector.broadcast %cst_144 : f32 to vector<8x256xf32>
    %228 = arith.mulf %227, %226 : vector<8x256xf32>
    %229 = arith.addf %225, %228 : vector<8x256xf32>
    %c0_145 = arith.constant 0 : index
    %c127_146 = arith.constant 127 : index
    %230 = vector.load %arg5[%c0_145, %c127_146] : memref<8x512xf32, #tpu.memory_space<vmem>>, vector<8x256xf32>
    %cst_147 = arith.constant 2.54357492E-17 : f32
    %231 = vector.broadcast %cst_147 : f32 to vector<8x256xf32>
    %232 = arith.mulf %231, %230 : vector<8x256xf32>
    %233 = arith.addf %229, %232 : vector<8x256xf32>
    %c0_148 = arith.constant 0 : index
    %c128_149 = arith.constant 128 : index
    %234 = vector.load %arg5[%c0_148, %c128_149] : memref<8x512xf32, #tpu.memory_space<vmem>>, vector<8x256xf32>
    %cst_150 = arith.constant 1.0000397 : f32
    %235 = vector.broadcast %cst_150 : f32 to vector<8x256xf32>
    %236 = arith.mulf %235, %234 : vector<8x256xf32>
    %237 = arith.addf %233, %236 : vector<8x256xf32>
    %c0_151 = arith.constant 0 : index
    %c129_152 = arith.constant 129 : index
    %238 = vector.load %arg5[%c0_151, %c129_152] : memref<8x512xf32, #tpu.memory_space<vmem>>, vector<8x256xf32>
    %cst_153 = arith.constant 2.54357492E-17 : f32
    %239 = vector.broadcast %cst_153 : f32 to vector<8x256xf32>
    %240 = arith.mulf %239, %238 : vector<8x256xf32>
    %241 = arith.addf %237, %240 : vector<8x256xf32>
    %c0_154 = arith.constant 0 : index
    %c130_155 = arith.constant 130 : index
    %242 = vector.load %arg5[%c0_154, %c130_155] : memref<8x512xf32, #tpu.memory_space<vmem>>, vector<8x256xf32>
    %cst_156 = arith.constant -5.9258731E-18 : f32
    %243 = vector.broadcast %cst_156 : f32 to vector<8x256xf32>
    %244 = arith.mulf %243, %242 : vector<8x256xf32>
    %245 = arith.addf %241, %244 : vector<8x256xf32>
    %c0_157 = arith.constant 0 : index
    %c131_158 = arith.constant 131 : index
    %246 = vector.load %arg5[%c0_157, %c131_158] : memref<8x512xf32, #tpu.memory_space<vmem>>, vector<8x256xf32>
    %cst_159 = arith.constant 9.11752463E-20 : f32
    %247 = vector.broadcast %cst_159 : f32 to vector<8x256xf32>
    %248 = arith.mulf %247, %246 : vector<8x256xf32>
    %249 = arith.addf %245, %248 : vector<8x256xf32>
    %c0_160 = arith.constant 0 : index
    %c126_161 = arith.constant 126 : index
    %250 = vector.load %arg5[%c0_160, %c126_161] : memref<8x512xf32, #tpu.memory_space<vmem>>, vector<8x256xf32>
    %cst_162 = arith.constant 0.00486158906 : f32
    %251 = vector.broadcast %cst_162 : f32 to vector<8x256xf32>
    %252 = arith.mulf %251, %250 : vector<8x256xf32>
    %c0_163 = arith.constant 0 : index
    %c127_164 = arith.constant 127 : index
    %253 = vector.load %arg5[%c0_163, %c127_164] : memref<8x512xf32, #tpu.memory_space<vmem>>, vector<8x256xf32>
    %cst_165 = arith.constant -0.078301549 : f32
    %254 = vector.broadcast %cst_165 : f32 to vector<8x256xf32>
    %255 = arith.mulf %254, %253 : vector<8x256xf32>
    %256 = arith.addf %252, %255 : vector<8x256xf32>
    %c0_166 = arith.constant 0 : index
    %c128_167 = arith.constant 128 : index
    %257 = vector.load %arg5[%c0_166, %c128_167] : memref<8x512xf32, #tpu.memory_space<vmem>>, vector<8x256xf32>
    %cst_168 = arith.constant 0.573420107 : f32
    %258 = vector.broadcast %cst_168 : f32 to vector<8x256xf32>
    %259 = arith.mulf %258, %257 : vector<8x256xf32>
    %260 = arith.addf %256, %259 : vector<8x256xf32>
    %c0_169 = arith.constant 0 : index
    %c129_170 = arith.constant 129 : index
    %261 = vector.load %arg5[%c0_169, %c129_170] : memref<8x512xf32, #tpu.memory_space<vmem>>, vector<8x256xf32>
    %cst_171 = arith.constant 0.573420107 : f32
    %262 = vector.broadcast %cst_171 : f32 to vector<8x256xf32>
    %263 = arith.mulf %262, %261 : vector<8x256xf32>
    %264 = arith.addf %260, %263 : vector<8x256xf32>
    %c0_172 = arith.constant 0 : index
    %c130_173 = arith.constant 130 : index
    %265 = vector.load %arg5[%c0_172, %c130_173] : memref<8x512xf32, #tpu.memory_space<vmem>>, vector<8x256xf32>
    %cst_174 = arith.constant -0.078301549 : f32
    %266 = vector.broadcast %cst_174 : f32 to vector<8x256xf32>
    %267 = arith.mulf %266, %265 : vector<8x256xf32>
    %268 = arith.addf %264, %267 : vector<8x256xf32>
    %c0_175 = arith.constant 0 : index
    %c131_176 = arith.constant 131 : index
    %269 = vector.load %arg5[%c0_175, %c131_176] : memref<8x512xf32, #tpu.memory_space<vmem>>, vector<8x256xf32>
    %cst_177 = arith.constant 0.00486158906 : f32
    %270 = vector.broadcast %cst_177 : f32 to vector<8x256xf32>
    %271 = arith.mulf %270, %269 : vector<8x256xf32>
    %272 = arith.addf %268, %271 : vector<8x256xf32>
    %273 = vector.broadcast %25 : vector<8x1xf32> to vector<8x256xf32>
    %274 = arith.mulf %273, %249 : vector<8x256xf32>
    %cst_178 = arith.constant 6.28318548 : f32
    %275 = vector.broadcast %cst_178 : f32 to vector<8x256xf32>
    %276 = arith.divf %274, %275 : vector<8x256xf32>
    %cst_179 = arith.constant 5.000000e-01 : f32
    %277 = vector.broadcast %cst_179 : f32 to vector<8x256xf32>
    %278 = arith.addf %276, %277 : vector<8x256xf32>
    %279 = math.floor %278 : vector<8x256xf32>
    %cst_180 = arith.constant 6.28318548 : f32
    %280 = vector.broadcast %cst_180 : f32 to vector<8x256xf32>
    %281 = arith.mulf %280, %279 : vector<8x256xf32>
    %282 = arith.subf %274, %281 : vector<8x256xf32>
    %cst_181 = arith.constant 1.57079637 : f32
    %283 = vector.broadcast %cst_181 : f32 to vector<8x256xf32>
    %284 = arith.cmpf ogt, %282, %283 : vector<8x256xf32>
    %cst_182 = arith.constant 3.14159274 : f32
    %285 = vector.broadcast %cst_182 : f32 to vector<8x256xf32>
    %286 = arith.subf %285, %282 : vector<8x256xf32>
    %287 = arith.select %284, %286, %282 : vector<8x256xi1>, vector<8x256xf32>
    %cst_183 = arith.constant -1.57079637 : f32
    %288 = vector.broadcast %cst_183 : f32 to vector<8x256xf32>
    %289 = arith.cmpf olt, %287, %288 : vector<8x256xf32>
    %cst_184 = arith.constant -3.14159274 : f32
    %290 = vector.broadcast %cst_184 : f32 to vector<8x256xf32>
    %291 = arith.subf %290, %287 : vector<8x256xf32>
    %292 = arith.select %289, %291, %287 : vector<8x256xi1>, vector<8x256xf32>
    %293 = arith.mulf %292, %292 : vector<8x256xf32>
    %cst_185 = arith.constant 2.75573188E-6 : f32
    %294 = vector.broadcast %cst_185 : f32 to vector<8x256xf32>
    %295 = arith.mulf %293, %294 : vector<8x256xf32>
    %cst_186 = arith.constant -1.98412701E-4 : f32
    %296 = vector.broadcast %cst_186 : f32 to vector<8x256xf32>
    %297 = arith.addf %296, %295 : vector<8x256xf32>
    %298 = arith.mulf %293, %297 : vector<8x256xf32>
    %cst_187 = arith.constant 0.00833333377 : f32
    %299 = vector.broadcast %cst_187 : f32 to vector<8x256xf32>
    %300 = arith.addf %299, %298 : vector<8x256xf32>
    %301 = arith.mulf %293, %300 : vector<8x256xf32>
    %cst_188 = arith.constant -0.166666672 : f32
    %302 = vector.broadcast %cst_188 : f32 to vector<8x256xf32>
    %303 = arith.addf %302, %301 : vector<8x256xf32>
    %304 = arith.mulf %293, %303 : vector<8x256xf32>
    %cst_189 = arith.constant 1.000000e+00 : f32
    %305 = vector.broadcast %cst_189 : f32 to vector<8x256xf32>
    %306 = arith.addf %305, %304 : vector<8x256xf32>
    %307 = arith.mulf %292, %306 : vector<8x256xf32>
    %308 = arith.mulf %307, %307 : vector<8x256xf32>
    %309 = vector.broadcast %31 : vector<8x1xf32> to vector<8x256xf32>
    %310 = arith.mulf %308, %309 : vector<8x256xf32>
    %311 = arith.addf %249, %310 : vector<8x256xf32>
    %312 = vector.broadcast %25 : vector<8x1xf32> to vector<8x256xf32>
    %313 = arith.mulf %312, %272 : vector<8x256xf32>
    %cst_190 = arith.constant 6.28318548 : f32
    %314 = vector.broadcast %cst_190 : f32 to vector<8x256xf32>
    %315 = arith.divf %313, %314 : vector<8x256xf32>
    %cst_191 = arith.constant 5.000000e-01 : f32
    %316 = vector.broadcast %cst_191 : f32 to vector<8x256xf32>
    %317 = arith.addf %315, %316 : vector<8x256xf32>
    %318 = math.floor %317 : vector<8x256xf32>
    %cst_192 = arith.constant 6.28318548 : f32
    %319 = vector.broadcast %cst_192 : f32 to vector<8x256xf32>
    %320 = arith.mulf %319, %318 : vector<8x256xf32>
    %321 = arith.subf %313, %320 : vector<8x256xf32>
    %cst_193 = arith.constant 1.57079637 : f32
    %322 = vector.broadcast %cst_193 : f32 to vector<8x256xf32>
    %323 = arith.cmpf ogt, %321, %322 : vector<8x256xf32>
    %cst_194 = arith.constant 3.14159274 : f32
    %324 = vector.broadcast %cst_194 : f32 to vector<8x256xf32>
    %325 = arith.subf %324, %321 : vector<8x256xf32>
    %326 = arith.select %323, %325, %321 : vector<8x256xi1>, vector<8x256xf32>
    %cst_195 = arith.constant -1.57079637 : f32
    %327 = vector.broadcast %cst_195 : f32 to vector<8x256xf32>
    %328 = arith.cmpf olt, %326, %327 : vector<8x256xf32>
    %cst_196 = arith.constant -3.14159274 : f32
    %329 = vector.broadcast %cst_196 : f32 to vector<8x256xf32>
    %330 = arith.subf %329, %326 : vector<8x256xf32>
    %331 = arith.select %328, %330, %326 : vector<8x256xi1>, vector<8x256xf32>
    %332 = arith.mulf %331, %331 : vector<8x256xf32>
    %cst_197 = arith.constant 2.75573188E-6 : f32
    %333 = vector.broadcast %cst_197 : f32 to vector<8x256xf32>
    %334 = arith.mulf %332, %333 : vector<8x256xf32>
    %cst_198 = arith.constant -1.98412701E-4 : f32
    %335 = vector.broadcast %cst_198 : f32 to vector<8x256xf32>
    %336 = arith.addf %335, %334 : vector<8x256xf32>
    %337 = arith.mulf %332, %336 : vector<8x256xf32>
    %cst_199 = arith.constant 0.00833333377 : f32
    %338 = vector.broadcast %cst_199 : f32 to vector<8x256xf32>
    %339 = arith.addf %338, %337 : vector<8x256xf32>
    %340 = arith.mulf %332, %339 : vector<8x256xf32>
    %cst_200 = arith.constant -0.166666672 : f32
    %341 = vector.broadcast %cst_200 : f32 to vector<8x256xf32>
    %342 = arith.addf %341, %340 : vector<8x256xf32>
    %343 = arith.mulf %332, %342 : vector<8x256xf32>
    %cst_201 = arith.constant 1.000000e+00 : f32
    %344 = vector.broadcast %cst_201 : f32 to vector<8x256xf32>
    %345 = arith.addf %344, %343 : vector<8x256xf32>
    %346 = arith.mulf %331, %345 : vector<8x256xf32>
    %347 = arith.mulf %346, %346 : vector<8x256xf32>
    %348 = vector.broadcast %31 : vector<8x1xf32> to vector<8x256xf32>
    %349 = arith.mulf %347, %348 : vector<8x256xf32>
    %350 = arith.addf %272, %349 : vector<8x256xf32>
    %c0_202 = arith.constant 0 : index
    %c128_203 = arith.constant 128 : index
    %351 = vector.load %arg5[%c0_202, %c128_203] : memref<8x512xf32, #tpu.memory_space<vmem>>, vector<8x256xf32>
    tpu.vector_store %arg5[%c0_202, %c128_203], %311 {strides = array<i32>} : memref<8x512xf32, #tpu.memory_space<vmem>>, vector<8x256xf32>,
    %c0_204 = arith.constant 0 : index
    %c125_205 = arith.constant 125 : index
    %352 = vector.load %arg5[%c0_204, %c125_205] : memref<8x512xf32, #tpu.memory_space<vmem>>, vector<8x256xf32>
    %cst_206 = arith.constant 4.55876232E-20 : f32
    %353 = vector.broadcast %cst_206 : f32 to vector<8x256xf32>
    %354 = arith.mulf %353, %352 : vector<8x256xf32>
    %c0_207 = arith.constant 0 : index
    %c126_208 = arith.constant 126 : index
    %355 = vector.load %arg5[%c0_207, %c126_208] : memref<8x512xf32, #tpu.memory_space<vmem>>, vector<8x256xf32>
    %cst_209 = arith.constant -2.96293655E-18 : f32
    %356 = vector.broadcast %cst_209 : f32 to vector<8x256xf32>
    %357 = arith.mulf %356, %355 : vector<8x256xf32>
    %358 = arith.addf %354, %357 : vector<8x256xf32>
    %c0_210 = arith.constant 0 : index
    %c127_211 = arith.constant 127 : index
    %359 = vector.load %arg5[%c0_210, %c127_211] : memref<8x512xf32, #tpu.memory_space<vmem>>, vector<8x256xf32>
    %cst_212 = arith.constant 1.27178746E-17 : f32
    %360 = vector.broadcast %cst_212 : f32 to vector<8x256xf32>
    %361 = arith.mulf %360, %359 : vector<8x256xf32>
    %362 = arith.addf %358, %361 : vector<8x256xf32>
    %c0_213 = arith.constant 0 : index
    %c128_214 = arith.constant 128 : index
    %363 = vector.load %arg5[%c0_213, %c128_214] : memref<8x512xf32, #tpu.memory_space<vmem>>, vector<8x256xf32>
    %cst_215 = arith.constant 0.500019848 : f32
    %364 = vector.broadcast %cst_215 : f32 to vector<8x256xf32>
    %365 = arith.mulf %364, %363 : vector<8x256xf32>
    %366 = arith.addf %362, %365 : vector<8x256xf32>
    %c0_216 = arith.constant 0 : index
    %c129_217 = arith.constant 129 : index
    %367 = vector.load %arg5[%c0_216, %c129_217] : memref<8x512xf32, #tpu.memory_space<vmem>>, vector<8x256xf32>
    %cst_218 = arith.constant 1.27178746E-17 : f32
    %368 = vector.broadcast %cst_218 : f32 to vector<8x256xf32>
    %369 = arith.mulf %368, %367 : vector<8x256xf32>
    %370 = arith.addf %366, %369 : vector<8x256xf32>
    %c0_219 = arith.constant 0 : index
    %c130_220 = arith.constant 130 : index
    %371 = vector.load %arg5[%c0_219, %c130_220] : memref<8x512xf32, #tpu.memory_space<vmem>>, vector<8x256xf32>
    %cst_221 = arith.constant -2.96293655E-18 : f32
    %372 = vector.broadcast %cst_221 : f32 to vector<8x256xf32>
    %373 = arith.mulf %372, %371 : vector<8x256xf32>
    %374 = arith.addf %370, %373 : vector<8x256xf32>
    %c0_222 = arith.constant 0 : index
    %c131_223 = arith.constant 131 : index
    %375 = vector.load %arg5[%c0_222, %c131_223] : memref<8x512xf32, #tpu.memory_space<vmem>>, vector<8x256xf32>
    %cst_224 = arith.constant 4.55876232E-20 : f32
    %376 = vector.broadcast %cst_224 : f32 to vector<8x256xf32>
    %377 = arith.mulf %376, %375 : vector<8x256xf32>
    %378 = arith.addf %374, %377 : vector<8x256xf32>
    %c0_225 = arith.constant 0 : index
    %c128_226 = arith.constant 128 : index
    %379 = vector.load %arg5[%c0_225, %c128_226] : memref<8x512xf32, #tpu.memory_space<vmem>>, vector<8x256xf32>
    tpu.vector_store %arg5[%c0_225, %c128_226], %350 {strides = array<i32>} : memref<8x512xf32, #tpu.memory_space<vmem>>, vector<8x256xf32>,
    %c0_227 = arith.constant 0 : index
    %c125_228 = arith.constant 125 : index
    %380 = vector.load %arg5[%c0_227, %c125_228] : memref<8x512xf32, #tpu.memory_space<vmem>>, vector<8x256xf32>
    %cst_229 = arith.constant 0.00243079453 : f32
    %381 = vector.broadcast %cst_229 : f32 to vector<8x256xf32>
    %382 = arith.mulf %381, %380 : vector<8x256xf32>
    %c0_230 = arith.constant 0 : index
    %c126_231 = arith.constant 126 : index
    %383 = vector.load %arg5[%c0_230, %c126_231] : memref<8x512xf32, #tpu.memory_space<vmem>>, vector<8x256xf32>
    %cst_232 = arith.constant -0.0391507745 : f32
    %384 = vector.broadcast %cst_232 : f32 to vector<8x256xf32>
    %385 = arith.mulf %384, %383 : vector<8x256xf32>
    %386 = arith.addf %382, %385 : vector<8x256xf32>
    %c0_233 = arith.constant 0 : index
    %c127_234 = arith.constant 127 : index
    %387 = vector.load %arg5[%c0_233, %c127_234] : memref<8x512xf32, #tpu.memory_space<vmem>>, vector<8x256xf32>
    %cst_235 = arith.constant 0.286710054 : f32
    %388 = vector.broadcast %cst_235 : f32 to vector<8x256xf32>
    %389 = arith.mulf %388, %387 : vector<8x256xf32>
    %390 = arith.addf %386, %389 : vector<8x256xf32>
    %c0_236 = arith.constant 0 : index
    %c128_237 = arith.constant 128 : index
    %391 = vector.load %arg5[%c0_236, %c128_237] : memref<8x512xf32, #tpu.memory_space<vmem>>, vector<8x256xf32>
    %cst_238 = arith.constant 0.286710054 : f32
    %392 = vector.broadcast %cst_238 : f32 to vector<8x256xf32>
    %393 = arith.mulf %392, %391 : vector<8x256xf32>
    %394 = arith.addf %390, %393 : vector<8x256xf32>
    %c0_239 = arith.constant 0 : index
    %c129_240 = arith.constant 129 : index
    %395 = vector.load %arg5[%c0_239, %c129_240] : memref<8x512xf32, #tpu.memory_space<vmem>>, vector<8x256xf32>
    %cst_241 = arith.constant -0.0391507745 : f32
    %396 = vector.broadcast %cst_241 : f32 to vector<8x256xf32>
    %397 = arith.mulf %396, %395 : vector<8x256xf32>
    %398 = arith.addf %394, %397 : vector<8x256xf32>
    %c0_242 = arith.constant 0 : index
    %c130_243 = arith.constant 130 : index
    %399 = vector.load %arg5[%c0_242, %c130_243] : memref<8x512xf32, #tpu.memory_space<vmem>>, vector<8x256xf32>
    %cst_244 = arith.constant 0.00243079453 : f32
    %400 = vector.broadcast %cst_244 : f32 to vector<8x256xf32>
    %401 = arith.mulf %400, %399 : vector<8x256xf32>
    %402 = arith.addf %398, %401 : vector<8x256xf32>
    %403 = arith.addf %378, %402 : vector<8x256xf32>
    %c0_245 = arith.constant 0 : index
    %c128_246 = arith.constant 128 : index
    %404 = vector.load %arg5[%c0_245, %c128_246] : memref<8x512xf32, #tpu.memory_space<vmem>>, vector<8x256xf32>
    tpu.vector_store %arg5[%c0_245, %c128_246], %403 {strides = array<i32>} : memref<8x512xf32, #tpu.memory_space<vmem>>, vector<8x256xf32>,
    %c0_247 = arith.constant 0 : index
    %c127_248 = arith.constant 127 : index
    %405 = vector.load %arg5[%c0_247, %c127_248] : memref<8x512xf32, #tpu.memory_space<vmem>>, vector<8x256xf32>
    %c0_249 = arith.constant 0 : index
    %c128_250 = arith.constant 128 : index
    %406 = vector.load %arg5[%c0_249, %c128_250] : memref<8x512xf32, #tpu.memory_space<vmem>>, vector<8x256xf32>
    %c0_251 = arith.constant 0 : index
    %c129_252 = arith.constant 129 : index
    %407 = vector.load %arg5[%c0_251, %c129_252] : memref<8x512xf32, #tpu.memory_space<vmem>>, vector<8x256xf32>
    %408 = tpu.concatenate %405, %406, %407 in 0 : vector<8x256xf32>, vector<8x256xf32>, vector<8x256xf32> -> vector<24x256xf32>
    %cst_253 = arith.constant dense<0.000000e+00> : vector<8x256xf32>
    %409 = tpu.matmul %9, %408, %cst_253 {dimension_numbers = #tpu.dot_dimension_numbers<[1], [0], [0], [1], [0, 0, 1, 1], [], []>} : vector<8x24xf32>, vector<24x256xf32>, vector<8x256xf32> -> vector<8x256xf32>
    %410 = vector.broadcast %13 : vector<8x1xf32> to vector<8x256xf32>
    %411 = arith.addf %409, %410 : vector<8x256xf32>
    %412 = arith.addf %5, %411 : vector<8x256xf32>
    %c2_254 = arith.constant 2 : index
    %c0_255 = arith.constant 0 : index
    %c0_256 = arith.constant 0 : index
    %413 = vector.load %arg2[%c2_254, %c0_255, %c0_256] : memref<6x8x24xf32, #tpu.memory_space<vmem>>, vector<1x8x24xf32>
    %414 = vector.shape_cast %413 : vector<1x8x24xf32> to vector<8x24xf32>
    %c3_257 = arith.constant 3 : index
    %c0_258 = arith.constant 0 : index
    %c0_259 = arith.constant 0 : index
    %415 = vector.load %arg2[%c3_257, %c0_258, %c0_259] : memref<6x8x24xf32, #tpu.memory_space<vmem>>, vector<1x8x24xf32>
    %416 = vector.shape_cast %415 : vector<1x8x24xf32> to vector<8x24xf32>
    %c6 = arith.constant 6 : index
    %c0_260 = arith.constant 0 : index
    %c0_261 = arith.constant 0 : index
    %417 = vector.load %arg3[%c6, %c0_260, %c0_261] : memref<18x8x1xf32, #tpu.memory_space<vmem>>, vector<1x8x1xf32>
    %418 = vector.shape_cast %417 : vector<1x8x1xf32> to vector<8x1xf32>
    %c7 = arith.constant 7 : index
    %c0_262 = arith.constant 0 : index
    %c0_263 = arith.constant 0 : index
    %419 = vector.load %arg3[%c7, %c0_262, %c0_263] : memref<18x8x1xf32, #tpu.memory_space<vmem>>, vector<1x8x1xf32>
    %420 = vector.shape_cast %419 : vector<1x8x1xf32> to vector<8x1xf32>
    %c8 = arith.constant 8 : index
    %c0_264 = arith.constant 0 : index
    %c0_265 = arith.constant 0 : index
    %421 = vector.load %arg3[%c8, %c0_264, %c0_265] : memref<18x8x1xf32, #tpu.memory_space<vmem>>, vector<1x8x1xf32>
    %422 = vector.shape_cast %421 : vector<1x8x1xf32> to vector<8x1xf32>
    %423 = math.exp %422 : vector<8x1xf32>
    %c9 = arith.constant 9 : index
    %c0_266 = arith.constant 0 : index
    %c0_267 = arith.constant 0 : index
    %424 = vector.load %arg3[%c9, %c0_266, %c0_267] : memref<18x8x1xf32, #tpu.memory_space<vmem>>, vector<1x8x1xf32>
    %425 = vector.shape_cast %424 : vector<1x8x1xf32> to vector<8x1xf32>
    %426 = math.exp %425 : vector<8x1xf32>
    %cst_268 = arith.constant 9.99999971E-10 : f32
    %427 = vector.broadcast %cst_268 : f32 to vector<8x1xf32>
    %428 = arith.addf %426, %427 : vector<8x1xf32>
    %429 = tpu.reciprocal %428 : vector<8x1xf32> -> vector<8x1xf32>
    %c10 = arith.constant 10 : index
    %c0_269 = arith.constant 0 : index
    %c0_270 = arith.constant 0 : index
    %430 = vector.load %arg3[%c10, %c0_269, %c0_270] : memref<18x8x1xf32, #tpu.memory_space<vmem>>, vector<1x8x1xf32>
    %431 = vector.shape_cast %430 : vector<1x8x1xf32> to vector<8x1xf32>
    %432 = math.exp %431 : vector<8x1xf32>
    %c11 = arith.constant 11 : index
    %c0_271 = arith.constant 0 : index
    %c0_272 = arith.constant 0 : index
    %433 = vector.load %arg3[%c11, %c0_271, %c0_272] : memref<18x8x1xf32, #tpu.memory_space<vmem>>, vector<1x8x1xf32>
    %434 = vector.shape_cast %433 : vector<1x8x1xf32> to vector<8x1xf32>
    %435 = math.exp %434 : vector<8x1xf32>
    %cst_273 = arith.constant 9.99999971E-10 : f32
    %436 = vector.broadcast %cst_273 : f32 to vector<8x1xf32>
    %437 = arith.addf %435, %436 : vector<8x1xf32>
    %438 = tpu.reciprocal %437 : vector<8x1xf32> -> vector<8x1xf32>
    %c0_274 = arith.constant 0 : index
    %c128_275 = arith.constant 128 : index
    %439 = vector.load %arg5[%c0_274, %c128_275] : memref<8x512xf32, #tpu.memory_space<vmem>>, vector<8x256xf32>
    tpu.vector_store %arg5[%c0_274, %c128_275], %412 {strides = array<i32>} : memref<8x512xf32, #tpu.memory_space<vmem>>, vector<8x256xf32>,
    %c0_276 = arith.constant 0 : index
    %c125_277 = arith.constant 125 : index
    %440 = vector.load %arg5[%c0_276, %c125_277] : memref<8x512xf32, #tpu.memory_space<vmem>>, vector<8x256xf32>
    %cst_278 = arith.constant 9.11752463E-20 : f32
    %441 = vector.broadcast %cst_278 : f32 to vector<8x256xf32>
    %442 = arith.mulf %441, %440 : vector<8x256xf32>
    %c0_279 = arith.constant 0 : index
    %c126_280 = arith.constant 126 : index
    %443 = vector.load %arg5[%c0_279, %c126_280] : memref<8x512xf32, #tpu.memory_space<vmem>>, vector<8x256xf32>
    %cst_281 = arith.constant -5.9258731E-18 : f32
    %444 = vector.broadcast %cst_281 : f32 to vector<8x256xf32>
    %445 = arith.mulf %444, %443 : vector<8x256xf32>
    %446 = arith.addf %442, %445 : vector<8x256xf32>
    %c0_282 = arith.constant 0 : index
    %c127_283 = arith.constant 127 : index
    %447 = vector.load %arg5[%c0_282, %c127_283] : memref<8x512xf32, #tpu.memory_space<vmem>>, vector<8x256xf32>
    %cst_284 = arith.constant 2.54357492E-17 : f32
    %448 = vector.broadcast %cst_284 : f32 to vector<8x256xf32>
    %449 = arith.mulf %448, %447 : vector<8x256xf32>
    %450 = arith.addf %446, %449 : vector<8x256xf32>
    %c0_285 = arith.constant 0 : index
    %c128_286 = arith.constant 128 : index
    %451 = vector.load %arg5[%c0_285, %c128_286] : memref<8x512xf32, #tpu.memory_space<vmem>>, vector<8x256xf32>
    %cst_287 = arith.constant 1.0000397 : f32
    %452 = vector.broadcast %cst_287 : f32 to vector<8x256xf32>
    %453 = arith.mulf %452, %451 : vector<8x256xf32>
    %454 = arith.addf %450, %453 : vector<8x256xf32>
    %c0_288 = arith.constant 0 : index
    %c129_289 = arith.constant 129 : index
    %455 = vector.load %arg5[%c0_288, %c129_289] : memref<8x512xf32, #tpu.memory_space<vmem>>, vector<8x256xf32>
    %cst_290 = arith.constant 2.54357492E-17 : f32
    %456 = vector.broadcast %cst_290 : f32 to vector<8x256xf32>
    %457 = arith.mulf %456, %455 : vector<8x256xf32>
    %458 = arith.addf %454, %457 : vector<8x256xf32>
    %c0_291 = arith.constant 0 : index
    %c130_292 = arith.constant 130 : index
    %459 = vector.load %arg5[%c0_291, %c130_292] : memref<8x512xf32, #tpu.memory_space<vmem>>, vector<8x256xf32>
    %cst_293 = arith.constant -5.9258731E-18 : f32
    %460 = vector.broadcast %cst_293 : f32 to vector<8x256xf32>
    %461 = arith.mulf %460, %459 : vector<8x256xf32>
    %462 = arith.addf %458, %461 : vector<8x256xf32>
    %c0_294 = arith.constant 0 : index
    %c131_295 = arith.constant 131 : index
    %463 = vector.load %arg5[%c0_294, %c131_295] : memref<8x512xf32, #tpu.memory_space<vmem>>, vector<8x256xf32>
    %cst_296 = arith.constant 9.11752463E-20 : f32
    %464 = vector.broadcast %cst_296 : f32 to vector<8x256xf32>
    %465 = arith.mulf %464, %463 : vector<8x256xf32>
    %466 = arith.addf %462, %465 : vector<8x256xf32>
    %c0_297 = arith.constant 0 : index
    %c126_298 = arith.constant 126 : index
    %467 = vector.load %arg5[%c0_297, %c126_298] : memref<8x512xf32, #tpu.memory_space<vmem>>, vector<8x256xf32>
    %cst_299 = arith.constant 0.00486158906 : f32
    %468 = vector.broadcast %cst_299 : f32 to vector<8x256xf32>
    %469 = arith.mulf %468, %467 : vector<8x256xf32>
    %c0_300 = arith.constant 0 : index
    %c127_301 = arith.constant 127 : index
    %470 = vector.load %arg5[%c0_300, %c127_301] : memref<8x512xf32, #tpu.memory_space<vmem>>, vector<8x256xf32>
    %cst_302 = arith.constant -0.078301549 : f32
    %471 = vector.broadcast %cst_302 : f32 to vector<8x256xf32>
    %472 = arith.mulf %471, %470 : vector<8x256xf32>
    %473 = arith.addf %469, %472 : vector<8x256xf32>
    %c0_303 = arith.constant 0 : index
    %c128_304 = arith.constant 128 : index
    %474 = vector.load %arg5[%c0_303, %c128_304] : memref<8x512xf32, #tpu.memory_space<vmem>>, vector<8x256xf32>
    %cst_305 = arith.constant 0.573420107 : f32
    %475 = vector.broadcast %cst_305 : f32 to vector<8x256xf32>
    %476 = arith.mulf %475, %474 : vector<8x256xf32>
    %477 = arith.addf %473, %476 : vector<8x256xf32>
    %c0_306 = arith.constant 0 : index
    %c129_307 = arith.constant 129 : index
    %478 = vector.load %arg5[%c0_306, %c129_307] : memref<8x512xf32, #tpu.memory_space<vmem>>, vector<8x256xf32>
    %cst_308 = arith.constant 0.573420107 : f32
    %479 = vector.broadcast %cst_308 : f32 to vector<8x256xf32>
    %480 = arith.mulf %479, %478 : vector<8x256xf32>
    %481 = arith.addf %477, %480 : vector<8x256xf32>
    %c0_309 = arith.constant 0 : index
    %c130_310 = arith.constant 130 : index
    %482 = vector.load %arg5[%c0_309, %c130_310] : memref<8x512xf32, #tpu.memory_space<vmem>>, vector<8x256xf32>
    %cst_311 = arith.constant -0.078301549 : f32
    %483 = vector.broadcast %cst_311 : f32 to vector<8x256xf32>
    %484 = arith.mulf %483, %482 : vector<8x256xf32>
    %485 = arith.addf %481, %484 : vector<8x256xf32>
    %c0_312 = arith.constant 0 : index
    %c131_313 = arith.constant 131 : index
    %486 = vector.load %arg5[%c0_312, %c131_313] : memref<8x512xf32, #tpu.memory_space<vmem>>, vector<8x256xf32>
    %cst_314 = arith.constant 0.00486158906 : f32
    %487 = vector.broadcast %cst_314 : f32 to vector<8x256xf32>
    %488 = arith.mulf %487, %486 : vector<8x256xf32>
    %489 = arith.addf %485, %488 : vector<8x256xf32>
    %490 = vector.broadcast %423 : vector<8x1xf32> to vector<8x256xf32>
    %491 = arith.mulf %490, %466 : vector<8x256xf32>
    %cst_315 = arith.constant 6.28318548 : f32
    %492 = vector.broadcast %cst_315 : f32 to vector<8x256xf32>
    %493 = arith.divf %491, %492 : vector<8x256xf32>
    %cst_316 = arith.constant 5.000000e-01 : f32
    %494 = vector.broadcast %cst_316 : f32 to vector<8x256xf32>
    %495 = arith.addf %493, %494 : vector<8x256xf32>
    %496 = math.floor %495 : vector<8x256xf32>
    %cst_317 = arith.constant 6.28318548 : f32
    %497 = vector.broadcast %cst_317 : f32 to vector<8x256xf32>
    %498 = arith.mulf %497, %496 : vector<8x256xf32>
    %499 = arith.subf %491, %498 : vector<8x256xf32>
    %cst_318 = arith.constant 1.57079637 : f32
    %500 = vector.broadcast %cst_318 : f32 to vector<8x256xf32>
    %501 = arith.cmpf ogt, %499, %500 : vector<8x256xf32>
    %cst_319 = arith.constant 3.14159274 : f32
    %502 = vector.broadcast %cst_319 : f32 to vector<8x256xf32>
    %503 = arith.subf %502, %499 : vector<8x256xf32>
    %504 = arith.select %501, %503, %499 : vector<8x256xi1>, vector<8x256xf32>
    %cst_320 = arith.constant -1.57079637 : f32
    %505 = vector.broadcast %cst_320 : f32 to vector<8x256xf32>
    %506 = arith.cmpf olt, %504, %505 : vector<8x256xf32>
    %cst_321 = arith.constant -3.14159274 : f32
    %507 = vector.broadcast %cst_321 : f32 to vector<8x256xf32>
    %508 = arith.subf %507, %504 : vector<8x256xf32>
    %509 = arith.select %506, %508, %504 : vector<8x256xi1>, vector<8x256xf32>
    %510 = arith.mulf %509, %509 : vector<8x256xf32>
    %cst_322 = arith.constant 2.75573188E-6 : f32
    %511 = vector.broadcast %cst_322 : f32 to vector<8x256xf32>
    %512 = arith.mulf %510, %511 : vector<8x256xf32>
    %cst_323 = arith.constant -1.98412701E-4 : f32
    %513 = vector.broadcast %cst_323 : f32 to vector<8x256xf32>
    %514 = arith.addf %513, %512 : vector<8x256xf32>
    %515 = arith.mulf %510, %514 : vector<8x256xf32>
    %cst_324 = arith.constant 0.00833333377 : f32
    %516 = vector.broadcast %cst_324 : f32 to vector<8x256xf32>
    %517 = arith.addf %516, %515 : vector<8x256xf32>
    %518 = arith.mulf %510, %517 : vector<8x256xf32>
    %cst_325 = arith.constant -0.166666672 : f32
    %519 = vector.broadcast %cst_325 : f32 to vector<8x256xf32>
    %520 = arith.addf %519, %518 : vector<8x256xf32>
    %521 = arith.mulf %510, %520 : vector<8x256xf32>
    %cst_326 = arith.constant 1.000000e+00 : f32
    %522 = vector.broadcast %cst_326 : f32 to vector<8x256xf32>
    %523 = arith.addf %522, %521 : vector<8x256xf32>
    %524 = arith.mulf %509, %523 : vector<8x256xf32>
    %525 = arith.mulf %524, %524 : vector<8x256xf32>
    %526 = vector.broadcast %429 : vector<8x1xf32> to vector<8x256xf32>
    %527 = arith.mulf %525, %526 : vector<8x256xf32>
    %528 = arith.addf %466, %527 : vector<8x256xf32>
    %529 = vector.broadcast %423 : vector<8x1xf32> to vector<8x256xf32>
    %530 = arith.mulf %529, %489 : vector<8x256xf32>
    %cst_327 = arith.constant 6.28318548 : f32
    %531 = vector.broadcast %cst_327 : f32 to vector<8x256xf32>
    %532 = arith.divf %530, %531 : vector<8x256xf32>
    %cst_328 = arith.constant 5.000000e-01 : f32
    %533 = vector.broadcast %cst_328 : f32 to vector<8x256xf32>
    %534 = arith.addf %532, %533 : vector<8x256xf32>
    %535 = math.floor %534 : vector<8x256xf32>
    %cst_329 = arith.constant 6.28318548 : f32
    %536 = vector.broadcast %cst_329 : f32 to vector<8x256xf32>
    %537 = arith.mulf %536, %535 : vector<8x256xf32>
    %538 = arith.subf %530, %537 : vector<8x256xf32>
    %cst_330 = arith.constant 1.57079637 : f32
    %539 = vector.broadcast %cst_330 : f32 to vector<8x256xf32>
    %540 = arith.cmpf ogt, %538, %539 : vector<8x256xf32>
    %cst_331 = arith.constant 3.14159274 : f32
    %541 = vector.broadcast %cst_331 : f32 to vector<8x256xf32>
    %542 = arith.subf %541, %538 : vector<8x256xf32>
    %543 = arith.select %540, %542, %538 : vector<8x256xi1>, vector<8x256xf32>
    %cst_332 = arith.constant -1.57079637 : f32
    %544 = vector.broadcast %cst_332 : f32 to vector<8x256xf32>
    %545 = arith.cmpf olt, %543, %544 : vector<8x256xf32>
    %cst_333 = arith.constant -3.14159274 : f32
    %546 = vector.broadcast %cst_333 : f32 to vector<8x256xf32>
    %547 = arith.subf %546, %543 : vector<8x256xf32>
    %548 = arith.select %545, %547, %543 : vector<8x256xi1>, vector<8x256xf32>
    %549 = arith.mulf %548, %548 : vector<8x256xf32>
    %cst_334 = arith.constant 2.75573188E-6 : f32
    %550 = vector.broadcast %cst_334 : f32 to vector<8x256xf32>
    %551 = arith.mulf %549, %550 : vector<8x256xf32>
    %cst_335 = arith.constant -1.98412701E-4 : f32
    %552 = vector.broadcast %cst_335 : f32 to vector<8x256xf32>
    %553 = arith.addf %552, %551 : vector<8x256xf32>
    %554 = arith.mulf %549, %553 : vector<8x256xf32>
    %cst_336 = arith.constant 0.00833333377 : f32
    %555 = vector.broadcast %cst_336 : f32 to vector<8x256xf32>
    %556 = arith.addf %555, %554 : vector<8x256xf32>
    %557 = arith.mulf %549, %556 : vector<8x256xf32>
    %cst_337 = arith.constant -0.166666672 : f32
    %558 = vector.broadcast %cst_337 : f32 to vector<8x256xf32>
    %559 = arith.addf %558, %557 : vector<8x256xf32>
    %560 = arith.mulf %549, %559 : vector<8x256xf32>
    %cst_338 = arith.constant 1.000000e+00 : f32
    %561 = vector.broadcast %cst_338 : f32 to vector<8x256xf32>
    %562 = arith.addf %561, %560 : vector<8x256xf32>
    %563 = arith.mulf %548, %562 : vector<8x256xf32>
    %564 = arith.mulf %563, %563 : vector<8x256xf32>
    %565 = vector.broadcast %429 : vector<8x1xf32> to vector<8x256xf32>
    %566 = arith.mulf %564, %565 : vector<8x256xf32>
    %567 = arith.addf %489, %566 : vector<8x256xf32>
    %c0_339 = arith.constant 0 : index
    %c128_340 = arith.constant 128 : index
    %568 = vector.load %arg5[%c0_339, %c128_340] : memref<8x512xf32, #tpu.memory_space<vmem>>, vector<8x256xf32>
    tpu.vector_store %arg5[%c0_339, %c128_340], %528 {strides = array<i32>} : memref<8x512xf32, #tpu.memory_space<vmem>>, vector<8x256xf32>,
    %c0_341 = arith.constant 0 : index
    %c125_342 = arith.constant 125 : index
    %569 = vector.load %arg5[%c0_341, %c125_342] : memref<8x512xf32, #tpu.memory_space<vmem>>, vector<8x256xf32>
    %cst_343 = arith.constant 4.55876232E-20 : f32
    %570 = vector.broadcast %cst_343 : f32 to vector<8x256xf32>
    %571 = arith.mulf %570, %569 : vector<8x256xf32>
    %c0_344 = arith.constant 0 : index
    %c126_345 = arith.constant 126 : index
    %572 = vector.load %arg5[%c0_344, %c126_345] : memref<8x512xf32, #tpu.memory_space<vmem>>, vector<8x256xf32>
    %cst_346 = arith.constant -2.96293655E-18 : f32
    %573 = vector.broadcast %cst_346 : f32 to vector<8x256xf32>
    %574 = arith.mulf %573, %572 : vector<8x256xf32>
    %575 = arith.addf %571, %574 : vector<8x256xf32>
    %c0_347 = arith.constant 0 : index
    %c127_348 = arith.constant 127 : index
    %576 = vector.load %arg5[%c0_347, %c127_348] : memref<8x512xf32, #tpu.memory_space<vmem>>, vector<8x256xf32>
    %cst_349 = arith.constant 1.27178746E-17 : f32
    %577 = vector.broadcast %cst_349 : f32 to vector<8x256xf32>
    %578 = arith.mulf %577, %576 : vector<8x256xf32>
    %579 = arith.addf %575, %578 : vector<8x256xf32>
    %c0_350 = arith.constant 0 : index
    %c128_351 = arith.constant 128 : index
    %580 = vector.load %arg5[%c0_350, %c128_351] : memref<8x512xf32, #tpu.memory_space<vmem>>, vector<8x256xf32>
    %cst_352 = arith.constant 0.500019848 : f32
    %581 = vector.broadcast %cst_352 : f32 to vector<8x256xf32>
    %582 = arith.mulf %581, %580 : vector<8x256xf32>
    %583 = arith.addf %579, %582 : vector<8x256xf32>
    %c0_353 = arith.constant 0 : index
    %c129_354 = arith.constant 129 : index
    %584 = vector.load %arg5[%c0_353, %c129_354] : memref<8x512xf32, #tpu.memory_space<vmem>>, vector<8x256xf32>
    %cst_355 = arith.constant 1.27178746E-17 : f32
    %585 = vector.broadcast %cst_355 : f32 to vector<8x256xf32>
    %586 = arith.mulf %585, %584 : vector<8x256xf32>
    %587 = arith.addf %583, %586 : vector<8x256xf32>
    %c0_356 = arith.constant 0 : index
    %c130_357 = arith.constant 130 : index
    %588 = vector.load %arg5[%c0_356, %c130_357] : memref<8x512xf32, #tpu.memory_space<vmem>>, vector<8x256xf32>
    %cst_358 = arith.constant -2.96293655E-18 : f32
    %589 = vector.broadcast %cst_358 : f32 to vector<8x256xf32>
    %590 = arith.mulf %589, %588 : vector<8x256xf32>
    %591 = arith.addf %587, %590 : vector<8x256xf32>
    %c0_359 = arith.constant 0 : index
    %c131_360 = arith.constant 131 : index
    %592 = vector.load %arg5[%c0_359, %c131_360] : memref<8x512xf32, #tpu.memory_space<vmem>>, vector<8x256xf32>
    %cst_361 = arith.constant 4.55876232E-20 : f32
    %593 = vector.broadcast %cst_361 : f32 to vector<8x256xf32>
    %594 = arith.mulf %593, %592 : vector<8x256xf32>
    %595 = arith.addf %591, %594 : vector<8x256xf32>
    %c0_362 = arith.constant 0 : index
    %c128_363 = arith.constant 128 : index
    %596 = vector.load %arg5[%c0_362, %c128_363] : memref<8x512xf32, #tpu.memory_space<vmem>>, vector<8x256xf32>
    tpu.vector_store %arg5[%c0_362, %c128_363], %567 {strides = array<i32>} : memref<8x512xf32, #tpu.memory_space<vmem>>, vector<8x256xf32>,
    %c0_364 = arith.constant 0 : index
    %c125_365 = arith.constant 125 : index
    %597 = vector.load %arg5[%c0_364, %c125_365] : memref<8x512xf32, #tpu.memory_space<vmem>>, vector<8x256xf32>
    %cst_366 = arith.constant 0.00243079453 : f32
    %598 = vector.broadcast %cst_366 : f32 to vector<8x256xf32>
    %599 = arith.mulf %598, %597 : vector<8x256xf32>
    %c0_367 = arith.constant 0 : index
    %c126_368 = arith.constant 126 : index
    %600 = vector.load %arg5[%c0_367, %c126_368] : memref<8x512xf32, #tpu.memory_space<vmem>>, vector<8x256xf32>
    %cst_369 = arith.constant -0.0391507745 : f32
    %601 = vector.broadcast %cst_369 : f32 to vector<8x256xf32>
    %602 = arith.mulf %601, %600 : vector<8x256xf32>
    %603 = arith.addf %599, %602 : vector<8x256xf32>
    %c0_370 = arith.constant 0 : index
    %c127_371 = arith.constant 127 : index
    %604 = vector.load %arg5[%c0_370, %c127_371] : memref<8x512xf32, #tpu.memory_space<vmem>>, vector<8x256xf32>
    %cst_372 = arith.constant 0.286710054 : f32
    %605 = vector.broadcast %cst_372 : f32 to vector<8x256xf32>
    %606 = arith.mulf %605, %604 : vector<8x256xf32>
    %607 = arith.addf %603, %606 : vector<8x256xf32>
    %c0_373 = arith.constant 0 : index
    %c128_374 = arith.constant 128 : index
    %608 = vector.load %arg5[%c0_373, %c128_374] : memref<8x512xf32, #tpu.memory_space<vmem>>, vector<8x256xf32>
    %cst_375 = arith.constant 0.286710054 : f32
    %609 = vector.broadcast %cst_375 : f32 to vector<8x256xf32>
    %610 = arith.mulf %609, %608 : vector<8x256xf32>
    %611 = arith.addf %607, %610 : vector<8x256xf32>
    %c0_376 = arith.constant 0 : index
    %c129_377 = arith.constant 129 : index
    %612 = vector.load %arg5[%c0_376, %c129_377] : memref<8x512xf32, #tpu.memory_space<vmem>>, vector<8x256xf32>
    %cst_378 = arith.constant -0.0391507745 : f32
    %613 = vector.broadcast %cst_378 : f32 to vector<8x256xf32>
    %614 = arith.mulf %613, %612 : vector<8x256xf32>
    %615 = arith.addf %611, %614 : vector<8x256xf32>
    %c0_379 = arith.constant 0 : index
    %c130_380 = arith.constant 130 : index
    %616 = vector.load %arg5[%c0_379, %c130_380] : memref<8x512xf32, #tpu.memory_space<vmem>>, vector<8x256xf32>
    %cst_381 = arith.constant 0.00243079453 : f32
    %617 = vector.broadcast %cst_381 : f32 to vector<8x256xf32>
    %618 = arith.mulf %617, %616 : vector<8x256xf32>
    %619 = arith.addf %615, %618 : vector<8x256xf32>
    %620 = arith.addf %595, %619 : vector<8x256xf32>
    %c0_382 = arith.constant 0 : index
    %c128_383 = arith.constant 128 : index
    %621 = vector.load %arg5[%c0_382, %c128_383] : memref<8x512xf32, #tpu.memory_space<vmem>>, vector<8x256xf32>
    tpu.vector_store %arg5[%c0_382, %c128_383], %620 {strides = array<i32>} : memref<8x512xf32, #tpu.memory_space<vmem>>, vector<8x256xf32>,
    %c0_384 = arith.constant 0 : index
    %c125_385 = arith.constant 125 : index
    %622 = vector.load %arg5[%c0_384, %c125_385] : memref<8x512xf32, #tpu.memory_space<vmem>>, vector<8x256xf32>
    %c0_386 = arith.constant 0 : index
    %c128_387 = arith.constant 128 : index
    %623 = vector.load %arg5[%c0_386, %c128_387] : memref<8x512xf32, #tpu.memory_space<vmem>>, vector<8x256xf32>
    %c0_388 = arith.constant 0 : index
    %c131_389 = arith.constant 131 : index
    %624 = vector.load %arg5[%c0_388, %c131_389] : memref<8x512xf32, #tpu.memory_space<vmem>>, vector<8x256xf32>
    %625 = tpu.concatenate %622, %623, %624 in 0 : vector<8x256xf32>, vector<8x256xf32>, vector<8x256xf32> -> vector<24x256xf32>
    %cst_390 = arith.constant dense<0.000000e+00> : vector<8x256xf32>
    %626 = tpu.matmul %414, %625, %cst_390 {dimension_numbers = #tpu.dot_dimension_numbers<[1], [0], [0], [1], [0, 0, 1, 1], [], []>} : vector<8x24xf32>, vector<24x256xf32>, vector<8x256xf32> -> vector<8x256xf32>
    %627 = vector.broadcast %418 : vector<8x1xf32> to vector<8x256xf32>
    %628 = arith.addf %626, %627 : vector<8x256xf32>
    %c0_391 = arith.constant 0 : index
    %c128_392 = arith.constant 128 : index
    %629 = vector.load %arg5[%c0_391, %c128_392] : memref<8x512xf32, #tpu.memory_space<vmem>>, vector<8x256xf32>
    tpu.vector_store %arg5[%c0_391, %c128_392], %628 {strides = array<i32>} : memref<8x512xf32, #tpu.memory_space<vmem>>, vector<8x256xf32>,
    %c0_393 = arith.constant 0 : index
    %c125_394 = arith.constant 125 : index
    %630 = vector.load %arg5[%c0_393, %c125_394] : memref<8x512xf32, #tpu.memory_space<vmem>>, vector<8x256xf32>
    %cst_395 = arith.constant 9.11752463E-20 : f32
    %631 = vector.broadcast %cst_395 : f32 to vector<8x256xf32>
    %632 = arith.mulf %631, %630 : vector<8x256xf32>
    %c0_396 = arith.constant 0 : index
    %c126_397 = arith.constant 126 : index
    %633 = vector.load %arg5[%c0_396, %c126_397] : memref<8x512xf32, #tpu.memory_space<vmem>>, vector<8x256xf32>
    %cst_398 = arith.constant -5.9258731E-18 : f32
    %634 = vector.broadcast %cst_398 : f32 to vector<8x256xf32>
    %635 = arith.mulf %634, %633 : vector<8x256xf32>
    %636 = arith.addf %632, %635 : vector<8x256xf32>
    %c0_399 = arith.constant 0 : index
    %c127_400 = arith.constant 127 : index
    %637 = vector.load %arg5[%c0_399, %c127_400] : memref<8x512xf32, #tpu.memory_space<vmem>>, vector<8x256xf32>
    %cst_401 = arith.constant 2.54357492E-17 : f32
    %638 = vector.broadcast %cst_401 : f32 to vector<8x256xf32>
    %639 = arith.mulf %638, %637 : vector<8x256xf32>
    %640 = arith.addf %636, %639 : vector<8x256xf32>
    %c0_402 = arith.constant 0 : index
    %c128_403 = arith.constant 128 : index
    %641 = vector.load %arg5[%c0_402, %c128_403] : memref<8x512xf32, #tpu.memory_space<vmem>>, vector<8x256xf32>
    %cst_404 = arith.constant 1.0000397 : f32
    %642 = vector.broadcast %cst_404 : f32 to vector<8x256xf32>
    %643 = arith.mulf %642, %641 : vector<8x256xf32>
    %644 = arith.addf %640, %643 : vector<8x256xf32>
    %c0_405 = arith.constant 0 : index
    %c129_406 = arith.constant 129 : index
    %645 = vector.load %arg5[%c0_405, %c129_406] : memref<8x512xf32, #tpu.memory_space<vmem>>, vector<8x256xf32>
    %cst_407 = arith.constant 2.54357492E-17 : f32
    %646 = vector.broadcast %cst_407 : f32 to vector<8x256xf32>
    %647 = arith.mulf %646, %645 : vector<8x256xf32>
    %648 = arith.addf %644, %647 : vector<8x256xf32>
    %c0_408 = arith.constant 0 : index
    %c130_409 = arith.constant 130 : index
    %649 = vector.load %arg5[%c0_408, %c130_409] : memref<8x512xf32, #tpu.memory_space<vmem>>, vector<8x256xf32>
    %cst_410 = arith.constant -5.9258731E-18 : f32
    %650 = vector.broadcast %cst_410 : f32 to vector<8x256xf32>
    %651 = arith.mulf %650, %649 : vector<8x256xf32>
    %652 = arith.addf %648, %651 : vector<8x256xf32>
    %c0_411 = arith.constant 0 : index
    %c131_412 = arith.constant 131 : index
    %653 = vector.load %arg5[%c0_411, %c131_412] : memref<8x512xf32, #tpu.memory_space<vmem>>, vector<8x256xf32>
    %cst_413 = arith.constant 9.11752463E-20 : f32
    %654 = vector.broadcast %cst_413 : f32 to vector<8x256xf32>
    %655 = arith.mulf %654, %653 : vector<8x256xf32>
    %656 = arith.addf %652, %655 : vector<8x256xf32>
    %c0_414 = arith.constant 0 : index
    %c126_415 = arith.constant 126 : index
    %657 = vector.load %arg5[%c0_414, %c126_415] : memref<8x512xf32, #tpu.memory_space<vmem>>, vector<8x256xf32>
    %cst_416 = arith.constant 0.00486158906 : f32
    %658 = vector.broadcast %cst_416 : f32 to vector<8x256xf32>
    %659 = arith.mulf %658, %657 : vector<8x256xf32>
    %c0_417 = arith.constant 0 : index
    %c127_418 = arith.constant 127 : index
    %660 = vector.load %arg5[%c0_417, %c127_418] : memref<8x512xf32, #tpu.memory_space<vmem>>, vector<8x256xf32>
    %cst_419 = arith.constant -0.078301549 : f32
    %661 = vector.broadcast %cst_419 : f32 to vector<8x256xf32>
    %662 = arith.mulf %661, %660 : vector<8x256xf32>
    %663 = arith.addf %659, %662 : vector<8x256xf32>
    %c0_420 = arith.constant 0 : index
    %c128_421 = arith.constant 128 : index
    %664 = vector.load %arg5[%c0_420, %c128_421] : memref<8x512xf32, #tpu.memory_space<vmem>>, vector<8x256xf32>
    %cst_422 = arith.constant 0.573420107 : f32
    %665 = vector.broadcast %cst_422 : f32 to vector<8x256xf32>
    %666 = arith.mulf %665, %664 : vector<8x256xf32>
    %667 = arith.addf %663, %666 : vector<8x256xf32>
    %c0_423 = arith.constant 0 : index
    %c129_424 = arith.constant 129 : index
    %668 = vector.load %arg5[%c0_423, %c129_424] : memref<8x512xf32, #tpu.memory_space<vmem>>, vector<8x256xf32>
    %cst_425 = arith.constant 0.573420107 : f32
    %669 = vector.broadcast %cst_425 : f32 to vector<8x256xf32>
    %670 = arith.mulf %669, %668 : vector<8x256xf32>
    %671 = arith.addf %667, %670 : vector<8x256xf32>
    %c0_426 = arith.constant 0 : index
    %c130_427 = arith.constant 130 : index
    %672 = vector.load %arg5[%c0_426, %c130_427] : memref<8x512xf32, #tpu.memory_space<vmem>>, vector<8x256xf32>
    %cst_428 = arith.constant -0.078301549 : f32
    %673 = vector.broadcast %cst_428 : f32 to vector<8x256xf32>
    %674 = arith.mulf %673, %672 : vector<8x256xf32>
    %675 = arith.addf %671, %674 : vector<8x256xf32>
    %c0_429 = arith.constant 0 : index
    %c131_430 = arith.constant 131 : index
    %676 = vector.load %arg5[%c0_429, %c131_430] : memref<8x512xf32, #tpu.memory_space<vmem>>, vector<8x256xf32>
    %cst_431 = arith.constant 0.00486158906 : f32
    %677 = vector.broadcast %cst_431 : f32 to vector<8x256xf32>
    %678 = arith.mulf %677, %676 : vector<8x256xf32>
    %679 = arith.addf %675, %678 : vector<8x256xf32>
    %680 = vector.broadcast %432 : vector<8x1xf32> to vector<8x256xf32>
    %681 = arith.mulf %680, %656 : vector<8x256xf32>
    %cst_432 = arith.constant 6.28318548 : f32
    %682 = vector.broadcast %cst_432 : f32 to vector<8x256xf32>
    %683 = arith.divf %681, %682 : vector<8x256xf32>
    %cst_433 = arith.constant 5.000000e-01 : f32
    %684 = vector.broadcast %cst_433 : f32 to vector<8x256xf32>
    %685 = arith.addf %683, %684 : vector<8x256xf32>
    %686 = math.floor %685 : vector<8x256xf32>
    %cst_434 = arith.constant 6.28318548 : f32
    %687 = vector.broadcast %cst_434 : f32 to vector<8x256xf32>
    %688 = arith.mulf %687, %686 : vector<8x256xf32>
    %689 = arith.subf %681, %688 : vector<8x256xf32>
    %cst_435 = arith.constant 1.57079637 : f32
    %690 = vector.broadcast %cst_435 : f32 to vector<8x256xf32>
    %691 = arith.cmpf ogt, %689, %690 : vector<8x256xf32>
    %cst_436 = arith.constant 3.14159274 : f32
    %692 = vector.broadcast %cst_436 : f32 to vector<8x256xf32>
    %693 = arith.subf %692, %689 : vector<8x256xf32>
    %694 = arith.select %691, %693, %689 : vector<8x256xi1>, vector<8x256xf32>
    %cst_437 = arith.constant -1.57079637 : f32
    %695 = vector.broadcast %cst_437 : f32 to vector<8x256xf32>
    %696 = arith.cmpf olt, %694, %695 : vector<8x256xf32>
    %cst_438 = arith.constant -3.14159274 : f32
    %697 = vector.broadcast %cst_438 : f32 to vector<8x256xf32>
    %698 = arith.subf %697, %694 : vector<8x256xf32>
    %699 = arith.select %696, %698, %694 : vector<8x256xi1>, vector<8x256xf32>
    %700 = arith.mulf %699, %699 : vector<8x256xf32>
    %cst_439 = arith.constant 2.75573188E-6 : f32
    %701 = vector.broadcast %cst_439 : f32 to vector<8x256xf32>
    %702 = arith.mulf %700, %701 : vector<8x256xf32>
    %cst_440 = arith.constant -1.98412701E-4 : f32
    %703 = vector.broadcast %cst_440 : f32 to vector<8x256xf32>
    %704 = arith.addf %703, %702 : vector<8x256xf32>
    %705 = arith.mulf %700, %704 : vector<8x256xf32>
    %cst_441 = arith.constant 0.00833333377 : f32
    %706 = vector.broadcast %cst_441 : f32 to vector<8x256xf32>
    %707 = arith.addf %706, %705 : vector<8x256xf32>
    %708 = arith.mulf %700, %707 : vector<8x256xf32>
    %cst_442 = arith.constant -0.166666672 : f32
    %709 = vector.broadcast %cst_442 : f32 to vector<8x256xf32>
    %710 = arith.addf %709, %708 : vector<8x256xf32>
    %711 = arith.mulf %700, %710 : vector<8x256xf32>
    %cst_443 = arith.constant 1.000000e+00 : f32
    %712 = vector.broadcast %cst_443 : f32 to vector<8x256xf32>
    %713 = arith.addf %712, %711 : vector<8x256xf32>
    %714 = arith.mulf %699, %713 : vector<8x256xf32>
    %715 = arith.mulf %714, %714 : vector<8x256xf32>
    %716 = vector.broadcast %438 : vector<8x1xf32> to vector<8x256xf32>
    %717 = arith.mulf %715, %716 : vector<8x256xf32>
    %718 = arith.addf %656, %717 : vector<8x256xf32>
    %719 = vector.broadcast %432 : vector<8x1xf32> to vector<8x256xf32>
    %720 = arith.mulf %719, %679 : vector<8x256xf32>
    %cst_444 = arith.constant 6.28318548 : f32
    %721 = vector.broadcast %cst_444 : f32 to vector<8x256xf32>
    %722 = arith.divf %720, %721 : vector<8x256xf32>
    %cst_445 = arith.constant 5.000000e-01 : f32
    %723 = vector.broadcast %cst_445 : f32 to vector<8x256xf32>
    %724 = arith.addf %722, %723 : vector<8x256xf32>
    %725 = math.floor %724 : vector<8x256xf32>
    %cst_446 = arith.constant 6.28318548 : f32
    %726 = vector.broadcast %cst_446 : f32 to vector<8x256xf32>
    %727 = arith.mulf %726, %725 : vector<8x256xf32>
    %728 = arith.subf %720, %727 : vector<8x256xf32>
    %cst_447 = arith.constant 1.57079637 : f32
    %729 = vector.broadcast %cst_447 : f32 to vector<8x256xf32>
    %730 = arith.cmpf ogt, %728, %729 : vector<8x256xf32>
    %cst_448 = arith.constant 3.14159274 : f32
    %731 = vector.broadcast %cst_448 : f32 to vector<8x256xf32>
    %732 = arith.subf %731, %728 : vector<8x256xf32>
    %733 = arith.select %730, %732, %728 : vector<8x256xi1>, vector<8x256xf32>
    %cst_449 = arith.constant -1.57079637 : f32
    %734 = vector.broadcast %cst_449 : f32 to vector<8x256xf32>
    %735 = arith.cmpf olt, %733, %734 : vector<8x256xf32>
    %cst_450 = arith.constant -3.14159274 : f32
    %736 = vector.broadcast %cst_450 : f32 to vector<8x256xf32>
    %737 = arith.subf %736, %733 : vector<8x256xf32>
    %738 = arith.select %735, %737, %733 : vector<8x256xi1>, vector<8x256xf32>
    %739 = arith.mulf %738, %738 : vector<8x256xf32>
    %cst_451 = arith.constant 2.75573188E-6 : f32
    %740 = vector.broadcast %cst_451 : f32 to vector<8x256xf32>
    %741 = arith.mulf %739, %740 : vector<8x256xf32>
    %cst_452 = arith.constant -1.98412701E-4 : f32
    %742 = vector.broadcast %cst_452 : f32 to vector<8x256xf32>
    %743 = arith.addf %742, %741 : vector<8x256xf32>
    %744 = arith.mulf %739, %743 : vector<8x256xf32>
    %cst_453 = arith.constant 0.00833333377 : f32
    %745 = vector.broadcast %cst_453 : f32 to vector<8x256xf32>
    %746 = arith.addf %745, %744 : vector<8x256xf32>
    %747 = arith.mulf %739, %746 : vector<8x256xf32>
    %cst_454 = arith.constant -0.166666672 : f32
    %748 = vector.broadcast %cst_454 : f32 to vector<8x256xf32>
    %749 = arith.addf %748, %747 : vector<8x256xf32>
    %750 = arith.mulf %739, %749 : vector<8x256xf32>
    %cst_455 = arith.constant 1.000000e+00 : f32
    %751 = vector.broadcast %cst_455 : f32 to vector<8x256xf32>
    %752 = arith.addf %751, %750 : vector<8x256xf32>
    %753 = arith.mulf %738, %752 : vector<8x256xf32>
    %754 = arith.mulf %753, %753 : vector<8x256xf32>
    %755 = vector.broadcast %438 : vector<8x1xf32> to vector<8x256xf32>
    %756 = arith.mulf %754, %755 : vector<8x256xf32>
    %757 = arith.addf %679, %756 : vector<8x256xf32>
    %c0_456 = arith.constant 0 : index
    %c128_457 = arith.constant 128 : index
    %758 = vector.load %arg5[%c0_456, %c128_457] : memref<8x512xf32, #tpu.memory_space<vmem>>, vector<8x256xf32>
    tpu.vector_store %arg5[%c0_456, %c128_457], %718 {strides = array<i32>} : memref<8x512xf32, #tpu.memory_space<vmem>>, vector<8x256xf32>,
    %c0_458 = arith.constant 0 : index
    %c125_459 = arith.constant 125 : index
    %759 = vector.load %arg5[%c0_458, %c125_459] : memref<8x512xf32, #tpu.memory_space<vmem>>, vector<8x256xf32>
    %cst_460 = arith.constant 4.55876232E-20 : f32
    %760 = vector.broadcast %cst_460 : f32 to vector<8x256xf32>
    %761 = arith.mulf %760, %759 : vector<8x256xf32>
    %c0_461 = arith.constant 0 : index
    %c126_462 = arith.constant 126 : index
    %762 = vector.load %arg5[%c0_461, %c126_462] : memref<8x512xf32, #tpu.memory_space<vmem>>, vector<8x256xf32>
    %cst_463 = arith.constant -2.96293655E-18 : f32
    %763 = vector.broadcast %cst_463 : f32 to vector<8x256xf32>
    %764 = arith.mulf %763, %762 : vector<8x256xf32>
    %765 = arith.addf %761, %764 : vector<8x256xf32>
    %c0_464 = arith.constant 0 : index
    %c127_465 = arith.constant 127 : index
    %766 = vector.load %arg5[%c0_464, %c127_465] : memref<8x512xf32, #tpu.memory_space<vmem>>, vector<8x256xf32>
    %cst_466 = arith.constant 1.27178746E-17 : f32
    %767 = vector.broadcast %cst_466 : f32 to vector<8x256xf32>
    %768 = arith.mulf %767, %766 : vector<8x256xf32>
    %769 = arith.addf %765, %768 : vector<8x256xf32>
    %c0_467 = arith.constant 0 : index
    %c128_468 = arith.constant 128 : index
    %770 = vector.load %arg5[%c0_467, %c128_468] : memref<8x512xf32, #tpu.memory_space<vmem>>, vector<8x256xf32>
    %cst_469 = arith.constant 0.500019848 : f32
    %771 = vector.broadcast %cst_469 : f32 to vector<8x256xf32>
    %772 = arith.mulf %771, %770 : vector<8x256xf32>
    %773 = arith.addf %769, %772 : vector<8x256xf32>
    %c0_470 = arith.constant 0 : index
    %c129_471 = arith.constant 129 : index
    %774 = vector.load %arg5[%c0_470, %c129_471] : memref<8x512xf32, #tpu.memory_space<vmem>>, vector<8x256xf32>
    %cst_472 = arith.constant 1.27178746E-17 : f32
    %775 = vector.broadcast %cst_472 : f32 to vector<8x256xf32>
    %776 = arith.mulf %775, %774 : vector<8x256xf32>
    %777 = arith.addf %773, %776 : vector<8x256xf32>
    %c0_473 = arith.constant 0 : index
    %c130_474 = arith.constant 130 : index
    %778 = vector.load %arg5[%c0_473, %c130_474] : memref<8x512xf32, #tpu.memory_space<vmem>>, vector<8x256xf32>
    %cst_475 = arith.constant -2.96293655E-18 : f32
    %779 = vector.broadcast %cst_475 : f32 to vector<8x256xf32>
    %780 = arith.mulf %779, %778 : vector<8x256xf32>
    %781 = arith.addf %777, %780 : vector<8x256xf32>
    %c0_476 = arith.constant 0 : index
    %c131_477 = arith.constant 131 : index
    %782 = vector.load %arg5[%c0_476, %c131_477] : memref<8x512xf32, #tpu.memory_space<vmem>>, vector<8x256xf32>
    %cst_478 = arith.constant 4.55876232E-20 : f32
    %783 = vector.broadcast %cst_478 : f32 to vector<8x256xf32>
    %784 = arith.mulf %783, %782 : vector<8x256xf32>
    %785 = arith.addf %781, %784 : vector<8x256xf32>
    %c0_479 = arith.constant 0 : index
    %c128_480 = arith.constant 128 : index
    %786 = vector.load %arg5[%c0_479, %c128_480] : memref<8x512xf32, #tpu.memory_space<vmem>>, vector<8x256xf32>
    tpu.vector_store %arg5[%c0_479, %c128_480], %757 {strides = array<i32>} : memref<8x512xf32, #tpu.memory_space<vmem>>, vector<8x256xf32>,
    %c0_481 = arith.constant 0 : index
    %c125_482 = arith.constant 125 : index
    %787 = vector.load %arg5[%c0_481, %c125_482] : memref<8x512xf32, #tpu.memory_space<vmem>>, vector<8x256xf32>
    %cst_483 = arith.constant 0.00243079453 : f32
    %788 = vector.broadcast %cst_483 : f32 to vector<8x256xf32>
    %789 = arith.mulf %788, %787 : vector<8x256xf32>
    %c0_484 = arith.constant 0 : index
    %c126_485 = arith.constant 126 : index
    %790 = vector.load %arg5[%c0_484, %c126_485] : memref<8x512xf32, #tpu.memory_space<vmem>>, vector<8x256xf32>
    %cst_486 = arith.constant -0.0391507745 : f32
    %791 = vector.broadcast %cst_486 : f32 to vector<8x256xf32>
    %792 = arith.mulf %791, %790 : vector<8x256xf32>
    %793 = arith.addf %789, %792 : vector<8x256xf32>
    %c0_487 = arith.constant 0 : index
    %c127_488 = arith.constant 127 : index
    %794 = vector.load %arg5[%c0_487, %c127_488] : memref<8x512xf32, #tpu.memory_space<vmem>>, vector<8x256xf32>
    %cst_489 = arith.constant 0.286710054 : f32
    %795 = vector.broadcast %cst_489 : f32 to vector<8x256xf32>
    %796 = arith.mulf %795, %794 : vector<8x256xf32>
    %797 = arith.addf %793, %796 : vector<8x256xf32>
    %c0_490 = arith.constant 0 : index
    %c128_491 = arith.constant 128 : index
    %798 = vector.load %arg5[%c0_490, %c128_491] : memref<8x512xf32, #tpu.memory_space<vmem>>, vector<8x256xf32>
    %cst_492 = arith.constant 0.286710054 : f32
    %799 = vector.broadcast %cst_492 : f32 to vector<8x256xf32>
    %800 = arith.mulf %799, %798 : vector<8x256xf32>
    %801 = arith.addf %797, %800 : vector<8x256xf32>
    %c0_493 = arith.constant 0 : index
    %c129_494 = arith.constant 129 : index
    %802 = vector.load %arg5[%c0_493, %c129_494] : memref<8x512xf32, #tpu.memory_space<vmem>>, vector<8x256xf32>
    %cst_495 = arith.constant -0.0391507745 : f32
    %803 = vector.broadcast %cst_495 : f32 to vector<8x256xf32>
    %804 = arith.mulf %803, %802 : vector<8x256xf32>
    %805 = arith.addf %801, %804 : vector<8x256xf32>
    %c0_496 = arith.constant 0 : index
    %c130_497 = arith.constant 130 : index
    %806 = vector.load %arg5[%c0_496, %c130_497] : memref<8x512xf32, #tpu.memory_space<vmem>>, vector<8x256xf32>
    %cst_498 = arith.constant 0.00243079453 : f32
    %807 = vector.broadcast %cst_498 : f32 to vector<8x256xf32>
    %808 = arith.mulf %807, %806 : vector<8x256xf32>
    %809 = arith.addf %805, %808 : vector<8x256xf32>
    %810 = arith.addf %785, %809 : vector<8x256xf32>
    %c0_499 = arith.constant 0 : index
    %c128_500 = arith.constant 128 : index
    %811 = vector.load %arg5[%c0_499, %c128_500] : memref<8x512xf32, #tpu.memory_space<vmem>>, vector<8x256xf32>
    tpu.vector_store %arg5[%c0_499, %c128_500], %810 {strides = array<i32>} : memref<8x512xf32, #tpu.memory_space<vmem>>, vector<8x256xf32>,
    %c0_501 = arith.constant 0 : index
    %c127_502 = arith.constant 127 : index
    %812 = vector.load %arg5[%c0_501, %c127_502] : memref<8x512xf32, #tpu.memory_space<vmem>>, vector<8x256xf32>
    %c0_503 = arith.constant 0 : index
    %c128_504 = arith.constant 128 : index
    %813 = vector.load %arg5[%c0_503, %c128_504] : memref<8x512xf32, #tpu.memory_space<vmem>>, vector<8x256xf32>
    %c0_505 = arith.constant 0 : index
    %c129_506 = arith.constant 129 : index
    %814 = vector.load %arg5[%c0_505, %c129_506] : memref<8x512xf32, #tpu.memory_space<vmem>>, vector<8x256xf32>
    %815 = tpu.concatenate %812, %813, %814 in 0 : vector<8x256xf32>, vector<8x256xf32>, vector<8x256xf32> -> vector<24x256xf32>
    %cst_507 = arith.constant dense<0.000000e+00> : vector<8x256xf32>
    %816 = tpu.matmul %416, %815, %cst_507 {dimension_numbers = #tpu.dot_dimension_numbers<[1], [0], [0], [1], [0, 0, 1, 1], [], []>} : vector<8x24xf32>, vector<24x256xf32>, vector<8x256xf32> -> vector<8x256xf32>
    %817 = vector.broadcast %420 : vector<8x1xf32> to vector<8x256xf32>
    %818 = arith.addf %816, %817 : vector<8x256xf32>
    %819 = arith.addf %412, %818 : vector<8x256xf32>
    %c4_508 = arith.constant 4 : index
    %c0_509 = arith.constant 0 : index
    %c0_510 = arith.constant 0 : index
    %820 = vector.load %arg2[%c4_508, %c0_509, %c0_510] : memref<6x8x24xf32, #tpu.memory_space<vmem>>, vector<1x8x24xf32>
    %821 = vector.shape_cast %820 : vector<1x8x24xf32> to vector<8x24xf32>
    %c5_511 = arith.constant 5 : index
    %c0_512 = arith.constant 0 : index
    %c0_513 = arith.constant 0 : index
    %822 = vector.load %arg2[%c5_511, %c0_512, %c0_513] : memref<6x8x24xf32, #tpu.memory_space<vmem>>, vector<1x8x24xf32>
    %823 = vector.shape_cast %822 : vector<1x8x24xf32> to vector<8x24xf32>
    %c12 = arith.constant 12 : index
    %c0_514 = arith.constant 0 : index
    %c0_515 = arith.constant 0 : index
    %824 = vector.load %arg3[%c12, %c0_514, %c0_515] : memref<18x8x1xf32, #tpu.memory_space<vmem>>, vector<1x8x1xf32>
    %825 = vector.shape_cast %824 : vector<1x8x1xf32> to vector<8x1xf32>
    %c13 = arith.constant 13 : index
    %c0_516 = arith.constant 0 : index
    %c0_517 = arith.constant 0 : index
    %826 = vector.load %arg3[%c13, %c0_516, %c0_517] : memref<18x8x1xf32, #tpu.memory_space<vmem>>, vector<1x8x1xf32>
    %827 = vector.shape_cast %826 : vector<1x8x1xf32> to vector<8x1xf32>
    %c14 = arith.constant 14 : index
    %c0_518 = arith.constant 0 : index
    %c0_519 = arith.constant 0 : index
    %828 = vector.load %arg3[%c14, %c0_518, %c0_519] : memref<18x8x1xf32, #tpu.memory_space<vmem>>, vector<1x8x1xf32>
    %829 = vector.shape_cast %828 : vector<1x8x1xf32> to vector<8x1xf32>
    %830 = math.exp %829 : vector<8x1xf32>
    %c15 = arith.constant 15 : index
    %c0_520 = arith.constant 0 : index
    %c0_521 = arith.constant 0 : index
    %831 = vector.load %arg3[%c15, %c0_520, %c0_521] : memref<18x8x1xf32, #tpu.memory_space<vmem>>, vector<1x8x1xf32>
    %832 = vector.shape_cast %831 : vector<1x8x1xf32> to vector<8x1xf32>
    %833 = math.exp %832 : vector<8x1xf32>
    %cst_522 = arith.constant 9.99999971E-10 : f32
    %834 = vector.broadcast %cst_522 : f32 to vector<8x1xf32>
    %835 = arith.addf %833, %834 : vector<8x1xf32>
    %836 = tpu.reciprocal %835 : vector<8x1xf32> -> vector<8x1xf32>
    %c16 = arith.constant 16 : index
    %c0_523 = arith.constant 0 : index
    %c0_524 = arith.constant 0 : index
    %837 = vector.load %arg3[%c16, %c0_523, %c0_524] : memref<18x8x1xf32, #tpu.memory_space<vmem>>, vector<1x8x1xf32>
    %838 = vector.shape_cast %837 : vector<1x8x1xf32> to vector<8x1xf32>
    %839 = math.exp %838 : vector<8x1xf32>
    %c17 = arith.constant 17 : index
    %c0_525 = arith.constant 0 : index
    %c0_526 = arith.constant 0 : index
    %840 = vector.load %arg3[%c17, %c0_525, %c0_526] : memref<18x8x1xf32, #tpu.memory_space<vmem>>, vector<1x8x1xf32>
    %841 = vector.shape_cast %840 : vector<1x8x1xf32> to vector<8x1xf32>
    %842 = math.exp %841 : vector<8x1xf32>
    %cst_527 = arith.constant 9.99999971E-10 : f32
    %843 = vector.broadcast %cst_527 : f32 to vector<8x1xf32>
    %844 = arith.addf %842, %843 : vector<8x1xf32>
    %845 = tpu.reciprocal %844 : vector<8x1xf32> -> vector<8x1xf32>
    %c0_528 = arith.constant 0 : index
    %c128_529 = arith.constant 128 : index
    %846 = vector.load %arg5[%c0_528, %c128_529] : memref<8x512xf32, #tpu.memory_space<vmem>>, vector<8x256xf32>
    tpu.vector_store %arg5[%c0_528, %c128_529], %819 {strides = array<i32>} : memref<8x512xf32, #tpu.memory_space<vmem>>, vector<8x256xf32>,
    %c0_530 = arith.constant 0 : index
    %c125_531 = arith.constant 125 : index
    %847 = vector.load %arg5[%c0_530, %c125_531] : memref<8x512xf32, #tpu.memory_space<vmem>>, vector<8x256xf32>
    %cst_532 = arith.constant 9.11752463E-20 : f32
    %848 = vector.broadcast %cst_532 : f32 to vector<8x256xf32>
    %849 = arith.mulf %848, %847 : vector<8x256xf32>
    %c0_533 = arith.constant 0 : index
    %c126_534 = arith.constant 126 : index
    %850 = vector.load %arg5[%c0_533, %c126_534] : memref<8x512xf32, #tpu.memory_space<vmem>>, vector<8x256xf32>
    %cst_535 = arith.constant -5.9258731E-18 : f32
    %851 = vector.broadcast %cst_535 : f32 to vector<8x256xf32>
    %852 = arith.mulf %851, %850 : vector<8x256xf32>
    %853 = arith.addf %849, %852 : vector<8x256xf32>
    %c0_536 = arith.constant 0 : index
    %c127_537 = arith.constant 127 : index
    %854 = vector.load %arg5[%c0_536, %c127_537] : memref<8x512xf32, #tpu.memory_space<vmem>>, vector<8x256xf32>
    %cst_538 = arith.constant 2.54357492E-17 : f32
    %855 = vector.broadcast %cst_538 : f32 to vector<8x256xf32>
    %856 = arith.mulf %855, %854 : vector<8x256xf32>
    %857 = arith.addf %853, %856 : vector<8x256xf32>
    %c0_539 = arith.constant 0 : index
    %c128_540 = arith.constant 128 : index
    %858 = vector.load %arg5[%c0_539, %c128_540] : memref<8x512xf32, #tpu.memory_space<vmem>>, vector<8x256xf32>
    %cst_541 = arith.constant 1.0000397 : f32
    %859 = vector.broadcast %cst_541 : f32 to vector<8x256xf32>
    %860 = arith.mulf %859, %858 : vector<8x256xf32>
    %861 = arith.addf %857, %860 : vector<8x256xf32>
    %c0_542 = arith.constant 0 : index
    %c129_543 = arith.constant 129 : index
    %862 = vector.load %arg5[%c0_542, %c129_543] : memref<8x512xf32, #tpu.memory_space<vmem>>, vector<8x256xf32>
    %cst_544 = arith.constant 2.54357492E-17 : f32
    %863 = vector.broadcast %cst_544 : f32 to vector<8x256xf32>
    %864 = arith.mulf %863, %862 : vector<8x256xf32>
    %865 = arith.addf %861, %864 : vector<8x256xf32>
    %c0_545 = arith.constant 0 : index
    %c130_546 = arith.constant 130 : index
    %866 = vector.load %arg5[%c0_545, %c130_546] : memref<8x512xf32, #tpu.memory_space<vmem>>, vector<8x256xf32>
    %cst_547 = arith.constant -5.9258731E-18 : f32
    %867 = vector.broadcast %cst_547 : f32 to vector<8x256xf32>
    %868 = arith.mulf %867, %866 : vector<8x256xf32>
    %869 = arith.addf %865, %868 : vector<8x256xf32>
    %c0_548 = arith.constant 0 : index
    %c131_549 = arith.constant 131 : index
    %870 = vector.load %arg5[%c0_548, %c131_549] : memref<8x512xf32, #tpu.memory_space<vmem>>, vector<8x256xf32>
    %cst_550 = arith.constant 9.11752463E-20 : f32
    %871 = vector.broadcast %cst_550 : f32 to vector<8x256xf32>
    %872 = arith.mulf %871, %870 : vector<8x256xf32>
    %873 = arith.addf %869, %872 : vector<8x256xf32>
    %c0_551 = arith.constant 0 : index
    %c126_552 = arith.constant 126 : index
    %874 = vector.load %arg5[%c0_551, %c126_552] : memref<8x512xf32, #tpu.memory_space<vmem>>, vector<8x256xf32>
    %cst_553 = arith.constant 0.00486158906 : f32
    %875 = vector.broadcast %cst_553 : f32 to vector<8x256xf32>
    %876 = arith.mulf %875, %874 : vector<8x256xf32>
    %c0_554 = arith.constant 0 : index
    %c127_555 = arith.constant 127 : index
    %877 = vector.load %arg5[%c0_554, %c127_555] : memref<8x512xf32, #tpu.memory_space<vmem>>, vector<8x256xf32>
    %cst_556 = arith.constant -0.078301549 : f32
    %878 = vector.broadcast %cst_556 : f32 to vector<8x256xf32>
    %879 = arith.mulf %878, %877 : vector<8x256xf32>
    %880 = arith.addf %876, %879 : vector<8x256xf32>
    %c0_557 = arith.constant 0 : index
    %c128_558 = arith.constant 128 : index
    %881 = vector.load %arg5[%c0_557, %c128_558] : memref<8x512xf32, #tpu.memory_space<vmem>>, vector<8x256xf32>
    %cst_559 = arith.constant 0.573420107 : f32
    %882 = vector.broadcast %cst_559 : f32 to vector<8x256xf32>
    %883 = arith.mulf %882, %881 : vector<8x256xf32>
    %884 = arith.addf %880, %883 : vector<8x256xf32>
    %c0_560 = arith.constant 0 : index
    %c129_561 = arith.constant 129 : index
    %885 = vector.load %arg5[%c0_560, %c129_561] : memref<8x512xf32, #tpu.memory_space<vmem>>, vector<8x256xf32>
    %cst_562 = arith.constant 0.573420107 : f32
    %886 = vector.broadcast %cst_562 : f32 to vector<8x256xf32>
    %887 = arith.mulf %886, %885 : vector<8x256xf32>
    %888 = arith.addf %884, %887 : vector<8x256xf32>
    %c0_563 = arith.constant 0 : index
    %c130_564 = arith.constant 130 : index
    %889 = vector.load %arg5[%c0_563, %c130_564] : memref<8x512xf32, #tpu.memory_space<vmem>>, vector<8x256xf32>
    %cst_565 = arith.constant -0.078301549 : f32
    %890 = vector.broadcast %cst_565 : f32 to vector<8x256xf32>
    %891 = arith.mulf %890, %889 : vector<8x256xf32>
    %892 = arith.addf %888, %891 : vector<8x256xf32>
    %c0_566 = arith.constant 0 : index
    %c131_567 = arith.constant 131 : index
    %893 = vector.load %arg5[%c0_566, %c131_567] : memref<8x512xf32, #tpu.memory_space<vmem>>, vector<8x256xf32>
    %cst_568 = arith.constant 0.00486158906 : f32
    %894 = vector.broadcast %cst_568 : f32 to vector<8x256xf32>
    %895 = arith.mulf %894, %893 : vector<8x256xf32>
    %896 = arith.addf %892, %895 : vector<8x256xf32>
    %897 = vector.broadcast %830 : vector<8x1xf32> to vector<8x256xf32>
    %898 = arith.mulf %897, %873 : vector<8x256xf32>
    %cst_569 = arith.constant 6.28318548 : f32
    %899 = vector.broadcast %cst_569 : f32 to vector<8x256xf32>
    %900 = arith.divf %898, %899 : vector<8x256xf32>
    %cst_570 = arith.constant 5.000000e-01 : f32
    %901 = vector.broadcast %cst_570 : f32 to vector<8x256xf32>
    %902 = arith.addf %900, %901 : vector<8x256xf32>
    %903 = math.floor %902 : vector<8x256xf32>
    %cst_571 = arith.constant 6.28318548 : f32
    %904 = vector.broadcast %cst_571 : f32 to vector<8x256xf32>
    %905 = arith.mulf %904, %903 : vector<8x256xf32>
    %906 = arith.subf %898, %905 : vector<8x256xf32>
    %cst_572 = arith.constant 1.57079637 : f32
    %907 = vector.broadcast %cst_572 : f32 to vector<8x256xf32>
    %908 = arith.cmpf ogt, %906, %907 : vector<8x256xf32>
    %cst_573 = arith.constant 3.14159274 : f32
    %909 = vector.broadcast %cst_573 : f32 to vector<8x256xf32>
    %910 = arith.subf %909, %906 : vector<8x256xf32>
    %911 = arith.select %908, %910, %906 : vector<8x256xi1>, vector<8x256xf32>
    %cst_574 = arith.constant -1.57079637 : f32
    %912 = vector.broadcast %cst_574 : f32 to vector<8x256xf32>
    %913 = arith.cmpf olt, %911, %912 : vector<8x256xf32>
    %cst_575 = arith.constant -3.14159274 : f32
    %914 = vector.broadcast %cst_575 : f32 to vector<8x256xf32>
    %915 = arith.subf %914, %911 : vector<8x256xf32>
    %916 = arith.select %913, %915, %911 : vector<8x256xi1>, vector<8x256xf32>
    %917 = arith.mulf %916, %916 : vector<8x256xf32>
    %cst_576 = arith.constant 2.75573188E-6 : f32
    %918 = vector.broadcast %cst_576 : f32 to vector<8x256xf32>
    %919 = arith.mulf %917, %918 : vector<8x256xf32>
    %cst_577 = arith.constant -1.98412701E-4 : f32
    %920 = vector.broadcast %cst_577 : f32 to vector<8x256xf32>
    %921 = arith.addf %920, %919 : vector<8x256xf32>
    %922 = arith.mulf %917, %921 : vector<8x256xf32>
    %cst_578 = arith.constant 0.00833333377 : f32
    %923 = vector.broadcast %cst_578 : f32 to vector<8x256xf32>
    %924 = arith.addf %923, %922 : vector<8x256xf32>
    %925 = arith.mulf %917, %924 : vector<8x256xf32>
    %cst_579 = arith.constant -0.166666672 : f32
    %926 = vector.broadcast %cst_579 : f32 to vector<8x256xf32>
    %927 = arith.addf %926, %925 : vector<8x256xf32>
    %928 = arith.mulf %917, %927 : vector<8x256xf32>
    %cst_580 = arith.constant 1.000000e+00 : f32
    %929 = vector.broadcast %cst_580 : f32 to vector<8x256xf32>
    %930 = arith.addf %929, %928 : vector<8x256xf32>
    %931 = arith.mulf %916, %930 : vector<8x256xf32>
    %932 = arith.mulf %931, %931 : vector<8x256xf32>
    %933 = vector.broadcast %836 : vector<8x1xf32> to vector<8x256xf32>
    %934 = arith.mulf %932, %933 : vector<8x256xf32>
    %935 = arith.addf %873, %934 : vector<8x256xf32>
    %936 = vector.broadcast %830 : vector<8x1xf32> to vector<8x256xf32>
    %937 = arith.mulf %936, %896 : vector<8x256xf32>
    %cst_581 = arith.constant 6.28318548 : f32
    %938 = vector.broadcast %cst_581 : f32 to vector<8x256xf32>
    %939 = arith.divf %937, %938 : vector<8x256xf32>
    %cst_582 = arith.constant 5.000000e-01 : f32
    %940 = vector.broadcast %cst_582 : f32 to vector<8x256xf32>
    %941 = arith.addf %939, %940 : vector<8x256xf32>
    %942 = math.floor %941 : vector<8x256xf32>
    %cst_583 = arith.constant 6.28318548 : f32
    %943 = vector.broadcast %cst_583 : f32 to vector<8x256xf32>
    %944 = arith.mulf %943, %942 : vector<8x256xf32>
    %945 = arith.subf %937, %944 : vector<8x256xf32>
    %cst_584 = arith.constant 1.57079637 : f32
    %946 = vector.broadcast %cst_584 : f32 to vector<8x256xf32>
    %947 = arith.cmpf ogt, %945, %946 : vector<8x256xf32>
    %cst_585 = arith.constant 3.14159274 : f32
    %948 = vector.broadcast %cst_585 : f32 to vector<8x256xf32>
    %949 = arith.subf %948, %945 : vector<8x256xf32>
    %950 = arith.select %947, %949, %945 : vector<8x256xi1>, vector<8x256xf32>
    %cst_586 = arith.constant -1.57079637 : f32
    %951 = vector.broadcast %cst_586 : f32 to vector<8x256xf32>
    %952 = arith.cmpf olt, %950, %951 : vector<8x256xf32>
    %cst_587 = arith.constant -3.14159274 : f32
    %953 = vector.broadcast %cst_587 : f32 to vector<8x256xf32>
    %954 = arith.subf %953, %950 : vector<8x256xf32>
    %955 = arith.select %952, %954, %950 : vector<8x256xi1>, vector<8x256xf32>
    %956 = arith.mulf %955, %955 : vector<8x256xf32>
    %cst_588 = arith.constant 2.75573188E-6 : f32
    %957 = vector.broadcast %cst_588 : f32 to vector<8x256xf32>
    %958 = arith.mulf %956, %957 : vector<8x256xf32>
    %cst_589 = arith.constant -1.98412701E-4 : f32
    %959 = vector.broadcast %cst_589 : f32 to vector<8x256xf32>
    %960 = arith.addf %959, %958 : vector<8x256xf32>
    %961 = arith.mulf %956, %960 : vector<8x256xf32>
    %cst_590 = arith.constant 0.00833333377 : f32
    %962 = vector.broadcast %cst_590 : f32 to vector<8x256xf32>
    %963 = arith.addf %962, %961 : vector<8x256xf32>
    %964 = arith.mulf %956, %963 : vector<8x256xf32>
    %cst_591 = arith.constant -0.166666672 : f32
    %965 = vector.broadcast %cst_591 : f32 to vector<8x256xf32>
    %966 = arith.addf %965, %964 : vector<8x256xf32>
    %967 = arith.mulf %956, %966 : vector<8x256xf32>
    %cst_592 = arith.constant 1.000000e+00 : f32
    %968 = vector.broadcast %cst_592 : f32 to vector<8x256xf32>
    %969 = arith.addf %968, %967 : vector<8x256xf32>
    %970 = arith.mulf %955, %969 : vector<8x256xf32>
    %971 = arith.mulf %970, %970 : vector<8x256xf32>
    %972 = vector.broadcast %836 : vector<8x1xf32> to vector<8x256xf32>
    %973 = arith.mulf %971, %972 : vector<8x256xf32>
    %974 = arith.addf %896, %973 : vector<8x256xf32>
    %c0_593 = arith.constant 0 : index
    %c128_594 = arith.constant 128 : index
    %975 = vector.load %arg5[%c0_593, %c128_594] : memref<8x512xf32, #tpu.memory_space<vmem>>, vector<8x256xf32>
    tpu.vector_store %arg5[%c0_593, %c128_594], %935 {strides = array<i32>} : memref<8x512xf32, #tpu.memory_space<vmem>>, vector<8x256xf32>,
    %c0_595 = arith.constant 0 : index
    %c125_596 = arith.constant 125 : index
    %976 = vector.load %arg5[%c0_595, %c125_596] : memref<8x512xf32, #tpu.memory_space<vmem>>, vector<8x256xf32>
    %cst_597 = arith.constant 4.55876232E-20 : f32
    %977 = vector.broadcast %cst_597 : f32 to vector<8x256xf32>
    %978 = arith.mulf %977, %976 : vector<8x256xf32>
    %c0_598 = arith.constant 0 : index
    %c126_599 = arith.constant 126 : index
    %979 = vector.load %arg5[%c0_598, %c126_599] : memref<8x512xf32, #tpu.memory_space<vmem>>, vector<8x256xf32>
    %cst_600 = arith.constant -2.96293655E-18 : f32
    %980 = vector.broadcast %cst_600 : f32 to vector<8x256xf32>
    %981 = arith.mulf %980, %979 : vector<8x256xf32>
    %982 = arith.addf %978, %981 : vector<8x256xf32>
    %c0_601 = arith.constant 0 : index
    %c127_602 = arith.constant 127 : index
    %983 = vector.load %arg5[%c0_601, %c127_602] : memref<8x512xf32, #tpu.memory_space<vmem>>, vector<8x256xf32>
    %cst_603 = arith.constant 1.27178746E-17 : f32
    %984 = vector.broadcast %cst_603 : f32 to vector<8x256xf32>
    %985 = arith.mulf %984, %983 : vector<8x256xf32>
    %986 = arith.addf %982, %985 : vector<8x256xf32>
    %c0_604 = arith.constant 0 : index
    %c128_605 = arith.constant 128 : index
    %987 = vector.load %arg5[%c0_604, %c128_605] : memref<8x512xf32, #tpu.memory_space<vmem>>, vector<8x256xf32>
    %cst_606 = arith.constant 0.500019848 : f32
    %988 = vector.broadcast %cst_606 : f32 to vector<8x256xf32>
    %989 = arith.mulf %988, %987 : vector<8x256xf32>
    %990 = arith.addf %986, %989 : vector<8x256xf32>
    %c0_607 = arith.constant 0 : index
    %c129_608 = arith.constant 129 : index
    %991 = vector.load %arg5[%c0_607, %c129_608] : memref<8x512xf32, #tpu.memory_space<vmem>>, vector<8x256xf32>
    %cst_609 = arith.constant 1.27178746E-17 : f32
    %992 = vector.broadcast %cst_609 : f32 to vector<8x256xf32>
    %993 = arith.mulf %992, %991 : vector<8x256xf32>
    %994 = arith.addf %990, %993 : vector<8x256xf32>
    %c0_610 = arith.constant 0 : index
    %c130_611 = arith.constant 130 : index
    %995 = vector.load %arg5[%c0_610, %c130_611] : memref<8x512xf32, #tpu.memory_space<vmem>>, vector<8x256xf32>
    %cst_612 = arith.constant -2.96293655E-18 : f32
    %996 = vector.broadcast %cst_612 : f32 to vector<8x256xf32>
    %997 = arith.mulf %996, %995 : vector<8x256xf32>
    %998 = arith.addf %994, %997 : vector<8x256xf32>
    %c0_613 = arith.constant 0 : index
    %c131_614 = arith.constant 131 : index
    %999 = vector.load %arg5[%c0_613, %c131_614] : memref<8x512xf32, #tpu.memory_space<vmem>>, vector<8x256xf32>
    %cst_615 = arith.constant 4.55876232E-20 : f32
    %1000 = vector.broadcast %cst_615 : f32 to vector<8x256xf32>
    %1001 = arith.mulf %1000, %999 : vector<8x256xf32>
    %1002 = arith.addf %998, %1001 : vector<8x256xf32>
    %c0_616 = arith.constant 0 : index
    %c128_617 = arith.constant 128 : index
    %1003 = vector.load %arg5[%c0_616, %c128_617] : memref<8x512xf32, #tpu.memory_space<vmem>>, vector<8x256xf32>
    tpu.vector_store %arg5[%c0_616, %c128_617], %974 {strides = array<i32>} : memref<8x512xf32, #tpu.memory_space<vmem>>, vector<8x256xf32>,
    %c0_618 = arith.constant 0 : index
    %c125_619 = arith.constant 125 : index
    %1004 = vector.load %arg5[%c0_618, %c125_619] : memref<8x512xf32, #tpu.memory_space<vmem>>, vector<8x256xf32>
    %cst_620 = arith.constant 0.00243079453 : f32
    %1005 = vector.broadcast %cst_620 : f32 to vector<8x256xf32>
    %1006 = arith.mulf %1005, %1004 : vector<8x256xf32>
    %c0_621 = arith.constant 0 : index
    %c126_622 = arith.constant 126 : index
    %1007 = vector.load %arg5[%c0_621, %c126_622] : memref<8x512xf32, #tpu.memory_space<vmem>>, vector<8x256xf32>
    %cst_623 = arith.constant -0.0391507745 : f32
    %1008 = vector.broadcast %cst_623 : f32 to vector<8x256xf32>
    %1009 = arith.mulf %1008, %1007 : vector<8x256xf32>
    %1010 = arith.addf %1006, %1009 : vector<8x256xf32>
    %c0_624 = arith.constant 0 : index
    %c127_625 = arith.constant 127 : index
    %1011 = vector.load %arg5[%c0_624, %c127_625] : memref<8x512xf32, #tpu.memory_space<vmem>>, vector<8x256xf32>
    %cst_626 = arith.constant 0.286710054 : f32
    %1012 = vector.broadcast %cst_626 : f32 to vector<8x256xf32>
    %1013 = arith.mulf %1012, %1011 : vector<8x256xf32>
    %1014 = arith.addf %1010, %1013 : vector<8x256xf32>
    %c0_627 = arith.constant 0 : index
    %c128_628 = arith.constant 128 : index
    %1015 = vector.load %arg5[%c0_627, %c128_628] : memref<8x512xf32, #tpu.memory_space<vmem>>, vector<8x256xf32>
    %cst_629 = arith.constant 0.286710054 : f32
    %1016 = vector.broadcast %cst_629 : f32 to vector<8x256xf32>
    %1017 = arith.mulf %1016, %1015 : vector<8x256xf32>
    %1018 = arith.addf %1014, %1017 : vector<8x256xf32>
    %c0_630 = arith.constant 0 : index
    %c129_631 = arith.constant 129 : index
    %1019 = vector.load %arg5[%c0_630, %c129_631] : memref<8x512xf32, #tpu.memory_space<vmem>>, vector<8x256xf32>
    %cst_632 = arith.constant -0.0391507745 : f32
    %1020 = vector.broadcast %cst_632 : f32 to vector<8x256xf32>
    %1021 = arith.mulf %1020, %1019 : vector<8x256xf32>
    %1022 = arith.addf %1018, %1021 : vector<8x256xf32>
    %c0_633 = arith.constant 0 : index
    %c130_634 = arith.constant 130 : index
    %1023 = vector.load %arg5[%c0_633, %c130_634] : memref<8x512xf32, #tpu.memory_space<vmem>>, vector<8x256xf32>
    %cst_635 = arith.constant 0.00243079453 : f32
    %1024 = vector.broadcast %cst_635 : f32 to vector<8x256xf32>
    %1025 = arith.mulf %1024, %1023 : vector<8x256xf32>
    %1026 = arith.addf %1022, %1025 : vector<8x256xf32>
    %1027 = arith.addf %1002, %1026 : vector<8x256xf32>
    %c0_636 = arith.constant 0 : index
    %c128_637 = arith.constant 128 : index
    %1028 = vector.load %arg5[%c0_636, %c128_637] : memref<8x512xf32, #tpu.memory_space<vmem>>, vector<8x256xf32>
    tpu.vector_store %arg5[%c0_636, %c128_637], %1027 {strides = array<i32>} : memref<8x512xf32, #tpu.memory_space<vmem>>, vector<8x256xf32>,
    %c0_638 = arith.constant 0 : index
    %c123 = arith.constant 123 : index
    %1029 = vector.load %arg5[%c0_638, %c123] : memref<8x512xf32, #tpu.memory_space<vmem>>, vector<8x256xf32>
    %c0_639 = arith.constant 0 : index
    %c128_640 = arith.constant 128 : index
    %1030 = vector.load %arg5[%c0_639, %c128_640] : memref<8x512xf32, #tpu.memory_space<vmem>>, vector<8x256xf32>
    %c0_641 = arith.constant 0 : index
    %c133 = arith.constant 133 : index
    %1031 = vector.load %arg5[%c0_641, %c133] : memref<8x512xf32, #tpu.memory_space<vmem>>, vector<8x256xf32>
    %1032 = tpu.concatenate %1029, %1030, %1031 in 0 : vector<8x256xf32>, vector<8x256xf32>, vector<8x256xf32> -> vector<24x256xf32>
    %cst_642 = arith.constant dense<0.000000e+00> : vector<8x256xf32>
    %1033 = tpu.matmul %821, %1032, %cst_642 {dimension_numbers = #tpu.dot_dimension_numbers<[1], [0], [0], [1], [0, 0, 1, 1], [], []>} : vector<8x24xf32>, vector<24x256xf32>, vector<8x256xf32> -> vector<8x256xf32>
    %1034 = vector.broadcast %825 : vector<8x1xf32> to vector<8x256xf32>
    %1035 = arith.addf %1033, %1034 : vector<8x256xf32>
    %c0_643 = arith.constant 0 : index
    %c128_644 = arith.constant 128 : index
    %1036 = vector.load %arg5[%c0_643, %c128_644] : memref<8x512xf32, #tpu.memory_space<vmem>>, vector<8x256xf32>
    tpu.vector_store %arg5[%c0_643, %c128_644], %1035 {strides = array<i32>} : memref<8x512xf32, #tpu.memory_space<vmem>>, vector<8x256xf32>,
    %c0_645 = arith.constant 0 : index
    %c125_646 = arith.constant 125 : index
    %1037 = vector.load %arg5[%c0_645, %c125_646] : memref<8x512xf32, #tpu.memory_space<vmem>>, vector<8x256xf32>
    %cst_647 = arith.constant 9.11752463E-20 : f32
    %1038 = vector.broadcast %cst_647 : f32 to vector<8x256xf32>
    %1039 = arith.mulf %1038, %1037 : vector<8x256xf32>
    %c0_648 = arith.constant 0 : index
    %c126_649 = arith.constant 126 : index
    %1040 = vector.load %arg5[%c0_648, %c126_649] : memref<8x512xf32, #tpu.memory_space<vmem>>, vector<8x256xf32>
    %cst_650 = arith.constant -5.9258731E-18 : f32
    %1041 = vector.broadcast %cst_650 : f32 to vector<8x256xf32>
    %1042 = arith.mulf %1041, %1040 : vector<8x256xf32>
    %1043 = arith.addf %1039, %1042 : vector<8x256xf32>
    %c0_651 = arith.constant 0 : index
    %c127_652 = arith.constant 127 : index
    %1044 = vector.load %arg5[%c0_651, %c127_652] : memref<8x512xf32, #tpu.memory_space<vmem>>, vector<8x256xf32>
    %cst_653 = arith.constant 2.54357492E-17 : f32
    %1045 = vector.broadcast %cst_653 : f32 to vector<8x256xf32>
    %1046 = arith.mulf %1045, %1044 : vector<8x256xf32>
    %1047 = arith.addf %1043, %1046 : vector<8x256xf32>
    %c0_654 = arith.constant 0 : index
    %c128_655 = arith.constant 128 : index
    %1048 = vector.load %arg5[%c0_654, %c128_655] : memref<8x512xf32, #tpu.memory_space<vmem>>, vector<8x256xf32>
    %cst_656 = arith.constant 1.0000397 : f32
    %1049 = vector.broadcast %cst_656 : f32 to vector<8x256xf32>
    %1050 = arith.mulf %1049, %1048 : vector<8x256xf32>
    %1051 = arith.addf %1047, %1050 : vector<8x256xf32>
    %c0_657 = arith.constant 0 : index
    %c129_658 = arith.constant 129 : index
    %1052 = vector.load %arg5[%c0_657, %c129_658] : memref<8x512xf32, #tpu.memory_space<vmem>>, vector<8x256xf32>
    %cst_659 = arith.constant 2.54357492E-17 : f32
    %1053 = vector.broadcast %cst_659 : f32 to vector<8x256xf32>
    %1054 = arith.mulf %1053, %1052 : vector<8x256xf32>
    %1055 = arith.addf %1051, %1054 : vector<8x256xf32>
    %c0_660 = arith.constant 0 : index
    %c130_661 = arith.constant 130 : index
    %1056 = vector.load %arg5[%c0_660, %c130_661] : memref<8x512xf32, #tpu.memory_space<vmem>>, vector<8x256xf32>
    %cst_662 = arith.constant -5.9258731E-18 : f32
    %1057 = vector.broadcast %cst_662 : f32 to vector<8x256xf32>
    %1058 = arith.mulf %1057, %1056 : vector<8x256xf32>
    %1059 = arith.addf %1055, %1058 : vector<8x256xf32>
    %c0_663 = arith.constant 0 : index
    %c131_664 = arith.constant 131 : index
    %1060 = vector.load %arg5[%c0_663, %c131_664] : memref<8x512xf32, #tpu.memory_space<vmem>>, vector<8x256xf32>
    %cst_665 = arith.constant 9.11752463E-20 : f32
    %1061 = vector.broadcast %cst_665 : f32 to vector<8x256xf32>
    %1062 = arith.mulf %1061, %1060 : vector<8x256xf32>
    %1063 = arith.addf %1059, %1062 : vector<8x256xf32>
    %c0_666 = arith.constant 0 : index
    %c126_667 = arith.constant 126 : index
    %1064 = vector.load %arg5[%c0_666, %c126_667] : memref<8x512xf32, #tpu.memory_space<vmem>>, vector<8x256xf32>
    %cst_668 = arith.constant 0.00486158906 : f32
    %1065 = vector.broadcast %cst_668 : f32 to vector<8x256xf32>
    %1066 = arith.mulf %1065, %1064 : vector<8x256xf32>
    %c0_669 = arith.constant 0 : index
    %c127_670 = arith.constant 127 : index
    %1067 = vector.load %arg5[%c0_669, %c127_670] : memref<8x512xf32, #tpu.memory_space<vmem>>, vector<8x256xf32>
    %cst_671 = arith.constant -0.078301549 : f32
    %1068 = vector.broadcast %cst_671 : f32 to vector<8x256xf32>
    %1069 = arith.mulf %1068, %1067 : vector<8x256xf32>
    %1070 = arith.addf %1066, %1069 : vector<8x256xf32>
    %c0_672 = arith.constant 0 : index
    %c128_673 = arith.constant 128 : index
    %1071 = vector.load %arg5[%c0_672, %c128_673] : memref<8x512xf32, #tpu.memory_space<vmem>>, vector<8x256xf32>
    %cst_674 = arith.constant 0.573420107 : f32
    %1072 = vector.broadcast %cst_674 : f32 to vector<8x256xf32>
    %1073 = arith.mulf %1072, %1071 : vector<8x256xf32>
    %1074 = arith.addf %1070, %1073 : vector<8x256xf32>
    %c0_675 = arith.constant 0 : index
    %c129_676 = arith.constant 129 : index
    %1075 = vector.load %arg5[%c0_675, %c129_676] : memref<8x512xf32, #tpu.memory_space<vmem>>, vector<8x256xf32>
    %cst_677 = arith.constant 0.573420107 : f32
    %1076 = vector.broadcast %cst_677 : f32 to vector<8x256xf32>
    %1077 = arith.mulf %1076, %1075 : vector<8x256xf32>
    %1078 = arith.addf %1074, %1077 : vector<8x256xf32>
    %c0_678 = arith.constant 0 : index
    %c130_679 = arith.constant 130 : index
    %1079 = vector.load %arg5[%c0_678, %c130_679] : memref<8x512xf32, #tpu.memory_space<vmem>>, vector<8x256xf32>
    %cst_680 = arith.constant -0.078301549 : f32
    %1080 = vector.broadcast %cst_680 : f32 to vector<8x256xf32>
    %1081 = arith.mulf %1080, %1079 : vector<8x256xf32>
    %1082 = arith.addf %1078, %1081 : vector<8x256xf32>
    %c0_681 = arith.constant 0 : index
    %c131_682 = arith.constant 131 : index
    %1083 = vector.load %arg5[%c0_681, %c131_682] : memref<8x512xf32, #tpu.memory_space<vmem>>, vector<8x256xf32>
    %cst_683 = arith.constant 0.00486158906 : f32
    %1084 = vector.broadcast %cst_683 : f32 to vector<8x256xf32>
    %1085 = arith.mulf %1084, %1083 : vector<8x256xf32>
    %1086 = arith.addf %1082, %1085 : vector<8x256xf32>
    %1087 = vector.broadcast %839 : vector<8x1xf32> to vector<8x256xf32>
    %1088 = arith.mulf %1087, %1063 : vector<8x256xf32>
    %cst_684 = arith.constant 6.28318548 : f32
    %1089 = vector.broadcast %cst_684 : f32 to vector<8x256xf32>
    %1090 = arith.divf %1088, %1089 : vector<8x256xf32>
    %cst_685 = arith.constant 5.000000e-01 : f32
    %1091 = vector.broadcast %cst_685 : f32 to vector<8x256xf32>
    %1092 = arith.addf %1090, %1091 : vector<8x256xf32>
    %1093 = math.floor %1092 : vector<8x256xf32>
    %cst_686 = arith.constant 6.28318548 : f32
    %1094 = vector.broadcast %cst_686 : f32 to vector<8x256xf32>
    %1095 = arith.mulf %1094, %1093 : vector<8x256xf32>
    %1096 = arith.subf %1088, %1095 : vector<8x256xf32>
    %cst_687 = arith.constant 1.57079637 : f32
    %1097 = vector.broadcast %cst_687 : f32 to vector<8x256xf32>
    %1098 = arith.cmpf ogt, %1096, %1097 : vector<8x256xf32>
    %cst_688 = arith.constant 3.14159274 : f32
    %1099 = vector.broadcast %cst_688 : f32 to vector<8x256xf32>
    %1100 = arith.subf %1099, %1096 : vector<8x256xf32>
    %1101 = arith.select %1098, %1100, %1096 : vector<8x256xi1>, vector<8x256xf32>
    %cst_689 = arith.constant -1.57079637 : f32
    %1102 = vector.broadcast %cst_689 : f32 to vector<8x256xf32>
    %1103 = arith.cmpf olt, %1101, %1102 : vector<8x256xf32>
    %cst_690 = arith.constant -3.14159274 : f32
    %1104 = vector.broadcast %cst_690 : f32 to vector<8x256xf32>
    %1105 = arith.subf %1104, %1101 : vector<8x256xf32>
    %1106 = arith.select %1103, %1105, %1101 : vector<8x256xi1>, vector<8x256xf32>
    %1107 = arith.mulf %1106, %1106 : vector<8x256xf32>
    %cst_691 = arith.constant 2.75573188E-6 : f32
    %1108 = vector.broadcast %cst_691 : f32 to vector<8x256xf32>
    %1109 = arith.mulf %1107, %1108 : vector<8x256xf32>
    %cst_692 = arith.constant -1.98412701E-4 : f32
    %1110 = vector.broadcast %cst_692 : f32 to vector<8x256xf32>
    %1111 = arith.addf %1110, %1109 : vector<8x256xf32>
    %1112 = arith.mulf %1107, %1111 : vector<8x256xf32>
    %cst_693 = arith.constant 0.00833333377 : f32
    %1113 = vector.broadcast %cst_693 : f32 to vector<8x256xf32>
    %1114 = arith.addf %1113, %1112 : vector<8x256xf32>
    %1115 = arith.mulf %1107, %1114 : vector<8x256xf32>
    %cst_694 = arith.constant -0.166666672 : f32
    %1116 = vector.broadcast %cst_694 : f32 to vector<8x256xf32>
    %1117 = arith.addf %1116, %1115 : vector<8x256xf32>
    %1118 = arith.mulf %1107, %1117 : vector<8x256xf32>
    %cst_695 = arith.constant 1.000000e+00 : f32
    %1119 = vector.broadcast %cst_695 : f32 to vector<8x256xf32>
    %1120 = arith.addf %1119, %1118 : vector<8x256xf32>
    %1121 = arith.mulf %1106, %1120 : vector<8x256xf32>
    %1122 = arith.mulf %1121, %1121 : vector<8x256xf32>
    %1123 = vector.broadcast %845 : vector<8x1xf32> to vector<8x256xf32>
    %1124 = arith.mulf %1122, %1123 : vector<8x256xf32>
    %1125 = arith.addf %1063, %1124 : vector<8x256xf32>
    %1126 = vector.broadcast %839 : vector<8x1xf32> to vector<8x256xf32>
    %1127 = arith.mulf %1126, %1086 : vector<8x256xf32>
    %cst_696 = arith.constant 6.28318548 : f32
    %1128 = vector.broadcast %cst_696 : f32 to vector<8x256xf32>
    %1129 = arith.divf %1127, %1128 : vector<8x256xf32>
    %cst_697 = arith.constant 5.000000e-01 : f32
    %1130 = vector.broadcast %cst_697 : f32 to vector<8x256xf32>
    %1131 = arith.addf %1129, %1130 : vector<8x256xf32>
    %1132 = math.floor %1131 : vector<8x256xf32>
    %cst_698 = arith.constant 6.28318548 : f32
    %1133 = vector.broadcast %cst_698 : f32 to vector<8x256xf32>
    %1134 = arith.mulf %1133, %1132 : vector<8x256xf32>
    %1135 = arith.subf %1127, %1134 : vector<8x256xf32>
    %cst_699 = arith.constant 1.57079637 : f32
    %1136 = vector.broadcast %cst_699 : f32 to vector<8x256xf32>
    %1137 = arith.cmpf ogt, %1135, %1136 : vector<8x256xf32>
    %cst_700 = arith.constant 3.14159274 : f32
    %1138 = vector.broadcast %cst_700 : f32 to vector<8x256xf32>
    %1139 = arith.subf %1138, %1135 : vector<8x256xf32>
    %1140 = arith.select %1137, %1139, %1135 : vector<8x256xi1>, vector<8x256xf32>
    %cst_701 = arith.constant -1.57079637 : f32
    %1141 = vector.broadcast %cst_701 : f32 to vector<8x256xf32>
    %1142 = arith.cmpf olt, %1140, %1141 : vector<8x256xf32>
    %cst_702 = arith.constant -3.14159274 : f32
    %1143 = vector.broadcast %cst_702 : f32 to vector<8x256xf32>
    %1144 = arith.subf %1143, %1140 : vector<8x256xf32>
    %1145 = arith.select %1142, %1144, %1140 : vector<8x256xi1>, vector<8x256xf32>
    %1146 = arith.mulf %1145, %1145 : vector<8x256xf32>
    %cst_703 = arith.constant 2.75573188E-6 : f32
    %1147 = vector.broadcast %cst_703 : f32 to vector<8x256xf32>
    %1148 = arith.mulf %1146, %1147 : vector<8x256xf32>
    %cst_704 = arith.constant -1.98412701E-4 : f32
    %1149 = vector.broadcast %cst_704 : f32 to vector<8x256xf32>
    %1150 = arith.addf %1149, %1148 : vector<8x256xf32>
    %1151 = arith.mulf %1146, %1150 : vector<8x256xf32>
    %cst_705 = arith.constant 0.00833333377 : f32
    %1152 = vector.broadcast %cst_705 : f32 to vector<8x256xf32>
    %1153 = arith.addf %1152, %1151 : vector<8x256xf32>
    %1154 = arith.mulf %1146, %1153 : vector<8x256xf32>
    %cst_706 = arith.constant -0.166666672 : f32
    %1155 = vector.broadcast %cst_706 : f32 to vector<8x256xf32>
    %1156 = arith.addf %1155, %1154 : vector<8x256xf32>
    %1157 = arith.mulf %1146, %1156 : vector<8x256xf32>
    %cst_707 = arith.constant 1.000000e+00 : f32
    %1158 = vector.broadcast %cst_707 : f32 to vector<8x256xf32>
    %1159 = arith.addf %1158, %1157 : vector<8x256xf32>
    %1160 = arith.mulf %1145, %1159 : vector<8x256xf32>
    %1161 = arith.mulf %1160, %1160 : vector<8x256xf32>
    %1162 = vector.broadcast %845 : vector<8x1xf32> to vector<8x256xf32>
    %1163 = arith.mulf %1161, %1162 : vector<8x256xf32>
    %1164 = arith.addf %1086, %1163 : vector<8x256xf32>
    %c0_708 = arith.constant 0 : index
    %c128_709 = arith.constant 128 : index
    %1165 = vector.load %arg5[%c0_708, %c128_709] : memref<8x512xf32, #tpu.memory_space<vmem>>, vector<8x256xf32>
    tpu.vector_store %arg5[%c0_708, %c128_709], %1125 {strides = array<i32>} : memref<8x512xf32, #tpu.memory_space<vmem>>, vector<8x256xf32>,
    %c0_710 = arith.constant 0 : index
    %c125_711 = arith.constant 125 : index
    %1166 = vector.load %arg5[%c0_710, %c125_711] : memref<8x512xf32, #tpu.memory_space<vmem>>, vector<8x256xf32>
    %cst_712 = arith.constant 4.55876232E-20 : f32
    %1167 = vector.broadcast %cst_712 : f32 to vector<8x256xf32>
    %1168 = arith.mulf %1167, %1166 : vector<8x256xf32>
    %c0_713 = arith.constant 0 : index
    %c126_714 = arith.constant 126 : index
    %1169 = vector.load %arg5[%c0_713, %c126_714] : memref<8x512xf32, #tpu.memory_space<vmem>>, vector<8x256xf32>
    %cst_715 = arith.constant -2.96293655E-18 : f32
    %1170 = vector.broadcast %cst_715 : f32 to vector<8x256xf32>
    %1171 = arith.mulf %1170, %1169 : vector<8x256xf32>
    %1172 = arith.addf %1168, %1171 : vector<8x256xf32>
    %c0_716 = arith.constant 0 : index
    %c127_717 = arith.constant 127 : index
    %1173 = vector.load %arg5[%c0_716, %c127_717] : memref<8x512xf32, #tpu.memory_space<vmem>>, vector<8x256xf32>
    %cst_718 = arith.constant 1.27178746E-17 : f32
    %1174 = vector.broadcast %cst_718 : f32 to vector<8x256xf32>
    %1175 = arith.mulf %1174, %1173 : vector<8x256xf32>
    %1176 = arith.addf %1172, %1175 : vector<8x256xf32>
    %c0_719 = arith.constant 0 : index
    %c128_720 = arith.constant 128 : index
    %1177 = vector.load %arg5[%c0_719, %c128_720] : memref<8x512xf32, #tpu.memory_space<vmem>>, vector<8x256xf32>
    %cst_721 = arith.constant 0.500019848 : f32
    %1178 = vector.broadcast %cst_721 : f32 to vector<8x256xf32>
    %1179 = arith.mulf %1178, %1177 : vector<8x256xf32>
    %1180 = arith.addf %1176, %1179 : vector<8x256xf32>
    %c0_722 = arith.constant 0 : index
    %c129_723 = arith.constant 129 : index
    %1181 = vector.load %arg5[%c0_722, %c129_723] : memref<8x512xf32, #tpu.memory_space<vmem>>, vector<8x256xf32>
    %cst_724 = arith.constant 1.27178746E-17 : f32
    %1182 = vector.broadcast %cst_724 : f32 to vector<8x256xf32>
    %1183 = arith.mulf %1182, %1181 : vector<8x256xf32>
    %1184 = arith.addf %1180, %1183 : vector<8x256xf32>
    %c0_725 = arith.constant 0 : index
    %c130_726 = arith.constant 130 : index
    %1185 = vector.load %arg5[%c0_725, %c130_726] : memref<8x512xf32, #tpu.memory_space<vmem>>, vector<8x256xf32>
    %cst_727 = arith.constant -2.96293655E-18 : f32
    %1186 = vector.broadcast %cst_727 : f32 to vector<8x256xf32>
    %1187 = arith.mulf %1186, %1185 : vector<8x256xf32>
    %1188 = arith.addf %1184, %1187 : vector<8x256xf32>
    %c0_728 = arith.constant 0 : index
    %c131_729 = arith.constant 131 : index
    %1189 = vector.load %arg5[%c0_728, %c131_729] : memref<8x512xf32, #tpu.memory_space<vmem>>, vector<8x256xf32>
    %cst_730 = arith.constant 4.55876232E-20 : f32
    %1190 = vector.broadcast %cst_730 : f32 to vector<8x256xf32>
    %1191 = arith.mulf %1190, %1189 : vector<8x256xf32>
    %1192 = arith.addf %1188, %1191 : vector<8x256xf32>
    %c0_731 = arith.constant 0 : index
    %c128_732 = arith.constant 128 : index
    %1193 = vector.load %arg5[%c0_731, %c128_732] : memref<8x512xf32, #tpu.memory_space<vmem>>, vector<8x256xf32>
    tpu.vector_store %arg5[%c0_731, %c128_732], %1164 {strides = array<i32>} : memref<8x512xf32, #tpu.memory_space<vmem>>, vector<8x256xf32>,
    %c0_733 = arith.constant 0 : index
    %c125_734 = arith.constant 125 : index
    %1194 = vector.load %arg5[%c0_733, %c125_734] : memref<8x512xf32, #tpu.memory_space<vmem>>, vector<8x256xf32>
    %cst_735 = arith.constant 0.00243079453 : f32
    %1195 = vector.broadcast %cst_735 : f32 to vector<8x256xf32>
    %1196 = arith.mulf %1195, %1194 : vector<8x256xf32>
    %c0_736 = arith.constant 0 : index
    %c126_737 = arith.constant 126 : index
    %1197 = vector.load %arg5[%c0_736, %c126_737] : memref<8x512xf32, #tpu.memory_space<vmem>>, vector<8x256xf32>
    %cst_738 = arith.constant -0.0391507745 : f32
    %1198 = vector.broadcast %cst_738 : f32 to vector<8x256xf32>
    %1199 = arith.mulf %1198, %1197 : vector<8x256xf32>
    %1200 = arith.addf %1196, %1199 : vector<8x256xf32>
    %c0_739 = arith.constant 0 : index
    %c127_740 = arith.constant 127 : index
    %1201 = vector.load %arg5[%c0_739, %c127_740] : memref<8x512xf32, #tpu.memory_space<vmem>>, vector<8x256xf32>
    %cst_741 = arith.constant 0.286710054 : f32
    %1202 = vector.broadcast %cst_741 : f32 to vector<8x256xf32>
    %1203 = arith.mulf %1202, %1201 : vector<8x256xf32>
    %1204 = arith.addf %1200, %1203 : vector<8x256xf32>
    %c0_742 = arith.constant 0 : index
    %c128_743 = arith.constant 128 : index
    %1205 = vector.load %arg5[%c0_742, %c128_743] : memref<8x512xf32, #tpu.memory_space<vmem>>, vector<8x256xf32>
    %cst_744 = arith.constant 0.286710054 : f32
    %1206 = vector.broadcast %cst_744 : f32 to vector<8x256xf32>
    %1207 = arith.mulf %1206, %1205 : vector<8x256xf32>
    %1208 = arith.addf %1204, %1207 : vector<8x256xf32>
    %c0_745 = arith.constant 0 : index
    %c129_746 = arith.constant 129 : index
    %1209 = vector.load %arg5[%c0_745, %c129_746] : memref<8x512xf32, #tpu.memory_space<vmem>>, vector<8x256xf32>
    %cst_747 = arith.constant -0.0391507745 : f32
    %1210 = vector.broadcast %cst_747 : f32 to vector<8x256xf32>
    %1211 = arith.mulf %1210, %1209 : vector<8x256xf32>
    %1212 = arith.addf %1208, %1211 : vector<8x256xf32>
    %c0_748 = arith.constant 0 : index
    %c130_749 = arith.constant 130 : index
    %1213 = vector.load %arg5[%c0_748, %c130_749] : memref<8x512xf32, #tpu.memory_space<vmem>>, vector<8x256xf32>
    %cst_750 = arith.constant 0.00243079453 : f32
    %1214 = vector.broadcast %cst_750 : f32 to vector<8x256xf32>
    %1215 = arith.mulf %1214, %1213 : vector<8x256xf32>
    %1216 = arith.addf %1212, %1215 : vector<8x256xf32>
    %1217 = arith.addf %1192, %1216 : vector<8x256xf32>
    %c0_751 = arith.constant 0 : index
    %c128_752 = arith.constant 128 : index
    %1218 = vector.load %arg5[%c0_751, %c128_752] : memref<8x512xf32, #tpu.memory_space<vmem>>, vector<8x256xf32>
    tpu.vector_store %arg5[%c0_751, %c128_752], %1217 {strides = array<i32>} : memref<8x512xf32, #tpu.memory_space<vmem>>, vector<8x256xf32>,
    %c0_753 = arith.constant 0 : index
    %c127_754 = arith.constant 127 : index
    %1219 = vector.load %arg5[%c0_753, %c127_754] : memref<8x512xf32, #tpu.memory_space<vmem>>, vector<8x256xf32>
    %c0_755 = arith.constant 0 : index
    %c128_756 = arith.constant 128 : index
    %1220 = vector.load %arg5[%c0_755, %c128_756] : memref<8x512xf32, #tpu.memory_space<vmem>>, vector<8x256xf32>
    %c0_757 = arith.constant 0 : index
    %c129_758 = arith.constant 129 : index
    %1221 = vector.load %arg5[%c0_757, %c129_758] : memref<8x512xf32, #tpu.memory_space<vmem>>, vector<8x256xf32>
    %1222 = tpu.concatenate %1219, %1220, %1221 in 0 : vector<8x256xf32>, vector<8x256xf32>, vector<8x256xf32> -> vector<24x256xf32>
    %cst_759 = arith.constant dense<0.000000e+00> : vector<8x256xf32>
    %1223 = tpu.matmul %823, %1222, %cst_759 {dimension_numbers = #tpu.dot_dimension_numbers<[1], [0], [0], [1], [0, 0, 1, 1], [], []>} : vector<8x24xf32>, vector<24x256xf32>, vector<8x256xf32> -> vector<8x256xf32>
    %1224 = vector.broadcast %827 : vector<8x1xf32> to vector<8x256xf32>
    %1225 = arith.addf %1223, %1224 : vector<8x256xf32>
    %1226 = arith.addf %819, %1225 : vector<8x256xf32>
    %c0_760 = arith.constant 0 : index
    %c0_761 = arith.constant 0 : index
    %c0_762 = arith.constant 0 : index
    %1227 = vector.load %arg4[%c0_760, %c0_761, %c0_762] : memref<1x8x256xf32, #tpu.memory_space<vmem>>, vector<1x8x256xf32>
    %1228 = vector.shape_cast %1227 : vector<1x8x256xf32> to vector<8x256xf32>
    %1229 = vector.shape_cast %1226 : vector<8x256xf32> to vector<1x8x256xf32>
    tpu.vector_store %arg4[%c0_760, %c0_761, %c0_762], %1229 {strides = array<i32>} : memref<1x8x256xf32, #tpu.memory_space<vmem>>, vector<1x8x256xf32>,
    return
  }
  func.func @transform_0(%arg0: i32) -> (i32, i32, i32) {
    %c0_i32 = arith.constant 0 : i32
    %c0_i32_0 = arith.constant 0 : i32
    %c0_i32_1 = arith.constant 0 : i32
    return %arg0, %c0_i32, %c0_i32_0 : i32, i32, i32
  }
  func.func @transform_1(%arg0: i32) -> (i32, i32, i32) {
    %c0_i32 = arith.constant 0 : i32
    %c0_i32_0 = arith.constant 0 : i32
    %c0_i32_1 = arith.constant 0 : i32
    %c0_i32_2 = arith.constant 0 : i32
    return %c0_i32, %c0_i32_0, %c0_i32_1 : i32, i32, i32
  }
  func.func @transform_2(%arg0: i32) -> (i32, i32, i32) {
    %c0_i32 = arith.constant 0 : i32
    %c0_i32_0 = arith.constant 0 : i32
    %c0_i32_1 = arith.constant 0 : i32
    %c0_i32_2 = arith.constant 0 : i32
    return %c0_i32, %c0_i32_0, %c0_i32_1 : i32, i32, i32
  }
  func.func @transform_3(%arg0: i32) -> (i32, i32, i32) {
    %c0_i32 = arith.constant 0 : i32
    %c0_i32_0 = arith.constant 0 : i32
    %c0_i32_1 = arith.constant 0 : i32
    return %arg0, %c0_i32, %c0_i32_0 : i32, i32, i32
  }
}

</mosaic_0001>

<llo_original>
// kernel: tpu_custom_call.1
$region0: #{tpu_custom_call.1}
  #allocation0 [shape = 'u32[]', space=smem, size = 0x4, offset = 0x4, fixed_abs, tag = 'smem constant byte address 0x4 - core index']
  #allocation1 [shape = 'u32[144,128]{1,0:T(1,128)}', space=vmem, size = 0x12000, scoped, tag = 'internal scratch']
  #allocation2 [shape = 'f32[8,512]{1,0:T(8,128)}', space=vmem, size = 0x4000, scoped, tag = 'scratch operand']
  %s0 = inlined_call_operand.vmem [shape: f32[2,8,256], index: 0, kind: input, shape index: {}]
  %s1 = inlined_call_operand.vmem [shape: f32[6,8,24], index: 1, kind: input, shape index: {}]
  %s2 = inlined_call_operand.vmem [shape: f32[18,8,1], index: 2, kind: input, shape index: {}]
  %s3 = inlined_call_operand.hbm [shape: f32[2,8,256], index: 3, kind: output, shape index: {}]
  %s4 = sld [smem:[#allocation0]]
  $region45: #{tpu_custom_call.1} parent=0
    _
  %s6 = ssub.s32 1, %s4
  %s7 = scalar_select 0, %s6, %s4
  $region1: #{tpu_custom_call.1} parent=0
    #allocation3 [shape = 'u8[16384]{0}', space=vmem, size = 0x4000, scoped, tag = 'output window, operand 0']
    #allocation4 [shape = 's32[2]{0}', space=sflag, size = 0x8, scoped, tag = 'scoped memory for tpu_custom_call.1']
    %8 = vsyncpa [#allocation4], 0
    %s9 = scalar_lea.sflag [#allocation4], 1
    %10 = vsyncpa %s9, 0
    loop: start=0, step=1, limit=4
    $region2: #{tpu_custom_call.1} parent=1 // loop_pre_header
      _
    $region3: #{tpu_custom_call.1} parent=1 // loop_header
      %s12 = sphi 0, %s16
      %p13 = scmp.ge.s32.totalorder %s12, 4
      %s22 = sphi 0, %s24
      %s25 = sphi 0, %s22
      %s26 = sphi 0, %s25
      %s42 = sphi 0, %s26
      %s46 = sphi 0, %s46
      %s48 = sphi 0, %s46
      %s49 = sphi 0, %s48
      %s63 = sphi 0, %s49
      %s67 = sphi 0, %s67
      %s69 = sphi 0, %s67
      %s70 = sphi 0, %s69
      %s84 = sphi 0, %s70
      %s90 = sphi 0, %s92
      %s93 = sphi 0, %s90
      %s94 = sphi 0, %s93
      %s110 = sphi 0, %s94
    $region4: #{tpu_custom_call.1} parent=1 // loop_header_branch
      %15 = sbr.rel (%p13) target = $region8
    $region5: #{tpu_custom_call.1} parent=1 // loop_body
      %s17 = ssub.s32 %s12, 1
      %s18 = ssub.s32 %s12, 2
      %s19 = sadd.s32 %s12, 1
      %s20 = ssub.s32 %s12, %s19
      %p21 = scmp.eq.s32.totalorder %s20, 0
      %s23 = sadd.s32 %s22, 1
      %s24 = scalar_select %p21, %s22, %s23
      %p27 = pneg %p21
      %p28 = scmp.eq.s32.totalorder %s12, 1
      %p29 = por %p27, %p28
      %p30 = scmp.ne.s32.totalorder %s22, %s25
      %p31 = scmp.eq.s32.totalorder %s12, 0
      %p32 = por %p30, %p31
      %p33 = scmp.ne.s32.totalorder %s22, %s25
      %p34 = scmp.eq.s32.totalorder %s17, 1
      %p35 = por %p33, %p34
      %p36 = scmp.ne.s32.totalorder %s25, %s26
      %p37 = scmp.eq.s32.totalorder %s17, 0
      %p38 = por %p36, %p37
      %p39 = scmp.ne.s32.totalorder %s25, %s26
      %p40 = scmp.eq.s32.totalorder %s18, 1
      %p41 = por %p39, %p40
      %p43 = scmp.ne.s32.totalorder %s26, %s42
      %p44 = scmp.eq.s32.totalorder %s18, 0
      %p45 = por %p43, %p44
      %s47 = sadd.s32 %s46, 1
      %p50 = scmp.eq.s32.totalorder %s12, 1
      %p51 = scmp.ne.s32.totalorder %s46, %s48
      %p52 = scmp.eq.s32.totalorder %s12, 0
      %p53 = por %p51, %p52
      %p54 = scmp.ne.s32.totalorder %s46, %s48
      %p55 = scmp.eq.s32.totalorder %s17, 1
      %p56 = por %p54, %p55
      %p57 = scmp.ne.s32.totalorder %s48, %s49
      %p58 = scmp.eq.s32.totalorder %s17, 0
      %p59 = por %p57, %p58
      %p60 = scmp.ne.s32.totalorder %s48, %s49
      %p61 = scmp.eq.s32.totalorder %s18, 1
      %p62 = por %p60, %p61
      %p64 = scmp.ne.s32.totalorder %s49, %s63
      %p65 = scmp.eq.s32.totalorder %s18, 0
      %p66 = por %p64, %p65
      %s68 = sadd.s32 %s67, 1
      %p71 = scmp.eq.s32.totalorder %s12, 1
      %p72 = scmp.ne.s32.totalorder %s67, %s69
      %p73 = scmp.eq.s32.totalorder %s12, 0
      %p74 = por %p72, %p73
      %p75 = scmp.ne.s32.totalorder %s67, %s69
      %p76 = scmp.eq.s32.totalorder %s17, 1
      %p77 = por %p75, %p76
      %p78 = scmp.ne.s32.totalorder %s69, %s70
      %p79 = scmp.eq.s32.totalorder %s17, 0
      %p80 = por %p78, %p79
      %p81 = scmp.ne.s32.totalorder %s69, %s70
      %p82 = scmp.eq.s32.totalorder %s18, 1
      %p83 = por %p81, %p82
      %p85 = scmp.ne.s32.totalorder %s70, %s84
      %p86 = scmp.eq.s32.totalorder %s18, 0
      %p87 = por %p85, %p86
      %s88 = ssub.s32 %s12, %s19
      %p89 = scmp.eq.s32.totalorder %s88, 0
      %s91 = sadd.s32 %s90, 1
      %s92 = scalar_select %p89, %s90, %s91
      %p95 = pneg %p89
      %p96 = scmp.eq.s32.totalorder %s12, 1
      %p97 = por %p95, %p96
      %p98 = scmp.ne.s32.totalorder %s90, %s93
      %p99 = scmp.eq.s32.totalorder %s12, 0
      %p100 = por %p98, %p99
      %p101 = scmp.ne.s32.totalorder %s90, %s93
      %p102 = scmp.eq.s32.totalorder %s17, 1
      %p103 = por %p101, %p102
      %p104 = scmp.ne.s32.totalorder %s93, %s94
      %p105 = scmp.eq.s32.totalorder %s17, 0
      %p106 = por %p104, %p105
      %p107 = scmp.ne.s32.totalorder %s93, %s94
      %p108 = scmp.eq.s32.totalorder %s18, 1
      %p109 = por %p107, %p108
      %p111 = scmp.ne.s32.totalorder %s94, %s110
      %p112 = scmp.eq.s32.totalorder %s18, 0
      %p113 = por %p111, %p112
      %p114 = scmp.le.s32.totalorder 1, %s12
      %p115 = scmp.lt.s32.totalorder %s12, 3
      %p116 = pnand %p114, %p115
      %p117 = pneg %p116
      // Predicated region
      $region9: #{tpu_custom_call.1} parent=5 // pred_check
        _
      $region10: #{tpu_custom_call.1} parent=5 // pred_check_branch
        %119 = sbr.rel (%p116) target = $region12
      $region11: #{tpu_custom_call.1} parent=5 // pred_region
        %s120 = ssub.s32 %s12, 1
        // Predicated region
        $region13: #{tpu_custom_call.1} parent=11 // pred_check
          %p121 = pneg %p59
        $region14: #{tpu_custom_call.1} parent=11 // pred_check_branch
          %123 = sbr.rel (%p121) target = $region16
        $region15: #{tpu_custom_call.1} parent=11 // pred_region
          _
        $region16: #{tpu_custom_call.1} parent=11 // pred_fallthru
          _
        // Predicated region
        $region17: #{tpu_custom_call.1} parent=11 // pred_check
          %p124 = pneg %p80
        $region18: #{tpu_custom_call.1} parent=11 // pred_check_branch
          %126 = sbr.rel (%p124) target = $region20
        $region19: #{tpu_custom_call.1} parent=11 // pred_region
          _
        $region20: #{tpu_custom_call.1} parent=11 // pred_fallthru
          _
      $region12: #{tpu_custom_call.1} parent=5 // pred_fallthru
        _
      %p127 = scmp.lt.s32.totalorder %s12, 2
      // Predicated region
      $region21: #{tpu_custom_call.1} parent=5 // pred_check
        %p128 = pneg %p127
      $region22: #{tpu_custom_call.1} parent=5 // pred_check_branch
        %130 = sbr.rel (%p128) target = $region24
      $region23: #{tpu_custom_call.1} parent=5 // pred_region
        // Predicated region
        $region25: #{tpu_custom_call.1} parent=23 // pred_check
          %p131 = pneg %p32
        $region26: #{tpu_custom_call.1} parent=23 // pred_check_branch
          %133 = sbr.rel (%p131) target = $region28
        $region27: #{tpu_custom_call.1} parent=23 // pred_region
          %p134 = scmp.lt.s32.totalorder %s12, 1
          %s135 = scalar_select %p134, %s12, 1
          %s136 = smul.addr %s135, 2
          %s137 = smul.addr %s136, 8
          %s138 = scalar_lea.vmem %s0, %s137
        $region28: #{tpu_custom_call.1} parent=23 // pred_fallthru
          _
      $region24: #{tpu_custom_call.1} parent=5 // pred_fallthru
        _
      %p139 = scmp.le.s32.totalorder 1, %s12
      %p140 = scmp.lt.s32.totalorder %s12, 3
      %p141 = pnand %p139, %p140
      %p142 = pneg %p141
      // Predicated region
      $region29: #{tpu_custom_call.1} parent=5 // pred_check
        _
      $region30: #{tpu_custom_call.1} parent=5 // pred_check_branch
        %144 = sbr.rel (%p141) target = $region32
      $region31: #{tpu_custom_call.1} parent=5 // pred_region
        %s145 = ssub.s32 %s12, 1
        %p146 = scmp.lt.s32.totalorder %s17, 1
        %s147 = scalar_select %p146, %s17, 1
        %s148 = smul.addr %s147, 2
        %s149 = smul.addr %s148, 8
        %s150 = scalar_lea.vmem %s0, %s149
        %p151 = pneg %p38
        %p152 = pneg %p35
        %p153 = pneg %p59
        %p154 = pneg %p56
        %p155 = pneg %p80
        %p156 = pneg %p77
        %p157 = pneg %p106
        %p158 = pneg %p103
        %s159 = sand.u32 %s93, 1
        %s160 = scalar_lea.sflag [#allocation4], %s159
        %s161 = sand.u32 %s93, 1
        %s162 = smul.addr %s161, 16
        %s163 = scalar_lea.vmem [#allocation3], %s162
        %p164 = scmp.lt.s32.totalorder %s17, 1
        %s165 = scalar_select %p164, %s17, 1
        %s166 = smul.addr %s165, 2
        %s167 = smul.addr %s166, 8
        %s168 = scalar_lea.vmem %s0, %s167
        %169 = vst [vmem:[#allocation2] sm:$0xff] 0.0
        %170 = vst [vmem:[#allocation2 + $0x18] sm:$0xff] 0.0
        %v171 = vld [vmem:[%s168] sm:$0xff]
        %v172 = vld [vmem:[%s168 + $0x8] sm:$0xff]
        %v173 = vld [vmem:[%s1] sm:$0xff]
        %s174 = scalar_lea.vmem %s1, 8
        %v175 = vld [vmem:[%s174] sm:$0xff]
        %v176 = vld [vmem:[%s2] sm:$0xff]
        %s177 = scalar_lea.vmem %s2, 8
        %v178 = vld [vmem:[%s177] sm:$0xff]
        %s179 = scalar_lea.vmem %s2, 16
        %v180 = vld [vmem:[%s179] sm:$0xff]
        %v181 = vmul.f32 %v180, 1.442695
        %v182 = vpow.pop %v181
        %s183 = scalar_lea.vmem %s2, 24
        %v184 = vld [vmem:[%s183] sm:$0xff]
        %v185 = vmul.f32 %v184, 1.442695
        %v186 = vpow.pop %v185
        %v187 = vadd.f32 %v186, 1e-09
        %v188 = vrcp.pop %v187
        %s189 = scalar_lea.vmem %s2, 32
        %v190 = vld [vmem:[%s189] sm:$0xff]
        %v191 = vmul.f32 %v190, 1.442695
        %v192 = vpow.pop %v191
        %s193 = scalar_lea.vmem %s2, 40
        %v194 = vld [vmem:[%s193] sm:$0xff]
        %v195 = vmul.f32 %v194, 1.442695
        %v196 = vpow.pop %v195
        %v197 = vadd.f32 %v196, 1e-09
        %v198 = vrcp.pop %v197
        %199 = vst [vmem:[#allocation2 + $0x8] sm:$0xff] %v171
        %200 = vst [vmem:[#allocation2 + $0x10] sm:$0xff] %v172
        %v201 = vld [vmem:[#allocation2] sm:$0xff]
        %v202 = vld [vmem:[#allocation2 + $0x8] sm:$0xff]
        %v203 = vld [vmem:[#allocation2 + $0x10] sm:$0xff]
        %v204 = vmul.f32 %v201, 9.1175246e-20
        %v205 = vmul.f32 %v202, 9.1175246e-20
        %v206 = vmul.f32 %v203, 9.1175246e-20
        %v207 = vmul.f32 %v201, -5.925873e-18
        %v208 = vmul.f32 %v202, -5.925873e-18
        %v209 = vmul.f32 %v203, -5.925873e-18
        %213 = vrot.lane.b32.xlu0 %v207, 127
        %v214 = vpop.permute.xlu0 %213
        %215 = vrot.lane.b32.xlu0 %v208, 127
        %v216 = vpop.permute.xlu0 %215
        %217 = vrot.lane.b32.xlu0 %v209, 127
        %v218 = vpop.permute.xlu0 %217
        %vm219 = vcmask 1039360
        %v220 = vsel %vm219, %v214, %v216
        %v221 = vsel %vm219, %v216, %v218
        %v225 = vadd.f32 %v204, %v220
        %v226 = vadd.f32 %v205, %v221
        %v227 = vadd.f32 %v206, %v218
        %v228 = vmul.f32 %v201, 2.543575e-17
        %v229 = vmul.f32 %v202, 2.543575e-17
        %v230 = vmul.f32 %v203, 2.543575e-17
        %234 = vrot.lane.b32.xlu0 %v228, 126
        %v235 = vpop.permute.xlu0 %234
        %236 = vrot.lane.b32.xlu0 %v229, 126
        %v237 = vpop.permute.xlu0 %236
        %238 = vrot.lane.b32.xlu0 %v230, 126
        %v239 = vpop.permute.xlu0 %238
        %vm240 = vcmask 1031168
        %v241 = vsel %vm240, %v235, %v237
        %v242 = vsel %vm240, %v237, %v239
        %v246 = vadd.f32 %v225, %v241
        %v247 = vadd.f32 %v226, %v242
        %v248 = vadd.f32 %v227, %v239
        %v249 = vmul.f32 %v202, 1.0000397
        %v250 = vmul.f32 %v203, 1.0000397
        %253 = vrot.lane.b32.xlu0 %v249, 125
        %v254 = vpop.permute.xlu0 %253
        %255 = vrot.lane.b32.xlu0 %v250, 125
        %v256 = vpop.permute.xlu0 %255
        %vm257 = vcmask 1022976
        %v258 = vsel %vm257, %v254, %v256
        %v262 = vadd.f32 %v246, %v254
        %v263 = vadd.f32 %v247, %v258
        %v264 = vadd.f32 %v248, %v256
        %v265 = vld [vmem:[#allocation2 + $0x8] sm:$0xff]
        %v266 = vld [vmem:[#allocation2 + $0x10] sm:$0xff]
        %v267 = vld [vmem:[#allocation2 + $0x18] sm:$0xff]
        %v268 = vmul.f32 %v265, 2.543575e-17
        %v269 = vmul.f32 %v266, 2.543575e-17
        %v270 = vmul.f32 %v267, 2.543575e-17
        %274 = vrot.lane.b32.xlu0 %v268, 124
        %v275 = vpop.permute.xlu0 %274
        %276 = vrot.lane.b32.xlu0 %v269, 124
        %v277 = vpop.permute.xlu0 %276
        %278 = vrot.lane.b32.xlu0 %v270, 124
        %v279 = vpop.permute.xlu0 %278
        %vm280 = vcmask 1014784
        %v281 = vsel %vm280, %v275, %v277
        %v282 = vsel %vm280, %v277, %v279
        %v286 = vadd.f32 %v262, %v275
        %v287 = vadd.f32 %v263, %v281
        %v288 = vadd.f32 %v264, %v282
        %v289 = vmul.f32 %v265, -5.925873e-18
        %v290 = vmul.f32 %v266, -5.925873e-18
        %v291 = vmul.f32 %v267, -5.925873e-18
        %295 = vrot.lane.b32.xlu0 %v289, 123
        %v296 = vpop.permute.xlu0 %295
        %297 = vrot.lane.b32.xlu0 %v290, 123
        %v298 = vpop.permute.xlu0 %297
        %299 = vrot.lane.b32.xlu0 %v291, 123
        %v300 = vpop.permute.xlu0 %299
        %vm301 = vcmask 1006592
        %v302 = vsel %vm301, %v296, %v298
        %v303 = vsel %vm301, %v298, %v300
        %v307 = vadd.f32 %v286, %v296
        %v308 = vadd.f32 %v287, %v302
        %v309 = vadd.f32 %v288, %v303
        %v310 = vmul.f32 %v265, 9.1175246e-20
        %v311 = vmul.f32 %v266, 9.1175246e-20
        %v312 = vmul.f32 %v267, 9.1175246e-20
        %316 = vrot.lane.b32.xlu0 %v310, 122
        %v317 = vpop.permute.xlu0 %316
        %318 = vrot.lane.b32.xlu0 %v311, 122
        %v319 = vpop.permute.xlu0 %318
        %320 = vrot.lane.b32.xlu0 %v312, 122
        %v321 = vpop.permute.xlu0 %320
        %vm322 = vcmask 998400
        %v323 = vsel %vm322, %v317, %v319
        %v324 = vsel %vm322, %v319, %v321
        %v328 = vadd.f32 %v307, %v317
        %v329 = vadd.f32 %v308, %v323
        %v330 = vadd.f32 %v309, %v324
        %v331 = vmul.f32 %v201, 0.004861589
        %v332 = vmul.f32 %v202, 0.004861589
        %v333 = vmul.f32 %v203, 0.004861589
        %v334 = vmul.f32 %v201, -0.07830155
        %v335 = vmul.f32 %v202, -0.07830155
        %v336 = vmul.f32 %v203, -0.07830155
        %340 = vrot.lane.b32.xlu0 %v334, 127
        %v341 = vpop.permute.xlu0 %340
        %342 = vrot.lane.b32.xlu0 %v335, 127
        %v343 = vpop.permute.xlu0 %342
        %344 = vrot.lane.b32.xlu0 %v336, 127
        %v345 = vpop.permute.xlu0 %344
        %v346 = vsel %vm219, %v341, %v343
        %v347 = vsel %vm219, %v343, %v345
        %v351 = vadd.f32 %v331, %v346
        %v352 = vadd.f32 %v332, %v347
        %v353 = vadd.f32 %v333, %v345
        %v354 = vmul.f32 %v202, 0.5734201
        %v355 = vmul.f32 %v203, 0.5734201
        %358 = vrot.lane.b32.xlu0 %v354, 126
        %v359 = vpop.permute.xlu0 %358
        %360 = vrot.lane.b32.xlu0 %v355, 126
        %v361 = vpop.permute.xlu0 %360
        %v362 = vsel %vm240, %v359, %v361
        %v366 = vadd.f32 %v351, %v359
        %v367 = vadd.f32 %v352, %v362
        %v368 = vadd.f32 %v353, %v361
        %v369 = vmul.f32 %v265, 0.5734201
        %v370 = vmul.f32 %v266, 0.5734201
        %v371 = vmul.f32 %v267, 0.5734201
        %375 = vrot.lane.b32.xlu0 %v369, 125
        %v376 = vpop.permute.xlu0 %375
        %377 = vrot.lane.b32.xlu0 %v370, 125
        %v378 = vpop.permute.xlu0 %377
        %379 = vrot.lane.b32.xlu0 %v371, 125
        %v380 = vpop.permute.xlu0 %379
        %v381 = vsel %vm257, %v376, %v378
        %v382 = vsel %vm257, %v378, %v380
        %v386 = vadd.f32 %v366, %v376
        %v387 = vadd.f32 %v367, %v381
        %v388 = vadd.f32 %v368, %v382
        %v389 = vmul.f32 %v265, -0.07830155
        %v390 = vmul.f32 %v266, -0.07830155
        %v391 = vmul.f32 %v267, -0.07830155
        %395 = vrot.lane.b32.xlu0 %v389, 124
        %v396 = vpop.permute.xlu0 %395
        %397 = vrot.lane.b32.xlu0 %v390, 124
        %v398 = vpop.permute.xlu0 %397
        %399 = vrot.lane.b32.xlu0 %v391, 124
        %v400 = vpop.permute.xlu0 %399
        %v401 = vsel %vm280, %v396, %v398
        %v402 = vsel %vm280, %v398, %v400
        %v406 = vadd.f32 %v386, %v396
        %v407 = vadd.f32 %v387, %v401
        %v408 = vadd.f32 %v388, %v402
        %v409 = vmul.f32 %v265, 0.004861589
        %v410 = vmul.f32 %v266, 0.004861589
        %v411 = vmul.f32 %v267, 0.004861589
        %415 = vrot.lane.b32.xlu0 %v409, 123
        %v416 = vpop.permute.xlu0 %415
        %417 = vrot.lane.b32.xlu0 %v410, 123
        %v418 = vpop.permute.xlu0 %417
        %419 = vrot.lane.b32.xlu0 %v411, 123
        %v420 = vpop.permute.xlu0 %419
        %v421 = vsel %vm301, %v416, %v418
        %v422 = vsel %vm301, %v418, %v420
        %v426 = vadd.f32 %v406, %v416
        %v427 = vadd.f32 %v407, %v421
        %v428 = vadd.f32 %v408, %v422
        %430 = vset.pattern.permute.xlu0 0
        %431 = vperm.xlu0 %430, %v182
        %v432 = vpop.permute.xlu0 %431
        %v434 = vmul.f32 %v432, %v328
        %v435 = vmul.f32 %v432, %v329
        %v436 = vmul.f32 %v432, %v330
        %v437 = vrcp.pop 6.2831855
        %v438 = vmul.f32 %v434, %v437
        %v439 = vmul.f32 %v435, %v437
        %v440 = vmul.f32 %v436, %v437
        %v441 = vadd.f32 %v438, 0.5
        %v442 = vadd.f32 %v439, 0.5
        %v443 = vadd.f32 %v440, 0.5
        %v444 = vfloor.f32 %v441
        %v445 = vfloor.f32 %v442
        %v446 = vfloor.f32 %v443
        %v447 = vmul.f32 %v444, 6.2831855
        %v448 = vmul.f32 %v445, 6.2831855
        %v449 = vmul.f32 %v446, 6.2831855
        %v450 = vsub.f32 %v434, %v447
        %v451 = vsub.f32 %v435, %v448
        %v452 = vsub.f32 %v436, %v449
        %vm453 = vcmp.gt.f32.partialorder %v450, 1.5707964
        %vm454 = vcmp.gt.f32.partialorder %v451, 1.5707964
        %vm455 = vcmp.gt.f32.partialorder %v452, 1.5707964
        %v456 = vsub.f32 3.1415927, %v450
        %v457 = vsub.f32 3.1415927, %v451
        %v458 = vsub.f32 3.1415927, %v452
        %v459 = vsel %vm453, %v456, %v450
        %v460 = vsel %vm454, %v457, %v451
        %v461 = vsel %vm455, %v458, %v452
        %vm462 = vcmp.lt.f32.partialorder %v459, -1.5707964
        %vm463 = vcmp.lt.f32.partialorder %v460, -1.5707964
        %vm464 = vcmp.lt.f32.partialorder %v461, -1.5707964
        %v465 = vsub.f32 -3.1415927, %v459
        %v466 = vsub.f32 -3.1415927, %v460
        %v467 = vsub.f32 -3.1415927, %v461
        %v468 = vsel %vm462, %v465, %v459
        %v469 = vsel %vm463, %v466, %v460
        %v470 = vsel %vm464, %v467, %v461
        %v471 = vmul.f32 %v468, %v468
        %v472 = vmul.f32 %v469, %v469
        %v473 = vmul.f32 %v470, %v470
        %v474 = vmul.f32 %v471, 2.7557319e-06
        %v475 = vmul.f32 %v472, 2.7557319e-06
        %v476 = vmul.f32 %v473, 2.7557319e-06
        %v477 = vadd.f32 %v474, -0.0001984127
        %v478 = vadd.f32 %v475, -0.0001984127
        %v479 = vadd.f32 %v476, -0.0001984127
        %v480 = vmul.f32 %v471, %v477
        %v481 = vmul.f32 %v472, %v478
        %v482 = vmul.f32 %v473, %v479
        %v483 = vadd.f32 %v480, 0.008333334
        %v484 = vadd.f32 %v481, 0.008333334
        %v485 = vadd.f32 %v482, 0.008333334
        %v486 = vmul.f32 %v471, %v483
        %v487 = vmul.f32 %v472, %v484
        %v488 = vmul.f32 %v473, %v485
        %v489 = vadd.f32 %v486, -0.16666667
        %v490 = vadd.f32 %v487, -0.16666667
        %v491 = vadd.f32 %v488, -0.16666667
        %v492 = vmul.f32 %v471, %v489
        %v493 = vmul.f32 %v472, %v490
        %v494 = vmul.f32 %v473, %v491
        %v495 = vadd.f32 %v492, 1.0
        %v496 = vadd.f32 %v493, 1.0
        %v497 = vadd.f32 %v494, 1.0
        %v498 = vmul.f32 %v468, %v495
        %v499 = vmul.f32 %v469, %v496
        %v500 = vmul.f32 %v470, %v497
        %v501 = vmul.f32 %v498, %v498
        %v502 = vmul.f32 %v499, %v499
        %v503 = vmul.f32 %v500, %v500
        %505 = vset.pattern.permute.xlu0 0
        %506 = vperm.xlu0 %505, %v188
        %v507 = vpop.permute.xlu0 %506
        %v509 = vmul.f32 %v501, %v507
        %v510 = vmul.f32 %v502, %v507
        %v511 = vmul.f32 %v503, %v507
        %v512 = vadd.f32 %v328, %v509
        %v513 = vadd.f32 %v329, %v510
        %v514 = vadd.f32 %v330, %v511
        %v515 = vmul.f32 %v432, %v426
        %v516 = vmul.f32 %v432, %v427
        %v517 = vmul.f32 %v432, %v428
        %v518 = vmul.f32 %v515, %v437
        %v519 = vmul.f32 %v516, %v437
        %v520 = vmul.f32 %v517, %v437
        %v521 = vadd.f32 %v518, 0.5
        %v522 = vadd.f32 %v519, 0.5
        %v523 = vadd.f32 %v520, 0.5
        %v524 = vfloor.f32 %v521
        %v525 = vfloor.f32 %v522
        %v526 = vfloor.f32 %v523
        %v527 = vmul.f32 %v524, 6.2831855
        %v528 = vmul.f32 %v525, 6.2831855
        %v529 = vmul.f32 %v526, 6.2831855
        %v530 = vsub.f32 %v515, %v527
        %v531 = vsub.f32 %v516, %v528
        %v532 = vsub.f32 %v517, %v529
        %vm533 = vcmp.gt.f32.partialorder %v530, 1.5707964
        %vm534 = vcmp.gt.f32.partialorder %v531, 1.5707964
        %vm535 = vcmp.gt.f32.partialorder %v532, 1.5707964
        %v536 = vsub.f32 3.1415927, %v530
        %v537 = vsub.f32 3.1415927, %v531
        %v538 = vsub.f32 3.1415927, %v532
        %v539 = vsel %vm533, %v536, %v530
        %v540 = vsel %vm534, %v537, %v531
        %v541 = vsel %vm535, %v538, %v532
        %vm542 = vcmp.lt.f32.partialorder %v539, -1.5707964
        %vm543 = vcmp.lt.f32.partialorder %v540, -1.5707964
        %vm544 = vcmp.lt.f32.partialorder %v541, -1.5707964
        %v545 = vsub.f32 -3.1415927, %v539
        %v546 = vsub.f32 -3.1415927, %v540
        %v547 = vsub.f32 -3.1415927, %v541
        %v548 = vsel %vm542, %v545, %v539
        %v549 = vsel %vm543, %v546, %v540
        %v550 = vsel %vm544, %v547, %v541
        %v551 = vmul.f32 %v548, %v548
        %v552 = vmul.f32 %v549, %v549
        %v553 = vmul.f32 %v550, %v550
        %v554 = vmul.f32 %v551, 2.7557319e-06
        %v555 = vmul.f32 %v552, 2.7557319e-06
        %v556 = vmul.f32 %v553, 2.7557319e-06
        %v557 = vadd.f32 %v554, -0.0001984127
        %v558 = vadd.f32 %v555, -0.0001984127
        %v559 = vadd.f32 %v556, -0.0001984127
        %v560 = vmul.f32 %v551, %v557
        %v561 = vmul.f32 %v552, %v558
        %v562 = vmul.f32 %v553, %v559
        %v563 = vadd.f32 %v560, 0.008333334
        %v564 = vadd.f32 %v561, 0.008333334
        %v565 = vadd.f32 %v562, 0.008333334
        %v566 = vmul.f32 %v551, %v563
        %v567 = vmul.f32 %v552, %v564
        %v568 = vmul.f32 %v553, %v565
        %v569 = vadd.f32 %v566, -0.16666667
        %v570 = vadd.f32 %v567, -0.16666667
        %v571 = vadd.f32 %v568, -0.16666667
        %v572 = vmul.f32 %v551, %v569
        %v573 = vmul.f32 %v552, %v570
        %v574 = vmul.f32 %v553, %v571
        %v575 = vadd.f32 %v572, 1.0
        %v576 = vadd.f32 %v573, 1.0
        %v577 = vadd.f32 %v574, 1.0
        %v578 = vmul.f32 %v548, %v575
        %v579 = vmul.f32 %v549, %v576
        %v580 = vmul.f32 %v550, %v577
        %v581 = vmul.f32 %v578, %v578
        %v582 = vmul.f32 %v579, %v579
        %v583 = vmul.f32 %v580, %v580
        %v584 = vmul.f32 %v581, %v507
        %v585 = vmul.f32 %v582, %v507
        %v586 = vmul.f32 %v583, %v507
        %v587 = vadd.f32 %v426, %v584
        %v588 = vadd.f32 %v427, %v585
        %v589 = vadd.f32 %v428, %v586
        %593 = vrot.lane.b32.xlu0 %v512, 3
        %v594 = vpop.permute.xlu0 %593
        %595 = vrot.lane.b32.xlu0 %v513, 3
        %v596 = vpop.permute.xlu0 %595
        %597 = vrot.lane.b32.xlu0 %v514, 3
        %v598 = vpop.permute.xlu0 %597
        %vm599 = vcmask 23552
        %v600 = vsel %vm599, %v594, %v596
        %v601 = vsel %vm599, %v596, %v598
        %604 = vst [vmem:[#allocation2 + $0x8] sm:$0xff] %v600
        %605 = vst [vmem:[#allocation2 + $0x10] sm:$0xff] %v601
        %v606 = vld [vmem:[#allocation2] sm:$0xff]
        %v607 = vld [vmem:[#allocation2 + $0x8] sm:$0xff]
        %v608 = vld [vmem:[#allocation2 + $0x10] sm:$0xff]
        %v609 = vmul.f32 %v606, 4.5587623e-20
        %v610 = vmul.f32 %v607, 4.5587623e-20
        %v611 = vmul.f32 %v608, 4.5587623e-20
        %v612 = vmul.f32 %v606, -2.9629366e-18
        %v613 = vmul.f32 %v607, -2.9629366e-18
        %v614 = vmul.f32 %v608, -2.9629366e-18
        %618 = vrot.lane.b32.xlu0 %v612, 127
        %v619 = vpop.permute.xlu0 %618
        %620 = vrot.lane.b32.xlu0 %v613, 127
        %v621 = vpop.permute.xlu0 %620
        %622 = vrot.lane.b32.xlu0 %v614, 127
        %v623 = vpop.permute.xlu0 %622
        %v624 = vsel %vm219, %v619, %v621
        %v625 = vsel %vm219, %v621, %v623
        %v629 = vadd.f32 %v609, %v624
        %v630 = vadd.f32 %v610, %v625
        %v631 = vadd.f32 %v611, %v623
        %v632 = vmul.f32 %v606, 1.2717875e-17
        %v633 = vmul.f32 %v607, 1.2717875e-17
        %v634 = vmul.f32 %v608, 1.2717875e-17
        %638 = vrot.lane.b32.xlu0 %v632, 126
        %v639 = vpop.permute.xlu0 %638
        %640 = vrot.lane.b32.xlu0 %v633, 126
        %v641 = vpop.permute.xlu0 %640
        %642 = vrot.lane.b32.xlu0 %v634, 126
        %v643 = vpop.permute.xlu0 %642
        %v644 = vsel %vm240, %v639, %v641
        %v645 = vsel %vm240, %v641, %v643
        %v649 = vadd.f32 %v629, %v644
        %v650 = vadd.f32 %v630, %v645
        %v651 = vadd.f32 %v631, %v643
        %v652 = vmul.f32 %v607, 0.50001985
        %v653 = vmul.f32 %v608, 0.50001985
        %656 = vrot.lane.b32.xlu0 %v652, 125
        %v657 = vpop.permute.xlu0 %656
        %658 = vrot.lane.b32.xlu0 %v653, 125
        %v659 = vpop.permute.xlu0 %658
        %v660 = vsel %vm257, %v657, %v659
        %v664 = vadd.f32 %v649, %v657
        %v665 = vadd.f32 %v650, %v660
        %v666 = vadd.f32 %v651, %v659
        %v667 = vld [vmem:[#allocation2 + $0x8] sm:$0xff]
        %v668 = vld [vmem:[#allocation2 + $0x10] sm:$0xff]
        %v669 = vld [vmem:[#allocation2 + $0x18] sm:$0xff]
        %v670 = vmul.f32 %v667, 1.2717875e-17
        %v671 = vmul.f32 %v668, 1.2717875e-17
        %v672 = vmul.f32 %v669, 1.2717875e-17
        %676 = vrot.lane.b32.xlu0 %v670, 124
        %v677 = vpop.permute.xlu0 %676
        %678 = vrot.lane.b32.xlu0 %v671, 124
        %v679 = vpop.permute.xlu0 %678
        %680 = vrot.lane.b32.xlu0 %v672, 124
        %v681 = vpop.permute.xlu0 %680
        %v682 = vsel %vm280, %v677, %v679
        %v683 = vsel %vm280, %v679, %v681
        %v687 = vadd.f32 %v664, %v677
        %v688 = vadd.f32 %v665, %v682
        %v689 = vadd.f32 %v666, %v683
        %v690 = vmul.f32 %v667, -2.9629366e-18
        %v691 = vmul.f32 %v668, -2.9629366e-18
        %v692 = vmul.f32 %v669, -2.9629366e-18
        %696 = vrot.lane.b32.xlu0 %v690, 123
        %v697 = vpop.permute.xlu0 %696
        %698 = vrot.lane.b32.xlu0 %v691, 123
        %v699 = vpop.permute.xlu0 %698
        %700 = vrot.lane.b32.xlu0 %v692, 123
        %v701 = vpop.permute.xlu0 %700
        %v702 = vsel %vm301, %v697, %v699
        %v703 = vsel %vm301, %v699, %v701
        %v707 = vadd.f32 %v687, %v697
        %v708 = vadd.f32 %v688, %v702
        %v709 = vadd.f32 %v689, %v703
        %v710 = vmul.f32 %v667, 4.5587623e-20
        %v711 = vmul.f32 %v668, 4.5587623e-20
        %v712 = vmul.f32 %v669, 4.5587623e-20
        %716 = vrot.lane.b32.xlu0 %v710, 122
        %v717 = vpop.permute.xlu0 %716
        %718 = vrot.lane.b32.xlu0 %v711, 122
        %v719 = vpop.permute.xlu0 %718
        %720 = vrot.lane.b32.xlu0 %v712, 122
        %v721 = vpop.permute.xlu0 %720
        %v722 = vsel %vm322, %v717, %v719
        %v723 = vsel %vm322, %v719, %v721
        %v727 = vadd.f32 %v707, %v717
        %v728 = vadd.f32 %v708, %v722
        %v729 = vadd.f32 %v709, %v723
        %733 = vrot.lane.b32.xlu0 %v587, 2
        %v734 = vpop.permute.xlu0 %733
        %735 = vrot.lane.b32.xlu0 %v588, 2
        %v736 = vpop.permute.xlu0 %735
        %737 = vrot.lane.b32.xlu0 %v589, 2
        %v738 = vpop.permute.xlu0 %737
        %vm739 = vcmask 15360
        %v740 = vsel %vm739, %v734, %v736
        %v741 = vsel %vm739, %v736, %v738
        %744 = vst [vmem:[#allocation2 + $0x8] sm:$0xff] %v740
        %745 = vst [vmem:[#allocation2 + $0x10] sm:$0xff] %v741
        %v746 = vld [vmem:[#allocation2] sm:$0xff]
        %v747 = vld [vmem:[#allocation2 + $0x8] sm:$0xff]
        %v748 = vld [vmem:[#allocation2 + $0x10] sm:$0xff]
        %v749 = vmul.f32 %v746, 0.0024307945
        %v750 = vmul.f32 %v747, 0.0024307945
        %v751 = vmul.f32 %v748, 0.0024307945
        %v752 = vmul.f32 %v746, -0.039150774
        %v753 = vmul.f32 %v747, -0.039150774
        %v754 = vmul.f32 %v748, -0.039150774
        %758 = vrot.lane.b32.xlu0 %v752, 127
        %v759 = vpop.permute.xlu0 %758
        %760 = vrot.lane.b32.xlu0 %v753, 127
        %v761 = vpop.permute.xlu0 %760
        %762 = vrot.lane.b32.xlu0 %v754, 127
        %v763 = vpop.permute.xlu0 %762
        %v764 = vsel %vm219, %v759, %v761
        %v765 = vsel %vm219, %v761, %v763
        %v769 = vadd.f32 %v749, %v764
        %v770 = vadd.f32 %v750, %v765
        %v771 = vadd.f32 %v751, %v763
        %v772 = vmul.f32 %v746, 0.28671005
        %v773 = vmul.f32 %v747, 0.28671005
        %v774 = vmul.f32 %v748, 0.28671005
        %778 = vrot.lane.b32.xlu0 %v772, 126
        %v779 = vpop.permute.xlu0 %778
        %780 = vrot.lane.b32.xlu0 %v773, 126
        %v781 = vpop.permute.xlu0 %780
        %782 = vrot.lane.b32.xlu0 %v774, 126
        %v783 = vpop.permute.xlu0 %782
        %v784 = vsel %vm240, %v779, %v781
        %v785 = vsel %vm240, %v781, %v783
        %v789 = vadd.f32 %v769, %v784
        %v790 = vadd.f32 %v770, %v785
        %v791 = vadd.f32 %v771, %v783
        %792 = vrot.lane.b32.xlu0 %v773, 125
        %v793 = vpop.permute.xlu0 %792
        %794 = vrot.lane.b32.xlu0 %v774, 125
        %v795 = vpop.permute.xlu0 %794
        %v796 = vsel %vm257, %v793, %v795
        %v800 = vadd.f32 %v789, %v793
        %v801 = vadd.f32 %v790, %v796
        %v802 = vadd.f32 %v791, %v795
        %v803 = vld [vmem:[#allocation2 + $0x8] sm:$0xff]
        %v804 = vld [vmem:[#allocation2 + $0x10] sm:$0xff]
        %v805 = vld [vmem:[#allocation2 + $0x18] sm:$0xff]
        %v806 = vmul.f32 %v803, -0.039150774
        %v807 = vmul.f32 %v804, -0.039150774
        %v808 = vmul.f32 %v805, -0.039150774
        %812 = vrot.lane.b32.xlu0 %v806, 124
        %v813 = vpop.permute.xlu0 %812
        %814 = vrot.lane.b32.xlu0 %v807, 124
        %v815 = vpop.permute.xlu0 %814
        %816 = vrot.lane.b32.xlu0 %v808, 124
        %v817 = vpop.permute.xlu0 %816
        %v818 = vsel %vm280, %v813, %v815
        %v819 = vsel %vm280, %v815, %v817
        %v823 = vadd.f32 %v800, %v813
        %v824 = vadd.f32 %v801, %v818
        %v825 = vadd.f32 %v802, %v819
        %v826 = vmul.f32 %v803, 0.0024307945
        %v827 = vmul.f32 %v804, 0.0024307945
        %v828 = vmul.f32 %v805, 0.0024307945
        %832 = vrot.lane.b32.xlu0 %v826, 123
        %v833 = vpop.permute.xlu0 %832
        %834 = vrot.lane.b32.xlu0 %v827, 123
        %v835 = vpop.permute.xlu0 %834
        %836 = vrot.lane.b32.xlu0 %v828, 123
        %v837 = vpop.permute.xlu0 %836
        %v838 = vsel %vm301, %v833, %v835
        %v839 = vsel %vm301, %v835, %v837
        %v843 = vadd.f32 %v823, %v833
        %v844 = vadd.f32 %v824, %v838
        %v845 = vadd.f32 %v825, %v839
        %v846 = vadd.f32 %v727, %v843
        %v847 = vadd.f32 %v728, %v844
        %v848 = vadd.f32 %v729, %v845
        %852 = vrot.lane.b32.xlu0 %v846, 3
        %v853 = vpop.permute.xlu0 %852
        %854 = vrot.lane.b32.xlu0 %v847, 3
        %v855 = vpop.permute.xlu0 %854
        %856 = vrot.lane.b32.xlu0 %v848, 3
        %v857 = vpop.permute.xlu0 %856
        %v858 = vsel %vm599, %v853, %v855
        %v859 = vsel %vm599, %v855, %v857
        %862 = vst [vmem:[#allocation2 + $0x8] sm:$0xff] %v858
        %863 = vst [vmem:[#allocation2 + $0x10] sm:$0xff] %v859
        %v864 = vld [vmem:[#allocation2] sm:$0xff]
        %v865 = vld [vmem:[#allocation2 + $0x8] sm:$0xff]
        %v866 = vld [vmem:[#allocation2 + $0x10] sm:$0xff]
        %v867 = vld [vmem:[#allocation2 + $0x8] sm:$0xff]
        %v868 = vld [vmem:[#allocation2 + $0x10] sm:$0xff]
        %v869 = vld [vmem:[#allocation2 + $0x18] sm:$0xff]
        %872 = vrot.lane.b32.xlu0 %v865, 127
        %v873 = vpop.permute.xlu0 %872
        %874 = vrot.lane.b32.xlu0 %v866, 127
        %v875 = vpop.permute.xlu0 %874
        %v876 = vsel %vm219, %v873, %v875
        %880 = vrot.lane.b32.xlu0 %v867, 126
        %v881 = vpop.permute.xlu0 %880
        %882 = vrot.lane.b32.xlu0 %v868, 126
        %v883 = vpop.permute.xlu0 %882
        %884 = vrot.lane.b32.xlu0 %v869, 126
        %v885 = vpop.permute.xlu0 %884
        %v886 = vsel %vm240, %v881, %v883
        %v887 = vsel %vm240, %v883, %v885
        %889 = vset.pattern.permute.xlu0 0
        %890 = vperm.xlu0 %889, %v176
        %v891 = vpop.permute.xlu0 %890
        %894 = vrot.lane.b32.xlu0 %v864, 1
        %v895 = vpop.permute.xlu0 %894
        %896 = vrot.lane.b32.xlu0 %v865, 1
        %v897 = vpop.permute.xlu0 %896
        %898 = vrot.lane.b32.xlu0 %v866, 1
        %v899 = vpop.permute.xlu0 %898
        %900 = vrot.lane.b32.xlu0 %v873, 1
        %v901 = vpop.permute.xlu0 %900
        %902 = vrot.lane.b32.xlu0 %v876, 1
        %v903 = vpop.permute.xlu0 %902
        %904 = vrot.lane.b32.xlu0 %v875, 1
        %v905 = vpop.permute.xlu0 %904
        %906 = vrot.lane.b32.xlu0 %v881, 1
        %v907 = vpop.permute.xlu0 %906
        %908 = vrot.lane.b32.xlu0 %v886, 1
        %v909 = vpop.permute.xlu0 %908
        %910 = vrot.lane.b32.xlu0 %v887, 1
        %v911 = vpop.permute.xlu0 %910
        %vm912 = vcmask 7168
        %v913 = vsel %vm912, %v895, %v897
        %v914 = vsel %vm912, %v897, %v899
        %v915 = vsel %vm912, %v901, %v903
        %v916 = vsel %vm912, %v903, %v905
        %v917 = vsel %vm912, %v907, %v909
        %v918 = vsel %vm912, %v909, %v911
        %vm925 = vcmask 195584
        %v927 = vsel %vm925, %v173, 0
        %929 = vmatprep.subr.mxu0 %v914
        %930 = vmatpush1.msra.mxu0 %v913
        %931 = vmatprep.subr.mxu0 %v916
        %932 = vmatpush1.msra.mxu0 %v915
        %933 = vmatprep.subr.mxu0 %v918
        %934 = vmatpush1.msra.mxu0 %v917
        %935 = vmatprep.subr.mxu0 0.0
        %936 = vmatpush1.msra.mxu0 0.0
        %937 = vmatprep.subr.mxu0 0.0
        %938 = vmatpush1.msra.mxu0 0.0
        %939 = vmatprep.subr.mxu0 0.0
        %940 = vmatpush1.msra.mxu0 0.0
        %941 = vmatprep.subr.mxu0 0.0
        %942 = vmatpush1.msra.mxu0 0.0
        %943 = vmatprep.subr.mxu0 0.0
        %944 = vmatpush1.msra.mxu0 0.0
        %945 = vmatprep.subr.mxu0 0.0
        %946 = vmatpush1.msra.mxu0 0.0
        %947 = vmatprep.subr.mxu0 0.0
        %948 = vmatpush1.msra.mxu0 0.0
        %949 = vmatprep.subr.mxu0 0.0
        %950 = vmatpush1.msra.mxu0 0.0
        %951 = vmatprep.subr.mxu0 0.0
        %952 = vmatpush1.msra.mxu0 0.0
        %953 = vmatprep.subr.mxu0 0.0
        %954 = vmatpush1.msra.mxu0 0.0
        %955 = vmatprep.subr.mxu0 0.0
        %956 = vmatpush1.msra.mxu0 0.0
        %957 = vmatprep.subr.mxu0 0.0
        %958 = vmatpush1.msra.mxu0 0.0
        %959 = vmatprep.subr.mxu0 0.0
        %960 = vmatpush1.msra.mxu0 0.0
        %961 = vmatprep.subr.mxu0 0.0
        %962 = vmatpush1.msra.mxu0 0.0
        %963 = vmatprep.subr.mxu0 0.0
        %964 = vmatpush1.msra.mxu0 0.0
        %965 = vmatprep.subr.mxu0 0.0
        %966 = vmatpush1.msra.mxu0 0.0
        %967 = vmatprep.subr.mxu0 0.0
        %968 = vmatpush1.msra.mxu0 0.0
        %969 = vmatprep.subr.mxu0 0.0
        %970 = vmatpush1.msra.mxu0 0.0
        %971 = vmatprep.subr.mxu0 0.0
        %972 = vmatpush1.msra.mxu0 0.0
        %973 = vmatprep.subr.mxu0 0.0
        %974 = vmatpush1.msra.mxu0 0.0
        %975 = vmatprep.subr.mxu0 0.0
        %976 = vmatpush1.msra.mxu0 0.0
        %977 = vmatprep.subr.mxu0 0.0
        %978 = vmatpush1.msra.mxu0 0.0
        %979 = vmatprep.subr.mxu0 0.0
        %980 = vmatpush1.msra.mxu0 0.0
        %981 = vmatprep.subr.mxu0 0.0
        %982 = vmatpush1.msra.mxu0 0.0
        %983 = vmatprep.subr.mxu0 0.0
        %984 = vmatpush1.msra.mxu0 0.0
        %985 = vmatprep.subr.mxu0 0.0
        %986 = vmatpush1.msra.mxu0 0.0
        %987 = vmatprep.subr.mxu0 0.0
        %988 = vmatpush1.msra.mxu0 0.0
        %989 = vmatprep.subr.mxu0 0.0
        %990 = vmatpush1.msra.mxu0 0.0
        %991 = vmatprep.subr.mxu0 0.0
        %992 = vmatpush1.msra.mxu0 0.0
        %993 = vmatprep.mubr.f32.mxu0 0.0
        %994 = vmatmul.mubr.f32.gmra.mrb[0].mxu0 %v927
        %v995 = vpop.f32.mrb[0].mxu0
        %v996 = vadd.f32 %v891, %v995
        %v997 = vpop.f32.mrb[0].mxu0
        %v998 = vadd.f32 %v891, %v997
        %999 = vdwg.mxu0
        %1000 = vst [vmem:[#allocation2 + $0x8] sm:$0xff] %v996
        %1001 = vst [vmem:[#allocation2 + $0x10] sm:$0xff] %v998
        %v1002 = vld [vmem:[#allocation2] sm:$0xff]
        %v1003 = vld [vmem:[#allocation2 + $0x8] sm:$0xff]
        %v1004 = vld [vmem:[#allocation2 + $0x10] sm:$0xff]
        %v1005 = vmul.f32 %v1002, 9.1175246e-20
        %v1006 = vmul.f32 %v1003, 9.1175246e-20
        %v1007 = vmul.f32 %v1004, 9.1175246e-20
        %v1008 = vmul.f32 %v1002, -5.925873e-18
        %v1009 = vmul.f32 %v1003, -5.925873e-18
        %v1010 = vmul.f32 %v1004, -5.925873e-18
        %1014 = vrot.lane.b32.xlu0 %v1008, 127
        %v1015 = vpop.permute.xlu0 %1014
        %1016 = vrot.lane.b32.xlu0 %v1009, 127
        %v1017 = vpop.permute.xlu0 %1016
        %1018 = vrot.lane.b32.xlu0 %v1010, 127
        %v1019 = vpop.permute.xlu0 %1018
        %v1020 = vsel %vm219, %v1015, %v1017
        %v1021 = vsel %vm219, %v1017, %v1019
        %v1025 = vadd.f32 %v1005, %v1020
        %v1026 = vadd.f32 %v1006, %v1021
        %v1027 = vadd.f32 %v1007, %v1019
        %v1028 = vmul.f32 %v1002, 2.543575e-17
        %v1029 = vmul.f32 %v1003, 2.543575e-17
        %v1030 = vmul.f32 %v1004, 2.543575e-17
        %1034 = vrot.lane.b32.xlu0 %v1028, 126
        %v1035 = vpop.permute.xlu0 %1034
        %1036 = vrot.lane.b32.xlu0 %v1029, 126
        %v1037 = vpop.permute.xlu0 %1036
        %1038 = vrot.lane.b32.xlu0 %v1030, 126
        %v1039 = vpop.permute.xlu0 %1038
        %v1040 = vsel %vm240, %v1035, %v1037
        %v1041 = vsel %vm240, %v1037, %v1039
        %v1045 = vadd.f32 %v1025, %v1040
        %v1046 = vadd.f32 %v1026, %v1041
        %v1047 = vadd.f32 %v1027, %v1039
        %v1048 = vmul.f32 %v1003, 1.0000397
        %v1049 = vmul.f32 %v1004, 1.0000397
        %1052 = vrot.lane.b32.xlu0 %v1048, 125
        %v1053 = vpop.permute.xlu0 %1052
        %1054 = vrot.lane.b32.xlu0 %v1049, 125
        %v1055 = vpop.permute.xlu0 %1054
        %v1056 = vsel %vm257, %v1053, %v1055
        %v1060 = vadd.f32 %v1045, %v1053
        %v1061 = vadd.f32 %v1046, %v1056
        %v1062 = vadd.f32 %v1047, %v1055
        %v1063 = vld [vmem:[#allocation2 + $0x8] sm:$0xff]
        %v1064 = vld [vmem:[#allocation2 + $0x10] sm:$0xff]
        %v1065 = vld [vmem:[#allocation2 + $0x18] sm:$0xff]
        %v1066 = vmul.f32 %v1063, 2.543575e-17
        %v1067 = vmul.f32 %v1064, 2.543575e-17
        %v1068 = vmul.f32 %v1065, 2.543575e-17
        %1072 = vrot.lane.b32.xlu0 %v1066, 124
        %v1073 = vpop.permute.xlu0 %1072
        %1074 = vrot.lane.b32.xlu0 %v1067, 124
        %v1075 = vpop.permute.xlu0 %1074
        %1076 = vrot.lane.b32.xlu0 %v1068, 124
        %v1077 = vpop.permute.xlu0 %1076
        %v1078 = vsel %vm280, %v1073, %v1075
        %v1079 = vsel %vm280, %v1075, %v1077
        %v1083 = vadd.f32 %v1060, %v1073
        %v1084 = vadd.f32 %v1061, %v1078
        %v1085 = vadd.f32 %v1062, %v1079
        %v1086 = vmul.f32 %v1063, -5.925873e-18
        %v1087 = vmul.f32 %v1064, -5.925873e-18
        %v1088 = vmul.f32 %v1065, -5.925873e-18
        %1092 = vrot.lane.b32.xlu0 %v1086, 123
        %v1093 = vpop.permute.xlu0 %1092
        %1094 = vrot.lane.b32.xlu0 %v1087, 123
        %v1095 = vpop.permute.xlu0 %1094
        %1096 = vrot.lane.b32.xlu0 %v1088, 123
        %v1097 = vpop.permute.xlu0 %1096
        %v1098 = vsel %vm301, %v1093, %v1095
        %v1099 = vsel %vm301, %v1095, %v1097
        %v1103 = vadd.f32 %v1083, %v1093
        %v1104 = vadd.f32 %v1084, %v1098
        %v1105 = vadd.f32 %v1085, %v1099
        %v1106 = vmul.f32 %v1063, 9.1175246e-20
        %v1107 = vmul.f32 %v1064, 9.1175246e-20
        %v1108 = vmul.f32 %v1065, 9.1175246e-20
        %1112 = vrot.lane.b32.xlu0 %v1106, 122
        %v1113 = vpop.permute.xlu0 %1112
        %1114 = vrot.lane.b32.xlu0 %v1107, 122
        %v1115 = vpop.permute.xlu0 %1114
        %1116 = vrot.lane.b32.xlu0 %v1108, 122
        %v1117 = vpop.permute.xlu0 %1116
        %v1118 = vsel %vm322, %v1113, %v1115
        %v1119 = vsel %vm322, %v1115, %v1117
        %v1123 = vadd.f32 %v1103, %v1113
        %v1124 = vadd.f32 %v1104, %v1118
        %v1125 = vadd.f32 %v1105, %v1119
        %v1126 = vmul.f32 %v1002, 0.004861589
        %v1127 = vmul.f32 %v1003, 0.004861589
        %v1128 = vmul.f32 %v1004, 0.004861589
        %v1129 = vmul.f32 %v1002, -0.07830155
        %v1130 = vmul.f32 %v1003, -0.07830155
        %v1131 = vmul.f32 %v1004, -0.07830155
        %1135 = vrot.lane.b32.xlu0 %v1129, 127
        %v1136 = vpop.permute.xlu0 %1135
        %1137 = vrot.lane.b32.xlu0 %v1130, 127
        %v1138 = vpop.permute.xlu0 %1137
        %1139 = vrot.lane.b32.xlu0 %v1131, 127
        %v1140 = vpop.permute.xlu0 %1139
        %v1141 = vsel %vm219, %v1136, %v1138
        %v1142 = vsel %vm219, %v1138, %v1140
        %v1146 = vadd.f32 %v1126, %v1141
        %v1147 = vadd.f32 %v1127, %v1142
        %v1148 = vadd.f32 %v1128, %v1140
        %v1149 = vmul.f32 %v1003, 0.5734201
        %v1150 = vmul.f32 %v1004, 0.5734201
        %1153 = vrot.lane.b32.xlu0 %v1149, 126
        %v1154 = vpop.permute.xlu0 %1153
        %1155 = vrot.lane.b32.xlu0 %v1150, 126
        %v1156 = vpop.permute.xlu0 %1155
        %v1157 = vsel %vm240, %v1154, %v1156
        %v1161 = vadd.f32 %v1146, %v1154
        %v1162 = vadd.f32 %v1147, %v1157
        %v1163 = vadd.f32 %v1148, %v1156
        %v1164 = vmul.f32 %v1063, 0.5734201
        %v1165 = vmul.f32 %v1064, 0.5734201
        %v1166 = vmul.f32 %v1065, 0.5734201
        %1170 = vrot.lane.b32.xlu0 %v1164, 125
        %v1171 = vpop.permute.xlu0 %1170
        %1172 = vrot.lane.b32.xlu0 %v1165, 125
        %v1173 = vpop.permute.xlu0 %1172
        %1174 = vrot.lane.b32.xlu0 %v1166, 125
        %v1175 = vpop.permute.xlu0 %1174
        %v1176 = vsel %vm257, %v1171, %v1173
        %v1177 = vsel %vm257, %v1173, %v1175
        %v1181 = vadd.f32 %v1161, %v1171
        %v1182 = vadd.f32 %v1162, %v1176
        %v1183 = vadd.f32 %v1163, %v1177
        %v1184 = vmul.f32 %v1063, -0.07830155
        %v1185 = vmul.f32 %v1064, -0.07830155
        %v1186 = vmul.f32 %v1065, -0.07830155
        %1190 = vrot.lane.b32.xlu0 %v1184, 124
        %v1191 = vpop.permute.xlu0 %1190
        %1192 = vrot.lane.b32.xlu0 %v1185, 124
        %v1193 = vpop.permute.xlu0 %1192
        %1194 = vrot.lane.b32.xlu0 %v1186, 124
        %v1195 = vpop.permute.xlu0 %1194
        %v1196 = vsel %vm280, %v1191, %v1193
        %v1197 = vsel %vm280, %v1193, %v1195
        %v1201 = vadd.f32 %v1181, %v1191
        %v1202 = vadd.f32 %v1182, %v1196
        %v1203 = vadd.f32 %v1183, %v1197
        %v1204 = vmul.f32 %v1063, 0.004861589
        %v1205 = vmul.f32 %v1064, 0.004861589
        %v1206 = vmul.f32 %v1065, 0.004861589
        %1210 = vrot.lane.b32.xlu0 %v1204, 123
        %v1211 = vpop.permute.xlu0 %1210
        %1212 = vrot.lane.b32.xlu0 %v1205, 123
        %v1213 = vpop.permute.xlu0 %1212
        %1214 = vrot.lane.b32.xlu0 %v1206, 123
        %v1215 = vpop.permute.xlu0 %1214
        %v1216 = vsel %vm301, %v1211, %v1213
        %v1217 = vsel %vm301, %v1213, %v1215
        %v1221 = vadd.f32 %v1201, %v1211
        %v1222 = vadd.f32 %v1202, %v1216
        %v1223 = vadd.f32 %v1203, %v1217
        %1225 = vset.pattern.permute.xlu0 0
        %1226 = vperm.xlu0 %1225, %v192
        %v1227 = vpop.permute.xlu0 %1226
        %v1229 = vmul.f32 %v1227, %v1123
        %v1230 = vmul.f32 %v1227, %v1124
        %v1231 = vmul.f32 %v1227, %v1125
        %v1232 = vmul.f32 %v1229, %v437
        %v1233 = vmul.f32 %v1230, %v437
        %v1234 = vmul.f32 %v1231, %v437
        %v1235 = vadd.f32 %v1232, 0.5
        %v1236 = vadd.f32 %v1233, 0.5
        %v1237 = vadd.f32 %v1234, 0.5
        %v1238 = vfloor.f32 %v1235
        %v1239 = vfloor.f32 %v1236
        %v1240 = vfloor.f32 %v1237
        %v1241 = vmul.f32 %v1238, 6.2831855
        %v1242 = vmul.f32 %v1239, 6.2831855
        %v1243 = vmul.f32 %v1240, 6.2831855
        %v1244 = vsub.f32 %v1229, %v1241
        %v1245 = vsub.f32 %v1230, %v1242
        %v1246 = vsub.f32 %v1231, %v1243
        %vm1247 = vcmp.gt.f32.partialorder %v1244, 1.5707964
        %vm1248 = vcmp.gt.f32.partialorder %v1245, 1.5707964
        %vm1249 = vcmp.gt.f32.partialorder %v1246, 1.5707964
        %v1250 = vsub.f32 3.1415927, %v1244
        %v1251 = vsub.f32 3.1415927, %v1245
        %v1252 = vsub.f32 3.1415927, %v1246
        %v1253 = vsel %vm1247, %v1250, %v1244
        %v1254 = vsel %vm1248, %v1251, %v1245
        %v1255 = vsel %vm1249, %v1252, %v1246
        %vm1256 = vcmp.lt.f32.partialorder %v1253, -1.5707964
        %vm1257 = vcmp.lt.f32.partialorder %v1254, -1.5707964
        %vm1258 = vcmp.lt.f32.partialorder %v1255, -1.5707964
        %v1259 = vsub.f32 -3.1415927, %v1253
        %v1260 = vsub.f32 -3.1415927, %v1254
        %v1261 = vsub.f32 -3.1415927, %v1255
        %v1262 = vsel %vm1256, %v1259, %v1253
        %v1263 = vsel %vm1257, %v1260, %v1254
        %v1264 = vsel %vm1258, %v1261, %v1255
        %v1265 = vmul.f32 %v1262, %v1262
        %v1266 = vmul.f32 %v1263, %v1263
        %v1267 = vmul.f32 %v1264, %v1264
        %v1268 = vmul.f32 %v1265, 2.7557319e-06
        %v1269 = vmul.f32 %v1266, 2.7557319e-06
        %v1270 = vmul.f32 %v1267, 2.7557319e-06
        %v1271 = vadd.f32 %v1268, -0.0001984127
        %v1272 = vadd.f32 %v1269, -0.0001984127
        %v1273 = vadd.f32 %v1270, -0.0001984127
        %v1274 = vmul.f32 %v1265, %v1271
        %v1275 = vmul.f32 %v1266, %v1272
        %v1276 = vmul.f32 %v1267, %v1273
        %v1277 = vadd.f32 %v1274, 0.008333334
        %v1278 = vadd.f32 %v1275, 0.008333334
        %v1279 = vadd.f32 %v1276, 0.008333334
        %v1280 = vmul.f32 %v1265, %v1277
        %v1281 = vmul.f32 %v1266, %v1278
        %v1282 = vmul.f32 %v1267, %v1279
        %v1283 = vadd.f32 %v1280, -0.16666667
        %v1284 = vadd.f32 %v1281, -0.16666667
        %v1285 = vadd.f32 %v1282, -0.16666667
        %v1286 = vmul.f32 %v1265, %v1283
        %v1287 = vmul.f32 %v1266, %v1284
        %v1288 = vmul.f32 %v1267, %v1285
        %v1289 = vadd.f32 %v1286, 1.0
        %v1290 = vadd.f32 %v1287, 1.0
        %v1291 = vadd.f32 %v1288, 1.0
        %v1292 = vmul.f32 %v1262, %v1289
        %v1293 = vmul.f32 %v1263, %v1290
        %v1294 = vmul.f32 %v1264, %v1291
        %v1295 = vmul.f32 %v1292, %v1292
        %v1296 = vmul.f32 %v1293, %v1293
        %v1297 = vmul.f32 %v1294, %v1294
        %1299 = vset.pattern.permute.xlu0 0
        %1300 = vperm.xlu0 %1299, %v198
        %v1301 = vpop.permute.xlu0 %1300
        %v1303 = vmul.f32 %v1295, %v1301
        %v1304 = vmul.f32 %v1296, %v1301
        %v1305 = vmul.f32 %v1297, %v1301
        %v1306 = vadd.f32 %v1123, %v1303
        %v1307 = vadd.f32 %v1124, %v1304
        %v1308 = vadd.f32 %v1125, %v1305
        %v1309 = vmul.f32 %v1227, %v1221
        %v1310 = vmul.f32 %v1227, %v1222
        %v1311 = vmul.f32 %v1227, %v1223
        %v1312 = vmul.f32 %v1309, %v437
        %v1313 = vmul.f32 %v1310, %v437
        %v1314 = vmul.f32 %v1311, %v437
        %v1315 = vadd.f32 %v1312, 0.5
        %v1316 = vadd.f32 %v1313, 0.5
        %v1317 = vadd.f32 %v1314, 0.5
        %v1318 = vfloor.f32 %v1315
        %v1319 = vfloor.f32 %v1316
        %v1320 = vfloor.f32 %v1317
        %v1321 = vmul.f32 %v1318, 6.2831855
        %v1322 = vmul.f32 %v1319, 6.2831855
        %v1323 = vmul.f32 %v1320, 6.2831855
        %v1324 = vsub.f32 %v1309, %v1321
        %v1325 = vsub.f32 %v1310, %v1322
        %v1326 = vsub.f32 %v1311, %v1323
        %vm1327 = vcmp.gt.f32.partialorder %v1324, 1.5707964
        %vm1328 = vcmp.gt.f32.partialorder %v1325, 1.5707964
        %vm1329 = vcmp.gt.f32.partialorder %v1326, 1.5707964
        %v1330 = vsub.f32 3.1415927, %v1324
        %v1331 = vsub.f32 3.1415927, %v1325
        %v1332 = vsub.f32 3.1415927, %v1326
        %v1333 = vsel %vm1327, %v1330, %v1324
        %v1334 = vsel %vm1328, %v1331, %v1325
        %v1335 = vsel %vm1329, %v1332, %v1326
        %vm1336 = vcmp.lt.f32.partialorder %v1333, -1.5707964
        %vm1337 = vcmp.lt.f32.partialorder %v1334, -1.5707964
        %vm1338 = vcmp.lt.f32.partialorder %v1335, -1.5707964
        %v1339 = vsub.f32 -3.1415927, %v1333
        %v1340 = vsub.f32 -3.1415927, %v1334
        %v1341 = vsub.f32 -3.1415927, %v1335
        %v1342 = vsel %vm1336, %v1339, %v1333
        %v1343 = vsel %vm1337, %v1340, %v1334
        %v1344 = vsel %vm1338, %v1341, %v1335
        %v1345 = vmul.f32 %v1342, %v1342
        %v1346 = vmul.f32 %v1343, %v1343
        %v1347 = vmul.f32 %v1344, %v1344
        %v1348 = vmul.f32 %v1345, 2.7557319e-06
        %v1349 = vmul.f32 %v1346, 2.7557319e-06
        %v1350 = vmul.f32 %v1347, 2.7557319e-06
        %v1351 = vadd.f32 %v1348, -0.0001984127
        %v1352 = vadd.f32 %v1349, -0.0001984127
        %v1353 = vadd.f32 %v1350, -0.0001984127
        %v1354 = vmul.f32 %v1345, %v1351
        %v1355 = vmul.f32 %v1346, %v1352
        %v1356 = vmul.f32 %v1347, %v1353
        %v1357 = vadd.f32 %v1354, 0.008333334
        %v1358 = vadd.f32 %v1355, 0.008333334
        %v1359 = vadd.f32 %v1356, 0.008333334
        %v1360 = vmul.f32 %v1345, %v1357
        %v1361 = vmul.f32 %v1346, %v1358
        %v1362 = vmul.f32 %v1347, %v1359
        %v1363 = vadd.f32 %v1360, -0.16666667
        %v1364 = vadd.f32 %v1361, -0.16666667
        %v1365 = vadd.f32 %v1362, -0.16666667
        %v1366 = vmul.f32 %v1345, %v1363
        %v1367 = vmul.f32 %v1346, %v1364
        %v1368 = vmul.f32 %v1347, %v1365
        %v1369 = vadd.f32 %v1366, 1.0
        %v1370 = vadd.f32 %v1367, 1.0
        %v1371 = vadd.f32 %v1368, 1.0
        %v1372 = vmul.f32 %v1342, %v1369
        %v1373 = vmul.f32 %v1343, %v1370
        %v1374 = vmul.f32 %v1344, %v1371
        %v1375 = vmul.f32 %v1372, %v1372
        %v1376 = vmul.f32 %v1373, %v1373
        %v1377 = vmul.f32 %v1374, %v1374
        %v1378 = vmul.f32 %v1375, %v1301
        %v1379 = vmul.f32 %v1376, %v1301
        %v1380 = vmul.f32 %v1377, %v1301
        %v1381 = vadd.f32 %v1221, %v1378
        %v1382 = vadd.f32 %v1222, %v1379
        %v1383 = vadd.f32 %v1223, %v1380
        %1387 = vrot.lane.b32.xlu0 %v1306, 3
        %v1388 = vpop.permute.xlu0 %1387
        %1389 = vrot.lane.b32.xlu0 %v1307, 3
        %v1390 = vpop.permute.xlu0 %1389
        %1391 = vrot.lane.b32.xlu0 %v1308, 3
        %v1392 = vpop.permute.xlu0 %1391
        %v1393 = vsel %vm599, %v1388, %v1390
        %v1394 = vsel %vm599, %v1390, %v1392
        %1397 = vst [vmem:[#allocation2 + $0x8] sm:$0xff] %v1393
        %1398 = vst [vmem:[#allocation2 + $0x10] sm:$0xff] %v1394
        %v1399 = vld [vmem:[#allocation2] sm:$0xff]
        %v1400 = vld [vmem:[#allocation2 + $0x8] sm:$0xff]
        %v1401 = vld [vmem:[#allocation2 + $0x10] sm:$0xff]
        %v1402 = vmul.f32 %v1399, 4.5587623e-20
        %v1403 = vmul.f32 %v1400, 4.5587623e-20
        %v1404 = vmul.f32 %v1401, 4.5587623e-20
        %v1405 = vmul.f32 %v1399, -2.9629366e-18
        %v1406 = vmul.f32 %v1400, -2.9629366e-18
        %v1407 = vmul.f32 %v1401, -2.9629366e-18
        %1411 = vrot.lane.b32.xlu0 %v1405, 127
        %v1412 = vpop.permute.xlu0 %1411
        %1413 = vrot.lane.b32.xlu0 %v1406, 127
        %v1414 = vpop.permute.xlu0 %1413
        %1415 = vrot.lane.b32.xlu0 %v1407, 127
        %v1416 = vpop.permute.xlu0 %1415
        %v1417 = vsel %vm219, %v1412, %v1414
        %v1418 = vsel %vm219, %v1414, %v1416
        %v1422 = vadd.f32 %v1402, %v1417
        %v1423 = vadd.f32 %v1403, %v1418
        %v1424 = vadd.f32 %v1404, %v1416
        %v1425 = vmul.f32 %v1399, 1.2717875e-17
        %v1426 = vmul.f32 %v1400, 1.2717875e-17
        %v1427 = vmul.f32 %v1401, 1.2717875e-17
        %1431 = vrot.lane.b32.xlu0 %v1425, 126
        %v1432 = vpop.permute.xlu0 %1431
        %1433 = vrot.lane.b32.xlu0 %v1426, 126
        %v1434 = vpop.permute.xlu0 %1433
        %1435 = vrot.lane.b32.xlu0 %v1427, 126
        %v1436 = vpop.permute.xlu0 %1435
        %v1437 = vsel %vm240, %v1432, %v1434
        %v1438 = vsel %vm240, %v1434, %v1436
        %v1442 = vadd.f32 %v1422, %v1437
        %v1443 = vadd.f32 %v1423, %v1438
        %v1444 = vadd.f32 %v1424, %v1436
        %v1445 = vmul.f32 %v1400, 0.50001985
        %v1446 = vmul.f32 %v1401, 0.50001985
        %1449 = vrot.lane.b32.xlu0 %v1445, 125
        %v1450 = vpop.permute.xlu0 %1449
        %1451 = vrot.lane.b32.xlu0 %v1446, 125
        %v1452 = vpop.permute.xlu0 %1451
        %v1453 = vsel %vm257, %v1450, %v1452
        %v1457 = vadd.f32 %v1442, %v1450
        %v1458 = vadd.f32 %v1443, %v1453
        %v1459 = vadd.f32 %v1444, %v1452
        %v1460 = vld [vmem:[#allocation2 + $0x8] sm:$0xff]
        %v1461 = vld [vmem:[#allocation2 + $0x10] sm:$0xff]
        %v1462 = vld [vmem:[#allocation2 + $0x18] sm:$0xff]
        %v1463 = vmul.f32 %v1460, 1.2717875e-17
        %v1464 = vmul.f32 %v1461, 1.2717875e-17
        %v1465 = vmul.f32 %v1462, 1.2717875e-17
        %1469 = vrot.lane.b32.xlu0 %v1463, 124
        %v1470 = vpop.permute.xlu0 %1469
        %1471 = vrot.lane.b32.xlu0 %v1464, 124
        %v1472 = vpop.permute.xlu0 %1471
        %1473 = vrot.lane.b32.xlu0 %v1465, 124
        %v1474 = vpop.permute.xlu0 %1473
        %v1475 = vsel %vm280, %v1470, %v1472
        %v1476 = vsel %vm280, %v1472, %v1474
        %v1480 = vadd.f32 %v1457, %v1470
        %v1481 = vadd.f32 %v1458, %v1475
        %v1482 = vadd.f32 %v1459, %v1476
        %v1483 = vmul.f32 %v1460, -2.9629366e-18
        %v1484 = vmul.f32 %v1461, -2.9629366e-18
        %v1485 = vmul.f32 %v1462, -2.9629366e-18
        %1489 = vrot.lane.b32.xlu0 %v1483, 123
        %v1490 = vpop.permute.xlu0 %1489
        %1491 = vrot.lane.b32.xlu0 %v1484, 123
        %v1492 = vpop.permute.xlu0 %1491
        %1493 = vrot.lane.b32.xlu0 %v1485, 123
        %v1494 = vpop.permute.xlu0 %1493
        %v1495 = vsel %vm301, %v1490, %v1492
        %v1496 = vsel %vm301, %v1492, %v1494
        %v1500 = vadd.f32 %v1480, %v1490
        %v1501 = vadd.f32 %v1481, %v1495
        %v1502 = vadd.f32 %v1482, %v1496
        %v1503 = vmul.f32 %v1460, 4.5587623e-20
        %v1504 = vmul.f32 %v1461, 4.5587623e-20
        %v1505 = vmul.f32 %v1462, 4.5587623e-20
        %1509 = vrot.lane.b32.xlu0 %v1503, 122
        %v1510 = vpop.permute.xlu0 %1509
        %1511 = vrot.lane.b32.xlu0 %v1504, 122
        %v1512 = vpop.permute.xlu0 %1511
        %1513 = vrot.lane.b32.xlu0 %v1505, 122
        %v1514 = vpop.permute.xlu0 %1513
        %v1515 = vsel %vm322, %v1510, %v1512
        %v1516 = vsel %vm322, %v1512, %v1514
        %v1520 = vadd.f32 %v1500, %v1510
        %v1521 = vadd.f32 %v1501, %v1515
        %v1522 = vadd.f32 %v1502, %v1516
        %1526 = vrot.lane.b32.xlu0 %v1381, 2
        %v1527 = vpop.permute.xlu0 %1526
        %1528 = vrot.lane.b32.xlu0 %v1382, 2
        %v1529 = vpop.permute.xlu0 %1528
        %1530 = vrot.lane.b32.xlu0 %v1383, 2
        %v1531 = vpop.permute.xlu0 %1530
        %v1532 = vsel %vm739, %v1527, %v1529
        %v1533 = vsel %vm739, %v1529, %v1531
        %1536 = vst [vmem:[#allocation2 + $0x8] sm:$0xff] %v1532
        %1537 = vst [vmem:[#allocation2 + $0x10] sm:$0xff] %v1533
        %v1538 = vld [vmem:[#allocation2] sm:$0xff]
        %v1539 = vld [vmem:[#allocation2 + $0x8] sm:$0xff]
        %v1540 = vld [vmem:[#allocation2 + $0x10] sm:$0xff]
        %v1541 = vmul.f32 %v1538, 0.0024307945
        %v1542 = vmul.f32 %v1539, 0.0024307945
        %v1543 = vmul.f32 %v1540, 0.0024307945
        %v1544 = vmul.f32 %v1538, -0.039150774
        %v1545 = vmul.f32 %v1539, -0.039150774
        %v1546 = vmul.f32 %v1540, -0.039150774
        %1550 = vrot.lane.b32.xlu0 %v1544, 127
        %v1551 = vpop.permute.xlu0 %1550
        %1552 = vrot.lane.b32.xlu0 %v1545, 127
        %v1553 = vpop.permute.xlu0 %1552
        %1554 = vrot.lane.b32.xlu0 %v1546, 127
        %v1555 = vpop.permute.xlu0 %1554
        %v1556 = vsel %vm219, %v1551, %v1553
        %v1557 = vsel %vm219, %v1553, %v1555
        %v1561 = vadd.f32 %v1541, %v1556
        %v1562 = vadd.f32 %v1542, %v1557
        %v1563 = vadd.f32 %v1543, %v1555
        %v1564 = vmul.f32 %v1538, 0.28671005
        %v1565 = vmul.f32 %v1539, 0.28671005
        %v1566 = vmul.f32 %v1540, 0.28671005
        %1570 = vrot.lane.b32.xlu0 %v1564, 126
        %v1571 = vpop.permute.xlu0 %1570
        %1572 = vrot.lane.b32.xlu0 %v1565, 126
        %v1573 = vpop.permute.xlu0 %1572
        %1574 = vrot.lane.b32.xlu0 %v1566, 126
        %v1575 = vpop.permute.xlu0 %1574
        %v1576 = vsel %vm240, %v1571, %v1573
        %v1577 = vsel %vm240, %v1573, %v1575
        %v1581 = vadd.f32 %v1561, %v1576
        %v1582 = vadd.f32 %v1562, %v1577
        %v1583 = vadd.f32 %v1563, %v1575
        %1584 = vrot.lane.b32.xlu0 %v1565, 125
        %v1585 = vpop.permute.xlu0 %1584
        %1586 = vrot.lane.b32.xlu0 %v1566, 125
        %v1587 = vpop.permute.xlu0 %1586
        %v1588 = vsel %vm257, %v1585, %v1587
        %v1592 = vadd.f32 %v1581, %v1585
        %v1593 = vadd.f32 %v1582, %v1588
        %v1594 = vadd.f32 %v1583, %v1587
        %v1595 = vld [vmem:[#allocation2 + $0x8] sm:$0xff]
        %v1596 = vld [vmem:[#allocation2 + $0x10] sm:$0xff]
        %v1597 = vld [vmem:[#allocation2 + $0x18] sm:$0xff]
        %v1598 = vmul.f32 %v1595, -0.039150774
        %v1599 = vmul.f32 %v1596, -0.039150774
        %v1600 = vmul.f32 %v1597, -0.039150774
        %1604 = vrot.lane.b32.xlu0 %v1598, 124
        %v1605 = vpop.permute.xlu0 %1604
        %1606 = vrot.lane.b32.xlu0 %v1599, 124
        %v1607 = vpop.permute.xlu0 %1606
        %1608 = vrot.lane.b32.xlu0 %v1600, 124
        %v1609 = vpop.permute.xlu0 %1608
        %v1610 = vsel %vm280, %v1605, %v1607
        %v1611 = vsel %vm280, %v1607, %v1609
        %v1615 = vadd.f32 %v1592, %v1605
        %v1616 = vadd.f32 %v1593, %v1610
        %v1617 = vadd.f32 %v1594, %v1611
        %v1618 = vmul.f32 %v1595, 0.0024307945
        %v1619 = vmul.f32 %v1596, 0.0024307945
        %v1620 = vmul.f32 %v1597, 0.0024307945
        %1624 = vrot.lane.b32.xlu0 %v1618, 123
        %v1625 = vpop.permute.xlu0 %1624
        %1626 = vrot.lane.b32.xlu0 %v1619, 123
        %v1627 = vpop.permute.xlu0 %1626
        %1628 = vrot.lane.b32.xlu0 %v1620, 123
        %v1629 = vpop.permute.xlu0 %1628
        %v1630 = vsel %vm301, %v1625, %v1627
        %v1631 = vsel %vm301, %v1627, %v1629
        %v1635 = vadd.f32 %v1615, %v1625
        %v1636 = vadd.f32 %v1616, %v1630
        %v1637 = vadd.f32 %v1617, %v1631
        %v1638 = vadd.f32 %v1520, %v1635
        %v1639 = vadd.f32 %v1521, %v1636
        %v1640 = vadd.f32 %v1522, %v1637
        %1644 = vrot.lane.b32.xlu0 %v1638, 3
        %v1645 = vpop.permute.xlu0 %1644
        %1646 = vrot.lane.b32.xlu0 %v1639, 3
        %v1647 = vpop.permute.xlu0 %1646
        %1648 = vrot.lane.b32.xlu0 %v1640, 3
        %v1649 = vpop.permute.xlu0 %1648
        %v1650 = vsel %vm599, %v1645, %v1647
        %v1651 = vsel %vm599, %v1647, %v1649
        %1654 = vst [vmem:[#allocation2 + $0x8] sm:$0xff] %v1650
        %1655 = vst [vmem:[#allocation2 + $0x10] sm:$0xff] %v1651
        %v1656 = vld [vmem:[#allocation2] sm:$0xff]
        %v1657 = vld [vmem:[#allocation2 + $0x8] sm:$0xff]
        %v1658 = vld [vmem:[#allocation2 + $0x10] sm:$0xff]
        %v1659 = vld [vmem:[#allocation2 + $0x8] sm:$0xff]
        %v1660 = vld [vmem:[#allocation2 + $0x10] sm:$0xff]
        %v1661 = vld [vmem:[#allocation2 + $0x18] sm:$0xff]
        %1664 = vrot.lane.b32.xlu0 %v1657, 127
        %v1665 = vpop.permute.xlu0 %1664
        %1666 = vrot.lane.b32.xlu0 %v1658, 127
        %v1667 = vpop.permute.xlu0 %1666
        %v1668 = vsel %vm219, %v1665, %v1667
        %1672 = vrot.lane.b32.xlu0 %v1659, 126
        %v1673 = vpop.permute.xlu0 %1672
        %1674 = vrot.lane.b32.xlu0 %v1660, 126
        %v1675 = vpop.permute.xlu0 %1674
        %1676 = vrot.lane.b32.xlu0 %v1661, 126
        %v1677 = vpop.permute.xlu0 %1676
        %v1678 = vsel %vm240, %v1673, %v1675
        %v1679 = vsel %vm240, %v1675, %v1677
        %1681 = vset.pattern.permute.xlu0 0
        %1682 = vperm.xlu0 %1681, %v178
        %v1683 = vpop.permute.xlu0 %1682
        %1686 = vrot.lane.b32.xlu0 %v1656, 1
        %v1687 = vpop.permute.xlu0 %1686
        %1688 = vrot.lane.b32.xlu0 %v1657, 1
        %v1689 = vpop.permute.xlu0 %1688
        %1690 = vrot.lane.b32.xlu0 %v1658, 1
        %v1691 = vpop.permute.xlu0 %1690
        %1692 = vrot.lane.b32.xlu0 %v1665, 1
        %v1693 = vpop.permute.xlu0 %1692
        %1694 = vrot.lane.b32.xlu0 %v1668, 1
        %v1695 = vpop.permute.xlu0 %1694
        %1696 = vrot.lane.b32.xlu0 %v1667, 1
        %v1697 = vpop.permute.xlu0 %1696
        %1698 = vrot.lane.b32.xlu0 %v1673, 1
        %v1699 = vpop.permute.xlu0 %1698
        %1700 = vrot.lane.b32.xlu0 %v1678, 1
        %v1701 = vpop.permute.xlu0 %1700
        %1702 = vrot.lane.b32.xlu0 %v1679, 1
        %v1703 = vpop.permute.xlu0 %1702
        %v1704 = vsel %vm912, %v1687, %v1689
        %v1705 = vsel %vm912, %v1689, %v1691
        %v1706 = vsel %vm912, %v1693, %v1695
        %v1707 = vsel %vm912, %v1695, %v1697
        %v1708 = vsel %vm912, %v1699, %v1701
        %v1709 = vsel %vm912, %v1701, %v1703
        %v1717 = vsel %vm925, %v175, 0
        %1719 = vmatprep.subr.mxu0 %v1705
        %1720 = vmatpush1.msra.mxu0 %v1704
        %1721 = vmatprep.subr.mxu0 %v1707
        %1722 = vmatpush1.msra.mxu0 %v1706
        %1723 = vmatprep.subr.mxu0 %v1709
        %1724 = vmatpush1.msra.mxu0 %v1708
        %1725 = vmatprep.subr.mxu0 0.0
        %1726 = vmatpush1.msra.mxu0 0.0
        %1727 = vmatprep.subr.mxu0 0.0
        %1728 = vmatpush1.msra.mxu0 0.0
        %1729 = vmatprep.subr.mxu0 0.0
        %1730 = vmatpush1.msra.mxu0 0.0
        %1731 = vmatprep.subr.mxu0 0.0
        %1732 = vmatpush1.msra.mxu0 0.0
        %1733 = vmatprep.subr.mxu0 0.0
        %1734 = vmatpush1.msra.mxu0 0.0
        %1735 = vmatprep.subr.mxu0 0.0
        %1736 = vmatpush1.msra.mxu0 0.0
        %1737 = vmatprep.subr.mxu0 0.0
        %1738 = vmatpush1.msra.mxu0 0.0
        %1739 = vmatprep.subr.mxu0 0.0
        %1740 = vmatpush1.msra.mxu0 0.0
        %1741 = vmatprep.subr.mxu0 0.0
        %1742 = vmatpush1.msra.mxu0 0.0
        %1743 = vmatprep.subr.mxu0 0.0
        %1744 = vmatpush1.msra.mxu0 0.0
        %1745 = vmatprep.subr.mxu0 0.0
        %1746 = vmatpush1.msra.mxu0 0.0
        %1747 = vmatprep.subr.mxu0 0.0
        %1748 = vmatpush1.msra.mxu0 0.0
        %1749 = vmatprep.subr.mxu0 0.0
        %1750 = vmatpush1.msra.mxu0 0.0
        %1751 = vmatprep.subr.mxu0 0.0
        %1752 = vmatpush1.msra.mxu0 0.0
        %1753 = vmatprep.subr.mxu0 0.0
        %1754 = vmatpush1.msra.mxu0 0.0
        %1755 = vmatprep.subr.mxu0 0.0
        %1756 = vmatpush1.msra.mxu0 0.0
        %1757 = vmatprep.subr.mxu0 0.0
        %1758 = vmatpush1.msra.mxu0 0.0
        %1759 = vmatprep.subr.mxu0 0.0
        %1760 = vmatpush1.msra.mxu0 0.0
        %1761 = vmatprep.subr.mxu0 0.0
        %1762 = vmatpush1.msra.mxu0 0.0
        %1763 = vmatprep.subr.mxu0 0.0
        %1764 = vmatpush1.msra.mxu0 0.0
        %1765 = vmatprep.subr.mxu0 0.0
        %1766 = vmatpush1.msra.mxu0 0.0
        %1767 = vmatprep.subr.mxu0 0.0
        %1768 = vmatpush1.msra.mxu0 0.0
        %1769 = vmatprep.subr.mxu0 0.0
        %1770 = vmatpush1.msra.mxu0 0.0
        %1771 = vmatprep.subr.mxu0 0.0
        %1772 = vmatpush1.msra.mxu0 0.0
        %1773 = vmatprep.subr.mxu0 0.0
        %1774 = vmatpush1.msra.mxu0 0.0
        %1775 = vmatprep.subr.mxu0 0.0
        %1776 = vmatpush1.msra.mxu0 0.0
        %1777 = vmatprep.subr.mxu0 0.0
        %1778 = vmatpush1.msra.mxu0 0.0
        %1779 = vmatprep.subr.mxu0 0.0
        %1780 = vmatpush1.msra.mxu0 0.0
        %1781 = vmatprep.subr.mxu0 0.0
        %1782 = vmatpush1.msra.mxu0 0.0
        %1783 = vmatprep.mubr.f32.mxu0 0.0
        %1784 = vmatmul.mubr.f32.gmra.mrb[0].mxu0 %v1717
        %v1785 = vpop.f32.mrb[0].mxu0
        %v1786 = vadd.f32 %v1683, %v1785
        %v1787 = vpop.f32.mrb[0].mxu0
        %v1788 = vadd.f32 %v1683, %v1787
        %1789 = vdwg.mxu0
        %v1790 = vadd.f32 %v171, %v1786
        %v1791 = vadd.f32 %v172, %v1788
        %s1792 = scalar_lea.vmem %s1, 16
        %v1793 = vld [vmem:[%s1792] sm:$0xff]
        %s1794 = scalar_lea.vmem %s1, 24
        %v1795 = vld [vmem:[%s1794] sm:$0xff]
        %s1796 = scalar_lea.vmem %s2, 48
        %v1797 = vld [vmem:[%s1796] sm:$0xff]
        %s1798 = scalar_lea.vmem %s2, 56
        %v1799 = vld [vmem:[%s1798] sm:$0xff]
        %s1800 = scalar_lea.vmem %s2, 64
        %v1801 = vld [vmem:[%s1800] sm:$0xff]
        %v1802 = vmul.f32 %v1801, 1.442695
        %v1803 = vpow.pop %v1802
        %s1804 = scalar_lea.vmem %s2, 72
        %v1805 = vld [vmem:[%s1804] sm:$0xff]
        %v1806 = vmul.f32 %v1805, 1.442695
        %v1807 = vpow.pop %v1806
        %v1808 = vadd.f32 %v1807, 1e-09
        %v1809 = vrcp.pop %v1808
        %s1810 = scalar_lea.vmem %s2, 80
        %v1811 = vld [vmem:[%s1810] sm:$0xff]
        %v1812 = vmul.f32 %v1811, 1.442695
        %v1813 = vpow.pop %v1812
        %s1814 = scalar_lea.vmem %s2, 88
        %v1815 = vld [vmem:[%s1814] sm:$0xff]
        %v1816 = vmul.f32 %v1815, 1.442695
        %v1817 = vpow.pop %v1816
        %v1818 = vadd.f32 %v1817, 1e-09
        %v1819 = vrcp.pop %v1818
        %1820 = vst [vmem:[#allocation2 + $0x8] sm:$0xff] %v1790
        %1821 = vst [vmem:[#allocation2 + $0x10] sm:$0xff] %v1791
        %v1822 = vld [vmem:[#allocation2] sm:$0xff]
        %v1823 = vld [vmem:[#allocation2 + $0x8] sm:$0xff]
        %v1824 = vld [vmem:[#allocation2 + $0x10] sm:$0xff]
        %v1825 = vmul.f32 %v1822, 9.1175246e-20
        %v1826 = vmul.f32 %v1823, 9.1175246e-20
        %v1827 = vmul.f32 %v1824, 9.1175246e-20
        %v1828 = vmul.f32 %v1822, -5.925873e-18
        %v1829 = vmul.f32 %v1823, -5.925873e-18
        %v1830 = vmul.f32 %v1824, -5.925873e-18
        %1834 = vrot.lane.b32.xlu0 %v1828, 127
        %v1835 = vpop.permute.xlu0 %1834
        %1836 = vrot.lane.b32.xlu0 %v1829, 127
        %v1837 = vpop.permute.xlu0 %1836
        %1838 = vrot.lane.b32.xlu0 %v1830, 127
        %v1839 = vpop.permute.xlu0 %1838
        %v1840 = vsel %vm219, %v1835, %v1837
        %v1841 = vsel %vm219, %v1837, %v1839
        %v1845 = vadd.f32 %v1825, %v1840
        %v1846 = vadd.f32 %v1826, %v1841
        %v1847 = vadd.f32 %v1827, %v1839
        %v1848 = vmul.f32 %v1822, 2.543575e-17
        %v1849 = vmul.f32 %v1823, 2.543575e-17
        %v1850 = vmul.f32 %v1824, 2.543575e-17
        %1854 = vrot.lane.b32.xlu0 %v1848, 126
        %v1855 = vpop.permute.xlu0 %1854
        %1856 = vrot.lane.b32.xlu0 %v1849, 126
        %v1857 = vpop.permute.xlu0 %1856
        %1858 = vrot.lane.b32.xlu0 %v1850, 126
        %v1859 = vpop.permute.xlu0 %1858
        %v1860 = vsel %vm240, %v1855, %v1857
        %v1861 = vsel %vm240, %v1857, %v1859
        %v1865 = vadd.f32 %v1845, %v1860
        %v1866 = vadd.f32 %v1846, %v1861
        %v1867 = vadd.f32 %v1847, %v1859
        %v1868 = vmul.f32 %v1823, 1.0000397
        %v1869 = vmul.f32 %v1824, 1.0000397
        %1872 = vrot.lane.b32.xlu0 %v1868, 125
        %v1873 = vpop.permute.xlu0 %1872
        %1874 = vrot.lane.b32.xlu0 %v1869, 125
        %v1875 = vpop.permute.xlu0 %1874
        %v1876 = vsel %vm257, %v1873, %v1875
        %v1880 = vadd.f32 %v1865, %v1873
        %v1881 = vadd.f32 %v1866, %v1876
        %v1882 = vadd.f32 %v1867, %v1875
        %v1883 = vld [vmem:[#allocation2 + $0x8] sm:$0xff]
        %v1884 = vld [vmem:[#allocation2 + $0x10] sm:$0xff]
        %v1885 = vld [vmem:[#allocation2 + $0x18] sm:$0xff]
        %v1886 = vmul.f32 %v1883, 2.543575e-17
        %v1887 = vmul.f32 %v1884, 2.543575e-17
        %v1888 = vmul.f32 %v1885, 2.543575e-17
        %1892 = vrot.lane.b32.xlu0 %v1886, 124
        %v1893 = vpop.permute.xlu0 %1892
        %1894 = vrot.lane.b32.xlu0 %v1887, 124
        %v1895 = vpop.permute.xlu0 %1894
        %1896 = vrot.lane.b32.xlu0 %v1888, 124
        %v1897 = vpop.permute.xlu0 %1896
        %v1898 = vsel %vm280, %v1893, %v1895
        %v1899 = vsel %vm280, %v1895, %v1897
        %v1903 = vadd.f32 %v1880, %v1893
        %v1904 = vadd.f32 %v1881, %v1898
        %v1905 = vadd.f32 %v1882, %v1899
        %v1906 = vmul.f32 %v1883, -5.925873e-18
        %v1907 = vmul.f32 %v1884, -5.925873e-18
        %v1908 = vmul.f32 %v1885, -5.925873e-18
        %1912 = vrot.lane.b32.xlu0 %v1906, 123
        %v1913 = vpop.permute.xlu0 %1912
        %1914 = vrot.lane.b32.xlu0 %v1907, 123
        %v1915 = vpop.permute.xlu0 %1914
        %1916 = vrot.lane.b32.xlu0 %v1908, 123
        %v1917 = vpop.permute.xlu0 %1916
        %v1918 = vsel %vm301, %v1913, %v1915
        %v1919 = vsel %vm301, %v1915, %v1917
        %v1923 = vadd.f32 %v1903, %v1913
        %v1924 = vadd.f32 %v1904, %v1918
        %v1925 = vadd.f32 %v1905, %v1919
        %v1926 = vmul.f32 %v1883, 9.1175246e-20
        %v1927 = vmul.f32 %v1884, 9.1175246e-20
        %v1928 = vmul.f32 %v1885, 9.1175246e-20
        %1932 = vrot.lane.b32.xlu0 %v1926, 122
        %v1933 = vpop.permute.xlu0 %1932
        %1934 = vrot.lane.b32.xlu0 %v1927, 122
        %v1935 = vpop.permute.xlu0 %1934
        %1936 = vrot.lane.b32.xlu0 %v1928, 122
        %v1937 = vpop.permute.xlu0 %1936
        %v1938 = vsel %vm322, %v1933, %v1935
        %v1939 = vsel %vm322, %v1935, %v1937
        %v1943 = vadd.f32 %v1923, %v1933
        %v1944 = vadd.f32 %v1924, %v1938
        %v1945 = vadd.f32 %v1925, %v1939
        %v1946 = vmul.f32 %v1822, 0.004861589
        %v1947 = vmul.f32 %v1823, 0.004861589
        %v1948 = vmul.f32 %v1824, 0.004861589
        %v1949 = vmul.f32 %v1822, -0.07830155
        %v1950 = vmul.f32 %v1823, -0.07830155
        %v1951 = vmul.f32 %v1824, -0.07830155
        %1955 = vrot.lane.b32.xlu0 %v1949, 127
        %v1956 = vpop.permute.xlu0 %1955
        %1957 = vrot.lane.b32.xlu0 %v1950, 127
        %v1958 = vpop.permute.xlu0 %1957
        %1959 = vrot.lane.b32.xlu0 %v1951, 127
        %v1960 = vpop.permute.xlu0 %1959
        %v1961 = vsel %vm219, %v1956, %v1958
        %v1962 = vsel %vm219, %v1958, %v1960
        %v1966 = vadd.f32 %v1946, %v1961
        %v1967 = vadd.f32 %v1947, %v1962
        %v1968 = vadd.f32 %v1948, %v1960
        %v1969 = vmul.f32 %v1823, 0.5734201
        %v1970 = vmul.f32 %v1824, 0.5734201
        %1973 = vrot.lane.b32.xlu0 %v1969, 126
        %v1974 = vpop.permute.xlu0 %1973
        %1975 = vrot.lane.b32.xlu0 %v1970, 126
        %v1976 = vpop.permute.xlu0 %1975
        %v1977 = vsel %vm240, %v1974, %v1976
        %v1981 = vadd.f32 %v1966, %v1974
        %v1982 = vadd.f32 %v1967, %v1977
        %v1983 = vadd.f32 %v1968, %v1976
        %v1984 = vmul.f32 %v1883, 0.5734201
        %v1985 = vmul.f32 %v1884, 0.5734201
        %v1986 = vmul.f32 %v1885, 0.5734201
        %1990 = vrot.lane.b32.xlu0 %v1984, 125
        %v1991 = vpop.permute.xlu0 %1990
        %1992 = vrot.lane.b32.xlu0 %v1985, 125
        %v1993 = vpop.permute.xlu0 %1992
        %1994 = vrot.lane.b32.xlu0 %v1986, 125
        %v1995 = vpop.permute.xlu0 %1994
        %v1996 = vsel %vm257, %v1991, %v1993
        %v1997 = vsel %vm257, %v1993, %v1995
        %v2001 = vadd.f32 %v1981, %v1991
        %v2002 = vadd.f32 %v1982, %v1996
        %v2003 = vadd.f32 %v1983, %v1997
        %v2004 = vmul.f32 %v1883, -0.07830155
        %v2005 = vmul.f32 %v1884, -0.07830155
        %v2006 = vmul.f32 %v1885, -0.07830155
        %2010 = vrot.lane.b32.xlu0 %v2004, 124
        %v2011 = vpop.permute.xlu0 %2010
        %2012 = vrot.lane.b32.xlu0 %v2005, 124
        %v2013 = vpop.permute.xlu0 %2012
        %2014 = vrot.lane.b32.xlu0 %v2006, 124
        %v2015 = vpop.permute.xlu0 %2014
        %v2016 = vsel %vm280, %v2011, %v2013
        %v2017 = vsel %vm280, %v2013, %v2015
        %v2021 = vadd.f32 %v2001, %v2011
        %v2022 = vadd.f32 %v2002, %v2016
        %v2023 = vadd.f32 %v2003, %v2017
        %v2024 = vmul.f32 %v1883, 0.004861589
        %v2025 = vmul.f32 %v1884, 0.004861589
        %v2026 = vmul.f32 %v1885, 0.004861589
        %2030 = vrot.lane.b32.xlu0 %v2024, 123
        %v2031 = vpop.permute.xlu0 %2030
        %2032 = vrot.lane.b32.xlu0 %v2025, 123
        %v2033 = vpop.permute.xlu0 %2032
        %2034 = vrot.lane.b32.xlu0 %v2026, 123
        %v2035 = vpop.permute.xlu0 %2034
        %v2036 = vsel %vm301, %v2031, %v2033
        %v2037 = vsel %vm301, %v2033, %v2035
        %v2041 = vadd.f32 %v2021, %v2031
        %v2042 = vadd.f32 %v2022, %v2036
        %v2043 = vadd.f32 %v2023, %v2037
        %2045 = vset.pattern.permute.xlu0 0
        %2046 = vperm.xlu0 %2045, %v1803
        %v2047 = vpop.permute.xlu0 %2046
        %v2049 = vmul.f32 %v2047, %v1943
        %v2050 = vmul.f32 %v2047, %v1944
        %v2051 = vmul.f32 %v2047, %v1945
        %v2052 = vmul.f32 %v2049, %v437
        %v2053 = vmul.f32 %v2050, %v437
        %v2054 = vmul.f32 %v2051, %v437
        %v2055 = vadd.f32 %v2052, 0.5
        %v2056 = vadd.f32 %v2053, 0.5
        %v2057 = vadd.f32 %v2054, 0.5
        %v2058 = vfloor.f32 %v2055
        %v2059 = vfloor.f32 %v2056
        %v2060 = vfloor.f32 %v2057
        %v2061 = vmul.f32 %v2058, 6.2831855
        %v2062 = vmul.f32 %v2059, 6.2831855
        %v2063 = vmul.f32 %v2060, 6.2831855
        %v2064 = vsub.f32 %v2049, %v2061
        %v2065 = vsub.f32 %v2050, %v2062
        %v2066 = vsub.f32 %v2051, %v2063
        %vm2067 = vcmp.gt.f32.partialorder %v2064, 1.5707964
        %vm2068 = vcmp.gt.f32.partialorder %v2065, 1.5707964
        %vm2069 = vcmp.gt.f32.partialorder %v2066, 1.5707964
        %v2070 = vsub.f32 3.1415927, %v2064
        %v2071 = vsub.f32 3.1415927, %v2065
        %v2072 = vsub.f32 3.1415927, %v2066
        %v2073 = vsel %vm2067, %v2070, %v2064
        %v2074 = vsel %vm2068, %v2071, %v2065
        %v2075 = vsel %vm2069, %v2072, %v2066
        %vm2076 = vcmp.lt.f32.partialorder %v2073, -1.5707964
        %vm2077 = vcmp.lt.f32.partialorder %v2074, -1.5707964
        %vm2078 = vcmp.lt.f32.partialorder %v2075, -1.5707964
        %v2079 = vsub.f32 -3.1415927, %v2073
        %v2080 = vsub.f32 -3.1415927, %v2074
        %v2081 = vsub.f32 -3.1415927, %v2075
        %v2082 = vsel %vm2076, %v2079, %v2073
        %v2083 = vsel %vm2077, %v2080, %v2074
        %v2084 = vsel %vm2078, %v2081, %v2075
        %v2085 = vmul.f32 %v2082, %v2082
        %v2086 = vmul.f32 %v2083, %v2083
        %v2087 = vmul.f32 %v2084, %v2084
        %v2088 = vmul.f32 %v2085, 2.7557319e-06
        %v2089 = vmul.f32 %v2086, 2.7557319e-06
        %v2090 = vmul.f32 %v2087, 2.7557319e-06
        %v2091 = vadd.f32 %v2088, -0.0001984127
        %v2092 = vadd.f32 %v2089, -0.0001984127
        %v2093 = vadd.f32 %v2090, -0.0001984127
        %v2094 = vmul.f32 %v2085, %v2091
        %v2095 = vmul.f32 %v2086, %v2092
        %v2096 = vmul.f32 %v2087, %v2093
        %v2097 = vadd.f32 %v2094, 0.008333334
        %v2098 = vadd.f32 %v2095, 0.008333334
        %v2099 = vadd.f32 %v2096, 0.008333334
        %v2100 = vmul.f32 %v2085, %v2097
        %v2101 = vmul.f32 %v2086, %v2098
        %v2102 = vmul.f32 %v2087, %v2099
        %v2103 = vadd.f32 %v2100, -0.16666667
        %v2104 = vadd.f32 %v2101, -0.16666667
        %v2105 = vadd.f32 %v2102, -0.16666667
        %v2106 = vmul.f32 %v2085, %v2103
        %v2107 = vmul.f32 %v2086, %v2104
        %v2108 = vmul.f32 %v2087, %v2105
        %v2109 = vadd.f32 %v2106, 1.0
        %v2110 = vadd.f32 %v2107, 1.0
        %v2111 = vadd.f32 %v2108, 1.0
        %v2112 = vmul.f32 %v2082, %v2109
        %v2113 = vmul.f32 %v2083, %v2110
        %v2114 = vmul.f32 %v2084, %v2111
        %v2115 = vmul.f32 %v2112, %v2112
        %v2116 = vmul.f32 %v2113, %v2113
        %v2117 = vmul.f32 %v2114, %v2114
        %2119 = vset.pattern.permute.xlu0 0
        %2120 = vperm.xlu0 %2119, %v1809
        %v2121 = vpop.permute.xlu0 %2120
        %v2123 = vmul.f32 %v2115, %v2121
        %v2124 = vmul.f32 %v2116, %v2121
        %v2125 = vmul.f32 %v2117, %v2121
        %v2126 = vadd.f32 %v1943, %v2123
        %v2127 = vadd.f32 %v1944, %v2124
        %v2128 = vadd.f32 %v1945, %v2125
        %v2129 = vmul.f32 %v2047, %v2041
        %v2130 = vmul.f32 %v2047, %v2042
        %v2131 = vmul.f32 %v2047, %v2043
        %v2132 = vmul.f32 %v2129, %v437
        %v2133 = vmul.f32 %v2130, %v437
        %v2134 = vmul.f32 %v2131, %v437
        %v2135 = vadd.f32 %v2132, 0.5
        %v2136 = vadd.f32 %v2133, 0.5
        %v2137 = vadd.f32 %v2134, 0.5
        %v2138 = vfloor.f32 %v2135
        %v2139 = vfloor.f32 %v2136
        %v2140 = vfloor.f32 %v2137
        %v2141 = vmul.f32 %v2138, 6.2831855
        %v2142 = vmul.f32 %v2139, 6.2831855
        %v2143 = vmul.f32 %v2140, 6.2831855
        %v2144 = vsub.f32 %v2129, %v2141
        %v2145 = vsub.f32 %v2130, %v2142
        %v2146 = vsub.f32 %v2131, %v2143
        %vm2147 = vcmp.gt.f32.partialorder %v2144, 1.5707964
        %vm2148 = vcmp.gt.f32.partialorder %v2145, 1.5707964
        %vm2149 = vcmp.gt.f32.partialorder %v2146, 1.5707964
        %v2150 = vsub.f32 3.1415927, %v2144
        %v2151 = vsub.f32 3.1415927, %v2145
        %v2152 = vsub.f32 3.1415927, %v2146
        %v2153 = vsel %vm2147, %v2150, %v2144
        %v2154 = vsel %vm2148, %v2151, %v2145
        %v2155 = vsel %vm2149, %v2152, %v2146
        %vm2156 = vcmp.lt.f32.partialorder %v2153, -1.5707964
        %vm2157 = vcmp.lt.f32.partialorder %v2154, -1.5707964
        %vm2158 = vcmp.lt.f32.partialorder %v2155, -1.5707964
        %v2159 = vsub.f32 -3.1415927, %v2153
        %v2160 = vsub.f32 -3.1415927, %v2154
        %v2161 = vsub.f32 -3.1415927, %v2155
        %v2162 = vsel %vm2156, %v2159, %v2153
        %v2163 = vsel %vm2157, %v2160, %v2154
        %v2164 = vsel %vm2158, %v2161, %v2155
        %v2165 = vmul.f32 %v2162, %v2162
        %v2166 = vmul.f32 %v2163, %v2163
        %v2167 = vmul.f32 %v2164, %v2164
        %v2168 = vmul.f32 %v2165, 2.7557319e-06
        %v2169 = vmul.f32 %v2166, 2.7557319e-06
        %v2170 = vmul.f32 %v2167, 2.7557319e-06
        %v2171 = vadd.f32 %v2168, -0.0001984127
        %v2172 = vadd.f32 %v2169, -0.0001984127
        %v2173 = vadd.f32 %v2170, -0.0001984127
        %v2174 = vmul.f32 %v2165, %v2171
        %v2175 = vmul.f32 %v2166, %v2172
        %v2176 = vmul.f32 %v2167, %v2173
        %v2177 = vadd.f32 %v2174, 0.008333334
        %v2178 = vadd.f32 %v2175, 0.008333334
        %v2179 = vadd.f32 %v2176, 0.008333334
        %v2180 = vmul.f32 %v2165, %v2177
        %v2181 = vmul.f32 %v2166, %v2178
        %v2182 = vmul.f32 %v2167, %v2179
        %v2183 = vadd.f32 %v2180, -0.16666667
        %v2184 = vadd.f32 %v2181, -0.16666667
        %v2185 = vadd.f32 %v2182, -0.16666667
        %v2186 = vmul.f32 %v2165, %v2183
        %v2187 = vmul.f32 %v2166, %v2184
        %v2188 = vmul.f32 %v2167, %v2185
        %v2189 = vadd.f32 %v2186, 1.0
        %v2190 = vadd.f32 %v2187, 1.0
        %v2191 = vadd.f32 %v2188, 1.0
        %v2192 = vmul.f32 %v2162, %v2189
        %v2193 = vmul.f32 %v2163, %v2190
        %v2194 = vmul.f32 %v2164, %v2191
        %v2195 = vmul.f32 %v2192, %v2192
        %v2196 = vmul.f32 %v2193, %v2193
        %v2197 = vmul.f32 %v2194, %v2194
        %v2198 = vmul.f32 %v2195, %v2121
        %v2199 = vmul.f32 %v2196, %v2121
        %v2200 = vmul.f32 %v2197, %v2121
        %v2201 = vadd.f32 %v2041, %v2198
        %v2202 = vadd.f32 %v2042, %v2199
        %v2203 = vadd.f32 %v2043, %v2200
        %2207 = vrot.lane.b32.xlu0 %v2126, 3
        %v2208 = vpop.permute.xlu0 %2207
        %2209 = vrot.lane.b32.xlu0 %v2127, 3
        %v2210 = vpop.permute.xlu0 %2209
        %2211 = vrot.lane.b32.xlu0 %v2128, 3
        %v2212 = vpop.permute.xlu0 %2211
        %v2213 = vsel %vm599, %v2208, %v2210
        %v2214 = vsel %vm599, %v2210, %v2212
        %2217 = vst [vmem:[#allocation2 + $0x8] sm:$0xff] %v2213
        %2218 = vst [vmem:[#allocation2 + $0x10] sm:$0xff] %v2214
        %v2219 = vld [vmem:[#allocation2] sm:$0xff]
        %v2220 = vld [vmem:[#allocation2 + $0x8] sm:$0xff]
        %v2221 = vld [vmem:[#allocation2 + $0x10] sm:$0xff]
        %v2222 = vmul.f32 %v2219, 4.5587623e-20
        %v2223 = vmul.f32 %v2220, 4.5587623e-20
        %v2224 = vmul.f32 %v2221, 4.5587623e-20
        %v2225 = vmul.f32 %v2219, -2.9629366e-18
        %v2226 = vmul.f32 %v2220, -2.9629366e-18
        %v2227 = vmul.f32 %v2221, -2.9629366e-18
        %2231 = vrot.lane.b32.xlu0 %v2225, 127
        %v2232 = vpop.permute.xlu0 %2231
        %2233 = vrot.lane.b32.xlu0 %v2226, 127
        %v2234 = vpop.permute.xlu0 %2233
        %2235 = vrot.lane.b32.xlu0 %v2227, 127
        %v2236 = vpop.permute.xlu0 %2235
        %v2237 = vsel %vm219, %v2232, %v2234
        %v2238 = vsel %vm219, %v2234, %v2236
        %v2242 = vadd.f32 %v2222, %v2237
        %v2243 = vadd.f32 %v2223, %v2238
        %v2244 = vadd.f32 %v2224, %v2236
        %v2245 = vmul.f32 %v2219, 1.2717875e-17
        %v2246 = vmul.f32 %v2220, 1.2717875e-17
        %v2247 = vmul.f32 %v2221, 1.2717875e-17
        %2251 = vrot.lane.b32.xlu0 %v2245, 126
        %v2252 = vpop.permute.xlu0 %2251
        %2253 = vrot.lane.b32.xlu0 %v2246, 126
        %v2254 = vpop.permute.xlu0 %2253
        %2255 = vrot.lane.b32.xlu0 %v2247, 126
        %v2256 = vpop.permute.xlu0 %2255
        %v2257 = vsel %vm240, %v2252, %v2254
        %v2258 = vsel %vm240, %v2254, %v2256
        %v2262 = vadd.f32 %v2242, %v2257
        %v2263 = vadd.f32 %v2243, %v2258
        %v2264 = vadd.f32 %v2244, %v2256
        %v2265 = vmul.f32 %v2220, 0.50001985
        %v2266 = vmul.f32 %v2221, 0.50001985
        %2269 = vrot.lane.b32.xlu0 %v2265, 125
        %v2270 = vpop.permute.xlu0 %2269
        %2271 = vrot.lane.b32.xlu0 %v2266, 125
        %v2272 = vpop.permute.xlu0 %2271
        %v2273 = vsel %vm257, %v2270, %v2272
        %v2277 = vadd.f32 %v2262, %v2270
        %v2278 = vadd.f32 %v2263, %v2273
        %v2279 = vadd.f32 %v2264, %v2272
        %v2280 = vld [vmem:[#allocation2 + $0x8] sm:$0xff]
        %v2281 = vld [vmem:[#allocation2 + $0x10] sm:$0xff]
        %v2282 = vld [vmem:[#allocation2 + $0x18] sm:$0xff]
        %v2283 = vmul.f32 %v2280, 1.2717875e-17
        %v2284 = vmul.f32 %v2281, 1.2717875e-17
        %v2285 = vmul.f32 %v2282, 1.2717875e-17
        %2289 = vrot.lane.b32.xlu0 %v2283, 124
        %v2290 = vpop.permute.xlu0 %2289
        %2291 = vrot.lane.b32.xlu0 %v2284, 124
        %v2292 = vpop.permute.xlu0 %2291
        %2293 = vrot.lane.b32.xlu0 %v2285, 124
        %v2294 = vpop.permute.xlu0 %2293
        %v2295 = vsel %vm280, %v2290, %v2292
        %v2296 = vsel %vm280, %v2292, %v2294
        %v2300 = vadd.f32 %v2277, %v2290
        %v2301 = vadd.f32 %v2278, %v2295
        %v2302 = vadd.f32 %v2279, %v2296
        %v2303 = vmul.f32 %v2280, -2.9629366e-18
        %v2304 = vmul.f32 %v2281, -2.9629366e-18
        %v2305 = vmul.f32 %v2282, -2.9629366e-18
        %2309 = vrot.lane.b32.xlu0 %v2303, 123
        %v2310 = vpop.permute.xlu0 %2309
        %2311 = vrot.lane.b32.xlu0 %v2304, 123
        %v2312 = vpop.permute.xlu0 %2311
        %2313 = vrot.lane.b32.xlu0 %v2305, 123
        %v2314 = vpop.permute.xlu0 %2313
        %v2315 = vsel %vm301, %v2310, %v2312
        %v2316 = vsel %vm301, %v2312, %v2314
        %v2320 = vadd.f32 %v2300, %v2310
        %v2321 = vadd.f32 %v2301, %v2315
        %v2322 = vadd.f32 %v2302, %v2316
        %v2323 = vmul.f32 %v2280, 4.5587623e-20
        %v2324 = vmul.f32 %v2281, 4.5587623e-20
        %v2325 = vmul.f32 %v2282, 4.5587623e-20
        %2329 = vrot.lane.b32.xlu0 %v2323, 122
        %v2330 = vpop.permute.xlu0 %2329
        %2331 = vrot.lane.b32.xlu0 %v2324, 122
        %v2332 = vpop.permute.xlu0 %2331
        %2333 = vrot.lane.b32.xlu0 %v2325, 122
        %v2334 = vpop.permute.xlu0 %2333
        %v2335 = vsel %vm322, %v2330, %v2332
        %v2336 = vsel %vm322, %v2332, %v2334
        %v2340 = vadd.f32 %v2320, %v2330
        %v2341 = vadd.f32 %v2321, %v2335
        %v2342 = vadd.f32 %v2322, %v2336
        %2346 = vrot.lane.b32.xlu0 %v2201, 2
        %v2347 = vpop.permute.xlu0 %2346
        %2348 = vrot.lane.b32.xlu0 %v2202, 2
        %v2349 = vpop.permute.xlu0 %2348
        %2350 = vrot.lane.b32.xlu0 %v2203, 2
        %v2351 = vpop.permute.xlu0 %2350
        %v2352 = vsel %vm739, %v2347, %v2349
        %v2353 = vsel %vm739, %v2349, %v2351
        %2356 = vst [vmem:[#allocation2 + $0x8] sm:$0xff] %v2352
        %2357 = vst [vmem:[#allocation2 + $0x10] sm:$0xff] %v2353
        %v2358 = vld [vmem:[#allocation2] sm:$0xff]
        %v2359 = vld [vmem:[#allocation2 + $0x8] sm:$0xff]
        %v2360 = vld [vmem:[#allocation2 + $0x10] sm:$0xff]
        %v2361 = vmul.f32 %v2358, 0.0024307945
        %v2362 = vmul.f32 %v2359, 0.0024307945
        %v2363 = vmul.f32 %v2360, 0.0024307945
        %v2364 = vmul.f32 %v2358, -0.039150774
        %v2365 = vmul.f32 %v2359, -0.039150774
        %v2366 = vmul.f32 %v2360, -0.039150774
        %2370 = vrot.lane.b32.xlu0 %v2364, 127
        %v2371 = vpop.permute.xlu0 %2370
        %2372 = vrot.lane.b32.xlu0 %v2365, 127
        %v2373 = vpop.permute.xlu0 %2372
        %2374 = vrot.lane.b32.xlu0 %v2366, 127
        %v2375 = vpop.permute.xlu0 %2374
        %v2376 = vsel %vm219, %v2371, %v2373
        %v2377 = vsel %vm219, %v2373, %v2375
        %v2381 = vadd.f32 %v2361, %v2376
        %v2382 = vadd.f32 %v2362, %v2377
        %v2383 = vadd.f32 %v2363, %v2375
        %v2384 = vmul.f32 %v2358, 0.28671005
        %v2385 = vmul.f32 %v2359, 0.28671005
        %v2386 = vmul.f32 %v2360, 0.28671005
        %2390 = vrot.lane.b32.xlu0 %v2384, 126
        %v2391 = vpop.permute.xlu0 %2390
        %2392 = vrot.lane.b32.xlu0 %v2385, 126
        %v2393 = vpop.permute.xlu0 %2392
        %2394 = vrot.lane.b32.xlu0 %v2386, 126
        %v2395 = vpop.permute.xlu0 %2394
        %v2396 = vsel %vm240, %v2391, %v2393
        %v2397 = vsel %vm240, %v2393, %v2395
        %v2401 = vadd.f32 %v2381, %v2396
        %v2402 = vadd.f32 %v2382, %v2397
        %v2403 = vadd.f32 %v2383, %v2395
        %2404 = vrot.lane.b32.xlu0 %v2385, 125
        %v2405 = vpop.permute.xlu0 %2404
        %2406 = vrot.lane.b32.xlu0 %v2386, 125
        %v2407 = vpop.permute.xlu0 %2406
        %v2408 = vsel %vm257, %v2405, %v2407
        %v2412 = vadd.f32 %v2401, %v2405
        %v2413 = vadd.f32 %v2402, %v2408
        %v2414 = vadd.f32 %v2403, %v2407
        %v2415 = vld [vmem:[#allocation2 + $0x8] sm:$0xff]
        %v2416 = vld [vmem:[#allocation2 + $0x10] sm:$0xff]
        %v2417 = vld [vmem:[#allocation2 + $0x18] sm:$0xff]
        %v2418 = vmul.f32 %v2415, -0.039150774
        %v2419 = vmul.f32 %v2416, -0.039150774
        %v2420 = vmul.f32 %v2417, -0.039150774
        %2424 = vrot.lane.b32.xlu0 %v2418, 124
        %v2425 = vpop.permute.xlu0 %2424
        %2426 = vrot.lane.b32.xlu0 %v2419, 124
        %v2427 = vpop.permute.xlu0 %2426
        %2428 = vrot.lane.b32.xlu0 %v2420, 124
        %v2429 = vpop.permute.xlu0 %2428
        %v2430 = vsel %vm280, %v2425, %v2427
        %v2431 = vsel %vm280, %v2427, %v2429
        %v2435 = vadd.f32 %v2412, %v2425
        %v2436 = vadd.f32 %v2413, %v2430
        %v2437 = vadd.f32 %v2414, %v2431
        %v2438 = vmul.f32 %v2415, 0.0024307945
        %v2439 = vmul.f32 %v2416, 0.0024307945
        %v2440 = vmul.f32 %v2417, 0.0024307945
        %2444 = vrot.lane.b32.xlu0 %v2438, 123
        %v2445 = vpop.permute.xlu0 %2444
        %2446 = vrot.lane.b32.xlu0 %v2439, 123
        %v2447 = vpop.permute.xlu0 %2446
        %2448 = vrot.lane.b32.xlu0 %v2440, 123
        %v2449 = vpop.permute.xlu0 %2448
        %v2450 = vsel %vm301, %v2445, %v2447
        %v2451 = vsel %vm301, %v2447, %v2449
        %v2455 = vadd.f32 %v2435, %v2445
        %v2456 = vadd.f32 %v2436, %v2450
        %v2457 = vadd.f32 %v2437, %v2451
        %v2458 = vadd.f32 %v2340, %v2455
        %v2459 = vadd.f32 %v2341, %v2456
        %v2460 = vadd.f32 %v2342, %v2457
        %2464 = vrot.lane.b32.xlu0 %v2458, 3
        %v2465 = vpop.permute.xlu0 %2464
        %2466 = vrot.lane.b32.xlu0 %v2459, 3
        %v2467 = vpop.permute.xlu0 %2466
        %2468 = vrot.lane.b32.xlu0 %v2460, 3
        %v2469 = vpop.permute.xlu0 %2468
        %v2470 = vsel %vm599, %v2465, %v2467
        %v2471 = vsel %vm599, %v2467, %v2469
        %2474 = vst [vmem:[#allocation2 + $0x8] sm:$0xff] %v2470
        %2475 = vst [vmem:[#allocation2 + $0x10] sm:$0xff] %v2471
        %v2476 = vld [vmem:[#allocation2] sm:$0xff]
        %v2477 = vld [vmem:[#allocation2 + $0x8] sm:$0xff]
        %v2478 = vld [vmem:[#allocation2 + $0x10] sm:$0xff]
        %v2479 = vld [vmem:[#allocation2 + $0x8] sm:$0xff]
        %v2480 = vld [vmem:[#allocation2 + $0x10] sm:$0xff]
        %v2481 = vld [vmem:[#allocation2 + $0x18] sm:$0xff]
        %2484 = vrot.lane.b32.xlu0 %v2477, 125
        %v2485 = vpop.permute.xlu0 %2484
        %2486 = vrot.lane.b32.xlu0 %v2478, 125
        %v2487 = vpop.permute.xlu0 %2486
        %v2488 = vsel %vm257, %v2485, %v2487
        %2492 = vrot.lane.b32.xlu0 %v2479, 122
        %v2493 = vpop.permute.xlu0 %2492
        %2494 = vrot.lane.b32.xlu0 %v2480, 122
        %v2495 = vpop.permute.xlu0 %2494
        %2496 = vrot.lane.b32.xlu0 %v2481, 122
        %v2497 = vpop.permute.xlu0 %2496
        %v2498 = vsel %vm322, %v2493, %v2495
        %v2499 = vsel %vm322, %v2495, %v2497
        %2501 = vset.pattern.permute.xlu0 0
        %2502 = vperm.xlu0 %2501, %v1797
        %v2503 = vpop.permute.xlu0 %2502
        %2506 = vrot.lane.b32.xlu0 %v2476, 3
        %v2507 = vpop.permute.xlu0 %2506
        %2508 = vrot.lane.b32.xlu0 %v2477, 3
        %v2509 = vpop.permute.xlu0 %2508
        %2510 = vrot.lane.b32.xlu0 %v2478, 3
        %v2511 = vpop.permute.xlu0 %2510
        %2512 = vrot.lane.b32.xlu0 %v2485, 3
        %v2513 = vpop.permute.xlu0 %2512
        %2514 = vrot.lane.b32.xlu0 %v2488, 3
        %v2515 = vpop.permute.xlu0 %2514
        %2516 = vrot.lane.b32.xlu0 %v2487, 3
        %v2517 = vpop.permute.xlu0 %2516
        %2518 = vrot.lane.b32.xlu0 %v2493, 3
        %v2519 = vpop.permute.xlu0 %2518
        %2520 = vrot.lane.b32.xlu0 %v2498, 3
        %v2521 = vpop.permute.xlu0 %2520
        %2522 = vrot.lane.b32.xlu0 %v2499, 3
        %v2523 = vpop.permute.xlu0 %2522
        %v2524 = vsel %vm599, %v2507, %v2509
        %v2525 = vsel %vm599, %v2509, %v2511
        %v2526 = vsel %vm599, %v2513, %v2515
        %v2527 = vsel %vm599, %v2515, %v2517
        %v2528 = vsel %vm599, %v2519, %v2521
        %v2529 = vsel %vm599, %v2521, %v2523
        %v2537 = vsel %vm925, %v1793, 0
        %2539 = vmatprep.subr.mxu0 %v2525
        %2540 = vmatpush1.msra.mxu0 %v2524
        %2541 = vmatprep.subr.mxu0 %v2527
        %2542 = vmatpush1.msra.mxu0 %v2526
        %2543 = vmatprep.subr.mxu0 %v2529
        %2544 = vmatpush1.msra.mxu0 %v2528
        %2545 = vmatprep.subr.mxu0 0.0
        %2546 = vmatpush1.msra.mxu0 0.0
        %2547 = vmatprep.subr.mxu0 0.0
        %2548 = vmatpush1.msra.mxu0 0.0
        %2549 = vmatprep.subr.mxu0 0.0
        %2550 = vmatpush1.msra.mxu0 0.0
        %2551 = vmatprep.subr.mxu0 0.0
        %2552 = vmatpush1.msra.mxu0 0.0
        %2553 = vmatprep.subr.mxu0 0.0
        %2554 = vmatpush1.msra.mxu0 0.0
        %2555 = vmatprep.subr.mxu0 0.0
        %2556 = vmatpush1.msra.mxu0 0.0
        %2557 = vmatprep.subr.mxu0 0.0
        %2558 = vmatpush1.msra.mxu0 0.0
        %2559 = vmatprep.subr.mxu0 0.0
        %2560 = vmatpush1.msra.mxu0 0.0
        %2561 = vmatprep.subr.mxu0 0.0
        %2562 = vmatpush1.msra.mxu0 0.0
        %2563 = vmatprep.subr.mxu0 0.0
        %2564 = vmatpush1.msra.mxu0 0.0
        %2565 = vmatprep.subr.mxu0 0.0
        %2566 = vmatpush1.msra.mxu0 0.0
        %2567 = vmatprep.subr.mxu0 0.0
        %2568 = vmatpush1.msra.mxu0 0.0
        %2569 = vmatprep.subr.mxu0 0.0
        %2570 = vmatpush1.msra.mxu0 0.0
        %2571 = vmatprep.subr.mxu0 0.0
        %2572 = vmatpush1.msra.mxu0 0.0
        %2573 = vmatprep.subr.mxu0 0.0
        %2574 = vmatpush1.msra.mxu0 0.0
        %2575 = vmatprep.subr.mxu0 0.0
        %2576 = vmatpush1.msra.mxu0 0.0
        %2577 = vmatprep.subr.mxu0 0.0
        %2578 = vmatpush1.msra.mxu0 0.0
        %2579 = vmatprep.subr.mxu0 0.0
        %2580 = vmatpush1.msra.mxu0 0.0
        %2581 = vmatprep.subr.mxu0 0.0
        %2582 = vmatpush1.msra.mxu0 0.0
        %2583 = vmatprep.subr.mxu0 0.0
        %2584 = vmatpush1.msra.mxu0 0.0
        %2585 = vmatprep.subr.mxu0 0.0
        %2586 = vmatpush1.msra.mxu0 0.0
        %2587 = vmatprep.subr.mxu0 0.0
        %2588 = vmatpush1.msra.mxu0 0.0
        %2589 = vmatprep.subr.mxu0 0.0
        %2590 = vmatpush1.msra.mxu0 0.0
        %2591 = vmatprep.subr.mxu0 0.0
        %2592 = vmatpush1.msra.mxu0 0.0
        %2593 = vmatprep.subr.mxu0 0.0
        %2594 = vmatpush1.msra.mxu0 0.0
        %2595 = vmatprep.subr.mxu0 0.0
        %2596 = vmatpush1.msra.mxu0 0.0
        %2597 = vmatprep.subr.mxu0 0.0
        %2598 = vmatpush1.msra.mxu0 0.0
        %2599 = vmatprep.subr.mxu0 0.0
        %2600 = vmatpush1.msra.mxu0 0.0
        %2601 = vmatprep.subr.mxu0 0.0
        %2602 = vmatpush1.msra.mxu0 0.0
        %2603 = vmatprep.mubr.f32.mxu0 0.0
        %2604 = vmatmul.mubr.f32.gmra.mrb[0].mxu0 %v2537
        %v2605 = vpop.f32.mrb[0].mxu0
        %v2606 = vadd.f32 %v2503, %v2605
        %v2607 = vpop.f32.mrb[0].mxu0
        %v2608 = vadd.f32 %v2503, %v2607
        %2609 = vdwg.mxu0
        %2610 = vst [vmem:[#allocation2 + $0x8] sm:$0xff] %v2606
        %2611 = vst [vmem:[#allocation2 + $0x10] sm:$0xff] %v2608
        %v2612 = vld [vmem:[#allocation2] sm:$0xff]
        %v2613 = vld [vmem:[#allocation2 + $0x8] sm:$0xff]
        %v2614 = vld [vmem:[#allocation2 + $0x10] sm:$0xff]
        %v2615 = vmul.f32 %v2612, 9.1175246e-20
        %v2616 = vmul.f32 %v2613, 9.1175246e-20
        %v2617 = vmul.f32 %v2614, 9.1175246e-20
        %v2618 = vmul.f32 %v2612, -5.925873e-18
        %v2619 = vmul.f32 %v2613, -5.925873e-18
        %v2620 = vmul.f32 %v2614, -5.925873e-18
        %2624 = vrot.lane.b32.xlu0 %v2618, 127
        %v2625 = vpop.permute.xlu0 %2624
        %2626 = vrot.lane.b32.xlu0 %v2619, 127
        %v2627 = vpop.permute.xlu0 %2626
        %2628 = vrot.lane.b32.xlu0 %v2620, 127
        %v2629 = vpop.permute.xlu0 %2628
        %v2630 = vsel %vm219, %v2625, %v2627
        %v2631 = vsel %vm219, %v2627, %v2629
        %v2635 = vadd.f32 %v2615, %v2630
        %v2636 = vadd.f32 %v2616, %v2631
        %v2637 = vadd.f32 %v2617, %v2629
        %v2638 = vmul.f32 %v2612, 2.543575e-17
        %v2639 = vmul.f32 %v2613, 2.543575e-17
        %v2640 = vmul.f32 %v2614, 2.543575e-17
        %2644 = vrot.lane.b32.xlu0 %v2638, 126
        %v2645 = vpop.permute.xlu0 %2644
        %2646 = vrot.lane.b32.xlu0 %v2639, 126
        %v2647 = vpop.permute.xlu0 %2646
        %2648 = vrot.lane.b32.xlu0 %v2640, 126
        %v2649 = vpop.permute.xlu0 %2648
        %v2650 = vsel %vm240, %v2645, %v2647
        %v2651 = vsel %vm240, %v2647, %v2649
        %v2655 = vadd.f32 %v2635, %v2650
        %v2656 = vadd.f32 %v2636, %v2651
        %v2657 = vadd.f32 %v2637, %v2649
        %v2658 = vmul.f32 %v2613, 1.0000397
        %v2659 = vmul.f32 %v2614, 1.0000397
        %2662 = vrot.lane.b32.xlu0 %v2658, 125
        %v2663 = vpop.permute.xlu0 %2662
        %2664 = vrot.lane.b32.xlu0 %v2659, 125
        %v2665 = vpop.permute.xlu0 %2664
        %v2666 = vsel %vm257, %v2663, %v2665
        %v2670 = vadd.f32 %v2655, %v2663
        %v2671 = vadd.f32 %v2656, %v2666
        %v2672 = vadd.f32 %v2657, %v2665
        %v2673 = vld [vmem:[#allocation2 + $0x8] sm:$0xff]
        %v2674 = vld [vmem:[#allocation2 + $0x10] sm:$0xff]
        %v2675 = vld [vmem:[#allocation2 + $0x18] sm:$0xff]
        %v2676 = vmul.f32 %v2673, 2.543575e-17
        %v2677 = vmul.f32 %v2674, 2.543575e-17
        %v2678 = vmul.f32 %v2675, 2.543575e-17
        %2682 = vrot.lane.b32.xlu0 %v2676, 124
        %v2683 = vpop.permute.xlu0 %2682
        %2684 = vrot.lane.b32.xlu0 %v2677, 124
        %v2685 = vpop.permute.xlu0 %2684
        %2686 = vrot.lane.b32.xlu0 %v2678, 124
        %v2687 = vpop.permute.xlu0 %2686
        %v2688 = vsel %vm280, %v2683, %v2685
        %v2689 = vsel %vm280, %v2685, %v2687
        %v2693 = vadd.f32 %v2670, %v2683
        %v2694 = vadd.f32 %v2671, %v2688
        %v2695 = vadd.f32 %v2672, %v2689
        %v2696 = vmul.f32 %v2673, -5.925873e-18
        %v2697 = vmul.f32 %v2674, -5.925873e-18
        %v2698 = vmul.f32 %v2675, -5.925873e-18
        %2702 = vrot.lane.b32.xlu0 %v2696, 123
        %v2703 = vpop.permute.xlu0 %2702
        %2704 = vrot.lane.b32.xlu0 %v2697, 123
        %v2705 = vpop.permute.xlu0 %2704
        %2706 = vrot.lane.b32.xlu0 %v2698, 123
        %v2707 = vpop.permute.xlu0 %2706
        %v2708 = vsel %vm301, %v2703, %v2705
        %v2709 = vsel %vm301, %v2705, %v2707
        %v2713 = vadd.f32 %v2693, %v2703
        %v2714 = vadd.f32 %v2694, %v2708
        %v2715 = vadd.f32 %v2695, %v2709
        %v2716 = vmul.f32 %v2673, 9.1175246e-20
        %v2717 = vmul.f32 %v2674, 9.1175246e-20
        %v2718 = vmul.f32 %v2675, 9.1175246e-20
        %2722 = vrot.lane.b32.xlu0 %v2716, 122
        %v2723 = vpop.permute.xlu0 %2722
        %2724 = vrot.lane.b32.xlu0 %v2717, 122
        %v2725 = vpop.permute.xlu0 %2724
        %2726 = vrot.lane.b32.xlu0 %v2718, 122
        %v2727 = vpop.permute.xlu0 %2726
        %v2728 = vsel %vm322, %v2723, %v2725
        %v2729 = vsel %vm322, %v2725, %v2727
        %v2733 = vadd.f32 %v2713, %v2723
        %v2734 = vadd.f32 %v2714, %v2728
        %v2735 = vadd.f32 %v2715, %v2729
        %v2736 = vmul.f32 %v2612, 0.004861589
        %v2737 = vmul.f32 %v2613, 0.004861589
        %v2738 = vmul.f32 %v2614, 0.004861589
        %v2739 = vmul.f32 %v2612, -0.07830155
        %v2740 = vmul.f32 %v2613, -0.07830155
        %v2741 = vmul.f32 %v2614, -0.07830155
        %2745 = vrot.lane.b32.xlu0 %v2739, 127
        %v2746 = vpop.permute.xlu0 %2745
        %2747 = vrot.lane.b32.xlu0 %v2740, 127
        %v2748 = vpop.permute.xlu0 %2747
        %2749 = vrot.lane.b32.xlu0 %v2741, 127
        %v2750 = vpop.permute.xlu0 %2749
        %v2751 = vsel %vm219, %v2746, %v2748
        %v2752 = vsel %vm219, %v2748, %v2750
        %v2756 = vadd.f32 %v2736, %v2751
        %v2757 = vadd.f32 %v2737, %v2752
        %v2758 = vadd.f32 %v2738, %v2750
        %v2759 = vmul.f32 %v2613, 0.5734201
        %v2760 = vmul.f32 %v2614, 0.5734201
        %2763 = vrot.lane.b32.xlu0 %v2759, 126
        %v2764 = vpop.permute.xlu0 %2763
        %2765 = vrot.lane.b32.xlu0 %v2760, 126
        %v2766 = vpop.permute.xlu0 %2765
        %v2767 = vsel %vm240, %v2764, %v2766
        %v2771 = vadd.f32 %v2756, %v2764
        %v2772 = vadd.f32 %v2757, %v2767
        %v2773 = vadd.f32 %v2758, %v2766
        %v2774 = vmul.f32 %v2673, 0.5734201
        %v2775 = vmul.f32 %v2674, 0.5734201
        %v2776 = vmul.f32 %v2675, 0.5734201
        %2780 = vrot.lane.b32.xlu0 %v2774, 125
        %v2781 = vpop.permute.xlu0 %2780
        %2782 = vrot.lane.b32.xlu0 %v2775, 125
        %v2783 = vpop.permute.xlu0 %2782
        %2784 = vrot.lane.b32.xlu0 %v2776, 125
        %v2785 = vpop.permute.xlu0 %2784
        %v2786 = vsel %vm257, %v2781, %v2783
        %v2787 = vsel %vm257, %v2783, %v2785
        %v2791 = vadd.f32 %v2771, %v2781
        %v2792 = vadd.f32 %v2772, %v2786
        %v2793 = vadd.f32 %v2773, %v2787
        %v2794 = vmul.f32 %v2673, -0.07830155
        %v2795 = vmul.f32 %v2674, -0.07830155
        %v2796 = vmul.f32 %v2675, -0.07830155
        %2800 = vrot.lane.b32.xlu0 %v2794, 124
        %v2801 = vpop.permute.xlu0 %2800
        %2802 = vrot.lane.b32.xlu0 %v2795, 124
        %v2803 = vpop.permute.xlu0 %2802
        %2804 = vrot.lane.b32.xlu0 %v2796, 124
        %v2805 = vpop.permute.xlu0 %2804
        %v2806 = vsel %vm280, %v2801, %v2803
        %v2807 = vsel %vm280, %v2803, %v2805
        %v2811 = vadd.f32 %v2791, %v2801
        %v2812 = vadd.f32 %v2792, %v2806
        %v2813 = vadd.f32 %v2793, %v2807
        %v2814 = vmul.f32 %v2673, 0.004861589
        %v2815 = vmul.f32 %v2674, 0.004861589
        %v2816 = vmul.f32 %v2675, 0.004861589
        %2820 = vrot.lane.b32.xlu0 %v2814, 123
        %v2821 = vpop.permute.xlu0 %2820
        %2822 = vrot.lane.b32.xlu0 %v2815, 123
        %v2823 = vpop.permute.xlu0 %2822
        %2824 = vrot.lane.b32.xlu0 %v2816, 123
        %v2825 = vpop.permute.xlu0 %2824
        %v2826 = vsel %vm301, %v2821, %v2823
        %v2827 = vsel %vm301, %v2823, %v2825
        %v2831 = vadd.f32 %v2811, %v2821
        %v2832 = vadd.f32 %v2812, %v2826
        %v2833 = vadd.f32 %v2813, %v2827
        %2835 = vset.pattern.permute.xlu0 0
        %2836 = vperm.xlu0 %2835, %v1813
        %v2837 = vpop.permute.xlu0 %2836
        %v2839 = vmul.f32 %v2837, %v2733
        %v2840 = vmul.f32 %v2837, %v2734
        %v2841 = vmul.f32 %v2837, %v2735
        %v2842 = vmul.f32 %v2839, %v437
        %v2843 = vmul.f32 %v2840, %v437
        %v2844 = vmul.f32 %v2841, %v437
        %v2845 = vadd.f32 %v2842, 0.5
        %v2846 = vadd.f32 %v2843, 0.5
        %v2847 = vadd.f32 %v2844, 0.5
        %v2848 = vfloor.f32 %v2845
        %v2849 = vfloor.f32 %v2846
        %v2850 = vfloor.f32 %v2847
        %v2851 = vmul.f32 %v2848, 6.2831855
        %v2852 = vmul.f32 %v2849, 6.2831855
        %v2853 = vmul.f32 %v2850, 6.2831855
        %v2854 = vsub.f32 %v2839, %v2851
        %v2855 = vsub.f32 %v2840, %v2852
        %v2856 = vsub.f32 %v2841, %v2853
        %vm2857 = vcmp.gt.f32.partialorder %v2854, 1.5707964
        %vm2858 = vcmp.gt.f32.partialorder %v2855, 1.5707964
        %vm2859 = vcmp.gt.f32.partialorder %v2856, 1.5707964
        %v2860 = vsub.f32 3.1415927, %v2854
        %v2861 = vsub.f32 3.1415927, %v2855
        %v2862 = vsub.f32 3.1415927, %v2856
        %v2863 = vsel %vm2857, %v2860, %v2854
        %v2864 = vsel %vm2858, %v2861, %v2855
        %v2865 = vsel %vm2859, %v2862, %v2856
        %vm2866 = vcmp.lt.f32.partialorder %v2863, -1.5707964
        %vm2867 = vcmp.lt.f32.partialorder %v2864, -1.5707964
        %vm2868 = vcmp.lt.f32.partialorder %v2865, -1.5707964
        %v2869 = vsub.f32 -3.1415927, %v2863
        %v2870 = vsub.f32 -3.1415927, %v2864
        %v2871 = vsub.f32 -3.1415927, %v2865
        %v2872 = vsel %vm2866, %v2869, %v2863
        %v2873 = vsel %vm2867, %v2870, %v2864
        %v2874 = vsel %vm2868, %v2871, %v2865
        %v2875 = vmul.f32 %v2872, %v2872
        %v2876 = vmul.f32 %v2873, %v2873
        %v2877 = vmul.f32 %v2874, %v2874
        %v2878 = vmul.f32 %v2875, 2.7557319e-06
        %v2879 = vmul.f32 %v2876, 2.7557319e-06
        %v2880 = vmul.f32 %v2877, 2.7557319e-06
        %v2881 = vadd.f32 %v2878, -0.0001984127
        %v2882 = vadd.f32 %v2879, -0.0001984127
        %v2883 = vadd.f32 %v2880, -0.0001984127
        %v2884 = vmul.f32 %v2875, %v2881
        %v2885 = vmul.f32 %v2876, %v2882
        %v2886 = vmul.f32 %v2877, %v2883
        %v2887 = vadd.f32 %v2884, 0.008333334
        %v2888 = vadd.f32 %v2885, 0.008333334
        %v2889 = vadd.f32 %v2886, 0.008333334
        %v2890 = vmul.f32 %v2875, %v2887
        %v2891 = vmul.f32 %v2876, %v2888
        %v2892 = vmul.f32 %v2877, %v2889
        %v2893 = vadd.f32 %v2890, -0.16666667
        %v2894 = vadd.f32 %v2891, -0.16666667
        %v2895 = vadd.f32 %v2892, -0.16666667
        %v2896 = vmul.f32 %v2875, %v2893
        %v2897 = vmul.f32 %v2876, %v2894
        %v2898 = vmul.f32 %v2877, %v2895
        %v2899 = vadd.f32 %v2896, 1.0
        %v2900 = vadd.f32 %v2897, 1.0
        %v2901 = vadd.f32 %v2898, 1.0
        %v2902 = vmul.f32 %v2872, %v2899
        %v2903 = vmul.f32 %v2873, %v2900
        %v2904 = vmul.f32 %v2874, %v2901
        %v2905 = vmul.f32 %v2902, %v2902
        %v2906 = vmul.f32 %v2903, %v2903
        %v2907 = vmul.f32 %v2904, %v2904
        %2909 = vset.pattern.permute.xlu0 0
        %2910 = vperm.xlu0 %2909, %v1819
        %v2911 = vpop.permute.xlu0 %2910
        %v2913 = vmul.f32 %v2905, %v2911
        %v2914 = vmul.f32 %v2906, %v2911
        %v2915 = vmul.f32 %v2907, %v2911
        %v2916 = vadd.f32 %v2733, %v2913
        %v2917 = vadd.f32 %v2734, %v2914
        %v2918 = vadd.f32 %v2735, %v2915
        %v2919 = vmul.f32 %v2837, %v2831
        %v2920 = vmul.f32 %v2837, %v2832
        %v2921 = vmul.f32 %v2837, %v2833
        %v2922 = vmul.f32 %v2919, %v437
        %v2923 = vmul.f32 %v2920, %v437
        %v2924 = vmul.f32 %v2921, %v437
        %v2925 = vadd.f32 %v2922, 0.5
        %v2926 = vadd.f32 %v2923, 0.5
        %v2927 = vadd.f32 %v2924, 0.5
        %v2928 = vfloor.f32 %v2925
        %v2929 = vfloor.f32 %v2926
        %v2930 = vfloor.f32 %v2927
        %v2931 = vmul.f32 %v2928, 6.2831855
        %v2932 = vmul.f32 %v2929, 6.2831855
        %v2933 = vmul.f32 %v2930, 6.2831855
        %v2934 = vsub.f32 %v2919, %v2931
        %v2935 = vsub.f32 %v2920, %v2932
        %v2936 = vsub.f32 %v2921, %v2933
        %vm2937 = vcmp.gt.f32.partialorder %v2934, 1.5707964
        %vm2938 = vcmp.gt.f32.partialorder %v2935, 1.5707964
        %vm2939 = vcmp.gt.f32.partialorder %v2936, 1.5707964
        %v2940 = vsub.f32 3.1415927, %v2934
        %v2941 = vsub.f32 3.1415927, %v2935
        %v2942 = vsub.f32 3.1415927, %v2936
        %v2943 = vsel %vm2937, %v2940, %v2934
        %v2944 = vsel %vm2938, %v2941, %v2935
        %v2945 = vsel %vm2939, %v2942, %v2936
        %vm2946 = vcmp.lt.f32.partialorder %v2943, -1.5707964
        %vm2947 = vcmp.lt.f32.partialorder %v2944, -1.5707964
        %vm2948 = vcmp.lt.f32.partialorder %v2945, -1.5707964
        %v2949 = vsub.f32 -3.1415927, %v2943
        %v2950 = vsub.f32 -3.1415927, %v2944
        %v2951 = vsub.f32 -3.1415927, %v2945
        %v2952 = vsel %vm2946, %v2949, %v2943
        %v2953 = vsel %vm2947, %v2950, %v2944
        %v2954 = vsel %vm2948, %v2951, %v2945
        %v2955 = vmul.f32 %v2952, %v2952
        %v2956 = vmul.f32 %v2953, %v2953
        %v2957 = vmul.f32 %v2954, %v2954
        %v2958 = vmul.f32 %v2955, 2.7557319e-06
        %v2959 = vmul.f32 %v2956, 2.7557319e-06
        %v2960 = vmul.f32 %v2957, 2.7557319e-06
        %v2961 = vadd.f32 %v2958, -0.0001984127
        %v2962 = vadd.f32 %v2959, -0.0001984127
        %v2963 = vadd.f32 %v2960, -0.0001984127
        %v2964 = vmul.f32 %v2955, %v2961
        %v2965 = vmul.f32 %v2956, %v2962
        %v2966 = vmul.f32 %v2957, %v2963
        %v2967 = vadd.f32 %v2964, 0.008333334
        %v2968 = vadd.f32 %v2965, 0.008333334
        %v2969 = vadd.f32 %v2966, 0.008333334
        %v2970 = vmul.f32 %v2955, %v2967
        %v2971 = vmul.f32 %v2956, %v2968
        %v2972 = vmul.f32 %v2957, %v2969
        %v2973 = vadd.f32 %v2970, -0.16666667
        %v2974 = vadd.f32 %v2971, -0.16666667
        %v2975 = vadd.f32 %v2972, -0.16666667
        %v2976 = vmul.f32 %v2955, %v2973
        %v2977 = vmul.f32 %v2956, %v2974
        %v2978 = vmul.f32 %v2957, %v2975
        %v2979 = vadd.f32 %v2976, 1.0
        %v2980 = vadd.f32 %v2977, 1.0
        %v2981 = vadd.f32 %v2978, 1.0
        %v2982 = vmul.f32 %v2952, %v2979
        %v2983 = vmul.f32 %v2953, %v2980
        %v2984 = vmul.f32 %v2954, %v2981
        %v2985 = vmul.f32 %v2982, %v2982
        %v2986 = vmul.f32 %v2983, %v2983
        %v2987 = vmul.f32 %v2984, %v2984
        %v2988 = vmul.f32 %v2985, %v2911
        %v2989 = vmul.f32 %v2986, %v2911
        %v2990 = vmul.f32 %v2987, %v2911
        %v2991 = vadd.f32 %v2831, %v2988
        %v2992 = vadd.f32 %v2832, %v2989
        %v2993 = vadd.f32 %v2833, %v2990
        %2997 = vrot.lane.b32.xlu0 %v2916, 3
        %v2998 = vpop.permute.xlu0 %2997
        %2999 = vrot.lane.b32.xlu0 %v2917, 3
        %v3000 = vpop.permute.xlu0 %2999
        %3001 = vrot.lane.b32.xlu0 %v2918, 3
        %v3002 = vpop.permute.xlu0 %3001
        %v3003 = vsel %vm599, %v2998, %v3000
        %v3004 = vsel %vm599, %v3000, %v3002
        %3007 = vst [vmem:[#allocation2 + $0x8] sm:$0xff] %v3003
        %3008 = vst [vmem:[#allocation2 + $0x10] sm:$0xff] %v3004
        %v3009 = vld [vmem:[#allocation2] sm:$0xff]
        %v3010 = vld [vmem:[#allocation2 + $0x8] sm:$0xff]
        %v3011 = vld [vmem:[#allocation2 + $0x10] sm:$0xff]
        %v3012 = vmul.f32 %v3009, 4.5587623e-20
        %v3013 = vmul.f32 %v3010, 4.5587623e-20
        %v3014 = vmul.f32 %v3011, 4.5587623e-20
        %v3015 = vmul.f32 %v3009, -2.9629366e-18
        %v3016 = vmul.f32 %v3010, -2.9629366e-18
        %v3017 = vmul.f32 %v3011, -2.9629366e-18
        %3021 = vrot.lane.b32.xlu0 %v3015, 127
        %v3022 = vpop.permute.xlu0 %3021
        %3023 = vrot.lane.b32.xlu0 %v3016, 127
        %v3024 = vpop.permute.xlu0 %3023
        %3025 = vrot.lane.b32.xlu0 %v3017, 127
        %v3026 = vpop.permute.xlu0 %3025
        %v3027 = vsel %vm219, %v3022, %v3024
        %v3028 = vsel %vm219, %v3024, %v3026
        %v3032 = vadd.f32 %v3012, %v3027
        %v3033 = vadd.f32 %v3013, %v3028
        %v3034 = vadd.f32 %v3014, %v3026
        %v3035 = vmul.f32 %v3009, 1.2717875e-17
        %v3036 = vmul.f32 %v3010, 1.2717875e-17
        %v3037 = vmul.f32 %v3011, 1.2717875e-17
        %3041 = vrot.lane.b32.xlu0 %v3035, 126
        %v3042 = vpop.permute.xlu0 %3041
        %3043 = vrot.lane.b32.xlu0 %v3036, 126
        %v3044 = vpop.permute.xlu0 %3043
        %3045 = vrot.lane.b32.xlu0 %v3037, 126
        %v3046 = vpop.permute.xlu0 %3045
        %v3047 = vsel %vm240, %v3042, %v3044
        %v3048 = vsel %vm240, %v3044, %v3046
        %v3052 = vadd.f32 %v3032, %v3047
        %v3053 = vadd.f32 %v3033, %v3048
        %v3054 = vadd.f32 %v3034, %v3046
        %v3055 = vmul.f32 %v3010, 0.50001985
        %v3056 = vmul.f32 %v3011, 0.50001985
        %3059 = vrot.lane.b32.xlu0 %v3055, 125
        %v3060 = vpop.permute.xlu0 %3059
        %3061 = vrot.lane.b32.xlu0 %v3056, 125
        %v3062 = vpop.permute.xlu0 %3061
        %v3063 = vsel %vm257, %v3060, %v3062
        %v3067 = vadd.f32 %v3052, %v3060
        %v3068 = vadd.f32 %v3053, %v3063
        %v3069 = vadd.f32 %v3054, %v3062
        %v3070 = vld [vmem:[#allocation2 + $0x8] sm:$0xff]
        %v3071 = vld [vmem:[#allocation2 + $0x10] sm:$0xff]
        %v3072 = vld [vmem:[#allocation2 + $0x18] sm:$0xff]
        %v3073 = vmul.f32 %v3070, 1.2717875e-17
        %v3074 = vmul.f32 %v3071, 1.2717875e-17
        %v3075 = vmul.f32 %v3072, 1.2717875e-17
        %3079 = vrot.lane.b32.xlu0 %v3073, 124
        %v3080 = vpop.permute.xlu0 %3079
        %3081 = vrot.lane.b32.xlu0 %v3074, 124
        %v3082 = vpop.permute.xlu0 %3081
        %3083 = vrot.lane.b32.xlu0 %v3075, 124
        %v3084 = vpop.permute.xlu0 %3083
        %v3085 = vsel %vm280, %v3080, %v3082
        %v3086 = vsel %vm280, %v3082, %v3084
        %v3090 = vadd.f32 %v3067, %v3080
        %v3091 = vadd.f32 %v3068, %v3085
        %v3092 = vadd.f32 %v3069, %v3086
        %v3093 = vmul.f32 %v3070, -2.9629366e-18
        %v3094 = vmul.f32 %v3071, -2.9629366e-18
        %v3095 = vmul.f32 %v3072, -2.9629366e-18
        %3099 = vrot.lane.b32.xlu0 %v3093, 123
        %v3100 = vpop.permute.xlu0 %3099
        %3101 = vrot.lane.b32.xlu0 %v3094, 123
        %v3102 = vpop.permute.xlu0 %3101
        %3103 = vrot.lane.b32.xlu0 %v3095, 123
        %v3104 = vpop.permute.xlu0 %3103
        %v3105 = vsel %vm301, %v3100, %v3102
        %v3106 = vsel %vm301, %v3102, %v3104
        %v3110 = vadd.f32 %v3090, %v3100
        %v3111 = vadd.f32 %v3091, %v3105
        %v3112 = vadd.f32 %v3092, %v3106
        %v3113 = vmul.f32 %v3070, 4.5587623e-20
        %v3114 = vmul.f32 %v3071, 4.5587623e-20
        %v3115 = vmul.f32 %v3072, 4.5587623e-20
        %3119 = vrot.lane.b32.xlu0 %v3113, 122
        %v3120 = vpop.permute.xlu0 %3119
        %3121 = vrot.lane.b32.xlu0 %v3114, 122
        %v3122 = vpop.permute.xlu0 %3121
        %3123 = vrot.lane.b32.xlu0 %v3115, 122
        %v3124 = vpop.permute.xlu0 %3123
        %v3125 = vsel %vm322, %v3120, %v3122
        %v3126 = vsel %vm322, %v3122, %v3124
        %v3130 = vadd.f32 %v3110, %v3120
        %v3131 = vadd.f32 %v3111, %v3125
        %v3132 = vadd.f32 %v3112, %v3126
        %3136 = vrot.lane.b32.xlu0 %v2991, 2
        %v3137 = vpop.permute.xlu0 %3136
        %3138 = vrot.lane.b32.xlu0 %v2992, 2
        %v3139 = vpop.permute.xlu0 %3138
        %3140 = vrot.lane.b32.xlu0 %v2993, 2
        %v3141 = vpop.permute.xlu0 %3140
        %v3142 = vsel %vm739, %v3137, %v3139
        %v3143 = vsel %vm739, %v3139, %v3141
        %3146 = vst [vmem:[#allocation2 + $0x8] sm:$0xff] %v3142
        %3147 = vst [vmem:[#allocation2 + $0x10] sm:$0xff] %v3143
        %v3148 = vld [vmem:[#allocation2] sm:$0xff]
        %v3149 = vld [vmem:[#allocation2 + $0x8] sm:$0xff]
        %v3150 = vld [vmem:[#allocation2 + $0x10] sm:$0xff]
        %v3151 = vmul.f32 %v3148, 0.0024307945
        %v3152 = vmul.f32 %v3149, 0.0024307945
        %v3153 = vmul.f32 %v3150, 0.0024307945
        %v3154 = vmul.f32 %v3148, -0.039150774
        %v3155 = vmul.f32 %v3149, -0.039150774
        %v3156 = vmul.f32 %v3150, -0.039150774
        %3160 = vrot.lane.b32.xlu0 %v3154, 127
        %v3161 = vpop.permute.xlu0 %3160
        %3162 = vrot.lane.b32.xlu0 %v3155, 127
        %v3163 = vpop.permute.xlu0 %3162
        %3164 = vrot.lane.b32.xlu0 %v3156, 127
        %v3165 = vpop.permute.xlu0 %3164
        %v3166 = vsel %vm219, %v3161, %v3163
        %v3167 = vsel %vm219, %v3163, %v3165
        %v3171 = vadd.f32 %v3151, %v3166
        %v3172 = vadd.f32 %v3152, %v3167
        %v3173 = vadd.f32 %v3153, %v3165
        %v3174 = vmul.f32 %v3148, 0.28671005
        %v3175 = vmul.f32 %v3149, 0.28671005
        %v3176 = vmul.f32 %v3150, 0.28671005
        %3180 = vrot.lane.b32.xlu0 %v3174, 126
        %v3181 = vpop.permute.xlu0 %3180
        %3182 = vrot.lane.b32.xlu0 %v3175, 126
        %v3183 = vpop.permute.xlu0 %3182
        %3184 = vrot.lane.b32.xlu0 %v3176, 126
        %v3185 = vpop.permute.xlu0 %3184
        %v3186 = vsel %vm240, %v3181, %v3183
        %v3187 = vsel %vm240, %v3183, %v3185
        %v3191 = vadd.f32 %v3171, %v3186
        %v3192 = vadd.f32 %v3172, %v3187
        %v3193 = vadd.f32 %v3173, %v3185
        %3194 = vrot.lane.b32.xlu0 %v3175, 125
        %v3195 = vpop.permute.xlu0 %3194
        %3196 = vrot.lane.b32.xlu0 %v3176, 125
        %v3197 = vpop.permute.xlu0 %3196
        %v3198 = vsel %vm257, %v3195, %v3197
        %v3202 = vadd.f32 %v3191, %v3195
        %v3203 = vadd.f32 %v3192, %v3198
        %v3204 = vadd.f32 %v3193, %v3197
        %v3205 = vld [vmem:[#allocation2 + $0x8] sm:$0xff]
        %v3206 = vld [vmem:[#allocation2 + $0x10] sm:$0xff]
        %v3207 = vld [vmem:[#allocation2 + $0x18] sm:$0xff]
        %v3208 = vmul.f32 %v3205, -0.039150774
        %v3209 = vmul.f32 %v3206, -0.039150774
        %v3210 = vmul.f32 %v3207, -0.039150774
        %3214 = vrot.lane.b32.xlu0 %v3208, 124
        %v3215 = vpop.permute.xlu0 %3214
        %3216 = vrot.lane.b32.xlu0 %v3209, 124
        %v3217 = vpop.permute.xlu0 %3216
        %3218 = vrot.lane.b32.xlu0 %v3210, 124
        %v3219 = vpop.permute.xlu0 %3218
        %v3220 = vsel %vm280, %v3215, %v3217
        %v3221 = vsel %vm280, %v3217, %v3219
        %v3225 = vadd.f32 %v3202, %v3215
        %v3226 = vadd.f32 %v3203, %v3220
        %v3227 = vadd.f32 %v3204, %v3221
        %v3228 = vmul.f32 %v3205, 0.0024307945
        %v3229 = vmul.f32 %v3206, 0.0024307945
        %v3230 = vmul.f32 %v3207, 0.0024307945
        %3234 = vrot.lane.b32.xlu0 %v3228, 123
        %v3235 = vpop.permute.xlu0 %3234
        %3236 = vrot.lane.b32.xlu0 %v3229, 123
        %v3237 = vpop.permute.xlu0 %3236
        %3238 = vrot.lane.b32.xlu0 %v3230, 123
        %v3239 = vpop.permute.xlu0 %3238
        %v3240 = vsel %vm301, %v3235, %v3237
        %v3241 = vsel %vm301, %v3237, %v3239
        %v3245 = vadd.f32 %v3225, %v3235
        %v3246 = vadd.f32 %v3226, %v3240
        %v3247 = vadd.f32 %v3227, %v3241
        %v3248 = vadd.f32 %v3130, %v3245
        %v3249 = vadd.f32 %v3131, %v3246
        %v3250 = vadd.f32 %v3132, %v3247
        %3254 = vrot.lane.b32.xlu0 %v3248, 3
        %v3255 = vpop.permute.xlu0 %3254
        %3256 = vrot.lane.b32.xlu0 %v3249, 3
        %v3257 = vpop.permute.xlu0 %3256
        %3258 = vrot.lane.b32.xlu0 %v3250, 3
        %v3259 = vpop.permute.xlu0 %3258
        %v3260 = vsel %vm599, %v3255, %v3257
        %v3261 = vsel %vm599, %v3257, %v3259
        %3264 = vst [vmem:[#allocation2 + $0x8] sm:$0xff] %v3260
        %3265 = vst [vmem:[#allocation2 + $0x10] sm:$0xff] %v3261
        %v3266 = vld [vmem:[#allocation2] sm:$0xff]
        %v3267 = vld [vmem:[#allocation2 + $0x8] sm:$0xff]
        %v3268 = vld [vmem:[#allocation2 + $0x10] sm:$0xff]
        %v3269 = vld [vmem:[#allocation2 + $0x8] sm:$0xff]
        %v3270 = vld [vmem:[#allocation2 + $0x10] sm:$0xff]
        %v3271 = vld [vmem:[#allocation2 + $0x18] sm:$0xff]
        %3274 = vrot.lane.b32.xlu0 %v3267, 127
        %v3275 = vpop.permute.xlu0 %3274
        %3276 = vrot.lane.b32.xlu0 %v3268, 127
        %v3277 = vpop.permute.xlu0 %3276
        %v3278 = vsel %vm219, %v3275, %v3277
        %3282 = vrot.lane.b32.xlu0 %v3269, 126
        %v3283 = vpop.permute.xlu0 %3282
        %3284 = vrot.lane.b32.xlu0 %v3270, 126
        %v3285 = vpop.permute.xlu0 %3284
        %3286 = vrot.lane.b32.xlu0 %v3271, 126
        %v3287 = vpop.permute.xlu0 %3286
        %v3288 = vsel %vm240, %v3283, %v3285
        %v3289 = vsel %vm240, %v3285, %v3287
        %3291 = vset.pattern.permute.xlu0 0
        %3292 = vperm.xlu0 %3291, %v1799
        %v3293 = vpop.permute.xlu0 %3292
        %3296 = vrot.lane.b32.xlu0 %v3266, 1
        %v3297 = vpop.permute.xlu0 %3296
        %3298 = vrot.lane.b32.xlu0 %v3267, 1
        %v3299 = vpop.permute.xlu0 %3298
        %3300 = vrot.lane.b32.xlu0 %v3268, 1
        %v3301 = vpop.permute.xlu0 %3300
        %3302 = vrot.lane.b32.xlu0 %v3275, 1
        %v3303 = vpop.permute.xlu0 %3302
        %3304 = vrot.lane.b32.xlu0 %v3278, 1
        %v3305 = vpop.permute.xlu0 %3304
        %3306 = vrot.lane.b32.xlu0 %v3277, 1
        %v3307 = vpop.permute.xlu0 %3306
        %3308 = vrot.lane.b32.xlu0 %v3283, 1
        %v3309 = vpop.permute.xlu0 %3308
        %3310 = vrot.lane.b32.xlu0 %v3288, 1
        %v3311 = vpop.permute.xlu0 %3310
        %3312 = vrot.lane.b32.xlu0 %v3289, 1
        %v3313 = vpop.permute.xlu0 %3312
        %v3314 = vsel %vm912, %v3297, %v3299
        %v3315 = vsel %vm912, %v3299, %v3301
        %v3316 = vsel %vm912, %v3303, %v3305
        %v3317 = vsel %vm912, %v3305, %v3307
        %v3318 = vsel %vm912, %v3309, %v3311
        %v3319 = vsel %vm912, %v3311, %v3313
        %v3327 = vsel %vm925, %v1795, 0
        %3329 = vmatprep.subr.mxu0 %v3315
        %3330 = vmatpush1.msra.mxu0 %v3314
        %3331 = vmatprep.subr.mxu0 %v3317
        %3332 = vmatpush1.msra.mxu0 %v3316
        %3333 = vmatprep.subr.mxu0 %v3319
        %3334 = vmatpush1.msra.mxu0 %v3318
        %3335 = vmatprep.subr.mxu0 0.0
        %3336 = vmatpush1.msra.mxu0 0.0
        %3337 = vmatprep.subr.mxu0 0.0
        %3338 = vmatpush1.msra.mxu0 0.0
        %3339 = vmatprep.subr.mxu0 0.0
        %3340 = vmatpush1.msra.mxu0 0.0
        %3341 = vmatprep.subr.mxu0 0.0
        %3342 = vmatpush1.msra.mxu0 0.0
        %3343 = vmatprep.subr.mxu0 0.0
        %3344 = vmatpush1.msra.mxu0 0.0
        %3345 = vmatprep.subr.mxu0 0.0
        %3346 = vmatpush1.msra.mxu0 0.0
        %3347 = vmatprep.subr.mxu0 0.0
        %3348 = vmatpush1.msra.mxu0 0.0
        %3349 = vmatprep.subr.mxu0 0.0
        %3350 = vmatpush1.msra.mxu0 0.0
        %3351 = vmatprep.subr.mxu0 0.0
        %3352 = vmatpush1.msra.mxu0 0.0
        %3353 = vmatprep.subr.mxu0 0.0
        %3354 = vmatpush1.msra.mxu0 0.0
        %3355 = vmatprep.subr.mxu0 0.0
        %3356 = vmatpush1.msra.mxu0 0.0
        %3357 = vmatprep.subr.mxu0 0.0
        %3358 = vmatpush1.msra.mxu0 0.0
        %3359 = vmatprep.subr.mxu0 0.0
        %3360 = vmatpush1.msra.mxu0 0.0
        %3361 = vmatprep.subr.mxu0 0.0
        %3362 = vmatpush1.msra.mxu0 0.0
        %3363 = vmatprep.subr.mxu0 0.0
        %3364 = vmatpush1.msra.mxu0 0.0
        %3365 = vmatprep.subr.mxu0 0.0
        %3366 = vmatpush1.msra.mxu0 0.0
        %3367 = vmatprep.subr.mxu0 0.0
        %3368 = vmatpush1.msra.mxu0 0.0
        %3369 = vmatprep.subr.mxu0 0.0
        %3370 = vmatpush1.msra.mxu0 0.0
        %3371 = vmatprep.subr.mxu0 0.0
        %3372 = vmatpush1.msra.mxu0 0.0
        %3373 = vmatprep.subr.mxu0 0.0
        %3374 = vmatpush1.msra.mxu0 0.0
        %3375 = vmatprep.subr.mxu0 0.0
        %3376 = vmatpush1.msra.mxu0 0.0
        %3377 = vmatprep.subr.mxu0 0.0
        %3378 = vmatpush1.msra.mxu0 0.0
        %3379 = vmatprep.subr.mxu0 0.0
        %3380 = vmatpush1.msra.mxu0 0.0
        %3381 = vmatprep.subr.mxu0 0.0
        %3382 = vmatpush1.msra.mxu0 0.0
        %3383 = vmatprep.subr.mxu0 0.0
        %3384 = vmatpush1.msra.mxu0 0.0
        %3385 = vmatprep.subr.mxu0 0.0
        %3386 = vmatpush1.msra.mxu0 0.0
        %3387 = vmatprep.subr.mxu0 0.0
        %3388 = vmatpush1.msra.mxu0 0.0
        %3389 = vmatprep.subr.mxu0 0.0
        %3390 = vmatpush1.msra.mxu0 0.0
        %3391 = vmatprep.subr.mxu0 0.0
        %3392 = vmatpush1.msra.mxu0 0.0
        %3393 = vmatprep.mubr.f32.mxu0 0.0
        %3394 = vmatmul.mubr.f32.gmra.mrb[0].mxu0 %v3327
        %v3395 = vpop.f32.mrb[0].mxu0
        %v3396 = vadd.f32 %v3293, %v3395
        %v3397 = vpop.f32.mrb[0].mxu0
        %v3398 = vadd.f32 %v3293, %v3397
        %3399 = vdwg.mxu0
        %v3400 = vadd.f32 %v1790, %v3396
        %v3401 = vadd.f32 %v1791, %v3398
        %s3402 = scalar_lea.vmem %s1, 32
        %v3403 = vld [vmem:[%s3402] sm:$0xff]
        %s3404 = scalar_lea.vmem %s1, 40
        %v3405 = vld [vmem:[%s3404] sm:$0xff]
        %s3406 = scalar_lea.vmem %s2, 96
        %v3407 = vld [vmem:[%s3406] sm:$0xff]
        %s3408 = scalar_lea.vmem %s2, 104
        %v3409 = vld [vmem:[%s3408] sm:$0xff]
        %s3410 = scalar_lea.vmem %s2, 112
        %v3411 = vld [vmem:[%s3410] sm:$0xff]
        %v3412 = vmul.f32 %v3411, 1.442695
        %v3413 = vpow.pop %v3412
        %s3414 = scalar_lea.vmem %s2, 120
        %v3415 = vld [vmem:[%s3414] sm:$0xff]
        %v3416 = vmul.f32 %v3415, 1.442695
        %v3417 = vpow.pop %v3416
        %v3418 = vadd.f32 %v3417, 1e-09
        %v3419 = vrcp.pop %v3418
        %s3420 = scalar_lea.vmem %s2, 128
        %v3421 = vld [vmem:[%s3420] sm:$0xff]
        %v3422 = vmul.f32 %v3421, 1.442695
        %v3423 = vpow.pop %v3422
        %s3424 = scalar_lea.vmem %s2, 136
        %v3425 = vld [vmem:[%s3424] sm:$0xff]
        %v3426 = vmul.f32 %v3425, 1.442695
        %v3427 = vpow.pop %v3426
        %v3428 = vadd.f32 %v3427, 1e-09
        %v3429 = vrcp.pop %v3428
        %3430 = vst [vmem:[#allocation2 + $0x8] sm:$0xff] %v3400
        %3431 = vst [vmem:[#allocation2 + $0x10] sm:$0xff] %v3401
        %v3432 = vld [vmem:[#allocation2] sm:$0xff]
        %v3433 = vld [vmem:[#allocation2 + $0x8] sm:$0xff]
        %v3434 = vld [vmem:[#allocation2 + $0x10] sm:$0xff]
        %v3435 = vmul.f32 %v3432, 9.1175246e-20
        %v3436 = vmul.f32 %v3433, 9.1175246e-20
        %v3437 = vmul.f32 %v3434, 9.1175246e-20
        %v3438 = vmul.f32 %v3432, -5.925873e-18
        %v3439 = vmul.f32 %v3433, -5.925873e-18
        %v3440 = vmul.f32 %v3434, -5.925873e-18
        %3444 = vrot.lane.b32.xlu0 %v3438, 127
        %v3445 = vpop.permute.xlu0 %3444
        %3446 = vrot.lane.b32.xlu0 %v3439, 127
        %v3447 = vpop.permute.xlu0 %3446
        %3448 = vrot.lane.b32.xlu0 %v3440, 127
        %v3449 = vpop.permute.xlu0 %3448
        %v3450 = vsel %vm219, %v3445, %v3447
        %v3451 = vsel %vm219, %v3447, %v3449
        %v3455 = vadd.f32 %v3435, %v3450
        %v3456 = vadd.f32 %v3436, %v3451
        %v3457 = vadd.f32 %v3437, %v3449
        %v3458 = vmul.f32 %v3432, 2.543575e-17
        %v3459 = vmul.f32 %v3433, 2.543575e-17
        %v3460 = vmul.f32 %v3434, 2.543575e-17
        %3464 = vrot.lane.b32.xlu0 %v3458, 126
        %v3465 = vpop.permute.xlu0 %3464
        %3466 = vrot.lane.b32.xlu0 %v3459, 126
        %v3467 = vpop.permute.xlu0 %3466
        %3468 = vrot.lane.b32.xlu0 %v3460, 126
        %v3469 = vpop.permute.xlu0 %3468
        %v3470 = vsel %vm240, %v3465, %v3467
        %v3471 = vsel %vm240, %v3467, %v3469
        %v3475 = vadd.f32 %v3455, %v3470
        %v3476 = vadd.f32 %v3456, %v3471
        %v3477 = vadd.f32 %v3457, %v3469
        %v3478 = vmul.f32 %v3433, 1.0000397
        %v3479 = vmul.f32 %v3434, 1.0000397
        %3482 = vrot.lane.b32.xlu0 %v3478, 125
        %v3483 = vpop.permute.xlu0 %3482
        %3484 = vrot.lane.b32.xlu0 %v3479, 125
        %v3485 = vpop.permute.xlu0 %3484
        %v3486 = vsel %vm257, %v3483, %v3485
        %v3490 = vadd.f32 %v3475, %v3483
        %v3491 = vadd.f32 %v3476, %v3486
        %v3492 = vadd.f32 %v3477, %v3485
        %v3493 = vld [vmem:[#allocation2 + $0x8] sm:$0xff]
        %v3494 = vld [vmem:[#allocation2 + $0x10] sm:$0xff]
        %v3495 = vld [vmem:[#allocation2 + $0x18] sm:$0xff]
        %v3496 = vmul.f32 %v3493, 2.543575e-17
        %v3497 = vmul.f32 %v3494, 2.543575e-17
        %v3498 = vmul.f32 %v3495, 2.543575e-17
        %3502 = vrot.lane.b32.xlu0 %v3496, 124
        %v3503 = vpop.permute.xlu0 %3502
        %3504 = vrot.lane.b32.xlu0 %v3497, 124
        %v3505 = vpop.permute.xlu0 %3504
        %3506 = vrot.lane.b32.xlu0 %v3498, 124
        %v3507 = vpop.permute.xlu0 %3506
        %v3508 = vsel %vm280, %v3503, %v3505
        %v3509 = vsel %vm280, %v3505, %v3507
        %v3513 = vadd.f32 %v3490, %v3503
        %v3514 = vadd.f32 %v3491, %v3508
        %v3515 = vadd.f32 %v3492, %v3509
        %v3516 = vmul.f32 %v3493, -5.925873e-18
        %v3517 = vmul.f32 %v3494, -5.925873e-18
        %v3518 = vmul.f32 %v3495, -5.925873e-18
        %3522 = vrot.lane.b32.xlu0 %v3516, 123
        %v3523 = vpop.permute.xlu0 %3522
        %3524 = vrot.lane.b32.xlu0 %v3517, 123
        %v3525 = vpop.permute.xlu0 %3524
        %3526 = vrot.lane.b32.xlu0 %v3518, 123
        %v3527 = vpop.permute.xlu0 %3526
        %v3528 = vsel %vm301, %v3523, %v3525
        %v3529 = vsel %vm301, %v3525, %v3527
        %v3533 = vadd.f32 %v3513, %v3523
        %v3534 = vadd.f32 %v3514, %v3528
        %v3535 = vadd.f32 %v3515, %v3529
        %v3536 = vmul.f32 %v3493, 9.1175246e-20
        %v3537 = vmul.f32 %v3494, 9.1175246e-20
        %v3538 = vmul.f32 %v3495, 9.1175246e-20
        %3542 = vrot.lane.b32.xlu0 %v3536, 122
        %v3543 = vpop.permute.xlu0 %3542
        %3544 = vrot.lane.b32.xlu0 %v3537, 122
        %v3545 = vpop.permute.xlu0 %3544
        %3546 = vrot.lane.b32.xlu0 %v3538, 122
        %v3547 = vpop.permute.xlu0 %3546
        %v3548 = vsel %vm322, %v3543, %v3545
        %v3549 = vsel %vm322, %v3545, %v3547
        %v3553 = vadd.f32 %v3533, %v3543
        %v3554 = vadd.f32 %v3534, %v3548
        %v3555 = vadd.f32 %v3535, %v3549
        %v3556 = vmul.f32 %v3432, 0.004861589
        %v3557 = vmul.f32 %v3433, 0.004861589
        %v3558 = vmul.f32 %v3434, 0.004861589
        %v3559 = vmul.f32 %v3432, -0.07830155
        %v3560 = vmul.f32 %v3433, -0.07830155
        %v3561 = vmul.f32 %v3434, -0.07830155
        %3565 = vrot.lane.b32.xlu0 %v3559, 127
        %v3566 = vpop.permute.xlu0 %3565
        %3567 = vrot.lane.b32.xlu0 %v3560, 127
        %v3568 = vpop.permute.xlu0 %3567
        %3569 = vrot.lane.b32.xlu0 %v3561, 127
        %v3570 = vpop.permute.xlu0 %3569
        %v3571 = vsel %vm219, %v3566, %v3568
        %v3572 = vsel %vm219, %v3568, %v3570
        %v3576 = vadd.f32 %v3556, %v3571
        %v3577 = vadd.f32 %v3557, %v3572
        %v3578 = vadd.f32 %v3558, %v3570
        %v3579 = vmul.f32 %v3433, 0.5734201
        %v3580 = vmul.f32 %v3434, 0.5734201
        %3583 = vrot.lane.b32.xlu0 %v3579, 126
        %v3584 = vpop.permute.xlu0 %3583
        %3585 = vrot.lane.b32.xlu0 %v3580, 126
        %v3586 = vpop.permute.xlu0 %3585
        %v3587 = vsel %vm240, %v3584, %v3586
        %v3591 = vadd.f32 %v3576, %v3584
        %v3592 = vadd.f32 %v3577, %v3587
        %v3593 = vadd.f32 %v3578, %v3586
        %v3594 = vmul.f32 %v3493, 0.5734201
        %v3595 = vmul.f32 %v3494, 0.5734201
        %v3596 = vmul.f32 %v3495, 0.5734201
        %3600 = vrot.lane.b32.xlu0 %v3594, 125
        %v3601 = vpop.permute.xlu0 %3600
        %3602 = vrot.lane.b32.xlu0 %v3595, 125
        %v3603 = vpop.permute.xlu0 %3602
        %3604 = vrot.lane.b32.xlu0 %v3596, 125
        %v3605 = vpop.permute.xlu0 %3604
        %v3606 = vsel %vm257, %v3601, %v3603
        %v3607 = vsel %vm257, %v3603, %v3605
        %v3611 = vadd.f32 %v3591, %v3601
        %v3612 = vadd.f32 %v3592, %v3606
        %v3613 = vadd.f32 %v3593, %v3607
        %v3614 = vmul.f32 %v3493, -0.07830155
        %v3615 = vmul.f32 %v3494, -0.07830155
        %v3616 = vmul.f32 %v3495, -0.07830155
        %3620 = vrot.lane.b32.xlu0 %v3614, 124
        %v3621 = vpop.permute.xlu0 %3620
        %3622 = vrot.lane.b32.xlu0 %v3615, 124
        %v3623 = vpop.permute.xlu0 %3622
        %3624 = vrot.lane.b32.xlu0 %v3616, 124
        %v3625 = vpop.permute.xlu0 %3624
        %v3626 = vsel %vm280, %v3621, %v3623
        %v3627 = vsel %vm280, %v3623, %v3625
        %v3631 = vadd.f32 %v3611, %v3621
        %v3632 = vadd.f32 %v3612, %v3626
        %v3633 = vadd.f32 %v3613, %v3627
        %v3634 = vmul.f32 %v3493, 0.004861589
        %v3635 = vmul.f32 %v3494, 0.004861589
        %v3636 = vmul.f32 %v3495, 0.004861589
        %3640 = vrot.lane.b32.xlu0 %v3634, 123
        %v3641 = vpop.permute.xlu0 %3640
        %3642 = vrot.lane.b32.xlu0 %v3635, 123
        %v3643 = vpop.permute.xlu0 %3642
        %3644 = vrot.lane.b32.xlu0 %v3636, 123
        %v3645 = vpop.permute.xlu0 %3644
        %v3646 = vsel %vm301, %v3641, %v3643
        %v3647 = vsel %vm301, %v3643, %v3645
        %v3651 = vadd.f32 %v3631, %v3641
        %v3652 = vadd.f32 %v3632, %v3646
        %v3653 = vadd.f32 %v3633, %v3647
        %3655 = vset.pattern.permute.xlu0 0
        %3656 = vperm.xlu0 %3655, %v3413
        %v3657 = vpop.permute.xlu0 %3656
        %v3659 = vmul.f32 %v3657, %v3553
        %v3660 = vmul.f32 %v3657, %v3554
        %v3661 = vmul.f32 %v3657, %v3555
        %v3662 = vmul.f32 %v3659, %v437
        %v3663 = vmul.f32 %v3660, %v437
        %v3664 = vmul.f32 %v3661, %v437
        %v3665 = vadd.f32 %v3662, 0.5
        %v3666 = vadd.f32 %v3663, 0.5
        %v3667 = vadd.f32 %v3664, 0.5
        %v3668 = vfloor.f32 %v3665
        %v3669 = vfloor.f32 %v3666
        %v3670 = vfloor.f32 %v3667
        %v3671 = vmul.f32 %v3668, 6.2831855
        %v3672 = vmul.f32 %v3669, 6.2831855
        %v3673 = vmul.f32 %v3670, 6.2831855
        %v3674 = vsub.f32 %v3659, %v3671
        %v3675 = vsub.f32 %v3660, %v3672
        %v3676 = vsub.f32 %v3661, %v3673
        %vm3677 = vcmp.gt.f32.partialorder %v3674, 1.5707964
        %vm3678 = vcmp.gt.f32.partialorder %v3675, 1.5707964
        %vm3679 = vcmp.gt.f32.partialorder %v3676, 1.5707964
        %v3680 = vsub.f32 3.1415927, %v3674
        %v3681 = vsub.f32 3.1415927, %v3675
        %v3682 = vsub.f32 3.1415927, %v3676
        %v3683 = vsel %vm3677, %v3680, %v3674
        %v3684 = vsel %vm3678, %v3681, %v3675
        %v3685 = vsel %vm3679, %v3682, %v3676
        %vm3686 = vcmp.lt.f32.partialorder %v3683, -1.5707964
        %vm3687 = vcmp.lt.f32.partialorder %v3684, -1.5707964
        %vm3688 = vcmp.lt.f32.partialorder %v3685, -1.5707964
        %v3689 = vsub.f32 -3.1415927, %v3683
        %v3690 = vsub.f32 -3.1415927, %v3684
        %v3691 = vsub.f32 -3.1415927, %v3685
        %v3692 = vsel %vm3686, %v3689, %v3683
        %v3693 = vsel %vm3687, %v3690, %v3684
        %v3694 = vsel %vm3688, %v3691, %v3685
        %v3695 = vmul.f32 %v3692, %v3692
        %v3696 = vmul.f32 %v3693, %v3693
        %v3697 = vmul.f32 %v3694, %v3694
        %v3698 = vmul.f32 %v3695, 2.7557319e-06
        %v3699 = vmul.f32 %v3696, 2.7557319e-06
        %v3700 = vmul.f32 %v3697, 2.7557319e-06
        %v3701 = vadd.f32 %v3698, -0.0001984127
        %v3702 = vadd.f32 %v3699, -0.0001984127
        %v3703 = vadd.f32 %v3700, -0.0001984127
        %v3704 = vmul.f32 %v3695, %v3701
        %v3705 = vmul.f32 %v3696, %v3702
        %v3706 = vmul.f32 %v3697, %v3703
        %v3707 = vadd.f32 %v3704, 0.008333334
        %v3708 = vadd.f32 %v3705, 0.008333334
        %v3709 = vadd.f32 %v3706, 0.008333334
        %v3710 = vmul.f32 %v3695, %v3707
        %v3711 = vmul.f32 %v3696, %v3708
        %v3712 = vmul.f32 %v3697, %v3709
        %v3713 = vadd.f32 %v3710, -0.16666667
        %v3714 = vadd.f32 %v3711, -0.16666667
        %v3715 = vadd.f32 %v3712, -0.16666667
        %v3716 = vmul.f32 %v3695, %v3713
        %v3717 = vmul.f32 %v3696, %v3714
        %v3718 = vmul.f32 %v3697, %v3715
        %v3719 = vadd.f32 %v3716, 1.0
        %v3720 = vadd.f32 %v3717, 1.0
        %v3721 = vadd.f32 %v3718, 1.0
        %v3722 = vmul.f32 %v3692, %v3719
        %v3723 = vmul.f32 %v3693, %v3720
        %v3724 = vmul.f32 %v3694, %v3721
        %v3725 = vmul.f32 %v3722, %v3722
        %v3726 = vmul.f32 %v3723, %v3723
        %v3727 = vmul.f32 %v3724, %v3724
        %3729 = vset.pattern.permute.xlu0 0
        %3730 = vperm.xlu0 %3729, %v3419
        %v3731 = vpop.permute.xlu0 %3730
        %v3733 = vmul.f32 %v3725, %v3731
        %v3734 = vmul.f32 %v3726, %v3731
        %v3735 = vmul.f32 %v3727, %v3731
        %v3736 = vadd.f32 %v3553, %v3733
        %v3737 = vadd.f32 %v3554, %v3734
        %v3738 = vadd.f32 %v3555, %v3735
        %v3739 = vmul.f32 %v3657, %v3651
        %v3740 = vmul.f32 %v3657, %v3652
        %v3741 = vmul.f32 %v3657, %v3653
        %v3742 = vmul.f32 %v3739, %v437
        %v3743 = vmul.f32 %v3740, %v437
        %v3744 = vmul.f32 %v3741, %v437
        %v3745 = vadd.f32 %v3742, 0.5
        %v3746 = vadd.f32 %v3743, 0.5
        %v3747 = vadd.f32 %v3744, 0.5
        %v3748 = vfloor.f32 %v3745
        %v3749 = vfloor.f32 %v3746
        %v3750 = vfloor.f32 %v3747
        %v3751 = vmul.f32 %v3748, 6.2831855
        %v3752 = vmul.f32 %v3749, 6.2831855
        %v3753 = vmul.f32 %v3750, 6.2831855
        %v3754 = vsub.f32 %v3739, %v3751
        %v3755 = vsub.f32 %v3740, %v3752
        %v3756 = vsub.f32 %v3741, %v3753
        %vm3757 = vcmp.gt.f32.partialorder %v3754, 1.5707964
        %vm3758 = vcmp.gt.f32.partialorder %v3755, 1.5707964
        %vm3759 = vcmp.gt.f32.partialorder %v3756, 1.5707964
        %v3760 = vsub.f32 3.1415927, %v3754
        %v3761 = vsub.f32 3.1415927, %v3755
        %v3762 = vsub.f32 3.1415927, %v3756
        %v3763 = vsel %vm3757, %v3760, %v3754
        %v3764 = vsel %vm3758, %v3761, %v3755
        %v3765 = vsel %vm3759, %v3762, %v3756
        %vm3766 = vcmp.lt.f32.partialorder %v3763, -1.5707964
        %vm3767 = vcmp.lt.f32.partialorder %v3764, -1.5707964
        %vm3768 = vcmp.lt.f32.partialorder %v3765, -1.5707964
        %v3769 = vsub.f32 -3.1415927, %v3763
        %v3770 = vsub.f32 -3.1415927, %v3764
        %v3771 = vsub.f32 -3.1415927, %v3765
        %v3772 = vsel %vm3766, %v3769, %v3763
        %v3773 = vsel %vm3767, %v3770, %v3764
        %v3774 = vsel %vm3768, %v3771, %v3765
        %v3775 = vmul.f32 %v3772, %v3772
        %v3776 = vmul.f32 %v3773, %v3773
        %v3777 = vmul.f32 %v3774, %v3774
        %v3778 = vmul.f32 %v3775, 2.7557319e-06
        %v3779 = vmul.f32 %v3776, 2.7557319e-06
        %v3780 = vmul.f32 %v3777, 2.7557319e-06
        %v3781 = vadd.f32 %v3778, -0.0001984127
        %v3782 = vadd.f32 %v3779, -0.0001984127
        %v3783 = vadd.f32 %v3780, -0.0001984127
        %v3784 = vmul.f32 %v3775, %v3781
        %v3785 = vmul.f32 %v3776, %v3782
        %v3786 = vmul.f32 %v3777, %v3783
        %v3787 = vadd.f32 %v3784, 0.008333334
        %v3788 = vadd.f32 %v3785, 0.008333334
        %v3789 = vadd.f32 %v3786, 0.008333334
        %v3790 = vmul.f32 %v3775, %v3787
        %v3791 = vmul.f32 %v3776, %v3788
        %v3792 = vmul.f32 %v3777, %v3789
        %v3793 = vadd.f32 %v3790, -0.16666667
        %v3794 = vadd.f32 %v3791, -0.16666667
        %v3795 = vadd.f32 %v3792, -0.16666667
        %v3796 = vmul.f32 %v3775, %v3793
        %v3797 = vmul.f32 %v3776, %v3794
        %v3798 = vmul.f32 %v3777, %v3795
        %v3799 = vadd.f32 %v3796, 1.0
        %v3800 = vadd.f32 %v3797, 1.0
        %v3801 = vadd.f32 %v3798, 1.0
        %v3802 = vmul.f32 %v3772, %v3799
        %v3803 = vmul.f32 %v3773, %v3800
        %v3804 = vmul.f32 %v3774, %v3801
        %v3805 = vmul.f32 %v3802, %v3802
        %v3806 = vmul.f32 %v3803, %v3803
        %v3807 = vmul.f32 %v3804, %v3804
        %v3808 = vmul.f32 %v3805, %v3731
        %v3809 = vmul.f32 %v3806, %v3731
        %v3810 = vmul.f32 %v3807, %v3731
        %v3811 = vadd.f32 %v3651, %v3808
        %v3812 = vadd.f32 %v3652, %v3809
        %v3813 = vadd.f32 %v3653, %v3810
        %3817 = vrot.lane.b32.xlu0 %v3736, 3
        %v3818 = vpop.permute.xlu0 %3817
        %3819 = vrot.lane.b32.xlu0 %v3737, 3
        %v3820 = vpop.permute.xlu0 %3819
        %3821 = vrot.lane.b32.xlu0 %v3738, 3
        %v3822 = vpop.permute.xlu0 %3821
        %v3823 = vsel %vm599, %v3818, %v3820
        %v3824 = vsel %vm599, %v3820, %v3822
        %3827 = vst [vmem:[#allocation2 + $0x8] sm:$0xff] %v3823
        %3828 = vst [vmem:[#allocation2 + $0x10] sm:$0xff] %v3824
        %v3829 = vld [vmem:[#allocation2] sm:$0xff]
        %v3830 = vld [vmem:[#allocation2 + $0x8] sm:$0xff]
        %v3831 = vld [vmem:[#allocation2 + $0x10] sm:$0xff]
        %v3832 = vmul.f32 %v3829, 4.5587623e-20
        %v3833 = vmul.f32 %v3830, 4.5587623e-20
        %v3834 = vmul.f32 %v3831, 4.5587623e-20
        %v3835 = vmul.f32 %v3829, -2.9629366e-18
        %v3836 = vmul.f32 %v3830, -2.9629366e-18
        %v3837 = vmul.f32 %v3831, -2.9629366e-18
        %3841 = vrot.lane.b32.xlu0 %v3835, 127
        %v3842 = vpop.permute.xlu0 %3841
        %3843 = vrot.lane.b32.xlu0 %v3836, 127
        %v3844 = vpop.permute.xlu0 %3843
        %3845 = vrot.lane.b32.xlu0 %v3837, 127
        %v3846 = vpop.permute.xlu0 %3845
        %v3847 = vsel %vm219, %v3842, %v3844
        %v3848 = vsel %vm219, %v3844, %v3846
        %v3852 = vadd.f32 %v3832, %v3847
        %v3853 = vadd.f32 %v3833, %v3848
        %v3854 = vadd.f32 %v3834, %v3846
        %v3855 = vmul.f32 %v3829, 1.2717875e-17
        %v3856 = vmul.f32 %v3830, 1.2717875e-17
        %v3857 = vmul.f32 %v3831, 1.2717875e-17
        %3861 = vrot.lane.b32.xlu0 %v3855, 126
        %v3862 = vpop.permute.xlu0 %3861
        %3863 = vrot.lane.b32.xlu0 %v3856, 126
        %v3864 = vpop.permute.xlu0 %3863
        %3865 = vrot.lane.b32.xlu0 %v3857, 126
        %v3866 = vpop.permute.xlu0 %3865
        %v3867 = vsel %vm240, %v3862, %v3864
        %v3868 = vsel %vm240, %v3864, %v3866
        %v3872 = vadd.f32 %v3852, %v3867
        %v3873 = vadd.f32 %v3853, %v3868
        %v3874 = vadd.f32 %v3854, %v3866
        %v3875 = vmul.f32 %v3830, 0.50001985
        %v3876 = vmul.f32 %v3831, 0.50001985
        %3879 = vrot.lane.b32.xlu0 %v3875, 125
        %v3880 = vpop.permute.xlu0 %3879
        %3881 = vrot.lane.b32.xlu0 %v3876, 125
        %v3882 = vpop.permute.xlu0 %3881
        %v3883 = vsel %vm257, %v3880, %v3882
        %v3887 = vadd.f32 %v3872, %v3880
        %v3888 = vadd.f32 %v3873, %v3883
        %v3889 = vadd.f32 %v3874, %v3882
        %v3890 = vld [vmem:[#allocation2 + $0x8] sm:$0xff]
        %v3891 = vld [vmem:[#allocation2 + $0x10] sm:$0xff]
        %v3892 = vld [vmem:[#allocation2 + $0x18] sm:$0xff]
        %v3893 = vmul.f32 %v3890, 1.2717875e-17
        %v3894 = vmul.f32 %v3891, 1.2717875e-17
        %v3895 = vmul.f32 %v3892, 1.2717875e-17
        %3899 = vrot.lane.b32.xlu0 %v3893, 124
        %v3900 = vpop.permute.xlu0 %3899
        %3901 = vrot.lane.b32.xlu0 %v3894, 124
        %v3902 = vpop.permute.xlu0 %3901
        %3903 = vrot.lane.b32.xlu0 %v3895, 124
        %v3904 = vpop.permute.xlu0 %3903
        %v3905 = vsel %vm280, %v3900, %v3902
        %v3906 = vsel %vm280, %v3902, %v3904
        %v3910 = vadd.f32 %v3887, %v3900
        %v3911 = vadd.f32 %v3888, %v3905
        %v3912 = vadd.f32 %v3889, %v3906
        %v3913 = vmul.f32 %v3890, -2.9629366e-18
        %v3914 = vmul.f32 %v3891, -2.9629366e-18
        %v3915 = vmul.f32 %v3892, -2.9629366e-18
        %3919 = vrot.lane.b32.xlu0 %v3913, 123
        %v3920 = vpop.permute.xlu0 %3919
        %3921 = vrot.lane.b32.xlu0 %v3914, 123
        %v3922 = vpop.permute.xlu0 %3921
        %3923 = vrot.lane.b32.xlu0 %v3915, 123
        %v3924 = vpop.permute.xlu0 %3923
        %v3925 = vsel %vm301, %v3920, %v3922
        %v3926 = vsel %vm301, %v3922, %v3924
        %v3930 = vadd.f32 %v3910, %v3920
        %v3931 = vadd.f32 %v3911, %v3925
        %v3932 = vadd.f32 %v3912, %v3926
        %v3933 = vmul.f32 %v3890, 4.5587623e-20
        %v3934 = vmul.f32 %v3891, 4.5587623e-20
        %v3935 = vmul.f32 %v3892, 4.5587623e-20
        %3939 = vrot.lane.b32.xlu0 %v3933, 122
        %v3940 = vpop.permute.xlu0 %3939
        %3941 = vrot.lane.b32.xlu0 %v3934, 122
        %v3942 = vpop.permute.xlu0 %3941
        %3943 = vrot.lane.b32.xlu0 %v3935, 122
        %v3944 = vpop.permute.xlu0 %3943
        %v3945 = vsel %vm322, %v3940, %v3942
        %v3946 = vsel %vm322, %v3942, %v3944
        %v3950 = vadd.f32 %v3930, %v3940
        %v3951 = vadd.f32 %v3931, %v3945
        %v3952 = vadd.f32 %v3932, %v3946
        %3956 = vrot.lane.b32.xlu0 %v3811, 2
        %v3957 = vpop.permute.xlu0 %3956
        %3958 = vrot.lane.b32.xlu0 %v3812, 2
        %v3959 = vpop.permute.xlu0 %3958
        %3960 = vrot.lane.b32.xlu0 %v3813, 2
        %v3961 = vpop.permute.xlu0 %3960
        %v3962 = vsel %vm739, %v3957, %v3959
        %v3963 = vsel %vm739, %v3959, %v3961
        %3966 = vst [vmem:[#allocation2 + $0x8] sm:$0xff] %v3962
        %3967 = vst [vmem:[#allocation2 + $0x10] sm:$0xff] %v3963
        %v3968 = vld [vmem:[#allocation2] sm:$0xff]
        %v3969 = vld [vmem:[#allocation2 + $0x8] sm:$0xff]
        %v3970 = vld [vmem:[#allocation2 + $0x10] sm:$0xff]
        %v3971 = vmul.f32 %v3968, 0.0024307945
        %v3972 = vmul.f32 %v3969, 0.0024307945
        %v3973 = vmul.f32 %v3970, 0.0024307945
        %v3974 = vmul.f32 %v3968, -0.039150774
        %v3975 = vmul.f32 %v3969, -0.039150774
        %v3976 = vmul.f32 %v3970, -0.039150774
        %3980 = vrot.lane.b32.xlu0 %v3974, 127
        %v3981 = vpop.permute.xlu0 %3980
        %3982 = vrot.lane.b32.xlu0 %v3975, 127
        %v3983 = vpop.permute.xlu0 %3982
        %3984 = vrot.lane.b32.xlu0 %v3976, 127
        %v3985 = vpop.permute.xlu0 %3984
        %v3986 = vsel %vm219, %v3981, %v3983
        %v3987 = vsel %vm219, %v3983, %v3985
        %v3991 = vadd.f32 %v3971, %v3986
        %v3992 = vadd.f32 %v3972, %v3987
        %v3993 = vadd.f32 %v3973, %v3985
        %v3994 = vmul.f32 %v3968, 0.28671005
        %v3995 = vmul.f32 %v3969, 0.28671005
        %v3996 = vmul.f32 %v3970, 0.28671005
        %4000 = vrot.lane.b32.xlu0 %v3994, 126
        %v4001 = vpop.permute.xlu0 %4000
        %4002 = vrot.lane.b32.xlu0 %v3995, 126
        %v4003 = vpop.permute.xlu0 %4002
        %4004 = vrot.lane.b32.xlu0 %v3996, 126
        %v4005 = vpop.permute.xlu0 %4004
        %v4006 = vsel %vm240, %v4001, %v4003
        %v4007 = vsel %vm240, %v4003, %v4005
        %v4011 = vadd.f32 %v3991, %v4006
        %v4012 = vadd.f32 %v3992, %v4007
        %v4013 = vadd.f32 %v3993, %v4005
        %4014 = vrot.lane.b32.xlu0 %v3995, 125
        %v4015 = vpop.permute.xlu0 %4014
        %4016 = vrot.lane.b32.xlu0 %v3996, 125
        %v4017 = vpop.permute.xlu0 %4016
        %v4018 = vsel %vm257, %v4015, %v4017
        %v4022 = vadd.f32 %v4011, %v4015
        %v4023 = vadd.f32 %v4012, %v4018
        %v4024 = vadd.f32 %v4013, %v4017
        %v4025 = vld [vmem:[#allocation2 + $0x8] sm:$0xff]
        %v4026 = vld [vmem:[#allocation2 + $0x10] sm:$0xff]
        %v4027 = vld [vmem:[#allocation2 + $0x18] sm:$0xff]
        %v4028 = vmul.f32 %v4025, -0.039150774
        %v4029 = vmul.f32 %v4026, -0.039150774
        %v4030 = vmul.f32 %v4027, -0.039150774
        %4034 = vrot.lane.b32.xlu0 %v4028, 124
        %v4035 = vpop.permute.xlu0 %4034
        %4036 = vrot.lane.b32.xlu0 %v4029, 124
        %v4037 = vpop.permute.xlu0 %4036
        %4038 = vrot.lane.b32.xlu0 %v4030, 124
        %v4039 = vpop.permute.xlu0 %4038
        %v4040 = vsel %vm280, %v4035, %v4037
        %v4041 = vsel %vm280, %v4037, %v4039
        %v4045 = vadd.f32 %v4022, %v4035
        %v4046 = vadd.f32 %v4023, %v4040
        %v4047 = vadd.f32 %v4024, %v4041
        %v4048 = vmul.f32 %v4025, 0.0024307945
        %v4049 = vmul.f32 %v4026, 0.0024307945
        %v4050 = vmul.f32 %v4027, 0.0024307945
        %4054 = vrot.lane.b32.xlu0 %v4048, 123
        %v4055 = vpop.permute.xlu0 %4054
        %4056 = vrot.lane.b32.xlu0 %v4049, 123
        %v4057 = vpop.permute.xlu0 %4056
        %4058 = vrot.lane.b32.xlu0 %v4050, 123
        %v4059 = vpop.permute.xlu0 %4058
        %v4060 = vsel %vm301, %v4055, %v4057
        %v4061 = vsel %vm301, %v4057, %v4059
        %v4065 = vadd.f32 %v4045, %v4055
        %v4066 = vadd.f32 %v4046, %v4060
        %v4067 = vadd.f32 %v4047, %v4061
        %v4068 = vadd.f32 %v3950, %v4065
        %v4069 = vadd.f32 %v3951, %v4066
        %v4070 = vadd.f32 %v3952, %v4067
        %4074 = vrot.lane.b32.xlu0 %v4068, 3
        %v4075 = vpop.permute.xlu0 %4074
        %4076 = vrot.lane.b32.xlu0 %v4069, 3
        %v4077 = vpop.permute.xlu0 %4076
        %4078 = vrot.lane.b32.xlu0 %v4070, 3
        %v4079 = vpop.permute.xlu0 %4078
        %v4080 = vsel %vm599, %v4075, %v4077
        %v4081 = vsel %vm599, %v4077, %v4079
        %4084 = vst [vmem:[#allocation2 + $0x8] sm:$0xff] %v4080
        %4085 = vst [vmem:[#allocation2 + $0x10] sm:$0xff] %v4081
        %v4086 = vld [vmem:[#allocation2] sm:$0xff]
        %v4087 = vld [vmem:[#allocation2 + $0x8] sm:$0xff]
        %v4088 = vld [vmem:[#allocation2 + $0x10] sm:$0xff]
        %v4089 = vld [vmem:[#allocation2 + $0x8] sm:$0xff]
        %v4090 = vld [vmem:[#allocation2 + $0x10] sm:$0xff]
        %v4091 = vld [vmem:[#allocation2 + $0x18] sm:$0xff]
        %4094 = vrot.lane.b32.xlu0 %v4087, 123
        %v4095 = vpop.permute.xlu0 %4094
        %4096 = vrot.lane.b32.xlu0 %v4088, 123
        %v4097 = vpop.permute.xlu0 %4096
        %v4098 = vsel %vm301, %v4095, %v4097
        %4102 = vrot.lane.b32.xlu0 %v4089, 118
        %v4103 = vpop.permute.xlu0 %4102
        %4104 = vrot.lane.b32.xlu0 %v4090, 118
        %v4105 = vpop.permute.xlu0 %4104
        %4106 = vrot.lane.b32.xlu0 %v4091, 118
        %v4107 = vpop.permute.xlu0 %4106
        %vm4108 = vcmask 965632
        %v4109 = vsel %vm4108, %v4103, %v4105
        %v4110 = vsel %vm4108, %v4105, %v4107
        %4112 = vset.pattern.permute.xlu0 0
        %4113 = vperm.xlu0 %4112, %v3407
        %v4114 = vpop.permute.xlu0 %4113
        %4117 = vrot.lane.b32.xlu0 %v4086, 5
        %v4118 = vpop.permute.xlu0 %4117
        %4119 = vrot.lane.b32.xlu0 %v4087, 5
        %v4120 = vpop.permute.xlu0 %4119
        %4121 = vrot.lane.b32.xlu0 %v4088, 5
        %v4122 = vpop.permute.xlu0 %4121
        %4123 = vrot.lane.b32.xlu0 %v4095, 5
        %v4124 = vpop.permute.xlu0 %4123
        %4125 = vrot.lane.b32.xlu0 %v4098, 5
        %v4126 = vpop.permute.xlu0 %4125
        %4127 = vrot.lane.b32.xlu0 %v4097, 5
        %v4128 = vpop.permute.xlu0 %4127
        %4129 = vrot.lane.b32.xlu0 %v4103, 5
        %v4130 = vpop.permute.xlu0 %4129
        %4131 = vrot.lane.b32.xlu0 %v4109, 5
        %v4132 = vpop.permute.xlu0 %4131
        %4133 = vrot.lane.b32.xlu0 %v4110, 5
        %v4134 = vpop.permute.xlu0 %4133
        %vm4135 = vcmask 39936
        %v4136 = vsel %vm4135, %v4118, %v4120
        %v4137 = vsel %vm4135, %v4120, %v4122
        %v4138 = vsel %vm4135, %v4124, %v4126
        %v4139 = vsel %vm4135, %v4126, %v4128
        %v4140 = vsel %vm4135, %v4130, %v4132
        %v4141 = vsel %vm4135, %v4132, %v4134
        %v4149 = vsel %vm925, %v3403, 0
        %4151 = vmatprep.subr.mxu0 %v4137
        %4152 = vmatpush1.msra.mxu0 %v4136
        %4153 = vmatprep.subr.mxu0 %v4139
        %4154 = vmatpush1.msra.mxu0 %v4138
        %4155 = vmatprep.subr.mxu0 %v4141
        %4156 = vmatpush1.msra.mxu0 %v4140
        %4157 = vmatprep.subr.mxu0 0.0
        %4158 = vmatpush1.msra.mxu0 0.0
        %4159 = vmatprep.subr.mxu0 0.0
        %4160 = vmatpush1.msra.mxu0 0.0
        %4161 = vmatprep.subr.mxu0 0.0
        %4162 = vmatpush1.msra.mxu0 0.0
        %4163 = vmatprep.subr.mxu0 0.0
        %4164 = vmatpush1.msra.mxu0 0.0
        %4165 = vmatprep.subr.mxu0 0.0
        %4166 = vmatpush1.msra.mxu0 0.0
        %4167 = vmatprep.subr.mxu0 0.0
        %4168 = vmatpush1.msra.mxu0 0.0
        %4169 = vmatprep.subr.mxu0 0.0
        %4170 = vmatpush1.msra.mxu0 0.0
        %4171 = vmatprep.subr.mxu0 0.0
        %4172 = vmatpush1.msra.mxu0 0.0
        %4173 = vmatprep.subr.mxu0 0.0
        %4174 = vmatpush1.msra.mxu0 0.0
        %4175 = vmatprep.subr.mxu0 0.0
        %4176 = vmatpush1.msra.mxu0 0.0
        %4177 = vmatprep.subr.mxu0 0.0
        %4178 = vmatpush1.msra.mxu0 0.0
        %4179 = vmatprep.subr.mxu0 0.0
        %4180 = vmatpush1.msra.mxu0 0.0
        %4181 = vmatprep.subr.mxu0 0.0
        %4182 = vmatpush1.msra.mxu0 0.0
        %4183 = vmatprep.subr.mxu0 0.0
        %4184 = vmatpush1.msra.mxu0 0.0
        %4185 = vmatprep.subr.mxu0 0.0
        %4186 = vmatpush1.msra.mxu0 0.0
        %4187 = vmatprep.subr.mxu0 0.0
        %4188 = vmatpush1.msra.mxu0 0.0
        %4189 = vmatprep.subr.mxu0 0.0
        %4190 = vmatpush1.msra.mxu0 0.0
        %4191 = vmatprep.subr.mxu0 0.0
        %4192 = vmatpush1.msra.mxu0 0.0
        %4193 = vmatprep.subr.mxu0 0.0
        %4194 = vmatpush1.msra.mxu0 0.0
        %4195 = vmatprep.subr.mxu0 0.0
        %4196 = vmatpush1.msra.mxu0 0.0
        %4197 = vmatprep.subr.mxu0 0.0
        %4198 = vmatpush1.msra.mxu0 0.0
        %4199 = vmatprep.subr.mxu0 0.0
        %4200 = vmatpush1.msra.mxu0 0.0
        %4201 = vmatprep.subr.mxu0 0.0
        %4202 = vmatpush1.msra.mxu0 0.0
        %4203 = vmatprep.subr.mxu0 0.0
        %4204 = vmatpush1.msra.mxu0 0.0
        %4205 = vmatprep.subr.mxu0 0.0
        %4206 = vmatpush1.msra.mxu0 0.0
        %4207 = vmatprep.subr.mxu0 0.0
        %4208 = vmatpush1.msra.mxu0 0.0
        %4209 = vmatprep.subr.mxu0 0.0
        %4210 = vmatpush1.msra.mxu0 0.0
        %4211 = vmatprep.subr.mxu0 0.0
        %4212 = vmatpush1.msra.mxu0 0.0
        %4213 = vmatprep.subr.mxu0 0.0
        %4214 = vmatpush1.msra.mxu0 0.0
        %4215 = vmatprep.mubr.f32.mxu0 0.0
        %4216 = vmatmul.mubr.f32.gmra.mrb[0].mxu0 %v4149
        %v4217 = vpop.f32.mrb[0].mxu0
        %v4218 = vadd.f32 %v4114, %v4217
        %v4219 = vpop.f32.mrb[0].mxu0
        %v4220 = vadd.f32 %v4114, %v4219
        %4221 = vdwg.mxu0
        %4222 = vst [vmem:[#allocation2 + $0x8] sm:$0xff] %v4218
        %4223 = vst [vmem:[#allocation2 + $0x10] sm:$0xff] %v4220
        %v4224 = vld [vmem:[#allocation2] sm:$0xff]
        %v4225 = vld [vmem:[#allocation2 + $0x8] sm:$0xff]
        %v4226 = vld [vmem:[#allocation2 + $0x10] sm:$0xff]
        %v4227 = vmul.f32 %v4224, 9.1175246e-20
        %v4228 = vmul.f32 %v4225, 9.1175246e-20
        %v4229 = vmul.f32 %v4226, 9.1175246e-20
        %v4230 = vmul.f32 %v4224, -5.925873e-18
        %v4231 = vmul.f32 %v4225, -5.925873e-18
        %v4232 = vmul.f32 %v4226, -5.925873e-18
        %4236 = vrot.lane.b32.xlu0 %v4230, 127
        %v4237 = vpop.permute.xlu0 %4236
        %4238 = vrot.lane.b32.xlu0 %v4231, 127
        %v4239 = vpop.permute.xlu0 %4238
        %4240 = vrot.lane.b32.xlu0 %v4232, 127
        %v4241 = vpop.permute.xlu0 %4240
        %v4242 = vsel %vm219, %v4237, %v4239
        %v4243 = vsel %vm219, %v4239, %v4241
        %v4247 = vadd.f32 %v4227, %v4242
        %v4248 = vadd.f32 %v4228, %v4243
        %v4249 = vadd.f32 %v4229, %v4241
        %v4250 = vmul.f32 %v4224, 2.543575e-17
        %v4251 = vmul.f32 %v4225, 2.543575e-17
        %v4252 = vmul.f32 %v4226, 2.543575e-17
        %4256 = vrot.lane.b32.xlu0 %v4250, 126
        %v4257 = vpop.permute.xlu0 %4256
        %4258 = vrot.lane.b32.xlu0 %v4251, 126
        %v4259 = vpop.permute.xlu0 %4258
        %4260 = vrot.lane.b32.xlu0 %v4252, 126
        %v4261 = vpop.permute.xlu0 %4260
        %v4262 = vsel %vm240, %v4257, %v4259
        %v4263 = vsel %vm240, %v4259, %v4261
        %v4267 = vadd.f32 %v4247, %v4262
        %v4268 = vadd.f32 %v4248, %v4263
        %v4269 = vadd.f32 %v4249, %v4261
        %v4270 = vmul.f32 %v4225, 1.0000397
        %v4271 = vmul.f32 %v4226, 1.0000397
        %4274 = vrot.lane.b32.xlu0 %v4270, 125
        %v4275 = vpop.permute.xlu0 %4274
        %4276 = vrot.lane.b32.xlu0 %v4271, 125
        %v4277 = vpop.permute.xlu0 %4276
        %v4278 = vsel %vm257, %v4275, %v4277
        %v4282 = vadd.f32 %v4267, %v4275
        %v4283 = vadd.f32 %v4268, %v4278
        %v4284 = vadd.f32 %v4269, %v4277
        %v4285 = vld [vmem:[#allocation2 + $0x8] sm:$0xff]
        %v4286 = vld [vmem:[#allocation2 + $0x10] sm:$0xff]
        %v4287 = vld [vmem:[#allocation2 + $0x18] sm:$0xff]
        %v4288 = vmul.f32 %v4285, 2.543575e-17
        %v4289 = vmul.f32 %v4286, 2.543575e-17
        %v4290 = vmul.f32 %v4287, 2.543575e-17
        %4294 = vrot.lane.b32.xlu0 %v4288, 124
        %v4295 = vpop.permute.xlu0 %4294
        %4296 = vrot.lane.b32.xlu0 %v4289, 124
        %v4297 = vpop.permute.xlu0 %4296
        %4298 = vrot.lane.b32.xlu0 %v4290, 124
        %v4299 = vpop.permute.xlu0 %4298
        %v4300 = vsel %vm280, %v4295, %v4297
        %v4301 = vsel %vm280, %v4297, %v4299
        %v4305 = vadd.f32 %v4282, %v4295
        %v4306 = vadd.f32 %v4283, %v4300
        %v4307 = vadd.f32 %v4284, %v4301
        %v4308 = vmul.f32 %v4285, -5.925873e-18
        %v4309 = vmul.f32 %v4286, -5.925873e-18
        %v4310 = vmul.f32 %v4287, -5.925873e-18
        %4314 = vrot.lane.b32.xlu0 %v4308, 123
        %v4315 = vpop.permute.xlu0 %4314
        %4316 = vrot.lane.b32.xlu0 %v4309, 123
        %v4317 = vpop.permute.xlu0 %4316
        %4318 = vrot.lane.b32.xlu0 %v4310, 123
        %v4319 = vpop.permute.xlu0 %4318
        %v4320 = vsel %vm301, %v4315, %v4317
        %v4321 = vsel %vm301, %v4317, %v4319
        %v4325 = vadd.f32 %v4305, %v4315
        %v4326 = vadd.f32 %v4306, %v4320
        %v4327 = vadd.f32 %v4307, %v4321
        %v4328 = vmul.f32 %v4285, 9.1175246e-20
        %v4329 = vmul.f32 %v4286, 9.1175246e-20
        %v4330 = vmul.f32 %v4287, 9.1175246e-20
        %4334 = vrot.lane.b32.xlu0 %v4328, 122
        %v4335 = vpop.permute.xlu0 %4334
        %4336 = vrot.lane.b32.xlu0 %v4329, 122
        %v4337 = vpop.permute.xlu0 %4336
        %4338 = vrot.lane.b32.xlu0 %v4330, 122
        %v4339 = vpop.permute.xlu0 %4338
        %v4340 = vsel %vm322, %v4335, %v4337
        %v4341 = vsel %vm322, %v4337, %v4339
        %v4345 = vadd.f32 %v4325, %v4335
        %v4346 = vadd.f32 %v4326, %v4340
        %v4347 = vadd.f32 %v4327, %v4341
        %v4348 = vmul.f32 %v4224, 0.004861589
        %v4349 = vmul.f32 %v4225, 0.004861589
        %v4350 = vmul.f32 %v4226, 0.004861589
        %v4351 = vmul.f32 %v4224, -0.07830155
        %v4352 = vmul.f32 %v4225, -0.07830155
        %v4353 = vmul.f32 %v4226, -0.07830155
        %4357 = vrot.lane.b32.xlu0 %v4351, 127
        %v4358 = vpop.permute.xlu0 %4357
        %4359 = vrot.lane.b32.xlu0 %v4352, 127
        %v4360 = vpop.permute.xlu0 %4359
        %4361 = vrot.lane.b32.xlu0 %v4353, 127
        %v4362 = vpop.permute.xlu0 %4361
        %v4363 = vsel %vm219, %v4358, %v4360
        %v4364 = vsel %vm219, %v4360, %v4362
        %v4368 = vadd.f32 %v4348, %v4363
        %v4369 = vadd.f32 %v4349, %v4364
        %v4370 = vadd.f32 %v4350, %v4362
        %v4371 = vmul.f32 %v4225, 0.5734201
        %v4372 = vmul.f32 %v4226, 0.5734201
        %4375 = vrot.lane.b32.xlu0 %v4371, 126
        %v4376 = vpop.permute.xlu0 %4375
        %4377 = vrot.lane.b32.xlu0 %v4372, 126
        %v4378 = vpop.permute.xlu0 %4377
        %v4379 = vsel %vm240, %v4376, %v4378
        %v4383 = vadd.f32 %v4368, %v4376
        %v4384 = vadd.f32 %v4369, %v4379
        %v4385 = vadd.f32 %v4370, %v4378
        %v4386 = vmul.f32 %v4285, 0.5734201
        %v4387 = vmul.f32 %v4286, 0.5734201
        %v4388 = vmul.f32 %v4287, 0.5734201
        %4392 = vrot.lane.b32.xlu0 %v4386, 125
        %v4393 = vpop.permute.xlu0 %4392
        %4394 = vrot.lane.b32.xlu0 %v4387, 125
        %v4395 = vpop.permute.xlu0 %4394
        %4396 = vrot.lane.b32.xlu0 %v4388, 125
        %v4397 = vpop.permute.xlu0 %4396
        %v4398 = vsel %vm257, %v4393, %v4395
        %v4399 = vsel %vm257, %v4395, %v4397
        %v4403 = vadd.f32 %v4383, %v4393
        %v4404 = vadd.f32 %v4384, %v4398
        %v4405 = vadd.f32 %v4385, %v4399
        %v4406 = vmul.f32 %v4285, -0.07830155
        %v4407 = vmul.f32 %v4286, -0.07830155
        %v4408 = vmul.f32 %v4287, -0.07830155
        %4412 = vrot.lane.b32.xlu0 %v4406, 124
        %v4413 = vpop.permute.xlu0 %4412
        %4414 = vrot.lane.b32.xlu0 %v4407, 124
        %v4415 = vpop.permute.xlu0 %4414
        %4416 = vrot.lane.b32.xlu0 %v4408, 124
        %v4417 = vpop.permute.xlu0 %4416
        %v4418 = vsel %vm280, %v4413, %v4415
        %v4419 = vsel %vm280, %v4415, %v4417
        %v4423 = vadd.f32 %v4403, %v4413
        %v4424 = vadd.f32 %v4404, %v4418
        %v4425 = vadd.f32 %v4405, %v4419
        %v4426 = vmul.f32 %v4285, 0.004861589
        %v4427 = vmul.f32 %v4286, 0.004861589
        %v4428 = vmul.f32 %v4287, 0.004861589
        %4432 = vrot.lane.b32.xlu0 %v4426, 123
        %v4433 = vpop.permute.xlu0 %4432
        %4434 = vrot.lane.b32.xlu0 %v4427, 123
        %v4435 = vpop.permute.xlu0 %4434
        %4436 = vrot.lane.b32.xlu0 %v4428, 123
        %v4437 = vpop.permute.xlu0 %4436
        %v4438 = vsel %vm301, %v4433, %v4435
        %v4439 = vsel %vm301, %v4435, %v4437
        %v4443 = vadd.f32 %v4423, %v4433
        %v4444 = vadd.f32 %v4424, %v4438
        %v4445 = vadd.f32 %v4425, %v4439
        %4447 = vset.pattern.permute.xlu0 0
        %4448 = vperm.xlu0 %4447, %v3423
        %v4449 = vpop.permute.xlu0 %4448
        %v4451 = vmul.f32 %v4449, %v4345
        %v4452 = vmul.f32 %v4449, %v4346
        %v4453 = vmul.f32 %v4449, %v4347
        %v4454 = vmul.f32 %v4451, %v437
        %v4455 = vmul.f32 %v4452, %v437
        %v4456 = vmul.f32 %v4453, %v437
        %v4457 = vadd.f32 %v4454, 0.5
        %v4458 = vadd.f32 %v4455, 0.5
        %v4459 = vadd.f32 %v4456, 0.5
        %v4460 = vfloor.f32 %v4457
        %v4461 = vfloor.f32 %v4458
        %v4462 = vfloor.f32 %v4459
        %v4463 = vmul.f32 %v4460, 6.2831855
        %v4464 = vmul.f32 %v4461, 6.2831855
        %v4465 = vmul.f32 %v4462, 6.2831855
        %v4466 = vsub.f32 %v4451, %v4463
        %v4467 = vsub.f32 %v4452, %v4464
        %v4468 = vsub.f32 %v4453, %v4465
        %vm4469 = vcmp.gt.f32.partialorder %v4466, 1.5707964
        %vm4470 = vcmp.gt.f32.partialorder %v4467, 1.5707964
        %vm4471 = vcmp.gt.f32.partialorder %v4468, 1.5707964
        %v4472 = vsub.f32 3.1415927, %v4466
        %v4473 = vsub.f32 3.1415927, %v4467
        %v4474 = vsub.f32 3.1415927, %v4468
        %v4475 = vsel %vm4469, %v4472, %v4466
        %v4476 = vsel %vm4470, %v4473, %v4467
        %v4477 = vsel %vm4471, %v4474, %v4468
        %vm4478 = vcmp.lt.f32.partialorder %v4475, -1.5707964
        %vm4479 = vcmp.lt.f32.partialorder %v4476, -1.5707964
        %vm4480 = vcmp.lt.f32.partialorder %v4477, -1.5707964
        %v4481 = vsub.f32 -3.1415927, %v4475
        %v4482 = vsub.f32 -3.1415927, %v4476
        %v4483 = vsub.f32 -3.1415927, %v4477
        %v4484 = vsel %vm4478, %v4481, %v4475
        %v4485 = vsel %vm4479, %v4482, %v4476
        %v4486 = vsel %vm4480, %v4483, %v4477
        %v4487 = vmul.f32 %v4484, %v4484
        %v4488 = vmul.f32 %v4485, %v4485
        %v4489 = vmul.f32 %v4486, %v4486
        %v4490 = vmul.f32 %v4487, 2.7557319e-06
        %v4491 = vmul.f32 %v4488, 2.7557319e-06
        %v4492 = vmul.f32 %v4489, 2.7557319e-06
        %v4493 = vadd.f32 %v4490, -0.0001984127
        %v4494 = vadd.f32 %v4491, -0.0001984127
        %v4495 = vadd.f32 %v4492, -0.0001984127
        %v4496 = vmul.f32 %v4487, %v4493
        %v4497 = vmul.f32 %v4488, %v4494
        %v4498 = vmul.f32 %v4489, %v4495
        %v4499 = vadd.f32 %v4496, 0.008333334
        %v4500 = vadd.f32 %v4497, 0.008333334
        %v4501 = vadd.f32 %v4498, 0.008333334
        %v4502 = vmul.f32 %v4487, %v4499
        %v4503 = vmul.f32 %v4488, %v4500
        %v4504 = vmul.f32 %v4489, %v4501
        %v4505 = vadd.f32 %v4502, -0.16666667
        %v4506 = vadd.f32 %v4503, -0.16666667
        %v4507 = vadd.f32 %v4504, -0.16666667
        %v4508 = vmul.f32 %v4487, %v4505
        %v4509 = vmul.f32 %v4488, %v4506
        %v4510 = vmul.f32 %v4489, %v4507
        %v4511 = vadd.f32 %v4508, 1.0
        %v4512 = vadd.f32 %v4509, 1.0
        %v4513 = vadd.f32 %v4510, 1.0
        %v4514 = vmul.f32 %v4484, %v4511
        %v4515 = vmul.f32 %v4485, %v4512
        %v4516 = vmul.f32 %v4486, %v4513
        %v4517 = vmul.f32 %v4514, %v4514
        %v4518 = vmul.f32 %v4515, %v4515
        %v4519 = vmul.f32 %v4516, %v4516
        %4521 = vset.pattern.permute.xlu0 0
        %4522 = vperm.xlu0 %4521, %v3429
        %v4523 = vpop.permute.xlu0 %4522
        %v4525 = vmul.f32 %v4517, %v4523
        %v4526 = vmul.f32 %v4518, %v4523
        %v4527 = vmul.f32 %v4519, %v4523
        %v4528 = vadd.f32 %v4345, %v4525
        %v4529 = vadd.f32 %v4346, %v4526
        %v4530 = vadd.f32 %v4347, %v4527
        %v4531 = vmul.f32 %v4449, %v4443
        %v4532 = vmul.f32 %v4449, %v4444
        %v4533 = vmul.f32 %v4449, %v4445
        %v4534 = vmul.f32 %v4531, %v437
        %v4535 = vmul.f32 %v4532, %v437
        %v4536 = vmul.f32 %v4533, %v437
        %v4537 = vadd.f32 %v4534, 0.5
        %v4538 = vadd.f32 %v4535, 0.5
        %v4539 = vadd.f32 %v4536, 0.5
        %v4540 = vfloor.f32 %v4537
        %v4541 = vfloor.f32 %v4538
        %v4542 = vfloor.f32 %v4539
        %v4543 = vmul.f32 %v4540, 6.2831855
        %v4544 = vmul.f32 %v4541, 6.2831855
        %v4545 = vmul.f32 %v4542, 6.2831855
        %v4546 = vsub.f32 %v4531, %v4543
        %v4547 = vsub.f32 %v4532, %v4544
        %v4548 = vsub.f32 %v4533, %v4545
        %vm4549 = vcmp.gt.f32.partialorder %v4546, 1.5707964
        %vm4550 = vcmp.gt.f32.partialorder %v4547, 1.5707964
        %vm4551 = vcmp.gt.f32.partialorder %v4548, 1.5707964
        %v4552 = vsub.f32 3.1415927, %v4546
        %v4553 = vsub.f32 3.1415927, %v4547
        %v4554 = vsub.f32 3.1415927, %v4548
        %v4555 = vsel %vm4549, %v4552, %v4546
        %v4556 = vsel %vm4550, %v4553, %v4547
        %v4557 = vsel %vm4551, %v4554, %v4548
        %vm4558 = vcmp.lt.f32.partialorder %v4555, -1.5707964
        %vm4559 = vcmp.lt.f32.partialorder %v4556, -1.5707964
        %vm4560 = vcmp.lt.f32.partialorder %v4557, -1.5707964
        %v4561 = vsub.f32 -3.1415927, %v4555
        %v4562 = vsub.f32 -3.1415927, %v4556
        %v4563 = vsub.f32 -3.1415927, %v4557
        %v4564 = vsel %vm4558, %v4561, %v4555
        %v4565 = vsel %vm4559, %v4562, %v4556
        %v4566 = vsel %vm4560, %v4563, %v4557
        %v4567 = vmul.f32 %v4564, %v4564
        %v4568 = vmul.f32 %v4565, %v4565
        %v4569 = vmul.f32 %v4566, %v4566
        %v4570 = vmul.f32 %v4567, 2.7557319e-06
        %v4571 = vmul.f32 %v4568, 2.7557319e-06
        %v4572 = vmul.f32 %v4569, 2.7557319e-06
        %v4573 = vadd.f32 %v4570, -0.0001984127
        %v4574 = vadd.f32 %v4571, -0.0001984127
        %v4575 = vadd.f32 %v4572, -0.0001984127
        %v4576 = vmul.f32 %v4567, %v4573
        %v4577 = vmul.f32 %v4568, %v4574
        %v4578 = vmul.f32 %v4569, %v4575
        %v4579 = vadd.f32 %v4576, 0.008333334
        %v4580 = vadd.f32 %v4577, 0.008333334
        %v4581 = vadd.f32 %v4578, 0.008333334
        %v4582 = vmul.f32 %v4567, %v4579
        %v4583 = vmul.f32 %v4568, %v4580
        %v4584 = vmul.f32 %v4569, %v4581
        %v4585 = vadd.f32 %v4582, -0.16666667
        %v4586 = vadd.f32 %v4583, -0.16666667
        %v4587 = vadd.f32 %v4584, -0.16666667
        %v4588 = vmul.f32 %v4567, %v4585
        %v4589 = vmul.f32 %v4568, %v4586
        %v4590 = vmul.f32 %v4569, %v4587
        %v4591 = vadd.f32 %v4588, 1.0
        %v4592 = vadd.f32 %v4589, 1.0
        %v4593 = vadd.f32 %v4590, 1.0
        %v4594 = vmul.f32 %v4564, %v4591
        %v4595 = vmul.f32 %v4565, %v4592
        %v4596 = vmul.f32 %v4566, %v4593
        %v4597 = vmul.f32 %v4594, %v4594
        %v4598 = vmul.f32 %v4595, %v4595
        %v4599 = vmul.f32 %v4596, %v4596
        %v4600 = vmul.f32 %v4597, %v4523
        %v4601 = vmul.f32 %v4598, %v4523
        %v4602 = vmul.f32 %v4599, %v4523
        %v4603 = vadd.f32 %v4443, %v4600
        %v4604 = vadd.f32 %v4444, %v4601
        %v4605 = vadd.f32 %v4445, %v4602
        %4609 = vrot.lane.b32.xlu0 %v4528, 3
        %v4610 = vpop.permute.xlu0 %4609
        %4611 = vrot.lane.b32.xlu0 %v4529, 3
        %v4612 = vpop.permute.xlu0 %4611
        %4613 = vrot.lane.b32.xlu0 %v4530, 3
        %v4614 = vpop.permute.xlu0 %4613
        %v4615 = vsel %vm599, %v4610, %v4612
        %v4616 = vsel %vm599, %v4612, %v4614
        %4619 = vst [vmem:[#allocation2 + $0x8] sm:$0xff] %v4615
        %4620 = vst [vmem:[#allocation2 + $0x10] sm:$0xff] %v4616
        %v4621 = vld [vmem:[#allocation2] sm:$0xff]
        %v4622 = vld [vmem:[#allocation2 + $0x8] sm:$0xff]
        %v4623 = vld [vmem:[#allocation2 + $0x10] sm:$0xff]
        %v4624 = vmul.f32 %v4621, 4.5587623e-20
        %v4625 = vmul.f32 %v4622, 4.5587623e-20
        %v4626 = vmul.f32 %v4623, 4.5587623e-20
        %v4627 = vmul.f32 %v4621, -2.9629366e-18
        %v4628 = vmul.f32 %v4622, -2.9629366e-18
        %v4629 = vmul.f32 %v4623, -2.9629366e-18
        %4633 = vrot.lane.b32.xlu0 %v4627, 127
        %v4634 = vpop.permute.xlu0 %4633
        %4635 = vrot.lane.b32.xlu0 %v4628, 127
        %v4636 = vpop.permute.xlu0 %4635
        %4637 = vrot.lane.b32.xlu0 %v4629, 127
        %v4638 = vpop.permute.xlu0 %4637
        %v4639 = vsel %vm219, %v4634, %v4636
        %v4640 = vsel %vm219, %v4636, %v4638
        %v4644 = vadd.f32 %v4624, %v4639
        %v4645 = vadd.f32 %v4625, %v4640
        %v4646 = vadd.f32 %v4626, %v4638
        %v4647 = vmul.f32 %v4621, 1.2717875e-17
        %v4648 = vmul.f32 %v4622, 1.2717875e-17
        %v4649 = vmul.f32 %v4623, 1.2717875e-17
        %4653 = vrot.lane.b32.xlu0 %v4647, 126
        %v4654 = vpop.permute.xlu0 %4653
        %4655 = vrot.lane.b32.xlu0 %v4648, 126
        %v4656 = vpop.permute.xlu0 %4655
        %4657 = vrot.lane.b32.xlu0 %v4649, 126
        %v4658 = vpop.permute.xlu0 %4657
        %v4659 = vsel %vm240, %v4654, %v4656
        %v4660 = vsel %vm240, %v4656, %v4658
        %v4664 = vadd.f32 %v4644, %v4659
        %v4665 = vadd.f32 %v4645, %v4660
        %v4666 = vadd.f32 %v4646, %v4658
        %v4667 = vmul.f32 %v4622, 0.50001985
        %v4668 = vmul.f32 %v4623, 0.50001985
        %4671 = vrot.lane.b32.xlu0 %v4667, 125
        %v4672 = vpop.permute.xlu0 %4671
        %4673 = vrot.lane.b32.xlu0 %v4668, 125
        %v4674 = vpop.permute.xlu0 %4673
        %v4675 = vsel %vm257, %v4672, %v4674
        %v4679 = vadd.f32 %v4664, %v4672
        %v4680 = vadd.f32 %v4665, %v4675
        %v4681 = vadd.f32 %v4666, %v4674
        %v4682 = vld [vmem:[#allocation2 + $0x8] sm:$0xff]
        %v4683 = vld [vmem:[#allocation2 + $0x10] sm:$0xff]
        %v4684 = vld [vmem:[#allocation2 + $0x18] sm:$0xff]
        %v4685 = vmul.f32 %v4682, 1.2717875e-17
        %v4686 = vmul.f32 %v4683, 1.2717875e-17
        %v4687 = vmul.f32 %v4684, 1.2717875e-17
        %4691 = vrot.lane.b32.xlu0 %v4685, 124
        %v4692 = vpop.permute.xlu0 %4691
        %4693 = vrot.lane.b32.xlu0 %v4686, 124
        %v4694 = vpop.permute.xlu0 %4693
        %4695 = vrot.lane.b32.xlu0 %v4687, 124
        %v4696 = vpop.permute.xlu0 %4695
        %v4697 = vsel %vm280, %v4692, %v4694
        %v4698 = vsel %vm280, %v4694, %v4696
        %v4702 = vadd.f32 %v4679, %v4692
        %v4703 = vadd.f32 %v4680, %v4697
        %v4704 = vadd.f32 %v4681, %v4698
        %v4705 = vmul.f32 %v4682, -2.9629366e-18
        %v4706 = vmul.f32 %v4683, -2.9629366e-18
        %v4707 = vmul.f32 %v4684, -2.9629366e-18
        %4711 = vrot.lane.b32.xlu0 %v4705, 123
        %v4712 = vpop.permute.xlu0 %4711
        %4713 = vrot.lane.b32.xlu0 %v4706, 123
        %v4714 = vpop.permute.xlu0 %4713
        %4715 = vrot.lane.b32.xlu0 %v4707, 123
        %v4716 = vpop.permute.xlu0 %4715
        %v4717 = vsel %vm301, %v4712, %v4714
        %v4718 = vsel %vm301, %v4714, %v4716
        %v4722 = vadd.f32 %v4702, %v4712
        %v4723 = vadd.f32 %v4703, %v4717
        %v4724 = vadd.f32 %v4704, %v4718
        %v4725 = vmul.f32 %v4682, 4.5587623e-20
        %v4726 = vmul.f32 %v4683, 4.5587623e-20
        %v4727 = vmul.f32 %v4684, 4.5587623e-20
        %4731 = vrot.lane.b32.xlu0 %v4725, 122
        %v4732 = vpop.permute.xlu0 %4731
        %4733 = vrot.lane.b32.xlu0 %v4726, 122
        %v4734 = vpop.permute.xlu0 %4733
        %4735 = vrot.lane.b32.xlu0 %v4727, 122
        %v4736 = vpop.permute.xlu0 %4735
        %v4737 = vsel %vm322, %v4732, %v4734
        %v4738 = vsel %vm322, %v4734, %v4736
        %v4742 = vadd.f32 %v4722, %v4732
        %v4743 = vadd.f32 %v4723, %v4737
        %v4744 = vadd.f32 %v4724, %v4738
        %4748 = vrot.lane.b32.xlu0 %v4603, 2
        %v4749 = vpop.permute.xlu0 %4748
        %4750 = vrot.lane.b32.xlu0 %v4604, 2
        %v4751 = vpop.permute.xlu0 %4750
        %4752 = vrot.lane.b32.xlu0 %v4605, 2
        %v4753 = vpop.permute.xlu0 %4752
        %v4754 = vsel %vm739, %v4749, %v4751
        %v4755 = vsel %vm739, %v4751, %v4753
        %4758 = vst [vmem:[#allocation2 + $0x8] sm:$0xff] %v4754
        %4759 = vst [vmem:[#allocation2 + $0x10] sm:$0xff] %v4755
        %v4760 = vld [vmem:[#allocation2] sm:$0xff]
        %v4761 = vld [vmem:[#allocation2 + $0x8] sm:$0xff]
        %v4762 = vld [vmem:[#allocation2 + $0x10] sm:$0xff]
        %v4763 = vmul.f32 %v4760, 0.0024307945
        %v4764 = vmul.f32 %v4761, 0.0024307945
        %v4765 = vmul.f32 %v4762, 0.0024307945
        %v4766 = vmul.f32 %v4760, -0.039150774
        %v4767 = vmul.f32 %v4761, -0.039150774
        %v4768 = vmul.f32 %v4762, -0.039150774
        %4772 = vrot.lane.b32.xlu0 %v4766, 127
        %v4773 = vpop.permute.xlu0 %4772
        %4774 = vrot.lane.b32.xlu0 %v4767, 127
        %v4775 = vpop.permute.xlu0 %4774
        %4776 = vrot.lane.b32.xlu0 %v4768, 127
        %v4777 = vpop.permute.xlu0 %4776
        %v4778 = vsel %vm219, %v4773, %v4775
        %v4779 = vsel %vm219, %v4775, %v4777
        %v4783 = vadd.f32 %v4763, %v4778
        %v4784 = vadd.f32 %v4764, %v4779
        %v4785 = vadd.f32 %v4765, %v4777
        %v4786 = vmul.f32 %v4760, 0.28671005
        %v4787 = vmul.f32 %v4761, 0.28671005
        %v4788 = vmul.f32 %v4762, 0.28671005
        %4792 = vrot.lane.b32.xlu0 %v4786, 126
        %v4793 = vpop.permute.xlu0 %4792
        %4794 = vrot.lane.b32.xlu0 %v4787, 126
        %v4795 = vpop.permute.xlu0 %4794
        %4796 = vrot.lane.b32.xlu0 %v4788, 126
        %v4797 = vpop.permute.xlu0 %4796
        %v4798 = vsel %vm240, %v4793, %v4795
        %v4799 = vsel %vm240, %v4795, %v4797
        %v4803 = vadd.f32 %v4783, %v4798
        %v4804 = vadd.f32 %v4784, %v4799
        %v4805 = vadd.f32 %v4785, %v4797
        %4806 = vrot.lane.b32.xlu0 %v4787, 125
        %v4807 = vpop.permute.xlu0 %4806
        %4808 = vrot.lane.b32.xlu0 %v4788, 125
        %v4809 = vpop.permute.xlu0 %4808
        %v4810 = vsel %vm257, %v4807, %v4809
        %v4814 = vadd.f32 %v4803, %v4807
        %v4815 = vadd.f32 %v4804, %v4810
        %v4816 = vadd.f32 %v4805, %v4809
        %v4817 = vld [vmem:[#allocation2 + $0x8] sm:$0xff]
        %v4818 = vld [vmem:[#allocation2 + $0x10] sm:$0xff]
        %v4819 = vld [vmem:[#allocation2 + $0x18] sm:$0xff]
        %v4820 = vmul.f32 %v4817, -0.039150774
        %v4821 = vmul.f32 %v4818, -0.039150774
        %v4822 = vmul.f32 %v4819, -0.039150774
        %4826 = vrot.lane.b32.xlu0 %v4820, 124
        %v4827 = vpop.permute.xlu0 %4826
        %4828 = vrot.lane.b32.xlu0 %v4821, 124
        %v4829 = vpop.permute.xlu0 %4828
        %4830 = vrot.lane.b32.xlu0 %v4822, 124
        %v4831 = vpop.permute.xlu0 %4830
        %v4832 = vsel %vm280, %v4827, %v4829
        %v4833 = vsel %vm280, %v4829, %v4831
        %v4837 = vadd.f32 %v4814, %v4827
        %v4838 = vadd.f32 %v4815, %v4832
        %v4839 = vadd.f32 %v4816, %v4833
        %v4840 = vmul.f32 %v4817, 0.0024307945
        %v4841 = vmul.f32 %v4818, 0.0024307945
        %v4842 = vmul.f32 %v4819, 0.0024307945
        %4846 = vrot.lane.b32.xlu0 %v4840, 123
        %v4847 = vpop.permute.xlu0 %4846
        %4848 = vrot.lane.b32.xlu0 %v4841, 123
        %v4849 = vpop.permute.xlu0 %4848
        %4850 = vrot.lane.b32.xlu0 %v4842, 123
        %v4851 = vpop.permute.xlu0 %4850
        %v4852 = vsel %vm301, %v4847, %v4849
        %v4853 = vsel %vm301, %v4849, %v4851
        %v4857 = vadd.f32 %v4837, %v4847
        %v4858 = vadd.f32 %v4838, %v4852
        %v4859 = vadd.f32 %v4839, %v4853
        %v4860 = vadd.f32 %v4742, %v4857
        %v4861 = vadd.f32 %v4743, %v4858
        %v4862 = vadd.f32 %v4744, %v4859
        %4866 = vrot.lane.b32.xlu0 %v4860, 3
        %v4867 = vpop.permute.xlu0 %4866
        %4868 = vrot.lane.b32.xlu0 %v4861, 3
        %v4869 = vpop.permute.xlu0 %4868
        %4870 = vrot.lane.b32.xlu0 %v4862, 3
        %v4871 = vpop.permute.xlu0 %4870
        %v4872 = vsel %vm599, %v4867, %v4869
        %v4873 = vsel %vm599, %v4869, %v4871
        %4876 = vst [vmem:[#allocation2 + $0x8] sm:$0xff] %v4872
        %4877 = vst [vmem:[#allocation2 + $0x10] sm:$0xff] %v4873
        %v4878 = vld [vmem:[#allocation2] sm:$0xff]
        %v4879 = vld [vmem:[#allocation2 + $0x8] sm:$0xff]
        %v4880 = vld [vmem:[#allocation2 + $0x10] sm:$0xff]
        %v4881 = vld [vmem:[#allocation2 + $0x8] sm:$0xff]
        %v4882 = vld [vmem:[#allocation2 + $0x10] sm:$0xff]
        %v4883 = vld [vmem:[#allocation2 + $0x18] sm:$0xff]
        %4886 = vrot.lane.b32.xlu0 %v4879, 127
        %v4887 = vpop.permute.xlu0 %4886
        %4888 = vrot.lane.b32.xlu0 %v4880, 127
        %v4889 = vpop.permute.xlu0 %4888
        %v4890 = vsel %vm219, %v4887, %v4889
        %4894 = vrot.lane.b32.xlu0 %v4881, 126
        %v4895 = vpop.permute.xlu0 %4894
        %4896 = vrot.lane.b32.xlu0 %v4882, 126
        %v4897 = vpop.permute.xlu0 %4896
        %4898 = vrot.lane.b32.xlu0 %v4883, 126
        %v4899 = vpop.permute.xlu0 %4898
        %v4900 = vsel %vm240, %v4895, %v4897
        %v4901 = vsel %vm240, %v4897, %v4899
        %4903 = vset.pattern.permute.xlu0 0
        %4904 = vperm.xlu0 %4903, %v3409
        %v4905 = vpop.permute.xlu0 %4904
        %4908 = vrot.lane.b32.xlu0 %v4878, 1
        %v4909 = vpop.permute.xlu0 %4908
        %4910 = vrot.lane.b32.xlu0 %v4879, 1
        %v4911 = vpop.permute.xlu0 %4910
        %4912 = vrot.lane.b32.xlu0 %v4880, 1
        %v4913 = vpop.permute.xlu0 %4912
        %4914 = vrot.lane.b32.xlu0 %v4887, 1
        %v4915 = vpop.permute.xlu0 %4914
        %4916 = vrot.lane.b32.xlu0 %v4890, 1
        %v4917 = vpop.permute.xlu0 %4916
        %4918 = vrot.lane.b32.xlu0 %v4889, 1
        %v4919 = vpop.permute.xlu0 %4918
        %4920 = vrot.lane.b32.xlu0 %v4895, 1
        %v4921 = vpop.permute.xlu0 %4920
        %4922 = vrot.lane.b32.xlu0 %v4900, 1
        %v4923 = vpop.permute.xlu0 %4922
        %4924 = vrot.lane.b32.xlu0 %v4901, 1
        %v4925 = vpop.permute.xlu0 %4924
        %v4926 = vsel %vm912, %v4909, %v4911
        %v4927 = vsel %vm912, %v4911, %v4913
        %v4928 = vsel %vm912, %v4915, %v4917
        %v4929 = vsel %vm912, %v4917, %v4919
        %v4930 = vsel %vm912, %v4921, %v4923
        %v4931 = vsel %vm912, %v4923, %v4925
        %v4939 = vsel %vm925, %v3405, 0
        %4941 = vmatprep.subr.mxu0 %v4927
        %4942 = vmatpush1.msra.mxu0 %v4926
        %4943 = vmatprep.subr.mxu0 %v4929
        %4944 = vmatpush1.msra.mxu0 %v4928
        %4945 = vmatprep.subr.mxu0 %v4931
        %4946 = vmatpush1.msra.mxu0 %v4930
        %4947 = vmatprep.subr.mxu0 0.0
        %4948 = vmatpush1.msra.mxu0 0.0
        %4949 = vmatprep.subr.mxu0 0.0
        %4950 = vmatpush1.msra.mxu0 0.0
        %4951 = vmatprep.subr.mxu0 0.0
        %4952 = vmatpush1.msra.mxu0 0.0
        %4953 = vmatprep.subr.mxu0 0.0
        %4954 = vmatpush1.msra.mxu0 0.0
        %4955 = vmatprep.subr.mxu0 0.0
        %4956 = vmatpush1.msra.mxu0 0.0
        %4957 = vmatprep.subr.mxu0 0.0
        %4958 = vmatpush1.msra.mxu0 0.0
        %4959 = vmatprep.subr.mxu0 0.0
        %4960 = vmatpush1.msra.mxu0 0.0
        %4961 = vmatprep.subr.mxu0 0.0
        %4962 = vmatpush1.msra.mxu0 0.0
        %4963 = vmatprep.subr.mxu0 0.0
        %4964 = vmatpush1.msra.mxu0 0.0
        %4965 = vmatprep.subr.mxu0 0.0
        %4966 = vmatpush1.msra.mxu0 0.0
        %4967 = vmatprep.subr.mxu0 0.0
        %4968 = vmatpush1.msra.mxu0 0.0
        %4969 = vmatprep.subr.mxu0 0.0
        %4970 = vmatpush1.msra.mxu0 0.0
        %4971 = vmatprep.subr.mxu0 0.0
        %4972 = vmatpush1.msra.mxu0 0.0
        %4973 = vmatprep.subr.mxu0 0.0
        %4974 = vmatpush1.msra.mxu0 0.0
        %4975 = vmatprep.subr.mxu0 0.0
        %4976 = vmatpush1.msra.mxu0 0.0
        %4977 = vmatprep.subr.mxu0 0.0
        %4978 = vmatpush1.msra.mxu0 0.0
        %4979 = vmatprep.subr.mxu0 0.0
        %4980 = vmatpush1.msra.mxu0 0.0
        %4981 = vmatprep.subr.mxu0 0.0
        %4982 = vmatpush1.msra.mxu0 0.0
        %4983 = vmatprep.subr.mxu0 0.0
        %4984 = vmatpush1.msra.mxu0 0.0
        %4985 = vmatprep.subr.mxu0 0.0
        %4986 = vmatpush1.msra.mxu0 0.0
        %4987 = vmatprep.subr.mxu0 0.0
        %4988 = vmatpush1.msra.mxu0 0.0
        %4989 = vmatprep.subr.mxu0 0.0
        %4990 = vmatpush1.msra.mxu0 0.0
        %4991 = vmatprep.subr.mxu0 0.0
        %4992 = vmatpush1.msra.mxu0 0.0
        %4993 = vmatprep.subr.mxu0 0.0
        %4994 = vmatpush1.msra.mxu0 0.0
        %4995 = vmatprep.subr.mxu0 0.0
        %4996 = vmatpush1.msra.mxu0 0.0
        %4997 = vmatprep.subr.mxu0 0.0
        %4998 = vmatpush1.msra.mxu0 0.0
        %4999 = vmatprep.subr.mxu0 0.0
        %5000 = vmatpush1.msra.mxu0 0.0
        %5001 = vmatprep.subr.mxu0 0.0
        %5002 = vmatpush1.msra.mxu0 0.0
        %5003 = vmatprep.subr.mxu0 0.0
        %5004 = vmatpush1.msra.mxu0 0.0
        %5005 = vmatprep.mubr.f32.mxu0 0.0
        %5006 = vmatmul.mubr.f32.gmra.mrb[0].mxu0 %v4939
        %v5007 = vpop.f32.mrb[0].mxu0
        %v5008 = vadd.f32 %v4905, %v5007
        %v5009 = vpop.f32.mrb[0].mxu0
        %v5010 = vadd.f32 %v4905, %v5009
        %5011 = vdwg.mxu0
        %v5012 = vadd.f32 %v3400, %v5008
        %v5013 = vadd.f32 %v3401, %v5010
        %5014 = vst [vmem:[%s163] sm:$0xff] %v5012
        %5015 = vst [vmem:[%s163 + $0x8] sm:$0xff] %v5013
        %s5016 = sand.u32 %s93, 1
        %s5017 = scalar_lea.sflag [#allocation4], %s5016
        %s5018 = sand.u32 %s93, 1
        %s5019 = smul.addr %s5018, 16
        %s5020 = scalar_lea.vmem [#allocation3], %s5019
        // Predicated region
        $region33: #{tpu_custom_call.1} parent=31 // pred_check
          %p5021 = pneg %p103
        $region34: #{tpu_custom_call.1} parent=31 // pred_check_branch
          %5023 = sbr.rel (%p5021) target = $region36
        $region35: #{tpu_custom_call.1} parent=31 // pred_region
          %s5025 = ssub.s32 256, 256
          %5026 = vsyncadd %s5017, %s5025
          %s5027 = smul.addr %s17, 2
          %s5028 = smul.addr %s5027, 128
          %s5029 = scalar_lea.hbm %s3, %s5028
          %s5031 = sshll.u32 %s5020, 4
          %s5032 = int_to_ptr.vmem [resolvable:$true] %s5031
          %5034 = dma.vmem_to_hbm [thread:$0]  %s5032, 256, %s5029, %s5017
        $region36: #{tpu_custom_call.1} parent=31 // pred_fallthru
          _
      $region32: #{tpu_custom_call.1} parent=5 // pred_fallthru
        _
      %p5035 = scmp.le.s32.totalorder 2, %s12
      // Predicated region
      $region37: #{tpu_custom_call.1} parent=5 // pred_check
        %p5036 = pneg %p5035
      $region38: #{tpu_custom_call.1} parent=5 // pred_check_branch
        %5038 = sbr.rel (%p5036) target = $region40
      $region39: #{tpu_custom_call.1} parent=5 // pred_region
        %s5039 = ssub.s32 %s12, 2
        // Predicated region
        $region41: #{tpu_custom_call.1} parent=39 // pred_check
          %p5040 = pneg %p109
        $region42: #{tpu_custom_call.1} parent=39 // pred_check_branch
          %5042 = sbr.rel (%p5040) target = $region44
        $region43: #{tpu_custom_call.1} parent=39 // pred_region
          %s5043 = sand.u32 %s94, 1
          %s5044 = scalar_lea.sflag [#allocation4], %s5043
          %s5045 = sand.u32 %s94, 1
          %s5046 = smul.addr %s5045, 16
          %s5047 = scalar_lea.vmem [#allocation3], %s5046
          %5048 = dma.done %s5044, 256
        $region44: #{tpu_custom_call.1} parent=39 // pred_fallthru
          _
      $region40: #{tpu_custom_call.1} parent=5 // pred_fallthru
        _
    $region6: #{tpu_custom_call.1} parent=1 // loop_footer
      %s16 = sadd.s32 1, %s12
    $region7: #{tpu_custom_call.1} parent=1 // loop_footer_branch
      %11 = sbr.rel target = $region3
    $region8: #{tpu_custom_call.1} parent=1 // loop_exit
      _
    %5049 = vsyncpa [#allocation4], 1
    %s5050 = scalar_lea.sflag [#allocation4], 1
    %5051 = vsyncpa %s5050, 1

</llo_original>
